<compile_context>
chip_gen: v6e
topology: v6e:2x2x1
jax: 0.10.0
libtpu: 0.0.40
codegen_flags: <defaults>
</compile_context>

<pallas_src>
import functools

import jax
import jax.numpy as jnp
from jax.experimental import pallas as pl
from jax.experimental.pallas import tpu as pltpu


# ---------------------------------------------------------------------------
# Fused ResBlock kernel (one grid step == one image)
# ---------------------------------------------------------------------------
def _resblock_kernel(pe_ref, w1_ref, b1_ref, w2_ref, b2_ref, mask_ref,
                     out_ref, qb_ref, *, K, Wp, L, d, neg_slope):
    """pe_ref:   (1, Ltot, C) f32  flattened zero-padded input (+2d zero tail)
       w*_ref:   (K*K, C, C) bf16  per-tap GEMM weights (pre-laid-out)
       b*_ref:   (1, C) f32        biases
       mask_ref: (L, 1) f32        1.0 on valid output positions, 0.0 on wrap garbage
       out_ref:  (1, L, C) f32     flattened output (garbage rows sliced off outside)
       qb_ref:   (Ltot, C) bf16    VMEM staging buffer for the padded conv1 activation
    """
    C = out_ref.shape[-1]
    Ltot = qb_ref.shape[0]

    def act(v):
        if neg_slope == 0.0:
            return jnp.maximum(v, 0.0)
        return jnp.where(v >= 0.0, v, neg_slope * v)

    # Single bf16 cast of the input tile; identity path below stays f32.
    xb = pe_ref[0].astype(jnp.bfloat16)                       # (Ltot, C)

    # ---- conv1: implicit GEMM, K*K shifted slices, f32 accumulation --------
    acc1 = jnp.zeros((L, C), jnp.float32)
    for kh in range(K):
        for kw in range(K):
            off = kh * Wp + kw
            acc1 = acc1 + jnp.dot(xb[off:off + L, :], w1_ref[kh * K + kw],
                                  preferred_element_type=jnp.float32)
    h = act(acc1 + b1_ref[...])                               # bias + LeakyReLU (f32)
    h = h * mask_ref[...]                                     # zero wrap garbage

    # Stage zero-padded conv1 activation in VMEM (shifted by d rows), bf16.
    if d > 0:
        qb_ref[0:d, :] = jnp.zeros((d, C), jnp.bfloat16)
        qb_ref[d + L:Ltot, :] = jnp.zeros((Ltot - L - d, C), jnp.bfloat16)
    qb_ref[d:d + L, :] = h.astype(jnp.bfloat16)

    # ---- conv2: implicit GEMM over the staged activation --------------------
    qv = qb_ref[...]                                          # (Ltot, C) bf16
    acc2 = jnp.zeros((L, C), jnp.float32)
    for kh in range(K):
        for kw in range(K):
            off = kh * Wp + kw
            acc2 = acc2 + jnp.dot(qv[off:off + L, :], w2_ref[kh * K + kw],
                                  preferred_element_type=jnp.float32)

    # bias + fused residual add (f32 identity straight from the input ref) + act
    y = acc2 + b2_ref[...] + pe_ref[0, d:d + L, :]
    out_ref[0] = act(y).astype(out_ref.dtype)


# ---------------------------------------------------------------------------
# Parameter pre-layout (done ONCE, not per forward call)
# ---------------------------------------------------------------------------
def prepare_params(w1, b1, w2, b2):
    """PyTorch Conv2d weights (Cout, Cin, K, K) -> per-tap GEMM layout
    (K*K, Cin, Cout) in bf16; biases as (1, C) f32."""
    def taps(w):
        Cout, Cin, K, _ = w.shape
        return (jnp.transpose(w, (2, 3, 1, 0))
                .reshape(K * K, Cin, Cout)
                .astype(jnp.bfloat16))
    return {
        "w1": taps(w1), "b1": b1.reshape(1, -1).astype(jnp.float32),
        "w2": taps(w2), "b2": b2.reshape(1, -1).astype(jnp.float32),
    }


# ---------------------------------------------------------------------------
# ResBlock forward
# ---------------------------------------------------------------------------
@functools.partial(jax.jit, static_argnames=("neg_slope",))
def resblock_forward(params, x_nchw, neg_slope=0.1):
    w1, b1, w2, b2 = params["w1"], params["b1"], params["w2"], params["b2"]
    KK, Cin, Cout = w1.shape
    assert Cin == Cout
    C = Cin
    K = int(round(KK ** 0.5))
    p = K // 2

    N, Cx, H, W = x_nchw.shape
    assert Cx == C
    Hp, Wp = H + 2 * p, W + 2 * p
    L = Hp * Wp                     # flat size of the padded image
    d = p * Wp + p                  # flat shift of the (p, p) corner
    Ltot = L + 2 * d                # tap reads never go out of bounds

    # NCHW -> NHWC, zero-pad spatially, flatten rows, append a zero tail.
    x_nhwc = jnp.transpose(x_nchw, (0, 2, 3, 1)).astype(jnp.float32)
    xp = jnp.pad(x_nhwc, ((0, 0), (p, p), (p, p), (0, 0)))
    pe = xp.reshape(N, L, C)
    if d > 0:
        pe = jnp.pad(pe, ((0, 0), (0, 2 * d), (0, 0)))        # (N, Ltot, C)

    # Validity mask over flat padded coordinates (precomputed; no in-kernel div/mod).
    ii = jnp.arange(Hp)[:, None]
    jj = jnp.arange(Wp)[None, :]
    mask = ((ii < H) & (jj < W)).astype(jnp.float32).reshape(L, 1)

    kernel = functools.partial(_resblock_kernel, K=K, Wp=Wp, L=L, d=d,
                               neg_slope=neg_slope)

    out_flat = pl.pallas_call(
        kernel,
        out_shape=jax.ShapeDtypeStruct((N, L, C), jnp.float32),
        grid=(N,),
        in_specs=[
            pl.BlockSpec((1, Ltot, C), lambda n: (n, 0, 0)),   # padded input
            pl.BlockSpec((KK, C, C), lambda n: (0, 0, 0)),     # w1 taps (bf16)
            pl.BlockSpec((1, C), lambda n: (0, 0)),            # b1
            pl.BlockSpec((KK, C, C), lambda n: (0, 0, 0)),     # w2 taps (bf16)
            pl.BlockSpec((1, C), lambda n: (0, 0)),            # b2
            pl.BlockSpec((L, 1), lambda n: (0, 0)),            # validity mask
        ],
        out_specs=pl.BlockSpec((1, L, C), lambda n: (n, 0, 0)),
        scratch_shapes=[pltpu.VMEM((Ltot, C), jnp.bfloat16)],  # staged conv1 act
        compiler_params=pltpu.CompilerParams(
            dimension_semantics=("parallel",)),
    )(pe, w1, b1, w2, b2, mask)

    out = out_flat.reshape(N, Hp, Wp, C)[:, :H, :W, :]         # drop wrap garbage
    return jnp.transpose(out, (0, 3, 1, 2))                    # back to NCHW


# ---------------------------------------------------------------------------
# Pure-JAX reference (PyTorch semantics) for a correctness check
# ---------------------------------------------------------------------------
def resblock_reference(x_nchw, w1, b1, w2, b2, neg_slope=0.1):
    p = w1.shape[-1] // 2

    def act(v):
        return jnp.where(v >= 0, v, neg_slope * v)

    def conv(x, w, b):
        y = jax.lax.conv_general_dilated(
            x, w, window_strides=(1, 1), padding=((p, p), (p, p)),
            dimension_numbers=("NCHW", "OIHW", "NCHW"),
            precision=jax.lax.Precision.HIGHEST)
        return y + b[None, :, None, None]

    h = act(conv(x_nchw, w1, b1))
    y = conv(h, w2, b2) + x_nchw
    return act(y)


if __name__ == "__main__":
    key = jax.random.PRNGKey(0)
    k1, k2, k3, k4, kx = jax.random.split(key, 5)

    channels, conv_size = 32, 3            # ResBlock(channels=32, conv_size=3, 'leakyrelu')
    N, H, W = 2, 16, 16
    fan_in = channels * conv_size * conv_size

    w1 = jax.random.normal(k1, (channels, channels, conv_size, conv_size),
                           jnp.float32) * (2.0 / fan_in) ** 0.5
    b1 = jax.random.normal(k2, (channels,), jnp.float32) * 0.01
    w2 = jax.random.normal(k3, (channels, channels, conv_size, conv_size),
                           jnp.float32) * (2.0 / fan_in) ** 0.5
    b2 = jax.random.normal(k4, (channels,), jnp.float32) * 0.01
    x = jax.random.normal(kx, (N, channels, H, W), jnp.float32)   # NCHW

    params = prepare_params(w1, b1, w2, b2)          # one-time weight re-layout
    out = resblock_forward(params, x, neg_slope=0.1)
    out = jax.block_until_ready(out)

    assert out.shape == (N, channels, H, W), out.shape
    assert bool(jnp.all(jnp.isfinite(out)))

    ref = resblock_reference(x, w1, b1, w2, b2, 0.1)
    max_err = float(jnp.max(jnp.abs(out - ref)))
    assert max_err < 1e-1, f"max abs error vs reference: {max_err}"

    print("KERNEL_OK")
</pallas_src>

<mosaic_0001>
module attributes {stable_mosaic.version = 11 : i64} {
  func.func @_resblock_kernel(%arg0: i32, %arg1: memref<1x362x32xf32, #tpu.memory_space<vmem>>, %arg2: memref<9x32x32xbf16, #tpu.memory_space<vmem>>, %arg3: memref<1x32xf32, #tpu.memory_space<vmem>>, %arg4: memref<9x32x32xbf16, #tpu.memory_space<vmem>>, %arg5: memref<1x32xf32, #tpu.memory_space<vmem>>, %arg6: memref<324x1xf32, #tpu.memory_space<vmem>>, %arg7: memref<1x324x32xf32, #tpu.memory_space<vmem>>, %arg8: memref<362x32xbf16, #tpu.memory_space<vmem>>) attributes {dimension_semantics = [#tpu.dimension_semantics<parallel>], iteration_bounds = array<i64: 2>, scalar_prefetch = 0 : i64, scratch_operands = 1 : i64, tpu.core_type = #tpu.core_type<tc>, window_params = [{transform_indices = @transform_0, window_bounds = array<i64: 1, 362, 32>}, {pipeline_mode = #tpu.pipeline_mode<synchronous>, transform_indices = @transform_1, window_bounds = array<i64: 9, 32, 32>}, {pipeline_mode = #tpu.pipeline_mode<synchronous>, transform_indices = @transform_2, window_bounds = array<i64: 1, 32>}, {pipeline_mode = #tpu.pipeline_mode<synchronous>, transform_indices = @transform_3, window_bounds = array<i64: 9, 32, 32>}, {pipeline_mode = #tpu.pipeline_mode<synchronous>, transform_indices = @transform_4, window_bounds = array<i64: 1, 32>}, {pipeline_mode = #tpu.pipeline_mode<synchronous>, transform_indices = @transform_5, window_bounds = array<i64: 324, 1>}, {transform_indices = @transform_6, window_bounds = array<i64: 1, 324, 32>}]} {
    %c0 = arith.constant 0 : index
    %c0_0 = arith.constant 0 : index
    %c0_1 = arith.constant 0 : index
    %0 = vector.load %arg1[%c0, %c0_0, %c0_1] : memref<1x362x32xf32, #tpu.memory_space<vmem>>, vector<1x362x32xf32>
    %1 = vector.shape_cast %0 : vector<1x362x32xf32> to vector<362x32xf32>
    %2 = arith.truncf %1 : vector<362x32xf32> to vector<362x32xbf16>
    %cst = arith.constant 0.000000e+00 : f32
    %3 = vector.broadcast %cst : f32 to vector<324x32xf32>
    %4 = vector.extract_strided_slice %2 {offsets = [0, 0], sizes = [324, 32], strides = [1, 1]} : vector<362x32xbf16> to vector<324x32xbf16>
    %c0_2 = arith.constant 0 : index
    %c0_3 = arith.constant 0 : index
    %c0_4 = arith.constant 0 : index
    %5 = vector.load %arg2[%c0_2, %c0_3, %c0_4] : memref<9x32x32xbf16, #tpu.memory_space<vmem>>, vector<1x32x32xbf16>
    %6 = vector.shape_cast %5 : vector<1x32x32xbf16> to vector<32x32xbf16>
    %cst_5 = arith.constant dense<0.000000e+00> : vector<324x32xf32>
    %7 = tpu.matmul %4, %6, %cst_5 {dimension_numbers = #tpu.dot_dimension_numbers<[1], [0], [0], [1], [0, 0, 1, 1], [], []>} : vector<324x32xbf16>, vector<32x32xbf16>, vector<324x32xf32> -> vector<324x32xf32>
    %8 = arith.addf %3, %7 : vector<324x32xf32>
    %9 = vector.extract_strided_slice %2 {offsets = [1, 0], sizes = [324, 32], strides = [1, 1]} : vector<362x32xbf16> to vector<324x32xbf16>
    %c1 = arith.constant 1 : index
    %c0_6 = arith.constant 0 : index
    %c0_7 = arith.constant 0 : index
    %10 = vector.load %arg2[%c1, %c0_6, %c0_7] : memref<9x32x32xbf16, #tpu.memory_space<vmem>>, vector<1x32x32xbf16>
    %11 = vector.shape_cast %10 : vector<1x32x32xbf16> to vector<32x32xbf16>
    %cst_8 = arith.constant dense<0.000000e+00> : vector<324x32xf32>
    %12 = tpu.matmul %9, %11, %cst_8 {dimension_numbers = #tpu.dot_dimension_numbers<[1], [0], [0], [1], [0, 0, 1, 1], [], []>} : vector<324x32xbf16>, vector<32x32xbf16>, vector<324x32xf32> -> vector<324x32xf32>
    %13 = arith.addf %8, %12 : vector<324x32xf32>
    %14 = vector.extract_strided_slice %2 {offsets = [2, 0], sizes = [324, 32], strides = [1, 1]} : vector<362x32xbf16> to vector<324x32xbf16>
    %c2 = arith.constant 2 : index
    %c0_9 = arith.constant 0 : index
    %c0_10 = arith.constant 0 : index
    %15 = vector.load %arg2[%c2, %c0_9, %c0_10] : memref<9x32x32xbf16, #tpu.memory_space<vmem>>, vector<1x32x32xbf16>
    %16 = vector.shape_cast %15 : vector<1x32x32xbf16> to vector<32x32xbf16>
    %cst_11 = arith.constant dense<0.000000e+00> : vector<324x32xf32>
    %17 = tpu.matmul %14, %16, %cst_11 {dimension_numbers = #tpu.dot_dimension_numbers<[1], [0], [0], [1], [0, 0, 1, 1], [], []>} : vector<324x32xbf16>, vector<32x32xbf16>, vector<324x32xf32> -> vector<324x32xf32>
    %18 = arith.addf %13, %17 : vector<324x32xf32>
    %19 = vector.extract_strided_slice %2 {offsets = [18, 0], sizes = [324, 32], strides = [1, 1]} : vector<362x32xbf16> to vector<324x32xbf16>
    %c3 = arith.constant 3 : index
    %c0_12 = arith.constant 0 : index
    %c0_13 = arith.constant 0 : index
    %20 = vector.load %arg2[%c3, %c0_12, %c0_13] : memref<9x32x32xbf16, #tpu.memory_space<vmem>>, vector<1x32x32xbf16>
    %21 = vector.shape_cast %20 : vector<1x32x32xbf16> to vector<32x32xbf16>
    %cst_14 = arith.constant dense<0.000000e+00> : vector<324x32xf32>
    %22 = tpu.matmul %19, %21, %cst_14 {dimension_numbers = #tpu.dot_dimension_numbers<[1], [0], [0], [1], [0, 0, 1, 1], [], []>} : vector<324x32xbf16>, vector<32x32xbf16>, vector<324x32xf32> -> vector<324x32xf32>
    %23 = arith.addf %18, %22 : vector<324x32xf32>
    %24 = vector.extract_strided_slice %2 {offsets = [19, 0], sizes = [324, 32], strides = [1, 1]} : vector<362x32xbf16> to vector<324x32xbf16>
    %c4 = arith.constant 4 : index
    %c0_15 = arith.constant 0 : index
    %c0_16 = arith.constant 0 : index
    %25 = vector.load %arg2[%c4, %c0_15, %c0_16] : memref<9x32x32xbf16, #tpu.memory_space<vmem>>, vector<1x32x32xbf16>
    %26 = vector.shape_cast %25 : vector<1x32x32xbf16> to vector<32x32xbf16>
    %cst_17 = arith.constant dense<0.000000e+00> : vector<324x32xf32>
    %27 = tpu.matmul %24, %26, %cst_17 {dimension_numbers = #tpu.dot_dimension_numbers<[1], [0], [0], [1], [0, 0, 1, 1], [], []>} : vector<324x32xbf16>, vector<32x32xbf16>, vector<324x32xf32> -> vector<324x32xf32>
    %28 = arith.addf %23, %27 : vector<324x32xf32>
    %29 = vector.extract_strided_slice %2 {offsets = [20, 0], sizes = [324, 32], strides = [1, 1]} : vector<362x32xbf16> to vector<324x32xbf16>
    %c5 = arith.constant 5 : index
    %c0_18 = arith.constant 0 : index
    %c0_19 = arith.constant 0 : index
    %30 = vector.load %arg2[%c5, %c0_18, %c0_19] : memref<9x32x32xbf16, #tpu.memory_space<vmem>>, vector<1x32x32xbf16>
    %31 = vector.shape_cast %30 : vector<1x32x32xbf16> to vector<32x32xbf16>
    %cst_20 = arith.constant dense<0.000000e+00> : vector<324x32xf32>
    %32 = tpu.matmul %29, %31, %cst_20 {dimension_numbers = #tpu.dot_dimension_numbers<[1], [0], [0], [1], [0, 0, 1, 1], [], []>} : vector<324x32xbf16>, vector<32x32xbf16>, vector<324x32xf32> -> vector<324x32xf32>
    %33 = arith.addf %28, %32 : vector<324x32xf32>
    %34 = vector.extract_strided_slice %2 {offsets = [36, 0], sizes = [324, 32], strides = [1, 1]} : vector<362x32xbf16> to vector<324x32xbf16>
    %c6 = arith.constant 6 : index
    %c0_21 = arith.constant 0 : index
    %c0_22 = arith.constant 0 : index
    %35 = vector.load %arg2[%c6, %c0_21, %c0_22] : memref<9x32x32xbf16, #tpu.memory_space<vmem>>, vector<1x32x32xbf16>
    %36 = vector.shape_cast %35 : vector<1x32x32xbf16> to vector<32x32xbf16>
    %cst_23 = arith.constant dense<0.000000e+00> : vector<324x32xf32>
    %37 = tpu.matmul %34, %36, %cst_23 {dimension_numbers = #tpu.dot_dimension_numbers<[1], [0], [0], [1], [0, 0, 1, 1], [], []>} : vector<324x32xbf16>, vector<32x32xbf16>, vector<324x32xf32> -> vector<324x32xf32>
    %38 = arith.addf %33, %37 : vector<324x32xf32>
    %39 = vector.extract_strided_slice %2 {offsets = [37, 0], sizes = [324, 32], strides = [1, 1]} : vector<362x32xbf16> to vector<324x32xbf16>
    %c7 = arith.constant 7 : index
    %c0_24 = arith.constant 0 : index
    %c0_25 = arith.constant 0 : index
    %40 = vector.load %arg2[%c7, %c0_24, %c0_25] : memref<9x32x32xbf16, #tpu.memory_space<vmem>>, vector<1x32x32xbf16>
    %41 = vector.shape_cast %40 : vector<1x32x32xbf16> to vector<32x32xbf16>
    %cst_26 = arith.constant dense<0.000000e+00> : vector<324x32xf32>
    %42 = tpu.matmul %39, %41, %cst_26 {dimension_numbers = #tpu.dot_dimension_numbers<[1], [0], [0], [1], [0, 0, 1, 1], [], []>} : vector<324x32xbf16>, vector<32x32xbf16>, vector<324x32xf32> -> vector<324x32xf32>
    %43 = arith.addf %38, %42 : vector<324x32xf32>
    %44 = vector.extract_strided_slice %2 {offsets = [38, 0], sizes = [324, 32], strides = [1, 1]} : vector<362x32xbf16> to vector<324x32xbf16>
    %c8 = arith.constant 8 : index
    %c0_27 = arith.constant 0 : index
    %c0_28 = arith.constant 0 : index
    %45 = vector.load %arg2[%c8, %c0_27, %c0_28] : memref<9x32x32xbf16, #tpu.memory_space<vmem>>, vector<1x32x32xbf16>
    %46 = vector.shape_cast %45 : vector<1x32x32xbf16> to vector<32x32xbf16>
    %cst_29 = arith.constant dense<0.000000e+00> : vector<324x32xf32>
    %47 = tpu.matmul %44, %46, %cst_29 {dimension_numbers = #tpu.dot_dimension_numbers<[1], [0], [0], [1], [0, 0, 1, 1], [], []>} : vector<324x32xbf16>, vector<32x32xbf16>, vector<324x32xf32> -> vector<324x32xf32>
    %48 = arith.addf %43, %47 : vector<324x32xf32>
    %c0_30 = arith.constant 0 : index
    %c0_31 = arith.constant 0 : index
    %49 = vector.load %arg3[%c0_30, %c0_31] : memref<1x32xf32, #tpu.memory_space<vmem>>, vector<1x32xf32>
    %50 = vector.broadcast %49 : vector<1x32xf32> to vector<324x32xf32>
    %51 = arith.addf %48, %50 : vector<324x32xf32>
    %cst_32 = arith.constant 0.000000e+00 : f32
    %52 = vector.broadcast %cst_32 : f32 to vector<324x32xf32>
    %53 = arith.cmpf oge, %51, %52 : vector<324x32xf32>
    %cst_33 = arith.constant 1.000000e-01 : f32
    %54 = vector.broadcast %cst_33 : f32 to vector<324x32xf32>
    %55 = arith.mulf %54, %51 : vector<324x32xf32>
    %56 = arith.select %53, %51, %55 : vector<324x32xi1>, vector<324x32xf32>
    %c0_34 = arith.constant 0 : index
    %c0_35 = arith.constant 0 : index
    %57 = vector.load %arg6[%c0_34, %c0_35] : memref<324x1xf32, #tpu.memory_space<vmem>>, vector<324x1xf32>
    %58 = vector.broadcast %57 : vector<324x1xf32> to vector<324x32xf32>
    %59 = arith.mulf %56, %58 : vector<324x32xf32>
    %cst_36 = arith.constant 0.000000e+00 : bf16
    %60 = vector.broadcast %cst_36 : bf16 to vector<19x32xbf16>
    %c0_37 = arith.constant 0 : index
    %c0_38 = arith.constant 0 : index
    %61 = vector.load %arg8[%c0_37, %c0_38] : memref<362x32xbf16, #tpu.memory_space<vmem>>, vector<19x32xbf16>
    tpu.vector_store %arg8[%c0_37, %c0_38], %60 {strides = array<i32>} : memref<362x32xbf16, #tpu.memory_space<vmem>>, vector<19x32xbf16>,
    %cst_39 = arith.constant 0.000000e+00 : bf16
    %62 = vector.broadcast %cst_39 : bf16 to vector<19x32xbf16>
    %c343 = arith.constant 343 : index
    %c0_40 = arith.constant 0 : index
    %63 = vector.load %arg8[%c343, %c0_40] : memref<362x32xbf16, #tpu.memory_space<vmem>>, vector<19x32xbf16>
    tpu.vector_store %arg8[%c343, %c0_40], %62 {strides = array<i32>} : memref<362x32xbf16, #tpu.memory_space<vmem>>, vector<19x32xbf16>,
    %64 = arith.truncf %59 : vector<324x32xf32> to vector<324x32xbf16>
    %c19 = arith.constant 19 : index
    %c0_41 = arith.constant 0 : index
    %65 = vector.load %arg8[%c19, %c0_41] : memref<362x32xbf16, #tpu.memory_space<vmem>>, vector<324x32xbf16>
    tpu.vector_store %arg8[%c19, %c0_41], %64 {strides = array<i32>} : memref<362x32xbf16, #tpu.memory_space<vmem>>, vector<324x32xbf16>,
    %c0_42 = arith.constant 0 : index
    %c0_43 = arith.constant 0 : index
    %66 = vector.load %arg8[%c0_42, %c0_43] : memref<362x32xbf16, #tpu.memory_space<vmem>>, vector<362x32xbf16>
    %cst_44 = arith.constant 0.000000e+00 : f32
    %67 = vector.broadcast %cst_44 : f32 to vector<324x32xf32>
    %68 = vector.extract_strided_slice %66 {offsets = [0, 0], sizes = [324, 32], strides = [1, 1]} : vector<362x32xbf16> to vector<324x32xbf16>
    %c0_45 = arith.constant 0 : index
    %c0_46 = arith.constant 0 : index
    %c0_47 = arith.constant 0 : index
    %69 = vector.load %arg4[%c0_45, %c0_46, %c0_47] : memref<9x32x32xbf16, #tpu.memory_space<vmem>>, vector<1x32x32xbf16>
    %70 = vector.shape_cast %69 : vector<1x32x32xbf16> to vector<32x32xbf16>
    %cst_48 = arith.constant dense<0.000000e+00> : vector<324x32xf32>
    %71 = tpu.matmul %68, %70, %cst_48 {dimension_numbers = #tpu.dot_dimension_numbers<[1], [0], [0], [1], [0, 0, 1, 1], [], []>} : vector<324x32xbf16>, vector<32x32xbf16>, vector<324x32xf32> -> vector<324x32xf32>
    %72 = arith.addf %67, %71 : vector<324x32xf32>
    %73 = vector.extract_strided_slice %66 {offsets = [1, 0], sizes = [324, 32], strides = [1, 1]} : vector<362x32xbf16> to vector<324x32xbf16>
    %c1_49 = arith.constant 1 : index
    %c0_50 = arith.constant 0 : index
    %c0_51 = arith.constant 0 : index
    %74 = vector.load %arg4[%c1_49, %c0_50, %c0_51] : memref<9x32x32xbf16, #tpu.memory_space<vmem>>, vector<1x32x32xbf16>
    %75 = vector.shape_cast %74 : vector<1x32x32xbf16> to vector<32x32xbf16>
    %cst_52 = arith.constant dense<0.000000e+00> : vector<324x32xf32>
    %76 = tpu.matmul %73, %75, %cst_52 {dimension_numbers = #tpu.dot_dimension_numbers<[1], [0], [0], [1], [0, 0, 1, 1], [], []>} : vector<324x32xbf16>, vector<32x32xbf16>, vector<324x32xf32> -> vector<324x32xf32>
    %77 = arith.addf %72, %76 : vector<324x32xf32>
    %78 = vector.extract_strided_slice %66 {offsets = [2, 0], sizes = [324, 32], strides = [1, 1]} : vector<362x32xbf16> to vector<324x32xbf16>
    %c2_53 = arith.constant 2 : index
    %c0_54 = arith.constant 0 : index
    %c0_55 = arith.constant 0 : index
    %79 = vector.load %arg4[%c2_53, %c0_54, %c0_55] : memref<9x32x32xbf16, #tpu.memory_space<vmem>>, vector<1x32x32xbf16>
    %80 = vector.shape_cast %79 : vector<1x32x32xbf16> to vector<32x32xbf16>
    %cst_56 = arith.constant dense<0.000000e+00> : vector<324x32xf32>
    %81 = tpu.matmul %78, %80, %cst_56 {dimension_numbers = #tpu.dot_dimension_numbers<[1], [0], [0], [1], [0, 0, 1, 1], [], []>} : vector<324x32xbf16>, vector<32x32xbf16>, vector<324x32xf32> -> vector<324x32xf32>
    %82 = arith.addf %77, %81 : vector<324x32xf32>
    %83 = vector.extract_strided_slice %66 {offsets = [18, 0], sizes = [324, 32], strides = [1, 1]} : vector<362x32xbf16> to vector<324x32xbf16>
    %c3_57 = arith.constant 3 : index
    %c0_58 = arith.constant 0 : index
    %c0_59 = arith.constant 0 : index
    %84 = vector.load %arg4[%c3_57, %c0_58, %c0_59] : memref<9x32x32xbf16, #tpu.memory_space<vmem>>, vector<1x32x32xbf16>
    %85 = vector.shape_cast %84 : vector<1x32x32xbf16> to vector<32x32xbf16>
    %cst_60 = arith.constant dense<0.000000e+00> : vector<324x32xf32>
    %86 = tpu.matmul %83, %85, %cst_60 {dimension_numbers = #tpu.dot_dimension_numbers<[1], [0], [0], [1], [0, 0, 1, 1], [], []>} : vector<324x32xbf16>, vector<32x32xbf16>, vector<324x32xf32> -> vector<324x32xf32>
    %87 = arith.addf %82, %86 : vector<324x32xf32>
    %88 = vector.extract_strided_slice %66 {offsets = [19, 0], sizes = [324, 32], strides = [1, 1]} : vector<362x32xbf16> to vector<324x32xbf16>
    %c4_61 = arith.constant 4 : index
    %c0_62 = arith.constant 0 : index
    %c0_63 = arith.constant 0 : index
    %89 = vector.load %arg4[%c4_61, %c0_62, %c0_63] : memref<9x32x32xbf16, #tpu.memory_space<vmem>>, vector<1x32x32xbf16>
    %90 = vector.shape_cast %89 : vector<1x32x32xbf16> to vector<32x32xbf16>
    %cst_64 = arith.constant dense<0.000000e+00> : vector<324x32xf32>
    %91 = tpu.matmul %88, %90, %cst_64 {dimension_numbers = #tpu.dot_dimension_numbers<[1], [0], [0], [1], [0, 0, 1, 1], [], []>} : vector<324x32xbf16>, vector<32x32xbf16>, vector<324x32xf32> -> vector<324x32xf32>
    %92 = arith.addf %87, %91 : vector<324x32xf32>
    %93 = vector.extract_strided_slice %66 {offsets = [20, 0], sizes = [324, 32], strides = [1, 1]} : vector<362x32xbf16> to vector<324x32xbf16>
    %c5_65 = arith.constant 5 : index
    %c0_66 = arith.constant 0 : index
    %c0_67 = arith.constant 0 : index
    %94 = vector.load %arg4[%c5_65, %c0_66, %c0_67] : memref<9x32x32xbf16, #tpu.memory_space<vmem>>, vector<1x32x32xbf16>
    %95 = vector.shape_cast %94 : vector<1x32x32xbf16> to vector<32x32xbf16>
    %cst_68 = arith.constant dense<0.000000e+00> : vector<324x32xf32>
    %96 = tpu.matmul %93, %95, %cst_68 {dimension_numbers = #tpu.dot_dimension_numbers<[1], [0], [0], [1], [0, 0, 1, 1], [], []>} : vector<324x32xbf16>, vector<32x32xbf16>, vector<324x32xf32> -> vector<324x32xf32>
    %97 = arith.addf %92, %96 : vector<324x32xf32>
    %98 = vector.extract_strided_slice %66 {offsets = [36, 0], sizes = [324, 32], strides = [1, 1]} : vector<362x32xbf16> to vector<324x32xbf16>
    %c6_69 = arith.constant 6 : index
    %c0_70 = arith.constant 0 : index
    %c0_71 = arith.constant 0 : index
    %99 = vector.load %arg4[%c6_69, %c0_70, %c0_71] : memref<9x32x32xbf16, #tpu.memory_space<vmem>>, vector<1x32x32xbf16>
    %100 = vector.shape_cast %99 : vector<1x32x32xbf16> to vector<32x32xbf16>
    %cst_72 = arith.constant dense<0.000000e+00> : vector<324x32xf32>
    %101 = tpu.matmul %98, %100, %cst_72 {dimension_numbers = #tpu.dot_dimension_numbers<[1], [0], [0], [1], [0, 0, 1, 1], [], []>} : vector<324x32xbf16>, vector<32x32xbf16>, vector<324x32xf32> -> vector<324x32xf32>
    %102 = arith.addf %97, %101 : vector<324x32xf32>
    %103 = vector.extract_strided_slice %66 {offsets = [37, 0], sizes = [324, 32], strides = [1, 1]} : vector<362x32xbf16> to vector<324x32xbf16>
    %c7_73 = arith.constant 7 : index
    %c0_74 = arith.constant 0 : index
    %c0_75 = arith.constant 0 : index
    %104 = vector.load %arg4[%c7_73, %c0_74, %c0_75] : memref<9x32x32xbf16, #tpu.memory_space<vmem>>, vector<1x32x32xbf16>
    %105 = vector.shape_cast %104 : vector<1x32x32xbf16> to vector<32x32xbf16>
    %cst_76 = arith.constant dense<0.000000e+00> : vector<324x32xf32>
    %106 = tpu.matmul %103, %105, %cst_76 {dimension_numbers = #tpu.dot_dimension_numbers<[1], [0], [0], [1], [0, 0, 1, 1], [], []>} : vector<324x32xbf16>, vector<32x32xbf16>, vector<324x32xf32> -> vector<324x32xf32>
    %107 = arith.addf %102, %106 : vector<324x32xf32>
    %108 = vector.extract_strided_slice %66 {offsets = [38, 0], sizes = [324, 32], strides = [1, 1]} : vector<362x32xbf16> to vector<324x32xbf16>
    %c8_77 = arith.constant 8 : index
    %c0_78 = arith.constant 0 : index
    %c0_79 = arith.constant 0 : index
    %109 = vector.load %arg4[%c8_77, %c0_78, %c0_79] : memref<9x32x32xbf16, #tpu.memory_space<vmem>>, vector<1x32x32xbf16>
    %110 = vector.shape_cast %109 : vector<1x32x32xbf16> to vector<32x32xbf16>
    %cst_80 = arith.constant dense<0.000000e+00> : vector<324x32xf32>
    %111 = tpu.matmul %108, %110, %cst_80 {dimension_numbers = #tpu.dot_dimension_numbers<[1], [0], [0], [1], [0, 0, 1, 1], [], []>} : vector<324x32xbf16>, vector<32x32xbf16>, vector<324x32xf32> -> vector<324x32xf32>
    %112 = arith.addf %107, %111 : vector<324x32xf32>
    %c0_81 = arith.constant 0 : index
    %c0_82 = arith.constant 0 : index
    %113 = vector.load %arg5[%c0_81, %c0_82] : memref<1x32xf32, #tpu.memory_space<vmem>>, vector<1x32xf32>
    %114 = vector.broadcast %113 : vector<1x32xf32> to vector<324x32xf32>
    %115 = arith.addf %112, %114 : vector<324x32xf32>
    %c0_83 = arith.constant 0 : index
    %c19_84 = arith.constant 19 : index
    %c0_85 = arith.constant 0 : index
    %116 = vector.load %arg1[%c0_83, %c19_84, %c0_85] : memref<1x362x32xf32, #tpu.memory_space<vmem>>, vector<1x324x32xf32>
    %117 = vector.shape_cast %116 : vector<1x324x32xf32> to vector<324x32xf32>
    %118 = arith.addf %115, %117 : vector<324x32xf32>
    %cst_86 = arith.constant 0.000000e+00 : f32
    %119 = vector.broadcast %cst_86 : f32 to vector<324x32xf32>
    %120 = arith.cmpf oge, %118, %119 : vector<324x32xf32>
    %cst_87 = arith.constant 1.000000e-01 : f32
    %121 = vector.broadcast %cst_87 : f32 to vector<324x32xf32>
    %122 = arith.mulf %121, %118 : vector<324x32xf32>
    %123 = arith.select %120, %118, %122 : vector<324x32xi1>, vector<324x32xf32>
    %c0_88 = arith.constant 0 : index
    %c0_89 = arith.constant 0 : index
    %c0_90 = arith.constant 0 : index
    %124 = vector.load %arg7[%c0_88, %c0_89, %c0_90] : memref<1x324x32xf32, #tpu.memory_space<vmem>>, vector<1x324x32xf32>
    %125 = vector.shape_cast %124 : vector<1x324x32xf32> to vector<324x32xf32>
    %126 = vector.shape_cast %123 : vector<324x32xf32> to vector<1x324x32xf32>
    tpu.vector_store %arg7[%c0_88, %c0_89, %c0_90], %126 {strides = array<i32>} : memref<1x324x32xf32, #tpu.memory_space<vmem>>, vector<1x324x32xf32>,
    return
  }
  func.func @transform_0(%arg0: i32) -> (i32, i32, i32) {
    %c0_i32 = arith.constant 0 : i32
    %c0_i32_0 = arith.constant 0 : i32
    %c0_i32_1 = arith.constant 0 : i32
    return %arg0, %c0_i32, %c0_i32_0 : i32, i32, i32
  }
  func.func @transform_1(%arg0: i32) -> (i32, i32, i32) {
    %c0_i32 = arith.constant 0 : i32
    %c0_i32_0 = arith.constant 0 : i32
    %c0_i32_1 = arith.constant 0 : i32
    %c0_i32_2 = arith.constant 0 : i32
    return %c0_i32, %c0_i32_0, %c0_i32_1 : i32, i32, i32
  }
  func.func @transform_2(%arg0: i32) -> (i32, i32) {
    %c0_i32 = arith.constant 0 : i32
    %c0_i32_0 = arith.constant 0 : i32
    %c0_i32_1 = arith.constant 0 : i32
    return %c0_i32, %c0_i32_0 : i32, i32
  }
  func.func @transform_3(%arg0: i32) -> (i32, i32, i32) {
    %c0_i32 = arith.constant 0 : i32
    %c0_i32_0 = arith.constant 0 : i32
    %c0_i32_1 = arith.constant 0 : i32
    %c0_i32_2 = arith.constant 0 : i32
    return %c0_i32, %c0_i32_0, %c0_i32_1 : i32, i32, i32
  }
  func.func @transform_4(%arg0: i32) -> (i32, i32) {
    %c0_i32 = arith.constant 0 : i32
    %c0_i32_0 = arith.constant 0 : i32
    %c0_i32_1 = arith.constant 0 : i32
    return %c0_i32, %c0_i32_0 : i32, i32
  }
  func.func @transform_5(%arg0: i32) -> (i32, i32) {
    %c0_i32 = arith.constant 0 : i32
    %c0_i32_0 = arith.constant 0 : i32
    %c0_i32_1 = arith.constant 0 : i32
    return %c0_i32, %c0_i32_0 : i32, i32
  }
  func.func @transform_6(%arg0: i32) -> (i32, i32, i32) {
    %c0_i32 = arith.constant 0 : i32
    %c0_i32_0 = arith.constant 0 : i32
    %c0_i32_1 = arith.constant 0 : i32
    return %arg0, %c0_i32, %c0_i32_0 : i32, i32, i32
  }
}

</mosaic_0001>

<llo_original>
// kernel: resblock_forward.1
$region0: #{resblock_forward.1}
  #allocation0 [shape = 'u32[]', space=smem, size = 0x4, offset = 0x4, fixed_abs, tag = 'smem constant byte address 0x4 - core index']
  #allocation1 [shape = 'u32[144,128]{1,0:T(1,128)}', space=vmem, size = 0x12000, scoped, tag = 'internal scratch']
  #allocation2 [shape = 'bf16[362,32]{1,0:T(8,128)(2,1)}', space=vmem, size = 0x17000, scoped, tag = 'scratch operand']
  %s0 = inlined_call_operand.vmem [shape: f32[2,362,32], index: 0, kind: input, shape index: {}]
  %s1 = inlined_call_operand.vmem [shape: bf16[9,32,32], index: 1, kind: input, shape index: {}]
  %s2 = inlined_call_operand.vmem [shape: f32[1,32], index: 2, kind: input, shape index: {}]
  %s3 = inlined_call_operand.vmem [shape: bf16[9,32,32], index: 3, kind: input, shape index: {}]
  %s4 = inlined_call_operand.vmem [shape: f32[1,32], index: 4, kind: input, shape index: {}]
  %s5 = inlined_call_operand.vmem [shape: f32[324,1], index: 5, kind: input, shape index: {}]
  %s6 = inlined_call_operand.vmem [shape: f32[2,324,32], index: 6, kind: output, shape index: {}]
  %s7 = sld [smem:[#allocation0]]
  $region57: #{resblock_forward.1} parent=0
    _
  %s9 = ssub.s32 1, %s7
  %s10 = scalar_select 0, %s9, %s7
  loop: start=0, step=1, limit=4
  $region2: #{resblock_forward.1} parent=0 // loop_pre_header
    _
  $region3: #{resblock_forward.1} parent=0 // loop_header
    %s12 = sphi 0, %s16
    %p13 = scmp.ge.s32.totalorder %s12, 4
    %s22 = sphi 0, %s24
    %s25 = sphi 0, %s22
    %s26 = sphi 0, %s25
    %s42 = sphi 0, %s26
    %s46 = sphi 0, %s46
    %s48 = sphi 0, %s46
    %s49 = sphi 0, %s48
    %s63 = sphi 0, %s49
    %s67 = sphi 0, %s67
    %s69 = sphi 0, %s67
    %s70 = sphi 0, %s69
    %s84 = sphi 0, %s70
    %s88 = sphi 0, %s88
    %s90 = sphi 0, %s88
    %s91 = sphi 0, %s90
    %s105 = sphi 0, %s91
    %s109 = sphi 0, %s109
    %s111 = sphi 0, %s109
    %s112 = sphi 0, %s111
    %s126 = sphi 0, %s112
    %s130 = sphi 0, %s130
    %s132 = sphi 0, %s130
    %s133 = sphi 0, %s132
    %s147 = sphi 0, %s133
    %s153 = sphi 0, %s155
    %s156 = sphi 0, %s153
    %s157 = sphi 0, %s156
    %s173 = sphi 0, %s157
  $region4: #{resblock_forward.1} parent=0 // loop_header_branch
    %15 = sbr.rel (%p13) target = $region8
  $region5: #{resblock_forward.1} parent=0 // loop_body
    %s17 = ssub.s32 %s12, 1
    %s18 = ssub.s32 %s12, 2
    %s19 = sadd.s32 %s12, 1
    %s20 = ssub.s32 %s12, %s19
    %p21 = scmp.eq.s32.totalorder %s20, 0
    %s23 = sadd.s32 %s22, 1
    %s24 = scalar_select %p21, %s22, %s23
    %p27 = pneg %p21
    %p28 = scmp.eq.s32.totalorder %s12, 1
    %p29 = por %p27, %p28
    %p30 = scmp.ne.s32.totalorder %s22, %s25
    %p31 = scmp.eq.s32.totalorder %s12, 0
    %p32 = por %p30, %p31
    %p33 = scmp.ne.s32.totalorder %s22, %s25
    %p34 = scmp.eq.s32.totalorder %s17, 1
    %p35 = por %p33, %p34
    %p36 = scmp.ne.s32.totalorder %s25, %s26
    %p37 = scmp.eq.s32.totalorder %s17, 0
    %p38 = por %p36, %p37
    %p39 = scmp.ne.s32.totalorder %s25, %s26
    %p40 = scmp.eq.s32.totalorder %s18, 1
    %p41 = por %p39, %p40
    %p43 = scmp.ne.s32.totalorder %s26, %s42
    %p44 = scmp.eq.s32.totalorder %s18, 0
    %p45 = por %p43, %p44
    %s47 = sadd.s32 %s46, 1
    %p50 = scmp.eq.s32.totalorder %s12, 1
    %p51 = scmp.ne.s32.totalorder %s46, %s48
    %p52 = scmp.eq.s32.totalorder %s12, 0
    %p53 = por %p51, %p52
    %p54 = scmp.ne.s32.totalorder %s46, %s48
    %p55 = scmp.eq.s32.totalorder %s17, 1
    %p56 = por %p54, %p55
    %p57 = scmp.ne.s32.totalorder %s48, %s49
    %p58 = scmp.eq.s32.totalorder %s17, 0
    %p59 = por %p57, %p58
    %p60 = scmp.ne.s32.totalorder %s48, %s49
    %p61 = scmp.eq.s32.totalorder %s18, 1
    %p62 = por %p60, %p61
    %p64 = scmp.ne.s32.totalorder %s49, %s63
    %p65 = scmp.eq.s32.totalorder %s18, 0
    %p66 = por %p64, %p65
    %s68 = sadd.s32 %s67, 1
    %p71 = scmp.eq.s32.totalorder %s12, 1
    %p72 = scmp.ne.s32.totalorder %s67, %s69
    %p73 = scmp.eq.s32.totalorder %s12, 0
    %p74 = por %p72, %p73
    %p75 = scmp.ne.s32.totalorder %s67, %s69
    %p76 = scmp.eq.s32.totalorder %s17, 1
    %p77 = por %p75, %p76
    %p78 = scmp.ne.s32.totalorder %s69, %s70
    %p79 = scmp.eq.s32.totalorder %s17, 0
    %p80 = por %p78, %p79
    %p81 = scmp.ne.s32.totalorder %s69, %s70
    %p82 = scmp.eq.s32.totalorder %s18, 1
    %p83 = por %p81, %p82
    %p85 = scmp.ne.s32.totalorder %s70, %s84
    %p86 = scmp.eq.s32.totalorder %s18, 0
    %p87 = por %p85, %p86
    %s89 = sadd.s32 %s88, 1
    %p92 = scmp.eq.s32.totalorder %s12, 1
    %p93 = scmp.ne.s32.totalorder %s88, %s90
    %p94 = scmp.eq.s32.totalorder %s12, 0
    %p95 = por %p93, %p94
    %p96 = scmp.ne.s32.totalorder %s88, %s90
    %p97 = scmp.eq.s32.totalorder %s17, 1
    %p98 = por %p96, %p97
    %p99 = scmp.ne.s32.totalorder %s90, %s91
    %p100 = scmp.eq.s32.totalorder %s17, 0
    %p101 = por %p99, %p100
    %p102 = scmp.ne.s32.totalorder %s90, %s91
    %p103 = scmp.eq.s32.totalorder %s18, 1
    %p104 = por %p102, %p103
    %p106 = scmp.ne.s32.totalorder %s91, %s105
    %p107 = scmp.eq.s32.totalorder %s18, 0
    %p108 = por %p106, %p107
    %s110 = sadd.s32 %s109, 1
    %p113 = scmp.eq.s32.totalorder %s12, 1
    %p114 = scmp.ne.s32.totalorder %s109, %s111
    %p115 = scmp.eq.s32.totalorder %s12, 0
    %p116 = por %p114, %p115
    %p117 = scmp.ne.s32.totalorder %s109, %s111
    %p118 = scmp.eq.s32.totalorder %s17, 1
    %p119 = por %p117, %p118
    %p120 = scmp.ne.s32.totalorder %s111, %s112
    %p121 = scmp.eq.s32.totalorder %s17, 0
    %p122 = por %p120, %p121
    %p123 = scmp.ne.s32.totalorder %s111, %s112
    %p124 = scmp.eq.s32.totalorder %s18, 1
    %p125 = por %p123, %p124
    %p127 = scmp.ne.s32.totalorder %s112, %s126
    %p128 = scmp.eq.s32.totalorder %s18, 0
    %p129 = por %p127, %p128
    %s131 = sadd.s32 %s130, 1
    %p134 = scmp.eq.s32.totalorder %s12, 1
    %p135 = scmp.ne.s32.totalorder %s130, %s132
    %p136 = scmp.eq.s32.totalorder %s12, 0
    %p137 = por %p135, %p136
    %p138 = scmp.ne.s32.totalorder %s130, %s132
    %p139 = scmp.eq.s32.totalorder %s17, 1
    %p140 = por %p138, %p139
    %p141 = scmp.ne.s32.totalorder %s132, %s133
    %p142 = scmp.eq.s32.totalorder %s17, 0
    %p143 = por %p141, %p142
    %p144 = scmp.ne.s32.totalorder %s132, %s133
    %p145 = scmp.eq.s32.totalorder %s18, 1
    %p146 = por %p144, %p145
    %p148 = scmp.ne.s32.totalorder %s133, %s147
    %p149 = scmp.eq.s32.totalorder %s18, 0
    %p150 = por %p148, %p149
    %s151 = ssub.s32 %s12, %s19
    %p152 = scmp.eq.s32.totalorder %s151, 0
    %s154 = sadd.s32 %s153, 1
    %s155 = scalar_select %p152, %s153, %s154
    %p158 = pneg %p152
    %p159 = scmp.eq.s32.totalorder %s12, 1
    %p160 = por %p158, %p159
    %p161 = scmp.ne.s32.totalorder %s153, %s156
    %p162 = scmp.eq.s32.totalorder %s12, 0
    %p163 = por %p161, %p162
    %p164 = scmp.ne.s32.totalorder %s153, %s156
    %p165 = scmp.eq.s32.totalorder %s17, 1
    %p166 = por %p164, %p165
    %p167 = scmp.ne.s32.totalorder %s156, %s157
    %p168 = scmp.eq.s32.totalorder %s17, 0
    %p169 = por %p167, %p168
    %p170 = scmp.ne.s32.totalorder %s156, %s157
    %p171 = scmp.eq.s32.totalorder %s18, 1
    %p172 = por %p170, %p171
    %p174 = scmp.ne.s32.totalorder %s157, %s173
    %p175 = scmp.eq.s32.totalorder %s18, 0
    %p176 = por %p174, %p175
    %p177 = scmp.le.s32.totalorder 1, %s12
    %p178 = scmp.lt.s32.totalorder %s12, 3
    %p179 = pnand %p177, %p178
    %p180 = pneg %p179
    // Predicated region
    $region9: #{resblock_forward.1} parent=5 // pred_check
      _
    $region10: #{resblock_forward.1} parent=5 // pred_check_branch
      %182 = sbr.rel (%p179) target = $region12
    $region11: #{resblock_forward.1} parent=5 // pred_region
      %s183 = ssub.s32 %s12, 1
      // Predicated region
      $region13: #{resblock_forward.1} parent=11 // pred_check
        %p184 = pneg %p59
      $region14: #{resblock_forward.1} parent=11 // pred_check_branch
        %186 = sbr.rel (%p184) target = $region16
      $region15: #{resblock_forward.1} parent=11 // pred_region
        _
      $region16: #{resblock_forward.1} parent=11 // pred_fallthru
        _
      // Predicated region
      $region17: #{resblock_forward.1} parent=11 // pred_check
        %p187 = pneg %p80
      $region18: #{resblock_forward.1} parent=11 // pred_check_branch
        %189 = sbr.rel (%p187) target = $region20
      $region19: #{resblock_forward.1} parent=11 // pred_region
        _
      $region20: #{resblock_forward.1} parent=11 // pred_fallthru
        _
      // Predicated region
      $region21: #{resblock_forward.1} parent=11 // pred_check
        %p190 = pneg %p101
      $region22: #{resblock_forward.1} parent=11 // pred_check_branch
        %192 = sbr.rel (%p190) target = $region24
      $region23: #{resblock_forward.1} parent=11 // pred_region
        _
      $region24: #{resblock_forward.1} parent=11 // pred_fallthru
        _
      // Predicated region
      $region25: #{resblock_forward.1} parent=11 // pred_check
        %p193 = pneg %p122
      $region26: #{resblock_forward.1} parent=11 // pred_check_branch
        %195 = sbr.rel (%p193) target = $region28
      $region27: #{resblock_forward.1} parent=11 // pred_region
        _
      $region28: #{resblock_forward.1} parent=11 // pred_fallthru
        _
      // Predicated region
      $region29: #{resblock_forward.1} parent=11 // pred_check
        %p196 = pneg %p143
      $region30: #{resblock_forward.1} parent=11 // pred_check_branch
        %198 = sbr.rel (%p196) target = $region32
      $region31: #{resblock_forward.1} parent=11 // pred_region
        _
      $region32: #{resblock_forward.1} parent=11 // pred_fallthru
        _
    $region12: #{resblock_forward.1} parent=5 // pred_fallthru
      _
    %p199 = scmp.lt.s32.totalorder %s12, 2
    // Predicated region
    $region33: #{resblock_forward.1} parent=5 // pred_check
      %p200 = pneg %p199
    $region34: #{resblock_forward.1} parent=5 // pred_check_branch
      %202 = sbr.rel (%p200) target = $region36
    $region35: #{resblock_forward.1} parent=5 // pred_region
      // Predicated region
      $region37: #{resblock_forward.1} parent=35 // pred_check
        %p203 = pneg %p32
      $region38: #{resblock_forward.1} parent=35 // pred_check_branch
        %205 = sbr.rel (%p203) target = $region40
      $region39: #{resblock_forward.1} parent=35 // pred_region
        %p206 = scmp.lt.s32.totalorder %s12, 1
        %s207 = scalar_select %p206, %s12, 1
        %s208 = smul.addr %s207, 46
        %s209 = smul.addr %s208, 8
        %s210 = scalar_lea.vmem %s0, %s209
      $region40: #{resblock_forward.1} parent=35 // pred_fallthru
        _
    $region36: #{resblock_forward.1} parent=5 // pred_fallthru
      _
    %p211 = scmp.le.s32.totalorder 1, %s12
    %p212 = scmp.lt.s32.totalorder %s12, 3
    %p213 = pnand %p211, %p212
    %p214 = pneg %p213
    // Predicated region
    $region41: #{resblock_forward.1} parent=5 // pred_check
      _
    $region42: #{resblock_forward.1} parent=5 // pred_check_branch
      %216 = sbr.rel (%p213) target = $region44
    $region43: #{resblock_forward.1} parent=5 // pred_region
      %s217 = ssub.s32 %s12, 1
      %p218 = scmp.lt.s32.totalorder %s17, 1
      %s219 = scalar_select %p218, %s17, 1
      %s220 = smul.addr %s219, 46
      %s221 = smul.addr %s220, 8
      %s222 = scalar_lea.vmem %s0, %s221
      %p223 = pneg %p38
      %p224 = pneg %p35
      %p225 = pneg %p59
      %p226 = pneg %p56
      %p227 = pneg %p80
      %p228 = pneg %p77
      %p229 = pneg %p101
      %p230 = pneg %p98
      %p231 = pneg %p122
      %p232 = pneg %p119
      %p233 = pneg %p143
      %p234 = pneg %p140
      %p235 = pneg %p169
      %p236 = pneg %p166
      %p237 = scmp.lt.s32.totalorder %s17, 1
      %s238 = scalar_select %p237, %s17, 1
      %s239 = smul.addr %s238, 41
      %s240 = smul.addr %s239, 8
      %s241 = scalar_lea.vmem %s6, %s240
      %p242 = scmp.lt.s32.totalorder %s17, 1
      %s243 = scalar_select %p242, %s17, 1
      %s244 = smul.addr %s243, 46
      %s245 = smul.addr %s244, 8
      %s246 = scalar_lea.vmem %s0, %s245
      %p247 = scmp.lt.s32.totalorder %s17, 1
      %s248 = scalar_select %p247, %s17, 1
      %s249 = smul.addr %s248, 41
      %s250 = smul.addr %s249, 8
      %s251 = scalar_lea.vmem %s6, %s250
      %v253 = vld [vmem:[%s246] sm:$0xff]
      %v254 = vld [vmem:[%s246 + $0x8] sm:$0xff]
      %v255 = vld [vmem:[%s246 + $0x10] sm:$0xff]
      %v256 = vld [vmem:[%s246 + $0x18] sm:$0xff]
      %v257 = vld [vmem:[%s246 + $0x20] sm:$0xff]
      %v258 = vld [vmem:[%s246 + $0x28] sm:$0xff]
      %v259 = vld [vmem:[%s246 + $0x30] sm:$0xff]
      %v260 = vld [vmem:[%s246 + $0x38] sm:$0xff]
      %v261 = vld [vmem:[%s246 + $0x40] sm:$0xff]
      %v262 = vld [vmem:[%s246 + $0x48] sm:$0xff]
      %v263 = vld [vmem:[%s246 + $0x50] sm:$0xff]
      %v264 = vld [vmem:[%s246 + $0x58] sm:$0xff]
      %v265 = vld [vmem:[%s246 + $0x60] sm:$0xff]
      %v266 = vld [vmem:[%s246 + $0x68] sm:$0xff]
      %v267 = vld [vmem:[%s246 + $0x70] sm:$0xff]
      %v268 = vld [vmem:[%s246 + $0x78] sm:$0xff]
      %v269 = vld [vmem:[%s246 + $0x80] sm:$0xff]
      %v270 = vld [vmem:[%s246 + $0x88] sm:$0xff]
      %v271 = vld [vmem:[%s246 + $0x90] sm:$0xff]
      %v272 = vld [vmem:[%s246 + $0x98] sm:$0xff]
      %v273 = vld [vmem:[%s246 + $0xa0] sm:$0xff]
      %v274 = vld [vmem:[%s246 + $0xa8] sm:$0xff]
      %v275 = vld [vmem:[%s246 + $0xb0] sm:$0xff]
      %v276 = vld [vmem:[%s246 + $0xb8] sm:$0xff]
      %v277 = vld [vmem:[%s246 + $0xc0] sm:$0xff]
      %v278 = vld [vmem:[%s246 + $0xc8] sm:$0xff]
      %v279 = vld [vmem:[%s246 + $0xd0] sm:$0xff]
      %v280 = vld [vmem:[%s246 + $0xd8] sm:$0xff]
      %v281 = vld [vmem:[%s246 + $0xe0] sm:$0xff]
      %v282 = vld [vmem:[%s246 + $0xe8] sm:$0xff]
      %v283 = vld [vmem:[%s246 + $0xf0] sm:$0xff]
      %v284 = vld [vmem:[%s246 + $0xf8] sm:$0xff]
      %v285 = vld [vmem:[%s246 + $0x100] sm:$0xff]
      %v286 = vld [vmem:[%s246 + $0x108] sm:$0xff]
      %v287 = vld [vmem:[%s246 + $0x110] sm:$0xff]
      %v288 = vld [vmem:[%s246 + $0x118] sm:$0xff]
      %v289 = vld [vmem:[%s246 + $0x120] sm:$0xff]
      %v290 = vld [vmem:[%s246 + $0x128] sm:$0xff]
      %v291 = vld [vmem:[%s246 + $0x130] sm:$0xff]
      %v292 = vld [vmem:[%s246 + $0x138] sm:$0xff]
      %v293 = vld [vmem:[%s246 + $0x140] sm:$0xff]
      %v294 = vld [vmem:[%s246 + $0x148] sm:$0xff]
      %v295 = vld [vmem:[%s246 + $0x150] sm:$0xff]
      %v296 = vld [vmem:[%s246 + $0x158] sm:$0xff]
      %v297 = vld [vmem:[%s246 + $0x160] sm:$0xff]
      %v298 = vld [vmem:[%s246 + $0x168] sm:$0x3]
      %v299 = vpack.c.bf16 %v254, %v253
      %v300 = vpack.c.bf16 %v256, %v255
      %v301 = vpack.c.bf16 %v258, %v257
      %v302 = vpack.c.bf16 %v260, %v259
      %v303 = vpack.c.bf16 %v262, %v261
      %v304 = vpack.c.bf16 %v264, %v263
      %v305 = vpack.c.bf16 %v266, %v265
      %v306 = vpack.c.bf16 %v268, %v267
      %v307 = vpack.c.bf16 %v270, %v269
      %v308 = vpack.c.bf16 %v272, %v271
      %v309 = vpack.c.bf16 %v274, %v273
      %v310 = vpack.c.bf16 %v276, %v275
      %v311 = vpack.c.bf16 %v278, %v277
      %v312 = vpack.c.bf16 %v280, %v279
      %v313 = vpack.c.bf16 %v282, %v281
      %v314 = vpack.c.bf16 %v284, %v283
      %v315 = vpack.c.bf16 %v286, %v285
      %v316 = vpack.c.bf16 %v288, %v287
      %v317 = vpack.c.bf16 %v290, %v289
      %v318 = vpack.c.bf16 %v292, %v291
      %v319 = vpack.c.bf16 %v294, %v293
      %v320 = vpack.c.bf16 %v296, %v295
      %v321 = vpack.c.bf16 %v298, %v297
      %v322 = vld [vmem:[%s1] sm:$0xf]
      %v323 = vld [vmem:[%s1 + $0x4] sm:$0xf]
      %v324 = vld [vmem:[%s1 + $0x8] sm:$0xf]
      %v325 = vld [vmem:[%s1 + $0xc] sm:$0xf]
      %s326 = scalar_lea.vmem %s1, 16
      %v327 = vld [vmem:[%s326] sm:$0xf]
      %v328 = vld [vmem:[%s326 + $0x4] sm:$0xf]
      %v329 = vld [vmem:[%s326 + $0x8] sm:$0xf]
      %v330 = vld [vmem:[%s326 + $0xc] sm:$0xf]
      %vm331 = vsmask.f32 7424
      %v333 = vshrl.u32 %v299, 16
      %v335 = vshll.u32 %v299, 16
      %v337 = vrot.slane %v335, 1
      %v338 = vor.u32 %v333, %v337
      %v340 = vshll.u32 %v300, 16
      %v342 = vrot.slane %v340, 1
      %v343 = vsel %vm331, %v338, %v342
      %v344 = vshrl.u32 %v300, 16
      %v346 = vor.u32 %v344, %v342
      %v348 = vshll.u32 %v301, 16
      %v350 = vrot.slane %v348, 1
      %v351 = vsel %vm331, %v346, %v350
      %v352 = vshrl.u32 %v301, 16
      %v354 = vor.u32 %v352, %v350
      %v356 = vshll.u32 %v302, 16
      %v358 = vrot.slane %v356, 1
      %v359 = vsel %vm331, %v354, %v358
      %v360 = vshrl.u32 %v302, 16
      %v362 = vor.u32 %v360, %v358
      %v364 = vshll.u32 %v303, 16
      %v366 = vrot.slane %v364, 1
      %v367 = vsel %vm331, %v362, %v366
      %v368 = vshrl.u32 %v303, 16
      %v370 = vor.u32 %v368, %v366
      %v372 = vshll.u32 %v304, 16
      %v374 = vrot.slane %v372, 1
      %v375 = vsel %vm331, %v370, %v374
      %v376 = vshrl.u32 %v304, 16
      %v378 = vor.u32 %v376, %v374
      %v380 = vshll.u32 %v305, 16
      %v382 = vrot.slane %v380, 1
      %v383 = vsel %vm331, %v378, %v382
      %v384 = vshrl.u32 %v305, 16
      %v386 = vor.u32 %v384, %v382
      %v388 = vshll.u32 %v306, 16
      %v390 = vrot.slane %v388, 1
      %v391 = vsel %vm331, %v386, %v390
      %v392 = vshrl.u32 %v306, 16
      %v394 = vor.u32 %v392, %v390
      %v396 = vshll.u32 %v307, 16
      %v398 = vrot.slane %v396, 1
      %v399 = vsel %vm331, %v394, %v398
      %v400 = vshrl.u32 %v307, 16
      %v402 = vor.u32 %v400, %v398
      %v404 = vshll.u32 %v308, 16
      %v406 = vrot.slane %v404, 1
      %v407 = vsel %vm331, %v402, %v406
      %v408 = vshrl.u32 %v308, 16
      %v410 = vor.u32 %v408, %v406
      %v412 = vshll.u32 %v309, 16
      %v414 = vrot.slane %v412, 1
      %v415 = vsel %vm331, %v410, %v414
      %v416 = vshrl.u32 %v309, 16
      %v418 = vor.u32 %v416, %v414
      %v420 = vshll.u32 %v310, 16
      %v422 = vrot.slane %v420, 1
      %v423 = vsel %vm331, %v418, %v422
      %v424 = vshrl.u32 %v310, 16
      %v426 = vor.u32 %v424, %v422
      %v428 = vshll.u32 %v311, 16
      %v430 = vrot.slane %v428, 1
      %v431 = vsel %vm331, %v426, %v430
      %v432 = vshrl.u32 %v311, 16
      %v434 = vor.u32 %v432, %v430
      %v436 = vshll.u32 %v312, 16
      %v438 = vrot.slane %v436, 1
      %v439 = vsel %vm331, %v434, %v438
      %v440 = vshrl.u32 %v312, 16
      %v442 = vor.u32 %v440, %v438
      %v444 = vshll.u32 %v313, 16
      %v446 = vrot.slane %v444, 1
      %v447 = vsel %vm331, %v442, %v446
      %v448 = vshrl.u32 %v313, 16
      %v450 = vor.u32 %v448, %v446
      %v452 = vshll.u32 %v314, 16
      %v454 = vrot.slane %v452, 1
      %v455 = vsel %vm331, %v450, %v454
      %v456 = vshrl.u32 %v314, 16
      %v458 = vor.u32 %v456, %v454
      %v460 = vshll.u32 %v315, 16
      %v462 = vrot.slane %v460, 1
      %v463 = vsel %vm331, %v458, %v462
      %v464 = vshrl.u32 %v315, 16
      %v466 = vor.u32 %v464, %v462
      %v468 = vshll.u32 %v316, 16
      %v470 = vrot.slane %v468, 1
      %v471 = vsel %vm331, %v466, %v470
      %v472 = vshrl.u32 %v316, 16
      %v474 = vor.u32 %v472, %v470
      %v476 = vshll.u32 %v317, 16
      %v478 = vrot.slane %v476, 1
      %v479 = vsel %vm331, %v474, %v478
      %v480 = vshrl.u32 %v317, 16
      %v482 = vor.u32 %v480, %v478
      %v484 = vshll.u32 %v318, 16
      %v486 = vrot.slane %v484, 1
      %v487 = vsel %vm331, %v482, %v486
      %v488 = vshrl.u32 %v318, 16
      %v490 = vor.u32 %v488, %v486
      %v492 = vshll.u32 %v319, 16
      %v494 = vrot.slane %v492, 1
      %v495 = vsel %vm331, %v490, %v494
      %v496 = vshrl.u32 %v319, 16
      %v498 = vor.u32 %v496, %v494
      %v503 = vunpack.c.l.b16 %v327
      %v504 = vunpack.c.l.b16 %v328
      %v505 = vunpack.c.l.b16 %v329
      %v506 = vunpack.c.l.b16 %v330
      %v507 = vpack.c.b16 %v504, %v503
      %v508 = vpack.c.b16 %v506, %v505
      %vm511 = vcmask 261120
      %v513 = vsel %vm511, %v343, 0
      %v516 = vsel %vm511, %v351, 0
      %v519 = vsel %vm511, %v359, 0
      %v522 = vsel %vm511, %v367, 0
      %v525 = vsel %vm511, %v375, 0
      %v528 = vsel %vm511, %v383, 0
      %v531 = vsel %vm511, %v391, 0
      %v534 = vsel %vm511, %v399, 0
      %v537 = vsel %vm511, %v407, 0
      %v540 = vsel %vm511, %v415, 0
      %v543 = vsel %vm511, %v423, 0
      %v546 = vsel %vm511, %v431, 0
      %v549 = vsel %vm511, %v439, 0
      %v552 = vsel %vm511, %v447, 0
      %v555 = vsel %vm511, %v455, 0
      %v558 = vsel %vm511, %v463, 0
      %v561 = vsel %vm511, %v471, 0
      %v564 = vsel %vm511, %v479, 0
      %v567 = vsel %vm511, %v487, 0
      %v570 = vsel %vm511, %v495, 0
      %v573 = vsel %vm511, %v498, 0
      %575 = vmatprep.subr.bf16.mxu0 0
      %576 = vmatpush1.bf16.msra.mxu0 0
      %577 = vmatprep.subr.bf16.mxu0 0
      %578 = vmatpush1.bf16.msra.mxu0 0
      %579 = vmatprep.subr.bf16.mxu0 0
      %580 = vmatpush1.bf16.msra.mxu0 0
      %581 = vmatprep.subr.bf16.mxu0 0
      %582 = vmatpush1.bf16.msra.mxu0 0
      %583 = vmatprep.subr.bf16.mxu0 0
      %584 = vmatpush1.bf16.msra.mxu0 0
      %585 = vmatprep.subr.bf16.mxu0 0
      %586 = vmatpush1.bf16.msra.mxu0 0
      %587 = vmatprep.subr.bf16.mxu0 0
      %588 = vmatpush1.bf16.msra.mxu0 %v508
      %589 = vmatprep.subr.bf16.mxu0 0
      %590 = vmatpush1.bf16.msra.mxu0 %v507
      %591 = vmatprep.subr.bf16.mxu0 0
      %592 = vmatpush2.bf16.msra.mxu0 0
      %593 = vmatprep.subr.bf16.mxu0 0
      %594 = vmatpush2.bf16.msra.mxu0 0
      %595 = vmatprep.subr.bf16.mxu0 0
      %596 = vmatpush2.bf16.msra.mxu0 0
      %597 = vmatprep.subr.bf16.mxu0 0
      %598 = vmatpush2.bf16.msra.mxu0 0
      %599 = vmatprep.subr.bf16.mxu0 0
      %600 = vmatpush2.bf16.msra.mxu0 0
      %601 = vmatprep.subr.bf16.mxu0 0
      %602 = vmatpush2.bf16.msra.mxu0 0
      %603 = vmatprep.subr.bf16.mxu0 0
      %604 = vmatpush2.bf16.msra.mxu0 0
      %605 = vmatprep.subr.bf16.mxu0 0
      %606 = vmatpush2.bf16.msra.mxu0 0
      %607 = vmatprep.mubr.bf16.mxu0 0
      %608 = vmatmul.mubr.bf16.gmra.mxu0 %v513
      %v609 = vpop.f32.mrf.mxu0
      %v610 = vadd.f32 0.0, %v609
      %v611 = vpop.f32.mrf.mxu0
      %v612 = vpop.f32.mrf.mxu0
      %v613 = vadd.f32 0.0, %v612
      %v614 = vpop.f32.mrf.mxu0
      %615 = vmatprep.mubr.bf16.mxu0 0
      %616 = vmatmul.mubr.bf16.gmra.mxu0 %v516
      %v617 = vpop.f32.mrf.mxu0
      %v618 = vadd.f32 0.0, %v617
      %v619 = vpop.f32.mrf.mxu0
      %v620 = vpop.f32.mrf.mxu0
      %v621 = vadd.f32 0.0, %v620
      %v622 = vpop.f32.mrf.mxu0
      %623 = vmatprep.mubr.bf16.mxu0 0
      %624 = vmatmul.mubr.bf16.gmra.mxu0 %v519
      %v625 = vpop.f32.mrf.mxu0
      %v626 = vadd.f32 0.0, %v625
      %v627 = vpop.f32.mrf.mxu0
      %v628 = vpop.f32.mrf.mxu0
      %v629 = vadd.f32 0.0, %v628
      %v630 = vpop.f32.mrf.mxu0
      %631 = vmatprep.mubr.bf16.mxu0 0
      %632 = vmatmul.mubr.bf16.gmra.mxu0 %v522
      %v633 = vpop.f32.mrf.mxu0
      %v634 = vadd.f32 0.0, %v633
      %v635 = vpop.f32.mrf.mxu0
      %v636 = vpop.f32.mrf.mxu0
      %v637 = vadd.f32 0.0, %v636
      %v638 = vpop.f32.mrf.mxu0
      %639 = vmatprep.mubr.bf16.mxu0 0
      %640 = vmatmul.mubr.bf16.gmra.mxu0 %v525
      %v641 = vpop.f32.mrf.mxu0
      %v642 = vadd.f32 0.0, %v641
      %v643 = vpop.f32.mrf.mxu0
      %v644 = vpop.f32.mrf.mxu0
      %v645 = vadd.f32 0.0, %v644
      %v646 = vpop.f32.mrf.mxu0
      %647 = vmatprep.mubr.bf16.mxu0 0
      %648 = vmatmul.mubr.bf16.gmra.mxu0 %v528
      %v649 = vpop.f32.mrf.mxu0
      %v650 = vadd.f32 0.0, %v649
      %v651 = vpop.f32.mrf.mxu0
      %v652 = vpop.f32.mrf.mxu0
      %v653 = vadd.f32 0.0, %v652
      %v654 = vpop.f32.mrf.mxu0
      %655 = vmatprep.mubr.bf16.mxu0 0
      %656 = vmatmul.mubr.bf16.gmra.mxu0 %v531
      %v657 = vpop.f32.mrf.mxu0
      %v658 = vadd.f32 0.0, %v657
      %v659 = vpop.f32.mrf.mxu0
      %v660 = vpop.f32.mrf.mxu0
      %v661 = vadd.f32 0.0, %v660
      %v662 = vpop.f32.mrf.mxu0
      %663 = vmatprep.mubr.bf16.mxu0 0
      %664 = vmatmul.mubr.bf16.gmra.mxu0 %v534
      %v665 = vpop.f32.mrf.mxu0
      %v666 = vadd.f32 0.0, %v665
      %v667 = vpop.f32.mrf.mxu0
      %v668 = vpop.f32.mrf.mxu0
      %v669 = vadd.f32 0.0, %v668
      %v670 = vpop.f32.mrf.mxu0
      %671 = vmatprep.mubr.bf16.mxu0 0
      %672 = vmatmul.mubr.bf16.gmra.mxu0 %v537
      %v673 = vpop.f32.mrf.mxu0
      %v674 = vadd.f32 0.0, %v673
      %v675 = vpop.f32.mrf.mxu0
      %v676 = vpop.f32.mrf.mxu0
      %v677 = vadd.f32 0.0, %v676
      %v678 = vpop.f32.mrf.mxu0
      %679 = vmatprep.mubr.bf16.mxu0 0
      %680 = vmatmul.mubr.bf16.gmra.mxu0 %v540
      %v681 = vpop.f32.mrf.mxu0
      %v682 = vadd.f32 0.0, %v681
      %v683 = vpop.f32.mrf.mxu0
      %v684 = vpop.f32.mrf.mxu0
      %v685 = vadd.f32 0.0, %v684
      %v686 = vpop.f32.mrf.mxu0
      %687 = vmatprep.mubr.bf16.mxu0 0
      %688 = vmatmul.mubr.bf16.gmra.mxu0 %v543
      %v689 = vpop.f32.mrf.mxu0
      %v690 = vadd.f32 0.0, %v689
      %v691 = vpop.f32.mrf.mxu0
      %v692 = vpop.f32.mrf.mxu0
      %v693 = vadd.f32 0.0, %v692
      %v694 = vpop.f32.mrf.mxu0
      %695 = vmatprep.mubr.bf16.mxu0 0
      %696 = vmatmul.mubr.bf16.gmra.mxu0 %v546
      %v697 = vpop.f32.mrf.mxu0
      %v698 = vadd.f32 0.0, %v697
      %v699 = vpop.f32.mrf.mxu0
      %v700 = vpop.f32.mrf.mxu0
      %v701 = vadd.f32 0.0, %v700
      %v702 = vpop.f32.mrf.mxu0
      %703 = vmatprep.mubr.bf16.mxu0 0
      %704 = vmatmul.mubr.bf16.gmra.mxu0 %v549
      %v705 = vpop.f32.mrf.mxu0
      %v706 = vadd.f32 0.0, %v705
      %v707 = vpop.f32.mrf.mxu0
      %v708 = vpop.f32.mrf.mxu0
      %v709 = vadd.f32 0.0, %v708
      %v710 = vpop.f32.mrf.mxu0
      %711 = vmatprep.mubr.bf16.mxu0 0
      %712 = vmatmul.mubr.bf16.gmra.mxu0 %v552
      %v713 = vpop.f32.mrf.mxu0
      %v714 = vadd.f32 0.0, %v713
      %v715 = vpop.f32.mrf.mxu0
      %v716 = vpop.f32.mrf.mxu0
      %v717 = vadd.f32 0.0, %v716
      %v718 = vpop.f32.mrf.mxu0
      %719 = vmatprep.mubr.bf16.mxu0 0
      %720 = vmatmul.mubr.bf16.gmra.mxu0 %v555
      %v721 = vpop.f32.mrf.mxu0
      %v722 = vadd.f32 0.0, %v721
      %v723 = vpop.f32.mrf.mxu0
      %v724 = vpop.f32.mrf.mxu0
      %v725 = vadd.f32 0.0, %v724
      %v726 = vpop.f32.mrf.mxu0
      %727 = vmatprep.mubr.bf16.mxu0 0
      %728 = vmatmul.mubr.bf16.gmra.mxu0 %v558
      %v729 = vpop.f32.mrf.mxu0
      %v730 = vadd.f32 0.0, %v729
      %v731 = vpop.f32.mrf.mxu0
      %v732 = vpop.f32.mrf.mxu0
      %v733 = vadd.f32 0.0, %v732
      %v734 = vpop.f32.mrf.mxu0
      %735 = vmatprep.mubr.bf16.mxu0 0
      %736 = vmatmul.mubr.bf16.gmra.mxu0 %v561
      %v737 = vpop.f32.mrf.mxu0
      %v738 = vadd.f32 0.0, %v737
      %v739 = vpop.f32.mrf.mxu0
      %v740 = vpop.f32.mrf.mxu0
      %v741 = vadd.f32 0.0, %v740
      %v742 = vpop.f32.mrf.mxu0
      %743 = vmatprep.mubr.bf16.mxu0 0
      %744 = vmatmul.mubr.bf16.gmra.mxu0 %v564
      %v745 = vpop.f32.mrf.mxu0
      %v746 = vadd.f32 0.0, %v745
      %v747 = vpop.f32.mrf.mxu0
      %v748 = vpop.f32.mrf.mxu0
      %v749 = vadd.f32 0.0, %v748
      %v750 = vpop.f32.mrf.mxu0
      %751 = vmatprep.mubr.bf16.mxu0 0
      %752 = vmatmul.mubr.bf16.gmra.mxu0 %v567
      %v753 = vpop.f32.mrf.mxu0
      %v754 = vadd.f32 0.0, %v753
      %v755 = vpop.f32.mrf.mxu0
      %v756 = vpop.f32.mrf.mxu0
      %v757 = vadd.f32 0.0, %v756
      %v758 = vpop.f32.mrf.mxu0
      %759 = vmatprep.mubr.bf16.mxu0 0
      %760 = vmatmul.mubr.bf16.gmra.mxu0 %v570
      %v761 = vpop.f32.mrf.mxu0
      %v762 = vadd.f32 0.0, %v761
      %v763 = vpop.f32.mrf.mxu0
      %v764 = vpop.f32.mrf.mxu0
      %v765 = vadd.f32 0.0, %v764
      %v766 = vpop.f32.mrf.mxu0
      %767 = vmatprep.mubr.bf16.mxu0 0
      %768 = vmatmul.mubr.bf16.gmra.mxu0 %v573
      %v769 = vpop.f32.mrf.mxu0
      %v770 = vadd.f32 0.0, %v769
      %v771 = vpop.f32.mrf.mxu0
      %v772 = vpop.f32.mrf.mxu0
      %v773 = vpop.f32.mrf.mxu0
      %774 = vdwg.mxu0
      %v779 = vunpack.c.l.b16 %v322
      %v780 = vunpack.c.l.b16 %v323
      %v781 = vunpack.c.l.b16 %v324
      %v782 = vunpack.c.l.b16 %v325
      %v783 = vpack.c.b16 %v780, %v779
      %v784 = vpack.c.b16 %v782, %v781
      %v787 = vsel %vm511, %v299, 0
      %v789 = vsel %vm511, %v300, 0
      %v791 = vsel %vm511, %v301, 0
      %v793 = vsel %vm511, %v302, 0
      %v795 = vsel %vm511, %v303, 0
      %v797 = vsel %vm511, %v304, 0
      %v799 = vsel %vm511, %v305, 0
      %v801 = vsel %vm511, %v306, 0
      %v803 = vsel %vm511, %v307, 0
      %v805 = vsel %vm511, %v308, 0
      %v807 = vsel %vm511, %v309, 0
      %v809 = vsel %vm511, %v310, 0
      %v811 = vsel %vm511, %v311, 0
      %v813 = vsel %vm511, %v312, 0
      %v815 = vsel %vm511, %v313, 0
      %v817 = vsel %vm511, %v314, 0
      %v819 = vsel %vm511, %v315, 0
      %v821 = vsel %vm511, %v316, 0
      %v823 = vsel %vm511, %v317, 0
      %v825 = vsel %vm511, %v318, 0
      %v827 = vsel %vm511, %v319, 0
      %829 = vmatprep.subr.bf16.mxu0 0
      %830 = vmatpush1.bf16.msra.mxu0 0
      %831 = vmatprep.subr.bf16.mxu0 0
      %832 = vmatpush1.bf16.msra.mxu0 0
      %833 = vmatprep.subr.bf16.mxu0 0
      %834 = vmatpush1.bf16.msra.mxu0 0
      %835 = vmatprep.subr.bf16.mxu0 0
      %836 = vmatpush1.bf16.msra.mxu0 0
      %837 = vmatprep.subr.bf16.mxu0 0
      %838 = vmatpush1.bf16.msra.mxu0 0
      %839 = vmatprep.subr.bf16.mxu0 0
      %840 = vmatpush1.bf16.msra.mxu0 0
      %841 = vmatprep.subr.bf16.mxu0 0
      %842 = vmatpush1.bf16.msra.mxu0 %v784
      %843 = vmatprep.subr.bf16.mxu0 0
      %844 = vmatpush1.bf16.msra.mxu0 %v783
      %845 = vmatprep.subr.bf16.mxu0 0
      %846 = vmatpush2.bf16.msra.mxu0 0
      %847 = vmatprep.subr.bf16.mxu0 0
      %848 = vmatpush2.bf16.msra.mxu0 0
      %849 = vmatprep.subr.bf16.mxu0 0
      %850 = vmatpush2.bf16.msra.mxu0 0
      %851 = vmatprep.subr.bf16.mxu0 0
      %852 = vmatpush2.bf16.msra.mxu0 0
      %853 = vmatprep.subr.bf16.mxu0 0
      %854 = vmatpush2.bf16.msra.mxu0 0
      %855 = vmatprep.subr.bf16.mxu0 0
      %856 = vmatpush2.bf16.msra.mxu0 0
      %857 = vmatprep.subr.bf16.mxu0 0
      %858 = vmatpush2.bf16.msra.mxu0 0
      %859 = vmatprep.subr.bf16.mxu0 0
      %860 = vmatpush2.bf16.msra.mxu0 0
      %861 = vmatprep.mubr.bf16.mxu0 0
      %862 = vmatmul.mubr.bf16.gmra.mxu0 %v787
      %v863 = vpop.f32.mrf.mxu0
      %v864 = vadd.f32 %v610, %v863
      %v865 = vpop.f32.mrf.mxu0
      %v866 = vpop.f32.mrf.mxu0
      %v867 = vadd.f32 %v613, %v866
      %v868 = vpop.f32.mrf.mxu0
      %869 = vmatprep.mubr.bf16.mxu0 0
      %870 = vmatmul.mubr.bf16.gmra.mxu0 %v789
      %v871 = vpop.f32.mrf.mxu0
      %v872 = vadd.f32 %v618, %v871
      %v873 = vpop.f32.mrf.mxu0
      %v874 = vpop.f32.mrf.mxu0
      %v875 = vadd.f32 %v621, %v874
      %v876 = vpop.f32.mrf.mxu0
      %877 = vmatprep.mubr.bf16.mxu0 0
      %878 = vmatmul.mubr.bf16.gmra.mxu0 %v791
      %v879 = vpop.f32.mrf.mxu0
      %v880 = vadd.f32 %v626, %v879
      %v881 = vpop.f32.mrf.mxu0
      %v882 = vpop.f32.mrf.mxu0
      %v883 = vadd.f32 %v629, %v882
      %v884 = vpop.f32.mrf.mxu0
      %885 = vmatprep.mubr.bf16.mxu0 0
      %886 = vmatmul.mubr.bf16.gmra.mxu0 %v793
      %v887 = vpop.f32.mrf.mxu0
      %v888 = vadd.f32 %v634, %v887
      %v889 = vpop.f32.mrf.mxu0
      %v890 = vpop.f32.mrf.mxu0
      %v891 = vadd.f32 %v637, %v890
      %v892 = vpop.f32.mrf.mxu0
      %893 = vmatprep.mubr.bf16.mxu0 0
      %894 = vmatmul.mubr.bf16.gmra.mxu0 %v795
      %v895 = vpop.f32.mrf.mxu0
      %v896 = vadd.f32 %v642, %v895
      %v897 = vpop.f32.mrf.mxu0
      %v898 = vpop.f32.mrf.mxu0
      %v899 = vadd.f32 %v645, %v898
      %v900 = vpop.f32.mrf.mxu0
      %901 = vmatprep.mubr.bf16.mxu0 0
      %902 = vmatmul.mubr.bf16.gmra.mxu0 %v797
      %v903 = vpop.f32.mrf.mxu0
      %v904 = vadd.f32 %v650, %v903
      %v905 = vpop.f32.mrf.mxu0
      %v906 = vpop.f32.mrf.mxu0
      %v907 = vadd.f32 %v653, %v906
      %v908 = vpop.f32.mrf.mxu0
      %909 = vmatprep.mubr.bf16.mxu0 0
      %910 = vmatmul.mubr.bf16.gmra.mxu0 %v799
      %v911 = vpop.f32.mrf.mxu0
      %v912 = vadd.f32 %v658, %v911
      %v913 = vpop.f32.mrf.mxu0
      %v914 = vpop.f32.mrf.mxu0
      %v915 = vadd.f32 %v661, %v914
      %v916 = vpop.f32.mrf.mxu0
      %917 = vmatprep.mubr.bf16.mxu0 0
      %918 = vmatmul.mubr.bf16.gmra.mxu0 %v801
      %v919 = vpop.f32.mrf.mxu0
      %v920 = vadd.f32 %v666, %v919
      %v921 = vpop.f32.mrf.mxu0
      %v922 = vpop.f32.mrf.mxu0
      %v923 = vadd.f32 %v669, %v922
      %v924 = vpop.f32.mrf.mxu0
      %925 = vmatprep.mubr.bf16.mxu0 0
      %926 = vmatmul.mubr.bf16.gmra.mxu0 %v803
      %v927 = vpop.f32.mrf.mxu0
      %v928 = vadd.f32 %v674, %v927
      %v929 = vpop.f32.mrf.mxu0
      %v930 = vpop.f32.mrf.mxu0
      %v931 = vadd.f32 %v677, %v930
      %v932 = vpop.f32.mrf.mxu0
      %933 = vmatprep.mubr.bf16.mxu0 0
      %934 = vmatmul.mubr.bf16.gmra.mxu0 %v805
      %v935 = vpop.f32.mrf.mxu0
      %v936 = vadd.f32 %v682, %v935
      %v937 = vpop.f32.mrf.mxu0
      %v938 = vpop.f32.mrf.mxu0
      %v939 = vadd.f32 %v685, %v938
      %v940 = vpop.f32.mrf.mxu0
      %941 = vmatprep.mubr.bf16.mxu0 0
      %942 = vmatmul.mubr.bf16.gmra.mxu0 %v807
      %v943 = vpop.f32.mrf.mxu0
      %v944 = vadd.f32 %v690, %v943
      %v945 = vpop.f32.mrf.mxu0
      %v946 = vpop.f32.mrf.mxu0
      %v947 = vadd.f32 %v693, %v946
      %v948 = vpop.f32.mrf.mxu0
      %949 = vmatprep.mubr.bf16.mxu0 0
      %950 = vmatmul.mubr.bf16.gmra.mxu0 %v809
      %v951 = vpop.f32.mrf.mxu0
      %v952 = vadd.f32 %v698, %v951
      %v953 = vpop.f32.mrf.mxu0
      %v954 = vpop.f32.mrf.mxu0
      %v955 = vadd.f32 %v701, %v954
      %v956 = vpop.f32.mrf.mxu0
      %957 = vmatprep.mubr.bf16.mxu0 0
      %958 = vmatmul.mubr.bf16.gmra.mxu0 %v811
      %v959 = vpop.f32.mrf.mxu0
      %v960 = vadd.f32 %v706, %v959
      %v961 = vpop.f32.mrf.mxu0
      %v962 = vpop.f32.mrf.mxu0
      %v963 = vadd.f32 %v709, %v962
      %v964 = vpop.f32.mrf.mxu0
      %965 = vmatprep.mubr.bf16.mxu0 0
      %966 = vmatmul.mubr.bf16.gmra.mxu0 %v813
      %v967 = vpop.f32.mrf.mxu0
      %v968 = vadd.f32 %v714, %v967
      %v969 = vpop.f32.mrf.mxu0
      %v970 = vpop.f32.mrf.mxu0
      %v971 = vadd.f32 %v717, %v970
      %v972 = vpop.f32.mrf.mxu0
      %973 = vmatprep.mubr.bf16.mxu0 0
      %974 = vmatmul.mubr.bf16.gmra.mxu0 %v815
      %v975 = vpop.f32.mrf.mxu0
      %v976 = vadd.f32 %v722, %v975
      %v977 = vpop.f32.mrf.mxu0
      %v978 = vpop.f32.mrf.mxu0
      %v979 = vadd.f32 %v725, %v978
      %v980 = vpop.f32.mrf.mxu0
      %981 = vmatprep.mubr.bf16.mxu0 0
      %982 = vmatmul.mubr.bf16.gmra.mxu0 %v817
      %v983 = vpop.f32.mrf.mxu0
      %v984 = vadd.f32 %v730, %v983
      %v985 = vpop.f32.mrf.mxu0
      %v986 = vpop.f32.mrf.mxu0
      %v987 = vadd.f32 %v733, %v986
      %v988 = vpop.f32.mrf.mxu0
      %989 = vmatprep.mubr.bf16.mxu0 0
      %990 = vmatmul.mubr.bf16.gmra.mxu0 %v819
      %v991 = vpop.f32.mrf.mxu0
      %v992 = vadd.f32 %v738, %v991
      %v993 = vpop.f32.mrf.mxu0
      %v994 = vpop.f32.mrf.mxu0
      %v995 = vadd.f32 %v741, %v994
      %v996 = vpop.f32.mrf.mxu0
      %997 = vmatprep.mubr.bf16.mxu0 0
      %998 = vmatmul.mubr.bf16.gmra.mxu0 %v821
      %v999 = vpop.f32.mrf.mxu0
      %v1000 = vadd.f32 %v746, %v999
      %v1001 = vpop.f32.mrf.mxu0
      %v1002 = vpop.f32.mrf.mxu0
      %v1003 = vadd.f32 %v749, %v1002
      %v1004 = vpop.f32.mrf.mxu0
      %1005 = vmatprep.mubr.bf16.mxu0 0
      %1006 = vmatmul.mubr.bf16.gmra.mxu0 %v823
      %v1007 = vpop.f32.mrf.mxu0
      %v1008 = vadd.f32 %v754, %v1007
      %v1009 = vpop.f32.mrf.mxu0
      %v1010 = vpop.f32.mrf.mxu0
      %v1011 = vadd.f32 %v757, %v1010
      %v1012 = vpop.f32.mrf.mxu0
      %1013 = vmatprep.mubr.bf16.mxu0 0
      %1014 = vmatmul.mubr.bf16.gmra.mxu0 %v825
      %v1015 = vpop.f32.mrf.mxu0
      %v1016 = vadd.f32 %v762, %v1015
      %v1017 = vpop.f32.mrf.mxu0
      %v1018 = vpop.f32.mrf.mxu0
      %v1019 = vadd.f32 %v765, %v1018
      %v1020 = vpop.f32.mrf.mxu0
      %1021 = vmatprep.mubr.bf16.mxu0 0
      %1022 = vmatmul.mubr.bf16.gmra.mxu0 %v827
      %v1023 = vpop.f32.mrf.mxu0
      %v1024 = vadd.f32 %v770, %v1023
      %v1025 = vpop.f32.mrf.mxu0
      %v1026 = vpop.f32.mrf.mxu0
      %v1027 = vpop.f32.mrf.mxu0
      %1028 = vdwg.mxu0
      %s1029 = scalar_lea.vmem %s1, 32
      %v1030 = vld [vmem:[%s1029] sm:$0xf]
      %v1031 = vld [vmem:[%s1029 + $0x4] sm:$0xf]
      %v1032 = vld [vmem:[%s1029 + $0x8] sm:$0xf]
      %v1033 = vld [vmem:[%s1029 + $0xc] sm:$0xf]
      %vm1055 = vcmask 1046528
      %v1056 = vrot.slane %v299, 1
      %v1057 = vrot.slane %v300, 1
      %v1058 = vsel %vm1055, %v1056, %v1057
      %v1059 = vrot.slane %v301, 1
      %v1060 = vsel %vm1055, %v1057, %v1059
      %v1061 = vrot.slane %v302, 1
      %v1062 = vsel %vm1055, %v1059, %v1061
      %v1063 = vrot.slane %v303, 1
      %v1064 = vsel %vm1055, %v1061, %v1063
      %v1065 = vrot.slane %v304, 1
      %v1066 = vsel %vm1055, %v1063, %v1065
      %v1067 = vrot.slane %v305, 1
      %v1068 = vsel %vm1055, %v1065, %v1067
      %v1069 = vrot.slane %v306, 1
      %v1070 = vsel %vm1055, %v1067, %v1069
      %v1071 = vrot.slane %v307, 1
      %v1072 = vsel %vm1055, %v1069, %v1071
      %v1073 = vrot.slane %v308, 1
      %v1074 = vsel %vm1055, %v1071, %v1073
      %v1075 = vrot.slane %v309, 1
      %v1076 = vsel %vm1055, %v1073, %v1075
      %v1077 = vrot.slane %v310, 1
      %v1078 = vsel %vm1055, %v1075, %v1077
      %v1079 = vrot.slane %v311, 1
      %v1080 = vsel %vm1055, %v1077, %v1079
      %v1081 = vrot.slane %v312, 1
      %v1082 = vsel %vm1055, %v1079, %v1081
      %v1083 = vrot.slane %v313, 1
      %v1084 = vsel %vm1055, %v1081, %v1083
      %v1085 = vrot.slane %v314, 1
      %v1086 = vsel %vm1055, %v1083, %v1085
      %v1087 = vrot.slane %v315, 1
      %v1088 = vsel %vm1055, %v1085, %v1087
      %v1089 = vrot.slane %v316, 1
      %v1090 = vsel %vm1055, %v1087, %v1089
      %v1091 = vrot.slane %v317, 1
      %v1092 = vsel %vm1055, %v1089, %v1091
      %v1093 = vrot.slane %v318, 1
      %v1094 = vsel %vm1055, %v1091, %v1093
      %v1095 = vrot.slane %v319, 1
      %v1096 = vsel %vm1055, %v1093, %v1095
      %v1101 = vunpack.c.l.b16 %v1030
      %v1102 = vunpack.c.l.b16 %v1031
      %v1103 = vunpack.c.l.b16 %v1032
      %v1104 = vunpack.c.l.b16 %v1033
      %v1105 = vpack.c.b16 %v1102, %v1101
      %v1106 = vpack.c.b16 %v1104, %v1103
      %v1110 = vsel %vm511, %v1058, 0
      %v1113 = vsel %vm511, %v1060, 0
      %v1116 = vsel %vm511, %v1062, 0
      %v1119 = vsel %vm511, %v1064, 0
      %v1122 = vsel %vm511, %v1066, 0
      %v1125 = vsel %vm511, %v1068, 0
      %v1128 = vsel %vm511, %v1070, 0
      %v1131 = vsel %vm511, %v1072, 0
      %v1134 = vsel %vm511, %v1074, 0
      %v1137 = vsel %vm511, %v1076, 0
      %v1140 = vsel %vm511, %v1078, 0
      %v1143 = vsel %vm511, %v1080, 0
      %v1146 = vsel %vm511, %v1082, 0
      %v1149 = vsel %vm511, %v1084, 0
      %v1152 = vsel %vm511, %v1086, 0
      %v1155 = vsel %vm511, %v1088, 0
      %v1158 = vsel %vm511, %v1090, 0
      %v1161 = vsel %vm511, %v1092, 0
      %v1164 = vsel %vm511, %v1094, 0
      %v1167 = vsel %vm511, %v1096, 0
      %v1170 = vsel %vm511, %v1095, 0
      %1172 = vmatprep.subr.bf16.mxu0 0
      %1173 = vmatpush1.bf16.msra.mxu0 0
      %1174 = vmatprep.subr.bf16.mxu0 0
      %1175 = vmatpush1.bf16.msra.mxu0 0
      %1176 = vmatprep.subr.bf16.mxu0 0
      %1177 = vmatpush1.bf16.msra.mxu0 0
      %1178 = vmatprep.subr.bf16.mxu0 0
      %1179 = vmatpush1.bf16.msra.mxu0 0
      %1180 = vmatprep.subr.bf16.mxu0 0
      %1181 = vmatpush1.bf16.msra.mxu0 0
      %1182 = vmatprep.subr.bf16.mxu0 0
      %1183 = vmatpush1.bf16.msra.mxu0 0
      %1184 = vmatprep.subr.bf16.mxu0 0
      %1185 = vmatpush1.bf16.msra.mxu0 %v1106
      %1186 = vmatprep.subr.bf16.mxu0 0
      %1187 = vmatpush1.bf16.msra.mxu0 %v1105
      %1188 = vmatprep.subr.bf16.mxu0 0
      %1189 = vmatpush2.bf16.msra.mxu0 0
      %1190 = vmatprep.subr.bf16.mxu0 0
      %1191 = vmatpush2.bf16.msra.mxu0 0
      %1192 = vmatprep.subr.bf16.mxu0 0
      %1193 = vmatpush2.bf16.msra.mxu0 0
      %1194 = vmatprep.subr.bf16.mxu0 0
      %1195 = vmatpush2.bf16.msra.mxu0 0
      %1196 = vmatprep.subr.bf16.mxu0 0
      %1197 = vmatpush2.bf16.msra.mxu0 0
      %1198 = vmatprep.subr.bf16.mxu0 0
      %1199 = vmatpush2.bf16.msra.mxu0 0
      %1200 = vmatprep.subr.bf16.mxu0 0
      %1201 = vmatpush2.bf16.msra.mxu0 0
      %1202 = vmatprep.subr.bf16.mxu0 0
      %1203 = vmatpush2.bf16.msra.mxu0 0
      %1204 = vmatprep.mubr.bf16.mxu0 0
      %1205 = vmatmul.mubr.bf16.gmra.mxu0 %v1110
      %v1206 = vpop.f32.mrf.mxu0
      %v1207 = vadd.f32 0.0, %v1206
      %v1208 = vpop.f32.mrf.mxu0
      %v1209 = vpop.f32.mrf.mxu0
      %v1210 = vadd.f32 0.0, %v1209
      %v1211 = vpop.f32.mrf.mxu0
      %1212 = vmatprep.mubr.bf16.mxu0 0
      %1213 = vmatmul.mubr.bf16.gmra.mxu0 %v1113
      %v1214 = vpop.f32.mrf.mxu0
      %v1215 = vadd.f32 0.0, %v1214
      %v1216 = vpop.f32.mrf.mxu0
      %v1217 = vpop.f32.mrf.mxu0
      %v1218 = vadd.f32 0.0, %v1217
      %v1219 = vpop.f32.mrf.mxu0
      %1220 = vmatprep.mubr.bf16.mxu0 0
      %1221 = vmatmul.mubr.bf16.gmra.mxu0 %v1116
      %v1222 = vpop.f32.mrf.mxu0
      %v1223 = vadd.f32 0.0, %v1222
      %v1224 = vpop.f32.mrf.mxu0
      %v1225 = vpop.f32.mrf.mxu0
      %v1226 = vadd.f32 0.0, %v1225
      %v1227 = vpop.f32.mrf.mxu0
      %1228 = vmatprep.mubr.bf16.mxu0 0
      %1229 = vmatmul.mubr.bf16.gmra.mxu0 %v1119
      %v1230 = vpop.f32.mrf.mxu0
      %v1231 = vadd.f32 0.0, %v1230
      %v1232 = vpop.f32.mrf.mxu0
      %v1233 = vpop.f32.mrf.mxu0
      %v1234 = vadd.f32 0.0, %v1233
      %v1235 = vpop.f32.mrf.mxu0
      %1236 = vmatprep.mubr.bf16.mxu0 0
      %1237 = vmatmul.mubr.bf16.gmra.mxu0 %v1122
      %v1238 = vpop.f32.mrf.mxu0
      %v1239 = vadd.f32 0.0, %v1238
      %v1240 = vpop.f32.mrf.mxu0
      %v1241 = vpop.f32.mrf.mxu0
      %v1242 = vadd.f32 0.0, %v1241
      %v1243 = vpop.f32.mrf.mxu0
      %1244 = vmatprep.mubr.bf16.mxu0 0
      %1245 = vmatmul.mubr.bf16.gmra.mxu0 %v1125
      %v1246 = vpop.f32.mrf.mxu0
      %v1247 = vadd.f32 0.0, %v1246
      %v1248 = vpop.f32.mrf.mxu0
      %v1249 = vpop.f32.mrf.mxu0
      %v1250 = vadd.f32 0.0, %v1249
      %v1251 = vpop.f32.mrf.mxu0
      %1252 = vmatprep.mubr.bf16.mxu0 0
      %1253 = vmatmul.mubr.bf16.gmra.mxu0 %v1128
      %v1254 = vpop.f32.mrf.mxu0
      %v1255 = vadd.f32 0.0, %v1254
      %v1256 = vpop.f32.mrf.mxu0
      %v1257 = vpop.f32.mrf.mxu0
      %v1258 = vadd.f32 0.0, %v1257
      %v1259 = vpop.f32.mrf.mxu0
      %1260 = vmatprep.mubr.bf16.mxu0 0
      %1261 = vmatmul.mubr.bf16.gmra.mxu0 %v1131
      %v1262 = vpop.f32.mrf.mxu0
      %v1263 = vadd.f32 0.0, %v1262
      %v1264 = vpop.f32.mrf.mxu0
      %v1265 = vpop.f32.mrf.mxu0
      %v1266 = vadd.f32 0.0, %v1265
      %v1267 = vpop.f32.mrf.mxu0
      %1268 = vmatprep.mubr.bf16.mxu0 0
      %1269 = vmatmul.mubr.bf16.gmra.mxu0 %v1134
      %v1270 = vpop.f32.mrf.mxu0
      %v1271 = vadd.f32 0.0, %v1270
      %v1272 = vpop.f32.mrf.mxu0
      %v1273 = vpop.f32.mrf.mxu0
      %v1274 = vadd.f32 0.0, %v1273
      %v1275 = vpop.f32.mrf.mxu0
      %1276 = vmatprep.mubr.bf16.mxu0 0
      %1277 = vmatmul.mubr.bf16.gmra.mxu0 %v1137
      %v1278 = vpop.f32.mrf.mxu0
      %v1279 = vadd.f32 0.0, %v1278
      %v1280 = vpop.f32.mrf.mxu0
      %v1281 = vpop.f32.mrf.mxu0
      %v1282 = vadd.f32 0.0, %v1281
      %v1283 = vpop.f32.mrf.mxu0
      %1284 = vmatprep.mubr.bf16.mxu0 0
      %1285 = vmatmul.mubr.bf16.gmra.mxu0 %v1140
      %v1286 = vpop.f32.mrf.mxu0
      %v1287 = vadd.f32 0.0, %v1286
      %v1288 = vpop.f32.mrf.mxu0
      %v1289 = vpop.f32.mrf.mxu0
      %v1290 = vadd.f32 0.0, %v1289
      %v1291 = vpop.f32.mrf.mxu0
      %1292 = vmatprep.mubr.bf16.mxu0 0
      %1293 = vmatmul.mubr.bf16.gmra.mxu0 %v1143
      %v1294 = vpop.f32.mrf.mxu0
      %v1295 = vadd.f32 0.0, %v1294
      %v1296 = vpop.f32.mrf.mxu0
      %v1297 = vpop.f32.mrf.mxu0
      %v1298 = vadd.f32 0.0, %v1297
      %v1299 = vpop.f32.mrf.mxu0
      %1300 = vmatprep.mubr.bf16.mxu0 0
      %1301 = vmatmul.mubr.bf16.gmra.mxu0 %v1146
      %v1302 = vpop.f32.mrf.mxu0
      %v1303 = vadd.f32 0.0, %v1302
      %v1304 = vpop.f32.mrf.mxu0
      %v1305 = vpop.f32.mrf.mxu0
      %v1306 = vadd.f32 0.0, %v1305
      %v1307 = vpop.f32.mrf.mxu0
      %1308 = vmatprep.mubr.bf16.mxu0 0
      %1309 = vmatmul.mubr.bf16.gmra.mxu0 %v1149
      %v1310 = vpop.f32.mrf.mxu0
      %v1311 = vadd.f32 0.0, %v1310
      %v1312 = vpop.f32.mrf.mxu0
      %v1313 = vpop.f32.mrf.mxu0
      %v1314 = vadd.f32 0.0, %v1313
      %v1315 = vpop.f32.mrf.mxu0
      %1316 = vmatprep.mubr.bf16.mxu0 0
      %1317 = vmatmul.mubr.bf16.gmra.mxu0 %v1152
      %v1318 = vpop.f32.mrf.mxu0
      %v1319 = vadd.f32 0.0, %v1318
      %v1320 = vpop.f32.mrf.mxu0
      %v1321 = vpop.f32.mrf.mxu0
      %v1322 = vadd.f32 0.0, %v1321
      %v1323 = vpop.f32.mrf.mxu0
      %1324 = vmatprep.mubr.bf16.mxu0 0
      %1325 = vmatmul.mubr.bf16.gmra.mxu0 %v1155
      %v1326 = vpop.f32.mrf.mxu0
      %v1327 = vadd.f32 0.0, %v1326
      %v1328 = vpop.f32.mrf.mxu0
      %v1329 = vpop.f32.mrf.mxu0
      %v1330 = vadd.f32 0.0, %v1329
      %v1331 = vpop.f32.mrf.mxu0
      %1332 = vmatprep.mubr.bf16.mxu0 0
      %1333 = vmatmul.mubr.bf16.gmra.mxu0 %v1158
      %v1334 = vpop.f32.mrf.mxu0
      %v1335 = vadd.f32 0.0, %v1334
      %v1336 = vpop.f32.mrf.mxu0
      %v1337 = vpop.f32.mrf.mxu0
      %v1338 = vadd.f32 0.0, %v1337
      %v1339 = vpop.f32.mrf.mxu0
      %1340 = vmatprep.mubr.bf16.mxu0 0
      %1341 = vmatmul.mubr.bf16.gmra.mxu0 %v1161
      %v1342 = vpop.f32.mrf.mxu0
      %v1343 = vadd.f32 0.0, %v1342
      %v1344 = vpop.f32.mrf.mxu0
      %v1345 = vpop.f32.mrf.mxu0
      %v1346 = vadd.f32 0.0, %v1345
      %v1347 = vpop.f32.mrf.mxu0
      %1348 = vmatprep.mubr.bf16.mxu0 0
      %1349 = vmatmul.mubr.bf16.gmra.mxu0 %v1164
      %v1350 = vpop.f32.mrf.mxu0
      %v1351 = vadd.f32 0.0, %v1350
      %v1352 = vpop.f32.mrf.mxu0
      %v1353 = vpop.f32.mrf.mxu0
      %v1354 = vadd.f32 0.0, %v1353
      %v1355 = vpop.f32.mrf.mxu0
      %1356 = vmatprep.mubr.bf16.mxu0 0
      %1357 = vmatmul.mubr.bf16.gmra.mxu0 %v1167
      %v1358 = vpop.f32.mrf.mxu0
      %v1359 = vadd.f32 0.0, %v1358
      %v1360 = vpop.f32.mrf.mxu0
      %v1361 = vpop.f32.mrf.mxu0
      %v1362 = vadd.f32 0.0, %v1361
      %v1363 = vpop.f32.mrf.mxu0
      %1364 = vmatprep.mubr.bf16.mxu0 0
      %1365 = vmatmul.mubr.bf16.gmra.mxu0 %v1170
      %v1366 = vpop.f32.mrf.mxu0
      %v1367 = vadd.f32 0.0, %v1366
      %v1368 = vpop.f32.mrf.mxu0
      %v1369 = vpop.f32.mrf.mxu0
      %v1370 = vpop.f32.mrf.mxu0
      %1371 = vdwg.mxu0
      %v1372 = vadd.f32 %v864, %v1207
      %v1373 = vadd.f32 %v867, %v1210
      %v1374 = vadd.f32 %v872, %v1215
      %v1375 = vadd.f32 %v875, %v1218
      %v1376 = vadd.f32 %v880, %v1223
      %v1377 = vadd.f32 %v883, %v1226
      %v1378 = vadd.f32 %v888, %v1231
      %v1379 = vadd.f32 %v891, %v1234
      %v1380 = vadd.f32 %v896, %v1239
      %v1381 = vadd.f32 %v899, %v1242
      %v1382 = vadd.f32 %v904, %v1247
      %v1383 = vadd.f32 %v907, %v1250
      %v1384 = vadd.f32 %v912, %v1255
      %v1385 = vadd.f32 %v915, %v1258
      %v1386 = vadd.f32 %v920, %v1263
      %v1387 = vadd.f32 %v923, %v1266
      %v1388 = vadd.f32 %v928, %v1271
      %v1389 = vadd.f32 %v931, %v1274
      %v1390 = vadd.f32 %v936, %v1279
      %v1391 = vadd.f32 %v939, %v1282
      %v1392 = vadd.f32 %v944, %v1287
      %v1393 = vadd.f32 %v947, %v1290
      %v1394 = vadd.f32 %v952, %v1295
      %v1395 = vadd.f32 %v955, %v1298
      %v1396 = vadd.f32 %v960, %v1303
      %v1397 = vadd.f32 %v963, %v1306
      %v1398 = vadd.f32 %v968, %v1311
      %v1399 = vadd.f32 %v971, %v1314
      %v1400 = vadd.f32 %v976, %v1319
      %v1401 = vadd.f32 %v979, %v1322
      %v1402 = vadd.f32 %v984, %v1327
      %v1403 = vadd.f32 %v987, %v1330
      %v1404 = vadd.f32 %v992, %v1335
      %v1405 = vadd.f32 %v995, %v1338
      %v1406 = vadd.f32 %v1000, %v1343
      %v1407 = vadd.f32 %v1003, %v1346
      %v1408 = vadd.f32 %v1008, %v1351
      %v1409 = vadd.f32 %v1011, %v1354
      %v1410 = vadd.f32 %v1016, %v1359
      %v1411 = vadd.f32 %v1019, %v1362
      %v1412 = vadd.f32 %v1024, %v1367
      %s1413 = scalar_lea.vmem %s1, 48
      %v1414 = vld [vmem:[%s1413] sm:$0xf]
      %v1415 = vld [vmem:[%s1413 + $0x4] sm:$0xf]
      %v1416 = vld [vmem:[%s1413 + $0x8] sm:$0xf]
      %v1417 = vld [vmem:[%s1413 + $0xc] sm:$0xf]
      %v1419 = vrot.slane %v320, 1
      %v1420 = vsel %vm1055, %v1095, %v1419
      %v1425 = vunpack.c.l.b16 %v1414
      %v1426 = vunpack.c.l.b16 %v1415
      %v1427 = vunpack.c.l.b16 %v1416
      %v1428 = vunpack.c.l.b16 %v1417
      %v1429 = vpack.c.b16 %v1426, %v1425
      %v1430 = vpack.c.b16 %v1428, %v1427
      %v1434 = vsel %vm511, %v1420, 0
      %v1437 = vsel %vm511, %v1419, 0
      %1439 = vmatprep.subr.bf16.mxu0 0
      %1440 = vmatpush1.bf16.msra.mxu0 0
      %1441 = vmatprep.subr.bf16.mxu0 0
      %1442 = vmatpush1.bf16.msra.mxu0 0
      %1443 = vmatprep.subr.bf16.mxu0 0
      %1444 = vmatpush1.bf16.msra.mxu0 0
      %1445 = vmatprep.subr.bf16.mxu0 0
      %1446 = vmatpush1.bf16.msra.mxu0 0
      %1447 = vmatprep.subr.bf16.mxu0 0
      %1448 = vmatpush1.bf16.msra.mxu0 0
      %1449 = vmatprep.subr.bf16.mxu0 0
      %1450 = vmatpush1.bf16.msra.mxu0 0
      %1451 = vmatprep.subr.bf16.mxu0 0
      %1452 = vmatpush1.bf16.msra.mxu0 %v1430
      %1453 = vmatprep.subr.bf16.mxu0 0
      %1454 = vmatpush1.bf16.msra.mxu0 %v1429
      %1455 = vmatprep.subr.bf16.mxu0 0
      %1456 = vmatpush2.bf16.msra.mxu0 0
      %1457 = vmatprep.subr.bf16.mxu0 0
      %1458 = vmatpush2.bf16.msra.mxu0 0
      %1459 = vmatprep.subr.bf16.mxu0 0
      %1460 = vmatpush2.bf16.msra.mxu0 0
      %1461 = vmatprep.subr.bf16.mxu0 0
      %1462 = vmatpush2.bf16.msra.mxu0 0
      %1463 = vmatprep.subr.bf16.mxu0 0
      %1464 = vmatpush2.bf16.msra.mxu0 0
      %1465 = vmatprep.subr.bf16.mxu0 0
      %1466 = vmatpush2.bf16.msra.mxu0 0
      %1467 = vmatprep.subr.bf16.mxu0 0
      %1468 = vmatpush2.bf16.msra.mxu0 0
      %1469 = vmatprep.subr.bf16.mxu0 0
      %1470 = vmatpush2.bf16.msra.mxu0 0
      %1471 = vmatprep.mubr.bf16.mxu0 0
      %1472 = vmatmul.mubr.bf16.gmra.mxu0 %v1113
      %v1473 = vpop.f32.mrf.mxu0
      %v1474 = vadd.f32 0.0, %v1473
      %v1475 = vpop.f32.mrf.mxu0
      %v1476 = vpop.f32.mrf.mxu0
      %v1477 = vadd.f32 0.0, %v1476
      %v1478 = vpop.f32.mrf.mxu0
      %1479 = vmatprep.mubr.bf16.mxu0 0
      %1480 = vmatmul.mubr.bf16.gmra.mxu0 %v1116
      %v1481 = vpop.f32.mrf.mxu0
      %v1482 = vadd.f32 0.0, %v1481
      %v1483 = vpop.f32.mrf.mxu0
      %v1484 = vpop.f32.mrf.mxu0
      %v1485 = vadd.f32 0.0, %v1484
      %v1486 = vpop.f32.mrf.mxu0
      %1487 = vmatprep.mubr.bf16.mxu0 0
      %1488 = vmatmul.mubr.bf16.gmra.mxu0 %v1119
      %v1489 = vpop.f32.mrf.mxu0
      %v1490 = vadd.f32 0.0, %v1489
      %v1491 = vpop.f32.mrf.mxu0
      %v1492 = vpop.f32.mrf.mxu0
      %v1493 = vadd.f32 0.0, %v1492
      %v1494 = vpop.f32.mrf.mxu0
      %1495 = vmatprep.mubr.bf16.mxu0 0
      %1496 = vmatmul.mubr.bf16.gmra.mxu0 %v1122
      %v1497 = vpop.f32.mrf.mxu0
      %v1498 = vadd.f32 0.0, %v1497
      %v1499 = vpop.f32.mrf.mxu0
      %v1500 = vpop.f32.mrf.mxu0
      %v1501 = vadd.f32 0.0, %v1500
      %v1502 = vpop.f32.mrf.mxu0
      %1503 = vmatprep.mubr.bf16.mxu0 0
      %1504 = vmatmul.mubr.bf16.gmra.mxu0 %v1125
      %v1505 = vpop.f32.mrf.mxu0
      %v1506 = vadd.f32 0.0, %v1505
      %v1507 = vpop.f32.mrf.mxu0
      %v1508 = vpop.f32.mrf.mxu0
      %v1509 = vadd.f32 0.0, %v1508
      %v1510 = vpop.f32.mrf.mxu0
      %1511 = vmatprep.mubr.bf16.mxu0 0
      %1512 = vmatmul.mubr.bf16.gmra.mxu0 %v1128
      %v1513 = vpop.f32.mrf.mxu0
      %v1514 = vadd.f32 0.0, %v1513
      %v1515 = vpop.f32.mrf.mxu0
      %v1516 = vpop.f32.mrf.mxu0
      %v1517 = vadd.f32 0.0, %v1516
      %v1518 = vpop.f32.mrf.mxu0
      %1519 = vmatprep.mubr.bf16.mxu0 0
      %1520 = vmatmul.mubr.bf16.gmra.mxu0 %v1131
      %v1521 = vpop.f32.mrf.mxu0
      %v1522 = vadd.f32 0.0, %v1521
      %v1523 = vpop.f32.mrf.mxu0
      %v1524 = vpop.f32.mrf.mxu0
      %v1525 = vadd.f32 0.0, %v1524
      %v1526 = vpop.f32.mrf.mxu0
      %1527 = vmatprep.mubr.bf16.mxu0 0
      %1528 = vmatmul.mubr.bf16.gmra.mxu0 %v1134
      %v1529 = vpop.f32.mrf.mxu0
      %v1530 = vadd.f32 0.0, %v1529
      %v1531 = vpop.f32.mrf.mxu0
      %v1532 = vpop.f32.mrf.mxu0
      %v1533 = vadd.f32 0.0, %v1532
      %v1534 = vpop.f32.mrf.mxu0
      %1535 = vmatprep.mubr.bf16.mxu0 0
      %1536 = vmatmul.mubr.bf16.gmra.mxu0 %v1137
      %v1537 = vpop.f32.mrf.mxu0
      %v1538 = vadd.f32 0.0, %v1537
      %v1539 = vpop.f32.mrf.mxu0
      %v1540 = vpop.f32.mrf.mxu0
      %v1541 = vadd.f32 0.0, %v1540
      %v1542 = vpop.f32.mrf.mxu0
      %1543 = vmatprep.mubr.bf16.mxu0 0
      %1544 = vmatmul.mubr.bf16.gmra.mxu0 %v1140
      %v1545 = vpop.f32.mrf.mxu0
      %v1546 = vadd.f32 0.0, %v1545
      %v1547 = vpop.f32.mrf.mxu0
      %v1548 = vpop.f32.mrf.mxu0
      %v1549 = vadd.f32 0.0, %v1548
      %v1550 = vpop.f32.mrf.mxu0
      %1551 = vmatprep.mubr.bf16.mxu0 0
      %1552 = vmatmul.mubr.bf16.gmra.mxu0 %v1143
      %v1553 = vpop.f32.mrf.mxu0
      %v1554 = vadd.f32 0.0, %v1553
      %v1555 = vpop.f32.mrf.mxu0
      %v1556 = vpop.f32.mrf.mxu0
      %v1557 = vadd.f32 0.0, %v1556
      %v1558 = vpop.f32.mrf.mxu0
      %1559 = vmatprep.mubr.bf16.mxu0 0
      %1560 = vmatmul.mubr.bf16.gmra.mxu0 %v1146
      %v1561 = vpop.f32.mrf.mxu0
      %v1562 = vadd.f32 0.0, %v1561
      %v1563 = vpop.f32.mrf.mxu0
      %v1564 = vpop.f32.mrf.mxu0
      %v1565 = vadd.f32 0.0, %v1564
      %v1566 = vpop.f32.mrf.mxu0
      %1567 = vmatprep.mubr.bf16.mxu0 0
      %1568 = vmatmul.mubr.bf16.gmra.mxu0 %v1149
      %v1569 = vpop.f32.mrf.mxu0
      %v1570 = vadd.f32 0.0, %v1569
      %v1571 = vpop.f32.mrf.mxu0
      %v1572 = vpop.f32.mrf.mxu0
      %v1573 = vadd.f32 0.0, %v1572
      %v1574 = vpop.f32.mrf.mxu0
      %1575 = vmatprep.mubr.bf16.mxu0 0
      %1576 = vmatmul.mubr.bf16.gmra.mxu0 %v1152
      %v1577 = vpop.f32.mrf.mxu0
      %v1578 = vadd.f32 0.0, %v1577
      %v1579 = vpop.f32.mrf.mxu0
      %v1580 = vpop.f32.mrf.mxu0
      %v1581 = vadd.f32 0.0, %v1580
      %v1582 = vpop.f32.mrf.mxu0
      %1583 = vmatprep.mubr.bf16.mxu0 0
      %1584 = vmatmul.mubr.bf16.gmra.mxu0 %v1155
      %v1585 = vpop.f32.mrf.mxu0
      %v1586 = vadd.f32 0.0, %v1585
      %v1587 = vpop.f32.mrf.mxu0
      %v1588 = vpop.f32.mrf.mxu0
      %v1589 = vadd.f32 0.0, %v1588
      %v1590 = vpop.f32.mrf.mxu0
      %1591 = vmatprep.mubr.bf16.mxu0 0
      %1592 = vmatmul.mubr.bf16.gmra.mxu0 %v1158
      %v1593 = vpop.f32.mrf.mxu0
      %v1594 = vadd.f32 0.0, %v1593
      %v1595 = vpop.f32.mrf.mxu0
      %v1596 = vpop.f32.mrf.mxu0
      %v1597 = vadd.f32 0.0, %v1596
      %v1598 = vpop.f32.mrf.mxu0
      %1599 = vmatprep.mubr.bf16.mxu0 0
      %1600 = vmatmul.mubr.bf16.gmra.mxu0 %v1161
      %v1601 = vpop.f32.mrf.mxu0
      %v1602 = vadd.f32 0.0, %v1601
      %v1603 = vpop.f32.mrf.mxu0
      %v1604 = vpop.f32.mrf.mxu0
      %v1605 = vadd.f32 0.0, %v1604
      %v1606 = vpop.f32.mrf.mxu0
      %1607 = vmatprep.mubr.bf16.mxu0 0
      %1608 = vmatmul.mubr.bf16.gmra.mxu0 %v1164
      %v1609 = vpop.f32.mrf.mxu0
      %v1610 = vadd.f32 0.0, %v1609
      %v1611 = vpop.f32.mrf.mxu0
      %v1612 = vpop.f32.mrf.mxu0
      %v1613 = vadd.f32 0.0, %v1612
      %v1614 = vpop.f32.mrf.mxu0
      %1615 = vmatprep.mubr.bf16.mxu0 0
      %1616 = vmatmul.mubr.bf16.gmra.mxu0 %v1167
      %v1617 = vpop.f32.mrf.mxu0
      %v1618 = vadd.f32 0.0, %v1617
      %v1619 = vpop.f32.mrf.mxu0
      %v1620 = vpop.f32.mrf.mxu0
      %v1621 = vadd.f32 0.0, %v1620
      %v1622 = vpop.f32.mrf.mxu0
      %1623 = vmatprep.mubr.bf16.mxu0 0
      %1624 = vmatmul.mubr.bf16.gmra.mxu0 %v1434
      %v1625 = vpop.f32.mrf.mxu0
      %v1626 = vadd.f32 0.0, %v1625
      %v1627 = vpop.f32.mrf.mxu0
      %v1628 = vpop.f32.mrf.mxu0
      %v1629 = vadd.f32 0.0, %v1628
      %v1630 = vpop.f32.mrf.mxu0
      %1631 = vmatprep.mubr.bf16.mxu0 0
      %1632 = vmatmul.mubr.bf16.gmra.mxu0 %v1437
      %v1633 = vpop.f32.mrf.mxu0
      %v1634 = vadd.f32 0.0, %v1633
      %v1635 = vpop.f32.mrf.mxu0
      %v1636 = vpop.f32.mrf.mxu0
      %v1637 = vpop.f32.mrf.mxu0
      %1638 = vdwg.mxu0
      %v1639 = vadd.f32 %v1372, %v1474
      %v1640 = vadd.f32 %v1373, %v1477
      %v1641 = vadd.f32 %v1374, %v1482
      %v1642 = vadd.f32 %v1375, %v1485
      %v1643 = vadd.f32 %v1376, %v1490
      %v1644 = vadd.f32 %v1377, %v1493
      %v1645 = vadd.f32 %v1378, %v1498
      %v1646 = vadd.f32 %v1379, %v1501
      %v1647 = vadd.f32 %v1380, %v1506
      %v1648 = vadd.f32 %v1381, %v1509
      %v1649 = vadd.f32 %v1382, %v1514
      %v1650 = vadd.f32 %v1383, %v1517
      %v1651 = vadd.f32 %v1384, %v1522
      %v1652 = vadd.f32 %v1385, %v1525
      %v1653 = vadd.f32 %v1386, %v1530
      %v1654 = vadd.f32 %v1387, %v1533
      %v1655 = vadd.f32 %v1388, %v1538
      %v1656 = vadd.f32 %v1389, %v1541
      %v1657 = vadd.f32 %v1390, %v1546
      %v1658 = vadd.f32 %v1391, %v1549
      %v1659 = vadd.f32 %v1392, %v1554
      %v1660 = vadd.f32 %v1393, %v1557
      %v1661 = vadd.f32 %v1394, %v1562
      %v1662 = vadd.f32 %v1395, %v1565
      %v1663 = vadd.f32 %v1396, %v1570
      %v1664 = vadd.f32 %v1397, %v1573
      %v1665 = vadd.f32 %v1398, %v1578
      %v1666 = vadd.f32 %v1399, %v1581
      %v1667 = vadd.f32 %v1400, %v1586
      %v1668 = vadd.f32 %v1401, %v1589
      %v1669 = vadd.f32 %v1402, %v1594
      %v1670 = vadd.f32 %v1403, %v1597
      %v1671 = vadd.f32 %v1404, %v1602
      %v1672 = vadd.f32 %v1405, %v1605
      %v1673 = vadd.f32 %v1406, %v1610
      %v1674 = vadd.f32 %v1407, %v1613
      %v1675 = vadd.f32 %v1408, %v1618
      %v1676 = vadd.f32 %v1409, %v1621
      %v1677 = vadd.f32 %v1410, %v1626
      %v1678 = vadd.f32 %v1411, %v1629
      %v1679 = vadd.f32 %v1412, %v1634
      %s1680 = scalar_lea.vmem %s1, 64
      %v1681 = vld [vmem:[%s1680] sm:$0xf]
      %v1682 = vld [vmem:[%s1680 + $0x4] sm:$0xf]
      %v1683 = vld [vmem:[%s1680 + $0x8] sm:$0xf]
      %v1684 = vld [vmem:[%s1680 + $0xc] sm:$0xf]
      %vm1685 = vsmask.f32 6400
      %v1686 = vrot.slane %v344, 1
      %v1687 = vrot.slane %v340, 2
      %v1688 = vor.u32 %v1686, %v1687
      %v1689 = vrot.slane %v352, 1
      %v1690 = vrot.slane %v348, 2
      %v1691 = vor.u32 %v1689, %v1690
      %v1692 = vsel %vm1685, %v1688, %v1691
      %v1693 = vrot.slane %v360, 1
      %v1694 = vrot.slane %v356, 2
      %v1695 = vor.u32 %v1693, %v1694
      %v1696 = vsel %vm1685, %v1691, %v1695
      %v1697 = vrot.slane %v368, 1
      %v1698 = vrot.slane %v364, 2
      %v1699 = vor.u32 %v1697, %v1698
      %v1700 = vsel %vm1685, %v1695, %v1699
      %v1701 = vrot.slane %v376, 1
      %v1702 = vrot.slane %v372, 2
      %v1703 = vor.u32 %v1701, %v1702
      %v1704 = vsel %vm1685, %v1699, %v1703
      %v1705 = vrot.slane %v384, 1
      %v1706 = vrot.slane %v380, 2
      %v1707 = vor.u32 %v1705, %v1706
      %v1708 = vsel %vm1685, %v1703, %v1707
      %v1709 = vrot.slane %v392, 1
      %v1710 = vrot.slane %v388, 2
      %v1711 = vor.u32 %v1709, %v1710
      %v1712 = vsel %vm1685, %v1707, %v1711
      %v1713 = vrot.slane %v400, 1
      %v1714 = vrot.slane %v396, 2
      %v1715 = vor.u32 %v1713, %v1714
      %v1716 = vsel %vm1685, %v1711, %v1715
      %v1717 = vrot.slane %v408, 1
      %v1718 = vrot.slane %v404, 2
      %v1719 = vor.u32 %v1717, %v1718
      %v1720 = vsel %vm1685, %v1715, %v1719
      %v1721 = vrot.slane %v416, 1
      %v1722 = vrot.slane %v412, 2
      %v1723 = vor.u32 %v1721, %v1722
      %v1724 = vsel %vm1685, %v1719, %v1723
      %v1725 = vrot.slane %v424, 1
      %v1726 = vrot.slane %v420, 2
      %v1727 = vor.u32 %v1725, %v1726
      %v1728 = vsel %vm1685, %v1723, %v1727
      %v1729 = vrot.slane %v432, 1
      %v1730 = vrot.slane %v428, 2
      %v1731 = vor.u32 %v1729, %v1730
      %v1732 = vsel %vm1685, %v1727, %v1731
      %v1733 = vrot.slane %v440, 1
      %v1734 = vrot.slane %v436, 2
      %v1735 = vor.u32 %v1733, %v1734
      %v1736 = vsel %vm1685, %v1731, %v1735
      %v1737 = vrot.slane %v448, 1
      %v1738 = vrot.slane %v444, 2
      %v1739 = vor.u32 %v1737, %v1738
      %v1740 = vsel %vm1685, %v1735, %v1739
      %v1741 = vrot.slane %v456, 1
      %v1742 = vrot.slane %v452, 2
      %v1743 = vor.u32 %v1741, %v1742
      %v1744 = vsel %vm1685, %v1739, %v1743
      %v1745 = vrot.slane %v464, 1
      %v1746 = vrot.slane %v460, 2
      %v1747 = vor.u32 %v1745, %v1746
      %v1748 = vsel %vm1685, %v1743, %v1747
      %v1749 = vrot.slane %v472, 1
      %v1750 = vrot.slane %v468, 2
      %v1751 = vor.u32 %v1749, %v1750
      %v1752 = vsel %vm1685, %v1747, %v1751
      %v1753 = vrot.slane %v480, 1
      %v1754 = vrot.slane %v476, 2
      %v1755 = vor.u32 %v1753, %v1754
      %v1756 = vsel %vm1685, %v1751, %v1755
      %v1757 = vrot.slane %v488, 1
      %v1758 = vrot.slane %v484, 2
      %v1759 = vor.u32 %v1757, %v1758
      %v1760 = vsel %vm1685, %v1755, %v1759
      %v1761 = vrot.slane %v496, 1
      %v1762 = vrot.slane %v492, 2
      %v1763 = vor.u32 %v1761, %v1762
      %v1764 = vsel %vm1685, %v1759, %v1763
      %v1766 = vshrl.u32 %v320, 16
      %v1768 = vrot.slane %v1766, 1
      %v1769 = vshll.u32 %v320, 16
      %v1771 = vrot.slane %v1769, 2
      %v1772 = vor.u32 %v1768, %v1771
      %v1773 = vsel %vm1685, %v1763, %v1772
      %v1778 = vunpack.c.l.b16 %v1681
      %v1779 = vunpack.c.l.b16 %v1682
      %v1780 = vunpack.c.l.b16 %v1683
      %v1781 = vunpack.c.l.b16 %v1684
      %v1782 = vpack.c.b16 %v1779, %v1778
      %v1783 = vpack.c.b16 %v1781, %v1780
      %v1787 = vsel %vm511, %v1692, 0
      %v1790 = vsel %vm511, %v1696, 0
      %v1793 = vsel %vm511, %v1700, 0
      %v1796 = vsel %vm511, %v1704, 0
      %v1799 = vsel %vm511, %v1708, 0
      %v1802 = vsel %vm511, %v1712, 0
      %v1805 = vsel %vm511, %v1716, 0
      %v1808 = vsel %vm511, %v1720, 0
      %v1811 = vsel %vm511, %v1724, 0
      %v1814 = vsel %vm511, %v1728, 0
      %v1817 = vsel %vm511, %v1732, 0
      %v1820 = vsel %vm511, %v1736, 0
      %v1823 = vsel %vm511, %v1740, 0
      %v1826 = vsel %vm511, %v1744, 0
      %v1829 = vsel %vm511, %v1748, 0
      %v1832 = vsel %vm511, %v1752, 0
      %v1835 = vsel %vm511, %v1756, 0
      %v1838 = vsel %vm511, %v1760, 0
      %v1841 = vsel %vm511, %v1764, 0
      %v1844 = vsel %vm511, %v1773, 0
      %v1847 = vsel %vm511, %v1772, 0
      %1849 = vmatprep.subr.bf16.mxu0 0
      %1850 = vmatpush1.bf16.msra.mxu0 0
      %1851 = vmatprep.subr.bf16.mxu0 0
      %1852 = vmatpush1.bf16.msra.mxu0 0
      %1853 = vmatprep.subr.bf16.mxu0 0
      %1854 = vmatpush1.bf16.msra.mxu0 0
      %1855 = vmatprep.subr.bf16.mxu0 0
      %1856 = vmatpush1.bf16.msra.mxu0 0
      %1857 = vmatprep.subr.bf16.mxu0 0
      %1858 = vmatpush1.bf16.msra.mxu0 0
      %1859 = vmatprep.subr.bf16.mxu0 0
      %1860 = vmatpush1.bf16.msra.mxu0 0
      %1861 = vmatprep.subr.bf16.mxu0 0
      %1862 = vmatpush1.bf16.msra.mxu0 %v1783
      %1863 = vmatprep.subr.bf16.mxu0 0
      %1864 = vmatpush1.bf16.msra.mxu0 %v1782
      %1865 = vmatprep.subr.bf16.mxu0 0
      %1866 = vmatpush2.bf16.msra.mxu0 0
      %1867 = vmatprep.subr.bf16.mxu0 0
      %1868 = vmatpush2.bf16.msra.mxu0 0
      %1869 = vmatprep.subr.bf16.mxu0 0
      %1870 = vmatpush2.bf16.msra.mxu0 0
      %1871 = vmatprep.subr.bf16.mxu0 0
      %1872 = vmatpush2.bf16.msra.mxu0 0
      %1873 = vmatprep.subr.bf16.mxu0 0
      %1874 = vmatpush2.bf16.msra.mxu0 0
      %1875 = vmatprep.subr.bf16.mxu0 0
      %1876 = vmatpush2.bf16.msra.mxu0 0
      %1877 = vmatprep.subr.bf16.mxu0 0
      %1878 = vmatpush2.bf16.msra.mxu0 0
      %1879 = vmatprep.subr.bf16.mxu0 0
      %1880 = vmatpush2.bf16.msra.mxu0 0
      %1881 = vmatprep.mubr.bf16.mxu0 0
      %1882 = vmatmul.mubr.bf16.gmra.mxu0 %v1787
      %v1883 = vpop.f32.mrf.mxu0
      %v1884 = vadd.f32 0.0, %v1883
      %v1885 = vpop.f32.mrf.mxu0
      %v1886 = vpop.f32.mrf.mxu0
      %v1887 = vadd.f32 0.0, %v1886
      %v1888 = vpop.f32.mrf.mxu0
      %1889 = vmatprep.mubr.bf16.mxu0 0
      %1890 = vmatmul.mubr.bf16.gmra.mxu0 %v1790
      %v1891 = vpop.f32.mrf.mxu0
      %v1892 = vadd.f32 0.0, %v1891
      %v1893 = vpop.f32.mrf.mxu0
      %v1894 = vpop.f32.mrf.mxu0
      %v1895 = vadd.f32 0.0, %v1894
      %v1896 = vpop.f32.mrf.mxu0
      %1897 = vmatprep.mubr.bf16.mxu0 0
      %1898 = vmatmul.mubr.bf16.gmra.mxu0 %v1793
      %v1899 = vpop.f32.mrf.mxu0
      %v1900 = vadd.f32 0.0, %v1899
      %v1901 = vpop.f32.mrf.mxu0
      %v1902 = vpop.f32.mrf.mxu0
      %v1903 = vadd.f32 0.0, %v1902
      %v1904 = vpop.f32.mrf.mxu0
      %1905 = vmatprep.mubr.bf16.mxu0 0
      %1906 = vmatmul.mubr.bf16.gmra.mxu0 %v1796
      %v1907 = vpop.f32.mrf.mxu0
      %v1908 = vadd.f32 0.0, %v1907
      %v1909 = vpop.f32.mrf.mxu0
      %v1910 = vpop.f32.mrf.mxu0
      %v1911 = vadd.f32 0.0, %v1910
      %v1912 = vpop.f32.mrf.mxu0
      %1913 = vmatprep.mubr.bf16.mxu0 0
      %1914 = vmatmul.mubr.bf16.gmra.mxu0 %v1799
      %v1915 = vpop.f32.mrf.mxu0
      %v1916 = vadd.f32 0.0, %v1915
      %v1917 = vpop.f32.mrf.mxu0
      %v1918 = vpop.f32.mrf.mxu0
      %v1919 = vadd.f32 0.0, %v1918
      %v1920 = vpop.f32.mrf.mxu0
      %1921 = vmatprep.mubr.bf16.mxu0 0
      %1922 = vmatmul.mubr.bf16.gmra.mxu0 %v1802
      %v1923 = vpop.f32.mrf.mxu0
      %v1924 = vadd.f32 0.0, %v1923
      %v1925 = vpop.f32.mrf.mxu0
      %v1926 = vpop.f32.mrf.mxu0
      %v1927 = vadd.f32 0.0, %v1926
      %v1928 = vpop.f32.mrf.mxu0
      %1929 = vmatprep.mubr.bf16.mxu0 0
      %1930 = vmatmul.mubr.bf16.gmra.mxu0 %v1805
      %v1931 = vpop.f32.mrf.mxu0
      %v1932 = vadd.f32 0.0, %v1931
      %v1933 = vpop.f32.mrf.mxu0
      %v1934 = vpop.f32.mrf.mxu0
      %v1935 = vadd.f32 0.0, %v1934
      %v1936 = vpop.f32.mrf.mxu0
      %1937 = vmatprep.mubr.bf16.mxu0 0
      %1938 = vmatmul.mubr.bf16.gmra.mxu0 %v1808
      %v1939 = vpop.f32.mrf.mxu0
      %v1940 = vadd.f32 0.0, %v1939
      %v1941 = vpop.f32.mrf.mxu0
      %v1942 = vpop.f32.mrf.mxu0
      %v1943 = vadd.f32 0.0, %v1942
      %v1944 = vpop.f32.mrf.mxu0
      %1945 = vmatprep.mubr.bf16.mxu0 0
      %1946 = vmatmul.mubr.bf16.gmra.mxu0 %v1811
      %v1947 = vpop.f32.mrf.mxu0
      %v1948 = vadd.f32 0.0, %v1947
      %v1949 = vpop.f32.mrf.mxu0
      %v1950 = vpop.f32.mrf.mxu0
      %v1951 = vadd.f32 0.0, %v1950
      %v1952 = vpop.f32.mrf.mxu0
      %1953 = vmatprep.mubr.bf16.mxu0 0
      %1954 = vmatmul.mubr.bf16.gmra.mxu0 %v1814
      %v1955 = vpop.f32.mrf.mxu0
      %v1956 = vadd.f32 0.0, %v1955
      %v1957 = vpop.f32.mrf.mxu0
      %v1958 = vpop.f32.mrf.mxu0
      %v1959 = vadd.f32 0.0, %v1958
      %v1960 = vpop.f32.mrf.mxu0
      %1961 = vmatprep.mubr.bf16.mxu0 0
      %1962 = vmatmul.mubr.bf16.gmra.mxu0 %v1817
      %v1963 = vpop.f32.mrf.mxu0
      %v1964 = vadd.f32 0.0, %v1963
      %v1965 = vpop.f32.mrf.mxu0
      %v1966 = vpop.f32.mrf.mxu0
      %v1967 = vadd.f32 0.0, %v1966
      %v1968 = vpop.f32.mrf.mxu0
      %1969 = vmatprep.mubr.bf16.mxu0 0
      %1970 = vmatmul.mubr.bf16.gmra.mxu0 %v1820
      %v1971 = vpop.f32.mrf.mxu0
      %v1972 = vadd.f32 0.0, %v1971
      %v1973 = vpop.f32.mrf.mxu0
      %v1974 = vpop.f32.mrf.mxu0
      %v1975 = vadd.f32 0.0, %v1974
      %v1976 = vpop.f32.mrf.mxu0
      %1977 = vmatprep.mubr.bf16.mxu0 0
      %1978 = vmatmul.mubr.bf16.gmra.mxu0 %v1823
      %v1979 = vpop.f32.mrf.mxu0
      %v1980 = vadd.f32 0.0, %v1979
      %v1981 = vpop.f32.mrf.mxu0
      %v1982 = vpop.f32.mrf.mxu0
      %v1983 = vadd.f32 0.0, %v1982
      %v1984 = vpop.f32.mrf.mxu0
      %1985 = vmatprep.mubr.bf16.mxu0 0
      %1986 = vmatmul.mubr.bf16.gmra.mxu0 %v1826
      %v1987 = vpop.f32.mrf.mxu0
      %v1988 = vadd.f32 0.0, %v1987
      %v1989 = vpop.f32.mrf.mxu0
      %v1990 = vpop.f32.mrf.mxu0
      %v1991 = vadd.f32 0.0, %v1990
      %v1992 = vpop.f32.mrf.mxu0
      %1993 = vmatprep.mubr.bf16.mxu0 0
      %1994 = vmatmul.mubr.bf16.gmra.mxu0 %v1829
      %v1995 = vpop.f32.mrf.mxu0
      %v1996 = vadd.f32 0.0, %v1995
      %v1997 = vpop.f32.mrf.mxu0
      %v1998 = vpop.f32.mrf.mxu0
      %v1999 = vadd.f32 0.0, %v1998
      %v2000 = vpop.f32.mrf.mxu0
      %2001 = vmatprep.mubr.bf16.mxu0 0
      %2002 = vmatmul.mubr.bf16.gmra.mxu0 %v1832
      %v2003 = vpop.f32.mrf.mxu0
      %v2004 = vadd.f32 0.0, %v2003
      %v2005 = vpop.f32.mrf.mxu0
      %v2006 = vpop.f32.mrf.mxu0
      %v2007 = vadd.f32 0.0, %v2006
      %v2008 = vpop.f32.mrf.mxu0
      %2009 = vmatprep.mubr.bf16.mxu0 0
      %2010 = vmatmul.mubr.bf16.gmra.mxu0 %v1835
      %v2011 = vpop.f32.mrf.mxu0
      %v2012 = vadd.f32 0.0, %v2011
      %v2013 = vpop.f32.mrf.mxu0
      %v2014 = vpop.f32.mrf.mxu0
      %v2015 = vadd.f32 0.0, %v2014
      %v2016 = vpop.f32.mrf.mxu0
      %2017 = vmatprep.mubr.bf16.mxu0 0
      %2018 = vmatmul.mubr.bf16.gmra.mxu0 %v1838
      %v2019 = vpop.f32.mrf.mxu0
      %v2020 = vadd.f32 0.0, %v2019
      %v2021 = vpop.f32.mrf.mxu0
      %v2022 = vpop.f32.mrf.mxu0
      %v2023 = vadd.f32 0.0, %v2022
      %v2024 = vpop.f32.mrf.mxu0
      %2025 = vmatprep.mubr.bf16.mxu0 0
      %2026 = vmatmul.mubr.bf16.gmra.mxu0 %v1841
      %v2027 = vpop.f32.mrf.mxu0
      %v2028 = vadd.f32 0.0, %v2027
      %v2029 = vpop.f32.mrf.mxu0
      %v2030 = vpop.f32.mrf.mxu0
      %v2031 = vadd.f32 0.0, %v2030
      %v2032 = vpop.f32.mrf.mxu0
      %2033 = vmatprep.mubr.bf16.mxu0 0
      %2034 = vmatmul.mubr.bf16.gmra.mxu0 %v1844
      %v2035 = vpop.f32.mrf.mxu0
      %v2036 = vadd.f32 0.0, %v2035
      %v2037 = vpop.f32.mrf.mxu0
      %v2038 = vpop.f32.mrf.mxu0
      %v2039 = vadd.f32 0.0, %v2038
      %v2040 = vpop.f32.mrf.mxu0
      %2041 = vmatprep.mubr.bf16.mxu0 0
      %2042 = vmatmul.mubr.bf16.gmra.mxu0 %v1847
      %v2043 = vpop.f32.mrf.mxu0
      %v2044 = vadd.f32 0.0, %v2043
      %v2045 = vpop.f32.mrf.mxu0
      %v2046 = vpop.f32.mrf.mxu0
      %v2047 = vpop.f32.mrf.mxu0
      %2048 = vdwg.mxu0
      %v2049 = vadd.f32 %v1639, %v1884
      %v2050 = vadd.f32 %v1640, %v1887
      %v2051 = vadd.f32 %v1641, %v1892
      %v2052 = vadd.f32 %v1642, %v1895
      %v2053 = vadd.f32 %v1643, %v1900
      %v2054 = vadd.f32 %v1644, %v1903
      %v2055 = vadd.f32 %v1645, %v1908
      %v2056 = vadd.f32 %v1646, %v1911
      %v2057 = vadd.f32 %v1647, %v1916
      %v2058 = vadd.f32 %v1648, %v1919
      %v2059 = vadd.f32 %v1649, %v1924
      %v2060 = vadd.f32 %v1650, %v1927
      %v2061 = vadd.f32 %v1651, %v1932
      %v2062 = vadd.f32 %v1652, %v1935
      %v2063 = vadd.f32 %v1653, %v1940
      %v2064 = vadd.f32 %v1654, %v1943
      %v2065 = vadd.f32 %v1655, %v1948
      %v2066 = vadd.f32 %v1656, %v1951
      %v2067 = vadd.f32 %v1657, %v1956
      %v2068 = vadd.f32 %v1658, %v1959
      %v2069 = vadd.f32 %v1659, %v1964
      %v2070 = vadd.f32 %v1660, %v1967
      %v2071 = vadd.f32 %v1661, %v1972
      %v2072 = vadd.f32 %v1662, %v1975
      %v2073 = vadd.f32 %v1663, %v1980
      %v2074 = vadd.f32 %v1664, %v1983
      %v2075 = vadd.f32 %v1665, %v1988
      %v2076 = vadd.f32 %v1666, %v1991
      %v2077 = vadd.f32 %v1667, %v1996
      %v2078 = vadd.f32 %v1668, %v1999
      %v2079 = vadd.f32 %v1669, %v2004
      %v2080 = vadd.f32 %v1670, %v2007
      %v2081 = vadd.f32 %v1671, %v2012
      %v2082 = vadd.f32 %v1672, %v2015
      %v2083 = vadd.f32 %v1673, %v2020
      %v2084 = vadd.f32 %v1674, %v2023
      %v2085 = vadd.f32 %v1675, %v2028
      %v2086 = vadd.f32 %v1676, %v2031
      %v2087 = vadd.f32 %v1677, %v2036
      %v2088 = vadd.f32 %v1678, %v2039
      %v2089 = vadd.f32 %v1679, %v2044
      %s2090 = scalar_lea.vmem %s1, 80
      %v2091 = vld [vmem:[%s2090] sm:$0xf]
      %v2092 = vld [vmem:[%s2090 + $0x4] sm:$0xf]
      %v2093 = vld [vmem:[%s2090 + $0x8] sm:$0xf]
      %v2094 = vld [vmem:[%s2090 + $0xc] sm:$0xf]
      %vm2095 = vcmask 1045504
      %v2096 = vrot.slane %v300, 2
      %v2097 = vrot.slane %v301, 2
      %v2098 = vsel %vm2095, %v2096, %v2097
      %v2099 = vrot.slane %v302, 2
      %v2100 = vsel %vm2095, %v2097, %v2099
      %v2101 = vrot.slane %v303, 2
      %v2102 = vsel %vm2095, %v2099, %v2101
      %v2103 = vrot.slane %v304, 2
      %v2104 = vsel %vm2095, %v2101, %v2103
      %v2105 = vrot.slane %v305, 2
      %v2106 = vsel %vm2095, %v2103, %v2105
      %v2107 = vrot.slane %v306, 2
      %v2108 = vsel %vm2095, %v2105, %v2107
      %v2109 = vrot.slane %v307, 2
      %v2110 = vsel %vm2095, %v2107, %v2109
      %v2111 = vrot.slane %v308, 2
      %v2112 = vsel %vm2095, %v2109, %v2111
      %v2113 = vrot.slane %v309, 2
      %v2114 = vsel %vm2095, %v2111, %v2113
      %v2115 = vrot.slane %v310, 2
      %v2116 = vsel %vm2095, %v2113, %v2115
      %v2117 = vrot.slane %v311, 2
      %v2118 = vsel %vm2095, %v2115, %v2117
      %v2119 = vrot.slane %v312, 2
      %v2120 = vsel %vm2095, %v2117, %v2119
      %v2121 = vrot.slane %v313, 2
      %v2122 = vsel %vm2095, %v2119, %v2121
      %v2123 = vrot.slane %v314, 2
      %v2124 = vsel %vm2095, %v2121, %v2123
      %v2125 = vrot.slane %v315, 2
      %v2126 = vsel %vm2095, %v2123, %v2125
      %v2127 = vrot.slane %v316, 2
      %v2128 = vsel %vm2095, %v2125, %v2127
      %v2129 = vrot.slane %v317, 2
      %v2130 = vsel %vm2095, %v2127, %v2129
      %v2131 = vrot.slane %v318, 2
      %v2132 = vsel %vm2095, %v2129, %v2131
      %v2133 = vrot.slane %v319, 2
      %v2134 = vsel %vm2095, %v2131, %v2133
      %v2135 = vrot.slane %v320, 2
      %v2136 = vsel %vm2095, %v2133, %v2135
      %v2141 = vunpack.c.l.b16 %v2091
      %v2142 = vunpack.c.l.b16 %v2092
      %v2143 = vunpack.c.l.b16 %v2093
      %v2144 = vunpack.c.l.b16 %v2094
      %v2145 = vpack.c.b16 %v2142, %v2141
      %v2146 = vpack.c.b16 %v2144, %v2143
      %v2150 = vsel %vm511, %v2098, 0
      %v2153 = vsel %vm511, %v2100, 0
      %v2156 = vsel %vm511, %v2102, 0
      %v2159 = vsel %vm511, %v2104, 0
      %v2162 = vsel %vm511, %v2106, 0
      %v2165 = vsel %vm511, %v2108, 0
      %v2168 = vsel %vm511, %v2110, 0
      %v2171 = vsel %vm511, %v2112, 0
      %v2174 = vsel %vm511, %v2114, 0
      %v2177 = vsel %vm511, %v2116, 0
      %v2180 = vsel %vm511, %v2118, 0
      %v2183 = vsel %vm511, %v2120, 0
      %v2186 = vsel %vm511, %v2122, 0
      %v2189 = vsel %vm511, %v2124, 0
      %v2192 = vsel %vm511, %v2126, 0
      %v2195 = vsel %vm511, %v2128, 0
      %v2198 = vsel %vm511, %v2130, 0
      %v2201 = vsel %vm511, %v2132, 0
      %v2204 = vsel %vm511, %v2134, 0
      %v2207 = vsel %vm511, %v2136, 0
      %v2210 = vsel %vm511, %v2135, 0
      %2212 = vmatprep.subr.bf16.mxu0 0
      %2213 = vmatpush1.bf16.msra.mxu0 0
      %2214 = vmatprep.subr.bf16.mxu0 0
      %2215 = vmatpush1.bf16.msra.mxu0 0
      %2216 = vmatprep.subr.bf16.mxu0 0
      %2217 = vmatpush1.bf16.msra.mxu0 0
      %2218 = vmatprep.subr.bf16.mxu0 0
      %2219 = vmatpush1.bf16.msra.mxu0 0
      %2220 = vmatprep.subr.bf16.mxu0 0
      %2221 = vmatpush1.bf16.msra.mxu0 0
      %2222 = vmatprep.subr.bf16.mxu0 0
      %2223 = vmatpush1.bf16.msra.mxu0 0
      %2224 = vmatprep.subr.bf16.mxu0 0
      %2225 = vmatpush1.bf16.msra.mxu0 %v2146
      %2226 = vmatprep.subr.bf16.mxu0 0
      %2227 = vmatpush1.bf16.msra.mxu0 %v2145
      %2228 = vmatprep.subr.bf16.mxu0 0
      %2229 = vmatpush2.bf16.msra.mxu0 0
      %2230 = vmatprep.subr.bf16.mxu0 0
      %2231 = vmatpush2.bf16.msra.mxu0 0
      %2232 = vmatprep.subr.bf16.mxu0 0
      %2233 = vmatpush2.bf16.msra.mxu0 0
      %2234 = vmatprep.subr.bf16.mxu0 0
      %2235 = vmatpush2.bf16.msra.mxu0 0
      %2236 = vmatprep.subr.bf16.mxu0 0
      %2237 = vmatpush2.bf16.msra.mxu0 0
      %2238 = vmatprep.subr.bf16.mxu0 0
      %2239 = vmatpush2.bf16.msra.mxu0 0
      %2240 = vmatprep.subr.bf16.mxu0 0
      %2241 = vmatpush2.bf16.msra.mxu0 0
      %2242 = vmatprep.subr.bf16.mxu0 0
      %2243 = vmatpush2.bf16.msra.mxu0 0
      %2244 = vmatprep.mubr.bf16.mxu0 0
      %2245 = vmatmul.mubr.bf16.gmra.mxu0 %v2150
      %v2246 = vpop.f32.mrf.mxu0
      %v2247 = vadd.f32 0.0, %v2246
      %v2248 = vpop.f32.mrf.mxu0
      %v2249 = vpop.f32.mrf.mxu0
      %v2250 = vadd.f32 0.0, %v2249
      %v2251 = vpop.f32.mrf.mxu0
      %2252 = vmatprep.mubr.bf16.mxu0 0
      %2253 = vmatmul.mubr.bf16.gmra.mxu0 %v2153
      %v2254 = vpop.f32.mrf.mxu0
      %v2255 = vadd.f32 0.0, %v2254
      %v2256 = vpop.f32.mrf.mxu0
      %v2257 = vpop.f32.mrf.mxu0
      %v2258 = vadd.f32 0.0, %v2257
      %v2259 = vpop.f32.mrf.mxu0
      %2260 = vmatprep.mubr.bf16.mxu0 0
      %2261 = vmatmul.mubr.bf16.gmra.mxu0 %v2156
      %v2262 = vpop.f32.mrf.mxu0
      %v2263 = vadd.f32 0.0, %v2262
      %v2264 = vpop.f32.mrf.mxu0
      %v2265 = vpop.f32.mrf.mxu0
      %v2266 = vadd.f32 0.0, %v2265
      %v2267 = vpop.f32.mrf.mxu0
      %2268 = vmatprep.mubr.bf16.mxu0 0
      %2269 = vmatmul.mubr.bf16.gmra.mxu0 %v2159
      %v2270 = vpop.f32.mrf.mxu0
      %v2271 = vadd.f32 0.0, %v2270
      %v2272 = vpop.f32.mrf.mxu0
      %v2273 = vpop.f32.mrf.mxu0
      %v2274 = vadd.f32 0.0, %v2273
      %v2275 = vpop.f32.mrf.mxu0
      %2276 = vmatprep.mubr.bf16.mxu0 0
      %2277 = vmatmul.mubr.bf16.gmra.mxu0 %v2162
      %v2278 = vpop.f32.mrf.mxu0
      %v2279 = vadd.f32 0.0, %v2278
      %v2280 = vpop.f32.mrf.mxu0
      %v2281 = vpop.f32.mrf.mxu0
      %v2282 = vadd.f32 0.0, %v2281
      %v2283 = vpop.f32.mrf.mxu0
      %2284 = vmatprep.mubr.bf16.mxu0 0
      %2285 = vmatmul.mubr.bf16.gmra.mxu0 %v2165
      %v2286 = vpop.f32.mrf.mxu0
      %v2287 = vadd.f32 0.0, %v2286
      %v2288 = vpop.f32.mrf.mxu0
      %v2289 = vpop.f32.mrf.mxu0
      %v2290 = vadd.f32 0.0, %v2289
      %v2291 = vpop.f32.mrf.mxu0
      %2292 = vmatprep.mubr.bf16.mxu0 0
      %2293 = vmatmul.mubr.bf16.gmra.mxu0 %v2168
      %v2294 = vpop.f32.mrf.mxu0
      %v2295 = vadd.f32 0.0, %v2294
      %v2296 = vpop.f32.mrf.mxu0
      %v2297 = vpop.f32.mrf.mxu0
      %v2298 = vadd.f32 0.0, %v2297
      %v2299 = vpop.f32.mrf.mxu0
      %2300 = vmatprep.mubr.bf16.mxu0 0
      %2301 = vmatmul.mubr.bf16.gmra.mxu0 %v2171
      %v2302 = vpop.f32.mrf.mxu0
      %v2303 = vadd.f32 0.0, %v2302
      %v2304 = vpop.f32.mrf.mxu0
      %v2305 = vpop.f32.mrf.mxu0
      %v2306 = vadd.f32 0.0, %v2305
      %v2307 = vpop.f32.mrf.mxu0
      %2308 = vmatprep.mubr.bf16.mxu0 0
      %2309 = vmatmul.mubr.bf16.gmra.mxu0 %v2174
      %v2310 = vpop.f32.mrf.mxu0
      %v2311 = vadd.f32 0.0, %v2310
      %v2312 = vpop.f32.mrf.mxu0
      %v2313 = vpop.f32.mrf.mxu0
      %v2314 = vadd.f32 0.0, %v2313
      %v2315 = vpop.f32.mrf.mxu0
      %2316 = vmatprep.mubr.bf16.mxu0 0
      %2317 = vmatmul.mubr.bf16.gmra.mxu0 %v2177
      %v2318 = vpop.f32.mrf.mxu0
      %v2319 = vadd.f32 0.0, %v2318
      %v2320 = vpop.f32.mrf.mxu0
      %v2321 = vpop.f32.mrf.mxu0
      %v2322 = vadd.f32 0.0, %v2321
      %v2323 = vpop.f32.mrf.mxu0
      %2324 = vmatprep.mubr.bf16.mxu0 0
      %2325 = vmatmul.mubr.bf16.gmra.mxu0 %v2180
      %v2326 = vpop.f32.mrf.mxu0
      %v2327 = vadd.f32 0.0, %v2326
      %v2328 = vpop.f32.mrf.mxu0
      %v2329 = vpop.f32.mrf.mxu0
      %v2330 = vadd.f32 0.0, %v2329
      %v2331 = vpop.f32.mrf.mxu0
      %2332 = vmatprep.mubr.bf16.mxu0 0
      %2333 = vmatmul.mubr.bf16.gmra.mxu0 %v2183
      %v2334 = vpop.f32.mrf.mxu0
      %v2335 = vadd.f32 0.0, %v2334
      %v2336 = vpop.f32.mrf.mxu0
      %v2337 = vpop.f32.mrf.mxu0
      %v2338 = vadd.f32 0.0, %v2337
      %v2339 = vpop.f32.mrf.mxu0
      %2340 = vmatprep.mubr.bf16.mxu0 0
      %2341 = vmatmul.mubr.bf16.gmra.mxu0 %v2186
      %v2342 = vpop.f32.mrf.mxu0
      %v2343 = vadd.f32 0.0, %v2342
      %v2344 = vpop.f32.mrf.mxu0
      %v2345 = vpop.f32.mrf.mxu0
      %v2346 = vadd.f32 0.0, %v2345
      %v2347 = vpop.f32.mrf.mxu0
      %2348 = vmatprep.mubr.bf16.mxu0 0
      %2349 = vmatmul.mubr.bf16.gmra.mxu0 %v2189
      %v2350 = vpop.f32.mrf.mxu0
      %v2351 = vadd.f32 0.0, %v2350
      %v2352 = vpop.f32.mrf.mxu0
      %v2353 = vpop.f32.mrf.mxu0
      %v2354 = vadd.f32 0.0, %v2353
      %v2355 = vpop.f32.mrf.mxu0
      %2356 = vmatprep.mubr.bf16.mxu0 0
      %2357 = vmatmul.mubr.bf16.gmra.mxu0 %v2192
      %v2358 = vpop.f32.mrf.mxu0
      %v2359 = vadd.f32 0.0, %v2358
      %v2360 = vpop.f32.mrf.mxu0
      %v2361 = vpop.f32.mrf.mxu0
      %v2362 = vadd.f32 0.0, %v2361
      %v2363 = vpop.f32.mrf.mxu0
      %2364 = vmatprep.mubr.bf16.mxu0 0
      %2365 = vmatmul.mubr.bf16.gmra.mxu0 %v2195
      %v2366 = vpop.f32.mrf.mxu0
      %v2367 = vadd.f32 0.0, %v2366
      %v2368 = vpop.f32.mrf.mxu0
      %v2369 = vpop.f32.mrf.mxu0
      %v2370 = vadd.f32 0.0, %v2369
      %v2371 = vpop.f32.mrf.mxu0
      %2372 = vmatprep.mubr.bf16.mxu0 0
      %2373 = vmatmul.mubr.bf16.gmra.mxu0 %v2198
      %v2374 = vpop.f32.mrf.mxu0
      %v2375 = vadd.f32 0.0, %v2374
      %v2376 = vpop.f32.mrf.mxu0
      %v2377 = vpop.f32.mrf.mxu0
      %v2378 = vadd.f32 0.0, %v2377
      %v2379 = vpop.f32.mrf.mxu0
      %2380 = vmatprep.mubr.bf16.mxu0 0
      %2381 = vmatmul.mubr.bf16.gmra.mxu0 %v2201
      %v2382 = vpop.f32.mrf.mxu0
      %v2383 = vadd.f32 0.0, %v2382
      %v2384 = vpop.f32.mrf.mxu0
      %v2385 = vpop.f32.mrf.mxu0
      %v2386 = vadd.f32 0.0, %v2385
      %v2387 = vpop.f32.mrf.mxu0
      %2388 = vmatprep.mubr.bf16.mxu0 0
      %2389 = vmatmul.mubr.bf16.gmra.mxu0 %v2204
      %v2390 = vpop.f32.mrf.mxu0
      %v2391 = vadd.f32 0.0, %v2390
      %v2392 = vpop.f32.mrf.mxu0
      %v2393 = vpop.f32.mrf.mxu0
      %v2394 = vadd.f32 0.0, %v2393
      %v2395 = vpop.f32.mrf.mxu0
      %2396 = vmatprep.mubr.bf16.mxu0 0
      %2397 = vmatmul.mubr.bf16.gmra.mxu0 %v2207
      %v2398 = vpop.f32.mrf.mxu0
      %v2399 = vadd.f32 0.0, %v2398
      %v2400 = vpop.f32.mrf.mxu0
      %v2401 = vpop.f32.mrf.mxu0
      %v2402 = vadd.f32 0.0, %v2401
      %v2403 = vpop.f32.mrf.mxu0
      %2404 = vmatprep.mubr.bf16.mxu0 0
      %2405 = vmatmul.mubr.bf16.gmra.mxu0 %v2210
      %v2406 = vpop.f32.mrf.mxu0
      %v2407 = vadd.f32 0.0, %v2406
      %v2408 = vpop.f32.mrf.mxu0
      %v2409 = vpop.f32.mrf.mxu0
      %v2410 = vpop.f32.mrf.mxu0
      %2411 = vdwg.mxu0
      %v2412 = vadd.f32 %v2049, %v2247
      %v2413 = vadd.f32 %v2050, %v2250
      %v2414 = vadd.f32 %v2051, %v2255
      %v2415 = vadd.f32 %v2052, %v2258
      %v2416 = vadd.f32 %v2053, %v2263
      %v2417 = vadd.f32 %v2054, %v2266
      %v2418 = vadd.f32 %v2055, %v2271
      %v2419 = vadd.f32 %v2056, %v2274
      %v2420 = vadd.f32 %v2057, %v2279
      %v2421 = vadd.f32 %v2058, %v2282
      %v2422 = vadd.f32 %v2059, %v2287
      %v2423 = vadd.f32 %v2060, %v2290
      %v2424 = vadd.f32 %v2061, %v2295
      %v2425 = vadd.f32 %v2062, %v2298
      %v2426 = vadd.f32 %v2063, %v2303
      %v2427 = vadd.f32 %v2064, %v2306
      %v2428 = vadd.f32 %v2065, %v2311
      %v2429 = vadd.f32 %v2066, %v2314
      %v2430 = vadd.f32 %v2067, %v2319
      %v2431 = vadd.f32 %v2068, %v2322
      %v2432 = vadd.f32 %v2069, %v2327
      %v2433 = vadd.f32 %v2070, %v2330
      %v2434 = vadd.f32 %v2071, %v2335
      %v2435 = vadd.f32 %v2072, %v2338
      %v2436 = vadd.f32 %v2073, %v2343
      %v2437 = vadd.f32 %v2074, %v2346
      %v2438 = vadd.f32 %v2075, %v2351
      %v2439 = vadd.f32 %v2076, %v2354
      %v2440 = vadd.f32 %v2077, %v2359
      %v2441 = vadd.f32 %v2078, %v2362
      %v2442 = vadd.f32 %v2079, %v2367
      %v2443 = vadd.f32 %v2080, %v2370
      %v2444 = vadd.f32 %v2081, %v2375
      %v2445 = vadd.f32 %v2082, %v2378
      %v2446 = vadd.f32 %v2083, %v2383
      %v2447 = vadd.f32 %v2084, %v2386
      %v2448 = vadd.f32 %v2085, %v2391
      %v2449 = vadd.f32 %v2086, %v2394
      %v2450 = vadd.f32 %v2087, %v2399
      %v2451 = vadd.f32 %v2088, %v2402
      %v2452 = vadd.f32 %v2089, %v2407
      %s2453 = scalar_lea.vmem %s1, 96
      %v2454 = vld [vmem:[%s2453] sm:$0xf]
      %v2455 = vld [vmem:[%s2453 + $0x4] sm:$0xf]
      %v2456 = vld [vmem:[%s2453 + $0x8] sm:$0xf]
      %v2457 = vld [vmem:[%s2453 + $0xc] sm:$0xf]
      %v2459 = vrot.slane %v321, 2
      %v2460 = vsel %vm2095, %v2135, %v2459
      %v2465 = vunpack.c.l.b16 %v2454
      %v2466 = vunpack.c.l.b16 %v2455
      %v2467 = vunpack.c.l.b16 %v2456
      %v2468 = vunpack.c.l.b16 %v2457
      %v2469 = vpack.c.b16 %v2466, %v2465
      %v2470 = vpack.c.b16 %v2468, %v2467
      %v2474 = vsel %vm511, %v2460, 0
      %v2477 = vsel %vm511, %v2459, 0
      %2479 = vmatprep.subr.bf16.mxu0 0
      %2480 = vmatpush1.bf16.msra.mxu0 0
      %2481 = vmatprep.subr.bf16.mxu0 0
      %2482 = vmatpush1.bf16.msra.mxu0 0
      %2483 = vmatprep.subr.bf16.mxu0 0
      %2484 = vmatpush1.bf16.msra.mxu0 0
      %2485 = vmatprep.subr.bf16.mxu0 0
      %2486 = vmatpush1.bf16.msra.mxu0 0
      %2487 = vmatprep.subr.bf16.mxu0 0
      %2488 = vmatpush1.bf16.msra.mxu0 0
      %2489 = vmatprep.subr.bf16.mxu0 0
      %2490 = vmatpush1.bf16.msra.mxu0 0
      %2491 = vmatprep.subr.bf16.mxu0 0
      %2492 = vmatpush1.bf16.msra.mxu0 %v2470
      %2493 = vmatprep.subr.bf16.mxu0 0
      %2494 = vmatpush1.bf16.msra.mxu0 %v2469
      %2495 = vmatprep.subr.bf16.mxu0 0
      %2496 = vmatpush2.bf16.msra.mxu0 0
      %2497 = vmatprep.subr.bf16.mxu0 0
      %2498 = vmatpush2.bf16.msra.mxu0 0
      %2499 = vmatprep.subr.bf16.mxu0 0
      %2500 = vmatpush2.bf16.msra.mxu0 0
      %2501 = vmatprep.subr.bf16.mxu0 0
      %2502 = vmatpush2.bf16.msra.mxu0 0
      %2503 = vmatprep.subr.bf16.mxu0 0
      %2504 = vmatpush2.bf16.msra.mxu0 0
      %2505 = vmatprep.subr.bf16.mxu0 0
      %2506 = vmatpush2.bf16.msra.mxu0 0
      %2507 = vmatprep.subr.bf16.mxu0 0
      %2508 = vmatpush2.bf16.msra.mxu0 0
      %2509 = vmatprep.subr.bf16.mxu0 0
      %2510 = vmatpush2.bf16.msra.mxu0 0
      %2511 = vmatprep.mubr.bf16.mxu0 0
      %2512 = vmatmul.mubr.bf16.gmra.mxu0 %v2153
      %v2513 = vpop.f32.mrf.mxu0
      %v2514 = vadd.f32 0.0, %v2513
      %v2515 = vpop.f32.mrf.mxu0
      %v2516 = vpop.f32.mrf.mxu0
      %v2517 = vadd.f32 0.0, %v2516
      %v2518 = vpop.f32.mrf.mxu0
      %2519 = vmatprep.mubr.bf16.mxu0 0
      %2520 = vmatmul.mubr.bf16.gmra.mxu0 %v2156
      %v2521 = vpop.f32.mrf.mxu0
      %v2522 = vadd.f32 0.0, %v2521
      %v2523 = vpop.f32.mrf.mxu0
      %v2524 = vpop.f32.mrf.mxu0
      %v2525 = vadd.f32 0.0, %v2524
      %v2526 = vpop.f32.mrf.mxu0
      %2527 = vmatprep.mubr.bf16.mxu0 0
      %2528 = vmatmul.mubr.bf16.gmra.mxu0 %v2159
      %v2529 = vpop.f32.mrf.mxu0
      %v2530 = vadd.f32 0.0, %v2529
      %v2531 = vpop.f32.mrf.mxu0
      %v2532 = vpop.f32.mrf.mxu0
      %v2533 = vadd.f32 0.0, %v2532
      %v2534 = vpop.f32.mrf.mxu0
      %2535 = vmatprep.mubr.bf16.mxu0 0
      %2536 = vmatmul.mubr.bf16.gmra.mxu0 %v2162
      %v2537 = vpop.f32.mrf.mxu0
      %v2538 = vadd.f32 0.0, %v2537
      %v2539 = vpop.f32.mrf.mxu0
      %v2540 = vpop.f32.mrf.mxu0
      %v2541 = vadd.f32 0.0, %v2540
      %v2542 = vpop.f32.mrf.mxu0
      %2543 = vmatprep.mubr.bf16.mxu0 0
      %2544 = vmatmul.mubr.bf16.gmra.mxu0 %v2165
      %v2545 = vpop.f32.mrf.mxu0
      %v2546 = vadd.f32 0.0, %v2545
      %v2547 = vpop.f32.mrf.mxu0
      %v2548 = vpop.f32.mrf.mxu0
      %v2549 = vadd.f32 0.0, %v2548
      %v2550 = vpop.f32.mrf.mxu0
      %2551 = vmatprep.mubr.bf16.mxu0 0
      %2552 = vmatmul.mubr.bf16.gmra.mxu0 %v2168
      %v2553 = vpop.f32.mrf.mxu0
      %v2554 = vadd.f32 0.0, %v2553
      %v2555 = vpop.f32.mrf.mxu0
      %v2556 = vpop.f32.mrf.mxu0
      %v2557 = vadd.f32 0.0, %v2556
      %v2558 = vpop.f32.mrf.mxu0
      %2559 = vmatprep.mubr.bf16.mxu0 0
      %2560 = vmatmul.mubr.bf16.gmra.mxu0 %v2171
      %v2561 = vpop.f32.mrf.mxu0
      %v2562 = vadd.f32 0.0, %v2561
      %v2563 = vpop.f32.mrf.mxu0
      %v2564 = vpop.f32.mrf.mxu0
      %v2565 = vadd.f32 0.0, %v2564
      %v2566 = vpop.f32.mrf.mxu0
      %2567 = vmatprep.mubr.bf16.mxu0 0
      %2568 = vmatmul.mubr.bf16.gmra.mxu0 %v2174
      %v2569 = vpop.f32.mrf.mxu0
      %v2570 = vadd.f32 0.0, %v2569
      %v2571 = vpop.f32.mrf.mxu0
      %v2572 = vpop.f32.mrf.mxu0
      %v2573 = vadd.f32 0.0, %v2572
      %v2574 = vpop.f32.mrf.mxu0
      %2575 = vmatprep.mubr.bf16.mxu0 0
      %2576 = vmatmul.mubr.bf16.gmra.mxu0 %v2177
      %v2577 = vpop.f32.mrf.mxu0
      %v2578 = vadd.f32 0.0, %v2577
      %v2579 = vpop.f32.mrf.mxu0
      %v2580 = vpop.f32.mrf.mxu0
      %v2581 = vadd.f32 0.0, %v2580
      %v2582 = vpop.f32.mrf.mxu0
      %2583 = vmatprep.mubr.bf16.mxu0 0
      %2584 = vmatmul.mubr.bf16.gmra.mxu0 %v2180
      %v2585 = vpop.f32.mrf.mxu0
      %v2586 = vadd.f32 0.0, %v2585
      %v2587 = vpop.f32.mrf.mxu0
      %v2588 = vpop.f32.mrf.mxu0
      %v2589 = vadd.f32 0.0, %v2588
      %v2590 = vpop.f32.mrf.mxu0
      %2591 = vmatprep.mubr.bf16.mxu0 0
      %2592 = vmatmul.mubr.bf16.gmra.mxu0 %v2183
      %v2593 = vpop.f32.mrf.mxu0
      %v2594 = vadd.f32 0.0, %v2593
      %v2595 = vpop.f32.mrf.mxu0
      %v2596 = vpop.f32.mrf.mxu0
      %v2597 = vadd.f32 0.0, %v2596
      %v2598 = vpop.f32.mrf.mxu0
      %2599 = vmatprep.mubr.bf16.mxu0 0
      %2600 = vmatmul.mubr.bf16.gmra.mxu0 %v2186
      %v2601 = vpop.f32.mrf.mxu0
      %v2602 = vadd.f32 0.0, %v2601
      %v2603 = vpop.f32.mrf.mxu0
      %v2604 = vpop.f32.mrf.mxu0
      %v2605 = vadd.f32 0.0, %v2604
      %v2606 = vpop.f32.mrf.mxu0
      %2607 = vmatprep.mubr.bf16.mxu0 0
      %2608 = vmatmul.mubr.bf16.gmra.mxu0 %v2189
      %v2609 = vpop.f32.mrf.mxu0
      %v2610 = vadd.f32 0.0, %v2609
      %v2611 = vpop.f32.mrf.mxu0
      %v2612 = vpop.f32.mrf.mxu0
      %v2613 = vadd.f32 0.0, %v2612
      %v2614 = vpop.f32.mrf.mxu0
      %2615 = vmatprep.mubr.bf16.mxu0 0
      %2616 = vmatmul.mubr.bf16.gmra.mxu0 %v2192
      %v2617 = vpop.f32.mrf.mxu0
      %v2618 = vadd.f32 0.0, %v2617
      %v2619 = vpop.f32.mrf.mxu0
      %v2620 = vpop.f32.mrf.mxu0
      %v2621 = vadd.f32 0.0, %v2620
      %v2622 = vpop.f32.mrf.mxu0
      %2623 = vmatprep.mubr.bf16.mxu0 0
      %2624 = vmatmul.mubr.bf16.gmra.mxu0 %v2195
      %v2625 = vpop.f32.mrf.mxu0
      %v2626 = vadd.f32 0.0, %v2625
      %v2627 = vpop.f32.mrf.mxu0
      %v2628 = vpop.f32.mrf.mxu0
      %v2629 = vadd.f32 0.0, %v2628
      %v2630 = vpop.f32.mrf.mxu0
      %2631 = vmatprep.mubr.bf16.mxu0 0
      %2632 = vmatmul.mubr.bf16.gmra.mxu0 %v2198
      %v2633 = vpop.f32.mrf.mxu0
      %v2634 = vadd.f32 0.0, %v2633
      %v2635 = vpop.f32.mrf.mxu0
      %v2636 = vpop.f32.mrf.mxu0
      %v2637 = vadd.f32 0.0, %v2636
      %v2638 = vpop.f32.mrf.mxu0
      %2639 = vmatprep.mubr.bf16.mxu0 0
      %2640 = vmatmul.mubr.bf16.gmra.mxu0 %v2201
      %v2641 = vpop.f32.mrf.mxu0
      %v2642 = vadd.f32 0.0, %v2641
      %v2643 = vpop.f32.mrf.mxu0
      %v2644 = vpop.f32.mrf.mxu0
      %v2645 = vadd.f32 0.0, %v2644
      %v2646 = vpop.f32.mrf.mxu0
      %2647 = vmatprep.mubr.bf16.mxu0 0
      %2648 = vmatmul.mubr.bf16.gmra.mxu0 %v2204
      %v2649 = vpop.f32.mrf.mxu0
      %v2650 = vadd.f32 0.0, %v2649
      %v2651 = vpop.f32.mrf.mxu0
      %v2652 = vpop.f32.mrf.mxu0
      %v2653 = vadd.f32 0.0, %v2652
      %v2654 = vpop.f32.mrf.mxu0
      %2655 = vmatprep.mubr.bf16.mxu0 0
      %2656 = vmatmul.mubr.bf16.gmra.mxu0 %v2207
      %v2657 = vpop.f32.mrf.mxu0
      %v2658 = vadd.f32 0.0, %v2657
      %v2659 = vpop.f32.mrf.mxu0
      %v2660 = vpop.f32.mrf.mxu0
      %v2661 = vadd.f32 0.0, %v2660
      %v2662 = vpop.f32.mrf.mxu0
      %2663 = vmatprep.mubr.bf16.mxu0 0
      %2664 = vmatmul.mubr.bf16.gmra.mxu0 %v2474
      %v2665 = vpop.f32.mrf.mxu0
      %v2666 = vadd.f32 0.0, %v2665
      %v2667 = vpop.f32.mrf.mxu0
      %v2668 = vpop.f32.mrf.mxu0
      %v2669 = vadd.f32 0.0, %v2668
      %v2670 = vpop.f32.mrf.mxu0
      %2671 = vmatprep.mubr.bf16.mxu0 0
      %2672 = vmatmul.mubr.bf16.gmra.mxu0 %v2477
      %v2673 = vpop.f32.mrf.mxu0
      %v2674 = vadd.f32 0.0, %v2673
      %v2675 = vpop.f32.mrf.mxu0
      %v2676 = vpop.f32.mrf.mxu0
      %v2677 = vpop.f32.mrf.mxu0
      %2678 = vdwg.mxu0
      %v2679 = vadd.f32 %v2412, %v2514
      %v2680 = vadd.f32 %v2413, %v2517
      %v2681 = vadd.f32 %v2414, %v2522
      %v2682 = vadd.f32 %v2415, %v2525
      %v2683 = vadd.f32 %v2416, %v2530
      %v2684 = vadd.f32 %v2417, %v2533
      %v2685 = vadd.f32 %v2418, %v2538
      %v2686 = vadd.f32 %v2419, %v2541
      %v2687 = vadd.f32 %v2420, %v2546
      %v2688 = vadd.f32 %v2421, %v2549
      %v2689 = vadd.f32 %v2422, %v2554
      %v2690 = vadd.f32 %v2423, %v2557
      %v2691 = vadd.f32 %v2424, %v2562
      %v2692 = vadd.f32 %v2425, %v2565
      %v2693 = vadd.f32 %v2426, %v2570
      %v2694 = vadd.f32 %v2427, %v2573
      %v2695 = vadd.f32 %v2428, %v2578
      %v2696 = vadd.f32 %v2429, %v2581
      %v2697 = vadd.f32 %v2430, %v2586
      %v2698 = vadd.f32 %v2431, %v2589
      %v2699 = vadd.f32 %v2432, %v2594
      %v2700 = vadd.f32 %v2433, %v2597
      %v2701 = vadd.f32 %v2434, %v2602
      %v2702 = vadd.f32 %v2435, %v2605
      %v2703 = vadd.f32 %v2436, %v2610
      %v2704 = vadd.f32 %v2437, %v2613
      %v2705 = vadd.f32 %v2438, %v2618
      %v2706 = vadd.f32 %v2439, %v2621
      %v2707 = vadd.f32 %v2440, %v2626
      %v2708 = vadd.f32 %v2441, %v2629
      %v2709 = vadd.f32 %v2442, %v2634
      %v2710 = vadd.f32 %v2443, %v2637
      %v2711 = vadd.f32 %v2444, %v2642
      %v2712 = vadd.f32 %v2445, %v2645
      %v2713 = vadd.f32 %v2446, %v2650
      %v2714 = vadd.f32 %v2447, %v2653
      %v2715 = vadd.f32 %v2448, %v2658
      %v2716 = vadd.f32 %v2449, %v2661
      %v2717 = vadd.f32 %v2450, %v2666
      %v2718 = vadd.f32 %v2451, %v2669
      %v2719 = vadd.f32 %v2452, %v2674
      %s2720 = scalar_lea.vmem %s1, 112
      %v2721 = vld [vmem:[%s2720] sm:$0xf]
      %v2722 = vld [vmem:[%s2720 + $0x4] sm:$0xf]
      %v2723 = vld [vmem:[%s2720 + $0x8] sm:$0xf]
      %v2724 = vld [vmem:[%s2720 + $0xc] sm:$0xf]
      %vm2725 = vsmask.f32 5376
      %v2726 = vrot.slane %v352, 2
      %v2727 = vrot.slane %v348, 3
      %v2728 = vor.u32 %v2726, %v2727
      %v2729 = vrot.slane %v360, 2
      %v2730 = vrot.slane %v356, 3
      %v2731 = vor.u32 %v2729, %v2730
      %v2732 = vsel %vm2725, %v2728, %v2731
      %v2733 = vrot.slane %v368, 2
      %v2734 = vrot.slane %v364, 3
      %v2735 = vor.u32 %v2733, %v2734
      %v2736 = vsel %vm2725, %v2731, %v2735
      %v2737 = vrot.slane %v376, 2
      %v2738 = vrot.slane %v372, 3
      %v2739 = vor.u32 %v2737, %v2738
      %v2740 = vsel %vm2725, %v2735, %v2739
      %v2741 = vrot.slane %v384, 2
      %v2742 = vrot.slane %v380, 3
      %v2743 = vor.u32 %v2741, %v2742
      %v2744 = vsel %vm2725, %v2739, %v2743
      %v2745 = vrot.slane %v392, 2
      %v2746 = vrot.slane %v388, 3
      %v2747 = vor.u32 %v2745, %v2746
      %v2748 = vsel %vm2725, %v2743, %v2747
      %v2749 = vrot.slane %v400, 2
      %v2750 = vrot.slane %v396, 3
      %v2751 = vor.u32 %v2749, %v2750
      %v2752 = vsel %vm2725, %v2747, %v2751
      %v2753 = vrot.slane %v408, 2
      %v2754 = vrot.slane %v404, 3
      %v2755 = vor.u32 %v2753, %v2754
      %v2756 = vsel %vm2725, %v2751, %v2755
      %v2757 = vrot.slane %v416, 2
      %v2758 = vrot.slane %v412, 3
      %v2759 = vor.u32 %v2757, %v2758
      %v2760 = vsel %vm2725, %v2755, %v2759
      %v2761 = vrot.slane %v424, 2
      %v2762 = vrot.slane %v420, 3
      %v2763 = vor.u32 %v2761, %v2762
      %v2764 = vsel %vm2725, %v2759, %v2763
      %v2765 = vrot.slane %v432, 2
      %v2766 = vrot.slane %v428, 3
      %v2767 = vor.u32 %v2765, %v2766
      %v2768 = vsel %vm2725, %v2763, %v2767
      %v2769 = vrot.slane %v440, 2
      %v2770 = vrot.slane %v436, 3
      %v2771 = vor.u32 %v2769, %v2770
      %v2772 = vsel %vm2725, %v2767, %v2771
      %v2773 = vrot.slane %v448, 2
      %v2774 = vrot.slane %v444, 3
      %v2775 = vor.u32 %v2773, %v2774
      %v2776 = vsel %vm2725, %v2771, %v2775
      %v2777 = vrot.slane %v456, 2
      %v2778 = vrot.slane %v452, 3
      %v2779 = vor.u32 %v2777, %v2778
      %v2780 = vsel %vm2725, %v2775, %v2779
      %v2781 = vrot.slane %v464, 2
      %v2782 = vrot.slane %v460, 3
      %v2783 = vor.u32 %v2781, %v2782
      %v2784 = vsel %vm2725, %v2779, %v2783
      %v2785 = vrot.slane %v472, 2
      %v2786 = vrot.slane %v468, 3
      %v2787 = vor.u32 %v2785, %v2786
      %v2788 = vsel %vm2725, %v2783, %v2787
      %v2789 = vrot.slane %v480, 2
      %v2790 = vrot.slane %v476, 3
      %v2791 = vor.u32 %v2789, %v2790
      %v2792 = vsel %vm2725, %v2787, %v2791
      %v2793 = vrot.slane %v488, 2
      %v2794 = vrot.slane %v484, 3
      %v2795 = vor.u32 %v2793, %v2794
      %v2796 = vsel %vm2725, %v2791, %v2795
      %v2797 = vrot.slane %v496, 2
      %v2798 = vrot.slane %v492, 3
      %v2799 = vor.u32 %v2797, %v2798
      %v2800 = vsel %vm2725, %v2795, %v2799
      %v2801 = vrot.slane %v1766, 2
      %v2802 = vrot.slane %v1769, 3
      %v2803 = vor.u32 %v2801, %v2802
      %v2804 = vsel %vm2725, %v2799, %v2803
      %v2806 = vshrl.u32 %v321, 16
      %v2808 = vrot.slane %v2806, 2
      %v2809 = vshll.u32 %v321, 16
      %v2811 = vrot.slane %v2809, 3
      %v2812 = vor.u32 %v2808, %v2811
      %v2813 = vsel %vm2725, %v2803, %v2812
      %v2818 = vunpack.c.l.b16 %v2721
      %v2819 = vunpack.c.l.b16 %v2722
      %v2820 = vunpack.c.l.b16 %v2723
      %v2821 = vunpack.c.l.b16 %v2724
      %v2822 = vpack.c.b16 %v2819, %v2818
      %v2823 = vpack.c.b16 %v2821, %v2820
      %v2827 = vsel %vm511, %v2732, 0
      %v2830 = vsel %vm511, %v2736, 0
      %v2833 = vsel %vm511, %v2740, 0
      %v2836 = vsel %vm511, %v2744, 0
      %v2839 = vsel %vm511, %v2748, 0
      %v2842 = vsel %vm511, %v2752, 0
      %v2845 = vsel %vm511, %v2756, 0
      %v2848 = vsel %vm511, %v2760, 0
      %v2851 = vsel %vm511, %v2764, 0
      %v2854 = vsel %vm511, %v2768, 0
      %v2857 = vsel %vm511, %v2772, 0
      %v2860 = vsel %vm511, %v2776, 0
      %v2863 = vsel %vm511, %v2780, 0
      %v2866 = vsel %vm511, %v2784, 0
      %v2869 = vsel %vm511, %v2788, 0
      %v2872 = vsel %vm511, %v2792, 0
      %v2875 = vsel %vm511, %v2796, 0
      %v2878 = vsel %vm511, %v2800, 0
      %v2881 = vsel %vm511, %v2804, 0
      %v2884 = vsel %vm511, %v2813, 0
      %v2887 = vsel %vm511, %v2812, 0
      %2889 = vmatprep.subr.bf16.mxu0 0
      %2890 = vmatpush1.bf16.msra.mxu0 0
      %2891 = vmatprep.subr.bf16.mxu0 0
      %2892 = vmatpush1.bf16.msra.mxu0 0
      %2893 = vmatprep.subr.bf16.mxu0 0
      %2894 = vmatpush1.bf16.msra.mxu0 0
      %2895 = vmatprep.subr.bf16.mxu0 0
      %2896 = vmatpush1.bf16.msra.mxu0 0
      %2897 = vmatprep.subr.bf16.mxu0 0
      %2898 = vmatpush1.bf16.msra.mxu0 0
      %2899 = vmatprep.subr.bf16.mxu0 0
      %2900 = vmatpush1.bf16.msra.mxu0 0
      %2901 = vmatprep.subr.bf16.mxu0 0
      %2902 = vmatpush1.bf16.msra.mxu0 %v2823
      %2903 = vmatprep.subr.bf16.mxu0 0
      %2904 = vmatpush1.bf16.msra.mxu0 %v2822
      %2905 = vmatprep.subr.bf16.mxu0 0
      %2906 = vmatpush2.bf16.msra.mxu0 0
      %2907 = vmatprep.subr.bf16.mxu0 0
      %2908 = vmatpush2.bf16.msra.mxu0 0
      %2909 = vmatprep.subr.bf16.mxu0 0
      %2910 = vmatpush2.bf16.msra.mxu0 0
      %2911 = vmatprep.subr.bf16.mxu0 0
      %2912 = vmatpush2.bf16.msra.mxu0 0
      %2913 = vmatprep.subr.bf16.mxu0 0
      %2914 = vmatpush2.bf16.msra.mxu0 0
      %2915 = vmatprep.subr.bf16.mxu0 0
      %2916 = vmatpush2.bf16.msra.mxu0 0
      %2917 = vmatprep.subr.bf16.mxu0 0
      %2918 = vmatpush2.bf16.msra.mxu0 0
      %2919 = vmatprep.subr.bf16.mxu0 0
      %2920 = vmatpush2.bf16.msra.mxu0 0
      %2921 = vmatprep.mubr.bf16.mxu0 0
      %2922 = vmatmul.mubr.bf16.gmra.mxu0 %v2827
      %v2923 = vpop.f32.mrf.mxu0
      %v2924 = vadd.f32 0.0, %v2923
      %v2925 = vpop.f32.mrf.mxu0
      %v2926 = vpop.f32.mrf.mxu0
      %v2927 = vadd.f32 0.0, %v2926
      %v2928 = vpop.f32.mrf.mxu0
      %2929 = vmatprep.mubr.bf16.mxu0 0
      %2930 = vmatmul.mubr.bf16.gmra.mxu0 %v2830
      %v2931 = vpop.f32.mrf.mxu0
      %v2932 = vadd.f32 0.0, %v2931
      %v2933 = vpop.f32.mrf.mxu0
      %v2934 = vpop.f32.mrf.mxu0
      %v2935 = vadd.f32 0.0, %v2934
      %v2936 = vpop.f32.mrf.mxu0
      %2937 = vmatprep.mubr.bf16.mxu0 0
      %2938 = vmatmul.mubr.bf16.gmra.mxu0 %v2833
      %v2939 = vpop.f32.mrf.mxu0
      %v2940 = vadd.f32 0.0, %v2939
      %v2941 = vpop.f32.mrf.mxu0
      %v2942 = vpop.f32.mrf.mxu0
      %v2943 = vadd.f32 0.0, %v2942
      %v2944 = vpop.f32.mrf.mxu0
      %2945 = vmatprep.mubr.bf16.mxu0 0
      %2946 = vmatmul.mubr.bf16.gmra.mxu0 %v2836
      %v2947 = vpop.f32.mrf.mxu0
      %v2948 = vadd.f32 0.0, %v2947
      %v2949 = vpop.f32.mrf.mxu0
      %v2950 = vpop.f32.mrf.mxu0
      %v2951 = vadd.f32 0.0, %v2950
      %v2952 = vpop.f32.mrf.mxu0
      %2953 = vmatprep.mubr.bf16.mxu0 0
      %2954 = vmatmul.mubr.bf16.gmra.mxu0 %v2839
      %v2955 = vpop.f32.mrf.mxu0
      %v2956 = vadd.f32 0.0, %v2955
      %v2957 = vpop.f32.mrf.mxu0
      %v2958 = vpop.f32.mrf.mxu0
      %v2959 = vadd.f32 0.0, %v2958
      %v2960 = vpop.f32.mrf.mxu0
      %2961 = vmatprep.mubr.bf16.mxu0 0
      %2962 = vmatmul.mubr.bf16.gmra.mxu0 %v2842
      %v2963 = vpop.f32.mrf.mxu0
      %v2964 = vadd.f32 0.0, %v2963
      %v2965 = vpop.f32.mrf.mxu0
      %v2966 = vpop.f32.mrf.mxu0
      %v2967 = vadd.f32 0.0, %v2966
      %v2968 = vpop.f32.mrf.mxu0
      %2969 = vmatprep.mubr.bf16.mxu0 0
      %2970 = vmatmul.mubr.bf16.gmra.mxu0 %v2845
      %v2971 = vpop.f32.mrf.mxu0
      %v2972 = vadd.f32 0.0, %v2971
      %v2973 = vpop.f32.mrf.mxu0
      %v2974 = vpop.f32.mrf.mxu0
      %v2975 = vadd.f32 0.0, %v2974
      %v2976 = vpop.f32.mrf.mxu0
      %2977 = vmatprep.mubr.bf16.mxu0 0
      %2978 = vmatmul.mubr.bf16.gmra.mxu0 %v2848
      %v2979 = vpop.f32.mrf.mxu0
      %v2980 = vadd.f32 0.0, %v2979
      %v2981 = vpop.f32.mrf.mxu0
      %v2982 = vpop.f32.mrf.mxu0
      %v2983 = vadd.f32 0.0, %v2982
      %v2984 = vpop.f32.mrf.mxu0
      %2985 = vmatprep.mubr.bf16.mxu0 0
      %2986 = vmatmul.mubr.bf16.gmra.mxu0 %v2851
      %v2987 = vpop.f32.mrf.mxu0
      %v2988 = vadd.f32 0.0, %v2987
      %v2989 = vpop.f32.mrf.mxu0
      %v2990 = vpop.f32.mrf.mxu0
      %v2991 = vadd.f32 0.0, %v2990
      %v2992 = vpop.f32.mrf.mxu0
      %2993 = vmatprep.mubr.bf16.mxu0 0
      %2994 = vmatmul.mubr.bf16.gmra.mxu0 %v2854
      %v2995 = vpop.f32.mrf.mxu0
      %v2996 = vadd.f32 0.0, %v2995
      %v2997 = vpop.f32.mrf.mxu0
      %v2998 = vpop.f32.mrf.mxu0
      %v2999 = vadd.f32 0.0, %v2998
      %v3000 = vpop.f32.mrf.mxu0
      %3001 = vmatprep.mubr.bf16.mxu0 0
      %3002 = vmatmul.mubr.bf16.gmra.mxu0 %v2857
      %v3003 = vpop.f32.mrf.mxu0
      %v3004 = vadd.f32 0.0, %v3003
      %v3005 = vpop.f32.mrf.mxu0
      %v3006 = vpop.f32.mrf.mxu0
      %v3007 = vadd.f32 0.0, %v3006
      %v3008 = vpop.f32.mrf.mxu0
      %3009 = vmatprep.mubr.bf16.mxu0 0
      %3010 = vmatmul.mubr.bf16.gmra.mxu0 %v2860
      %v3011 = vpop.f32.mrf.mxu0
      %v3012 = vadd.f32 0.0, %v3011
      %v3013 = vpop.f32.mrf.mxu0
      %v3014 = vpop.f32.mrf.mxu0
      %v3015 = vadd.f32 0.0, %v3014
      %v3016 = vpop.f32.mrf.mxu0
      %3017 = vmatprep.mubr.bf16.mxu0 0
      %3018 = vmatmul.mubr.bf16.gmra.mxu0 %v2863
      %v3019 = vpop.f32.mrf.mxu0
      %v3020 = vadd.f32 0.0, %v3019
      %v3021 = vpop.f32.mrf.mxu0
      %v3022 = vpop.f32.mrf.mxu0
      %v3023 = vadd.f32 0.0, %v3022
      %v3024 = vpop.f32.mrf.mxu0
      %3025 = vmatprep.mubr.bf16.mxu0 0
      %3026 = vmatmul.mubr.bf16.gmra.mxu0 %v2866
      %v3027 = vpop.f32.mrf.mxu0
      %v3028 = vadd.f32 0.0, %v3027
      %v3029 = vpop.f32.mrf.mxu0
      %v3030 = vpop.f32.mrf.mxu0
      %v3031 = vadd.f32 0.0, %v3030
      %v3032 = vpop.f32.mrf.mxu0
      %3033 = vmatprep.mubr.bf16.mxu0 0
      %3034 = vmatmul.mubr.bf16.gmra.mxu0 %v2869
      %v3035 = vpop.f32.mrf.mxu0
      %v3036 = vadd.f32 0.0, %v3035
      %v3037 = vpop.f32.mrf.mxu0
      %v3038 = vpop.f32.mrf.mxu0
      %v3039 = vadd.f32 0.0, %v3038
      %v3040 = vpop.f32.mrf.mxu0
      %3041 = vmatprep.mubr.bf16.mxu0 0
      %3042 = vmatmul.mubr.bf16.gmra.mxu0 %v2872
      %v3043 = vpop.f32.mrf.mxu0
      %v3044 = vadd.f32 0.0, %v3043
      %v3045 = vpop.f32.mrf.mxu0
      %v3046 = vpop.f32.mrf.mxu0
      %v3047 = vadd.f32 0.0, %v3046
      %v3048 = vpop.f32.mrf.mxu0
      %3049 = vmatprep.mubr.bf16.mxu0 0
      %3050 = vmatmul.mubr.bf16.gmra.mxu0 %v2875
      %v3051 = vpop.f32.mrf.mxu0
      %v3052 = vadd.f32 0.0, %v3051
      %v3053 = vpop.f32.mrf.mxu0
      %v3054 = vpop.f32.mrf.mxu0
      %v3055 = vadd.f32 0.0, %v3054
      %v3056 = vpop.f32.mrf.mxu0
      %3057 = vmatprep.mubr.bf16.mxu0 0
      %3058 = vmatmul.mubr.bf16.gmra.mxu0 %v2878
      %v3059 = vpop.f32.mrf.mxu0
      %v3060 = vadd.f32 0.0, %v3059
      %v3061 = vpop.f32.mrf.mxu0
      %v3062 = vpop.f32.mrf.mxu0
      %v3063 = vadd.f32 0.0, %v3062
      %v3064 = vpop.f32.mrf.mxu0
      %3065 = vmatprep.mubr.bf16.mxu0 0
      %3066 = vmatmul.mubr.bf16.gmra.mxu0 %v2881
      %v3067 = vpop.f32.mrf.mxu0
      %v3068 = vadd.f32 0.0, %v3067
      %v3069 = vpop.f32.mrf.mxu0
      %v3070 = vpop.f32.mrf.mxu0
      %v3071 = vadd.f32 0.0, %v3070
      %v3072 = vpop.f32.mrf.mxu0
      %3073 = vmatprep.mubr.bf16.mxu0 0
      %3074 = vmatmul.mubr.bf16.gmra.mxu0 %v2884
      %v3075 = vpop.f32.mrf.mxu0
      %v3076 = vadd.f32 0.0, %v3075
      %v3077 = vpop.f32.mrf.mxu0
      %v3078 = vpop.f32.mrf.mxu0
      %v3079 = vadd.f32 0.0, %v3078
      %v3080 = vpop.f32.mrf.mxu0
      %3081 = vmatprep.mubr.bf16.mxu0 0
      %3082 = vmatmul.mubr.bf16.gmra.mxu0 %v2887
      %v3083 = vpop.f32.mrf.mxu0
      %v3084 = vadd.f32 0.0, %v3083
      %v3085 = vpop.f32.mrf.mxu0
      %v3086 = vpop.f32.mrf.mxu0
      %v3087 = vpop.f32.mrf.mxu0
      %3088 = vdwg.mxu0
      %v3089 = vadd.f32 %v2679, %v2924
      %v3090 = vadd.f32 %v2680, %v2927
      %v3091 = vadd.f32 %v2681, %v2932
      %v3092 = vadd.f32 %v2682, %v2935
      %v3093 = vadd.f32 %v2683, %v2940
      %v3094 = vadd.f32 %v2684, %v2943
      %v3095 = vadd.f32 %v2685, %v2948
      %v3096 = vadd.f32 %v2686, %v2951
      %v3097 = vadd.f32 %v2687, %v2956
      %v3098 = vadd.f32 %v2688, %v2959
      %v3099 = vadd.f32 %v2689, %v2964
      %v3100 = vadd.f32 %v2690, %v2967
      %v3101 = vadd.f32 %v2691, %v2972
      %v3102 = vadd.f32 %v2692, %v2975
      %v3103 = vadd.f32 %v2693, %v2980
      %v3104 = vadd.f32 %v2694, %v2983
      %v3105 = vadd.f32 %v2695, %v2988
      %v3106 = vadd.f32 %v2696, %v2991
      %v3107 = vadd.f32 %v2697, %v2996
      %v3108 = vadd.f32 %v2698, %v2999
      %v3109 = vadd.f32 %v2699, %v3004
      %v3110 = vadd.f32 %v2700, %v3007
      %v3111 = vadd.f32 %v2701, %v3012
      %v3112 = vadd.f32 %v2702, %v3015
      %v3113 = vadd.f32 %v2703, %v3020
      %v3114 = vadd.f32 %v2704, %v3023
      %v3115 = vadd.f32 %v2705, %v3028
      %v3116 = vadd.f32 %v2706, %v3031
      %v3117 = vadd.f32 %v2707, %v3036
      %v3118 = vadd.f32 %v2708, %v3039
      %v3119 = vadd.f32 %v2709, %v3044
      %v3120 = vadd.f32 %v2710, %v3047
      %v3121 = vadd.f32 %v2711, %v3052
      %v3122 = vadd.f32 %v2712, %v3055
      %v3123 = vadd.f32 %v2713, %v3060
      %v3124 = vadd.f32 %v2714, %v3063
      %v3125 = vadd.f32 %v2715, %v3068
      %v3126 = vadd.f32 %v2716, %v3071
      %v3127 = vadd.f32 %v2717, %v3076
      %v3128 = vadd.f32 %v2718, %v3079
      %v3129 = vadd.f32 %v2719, %v3084
      %s3130 = scalar_lea.vmem %s1, 128
      %v3131 = vld [vmem:[%s3130] sm:$0xf]
      %v3132 = vld [vmem:[%s3130 + $0x4] sm:$0xf]
      %v3133 = vld [vmem:[%s3130 + $0x8] sm:$0xf]
      %v3134 = vld [vmem:[%s3130 + $0xc] sm:$0xf]
      %vm3135 = vcmask 1044480
      %v3136 = vrot.slane %v301, 3
      %v3137 = vrot.slane %v302, 3
      %v3138 = vsel %vm3135, %v3136, %v3137
      %v3139 = vrot.slane %v303, 3
      %v3140 = vsel %vm3135, %v3137, %v3139
      %v3141 = vrot.slane %v304, 3
      %v3142 = vsel %vm3135, %v3139, %v3141
      %v3143 = vrot.slane %v305, 3
      %v3144 = vsel %vm3135, %v3141, %v3143
      %v3145 = vrot.slane %v306, 3
      %v3146 = vsel %vm3135, %v3143, %v3145
      %v3147 = vrot.slane %v307, 3
      %v3148 = vsel %vm3135, %v3145, %v3147
      %v3149 = vrot.slane %v308, 3
      %v3150 = vsel %vm3135, %v3147, %v3149
      %v3151 = vrot.slane %v309, 3
      %v3152 = vsel %vm3135, %v3149, %v3151
      %v3153 = vrot.slane %v310, 3
      %v3154 = vsel %vm3135, %v3151, %v3153
      %v3155 = vrot.slane %v311, 3
      %v3156 = vsel %vm3135, %v3153, %v3155
      %v3157 = vrot.slane %v312, 3
      %v3158 = vsel %vm3135, %v3155, %v3157
      %v3159 = vrot.slane %v313, 3
      %v3160 = vsel %vm3135, %v3157, %v3159
      %v3161 = vrot.slane %v314, 3
      %v3162 = vsel %vm3135, %v3159, %v3161
      %v3163 = vrot.slane %v315, 3
      %v3164 = vsel %vm3135, %v3161, %v3163
      %v3165 = vrot.slane %v316, 3
      %v3166 = vsel %vm3135, %v3163, %v3165
      %v3167 = vrot.slane %v317, 3
      %v3168 = vsel %vm3135, %v3165, %v3167
      %v3169 = vrot.slane %v318, 3
      %v3170 = vsel %vm3135, %v3167, %v3169
      %v3171 = vrot.slane %v319, 3
      %v3172 = vsel %vm3135, %v3169, %v3171
      %v3173 = vrot.slane %v320, 3
      %v3174 = vsel %vm3135, %v3171, %v3173
      %v3175 = vrot.slane %v321, 3
      %v3176 = vsel %vm3135, %v3173, %v3175
      %v3181 = vunpack.c.l.b16 %v3131
      %v3182 = vunpack.c.l.b16 %v3132
      %v3183 = vunpack.c.l.b16 %v3133
      %v3184 = vunpack.c.l.b16 %v3134
      %v3185 = vpack.c.b16 %v3182, %v3181
      %v3186 = vpack.c.b16 %v3184, %v3183
      %v3190 = vsel %vm511, %v3138, 0
      %v3193 = vsel %vm511, %v3140, 0
      %v3196 = vsel %vm511, %v3142, 0
      %v3199 = vsel %vm511, %v3144, 0
      %v3202 = vsel %vm511, %v3146, 0
      %v3205 = vsel %vm511, %v3148, 0
      %v3208 = vsel %vm511, %v3150, 0
      %v3211 = vsel %vm511, %v3152, 0
      %v3214 = vsel %vm511, %v3154, 0
      %v3217 = vsel %vm511, %v3156, 0
      %v3220 = vsel %vm511, %v3158, 0
      %v3223 = vsel %vm511, %v3160, 0
      %v3226 = vsel %vm511, %v3162, 0
      %v3229 = vsel %vm511, %v3164, 0
      %v3232 = vsel %vm511, %v3166, 0
      %v3235 = vsel %vm511, %v3168, 0
      %v3238 = vsel %vm511, %v3170, 0
      %v3241 = vsel %vm511, %v3172, 0
      %v3244 = vsel %vm511, %v3174, 0
      %v3247 = vsel %vm511, %v3176, 0
      %v3250 = vsel %vm511, %v3175, 0
      %3252 = vmatprep.subr.bf16.mxu0 0
      %3253 = vmatpush1.bf16.msra.mxu0 0
      %3254 = vmatprep.subr.bf16.mxu0 0
      %3255 = vmatpush1.bf16.msra.mxu0 0
      %3256 = vmatprep.subr.bf16.mxu0 0
      %3257 = vmatpush1.bf16.msra.mxu0 0
      %3258 = vmatprep.subr.bf16.mxu0 0
      %3259 = vmatpush1.bf16.msra.mxu0 0
      %3260 = vmatprep.subr.bf16.mxu0 0
      %3261 = vmatpush1.bf16.msra.mxu0 0
      %3262 = vmatprep.subr.bf16.mxu0 0
      %3263 = vmatpush1.bf16.msra.mxu0 0
      %3264 = vmatprep.subr.bf16.mxu0 0
      %3265 = vmatpush1.bf16.msra.mxu0 %v3186
      %3266 = vmatprep.subr.bf16.mxu0 0
      %3267 = vmatpush1.bf16.msra.mxu0 %v3185
      %3268 = vmatprep.subr.bf16.mxu0 0
      %3269 = vmatpush2.bf16.msra.mxu0 0
      %3270 = vmatprep.subr.bf16.mxu0 0
      %3271 = vmatpush2.bf16.msra.mxu0 0
      %3272 = vmatprep.subr.bf16.mxu0 0
      %3273 = vmatpush2.bf16.msra.mxu0 0
      %3274 = vmatprep.subr.bf16.mxu0 0
      %3275 = vmatpush2.bf16.msra.mxu0 0
      %3276 = vmatprep.subr.bf16.mxu0 0
      %3277 = vmatpush2.bf16.msra.mxu0 0
      %3278 = vmatprep.subr.bf16.mxu0 0
      %3279 = vmatpush2.bf16.msra.mxu0 0
      %3280 = vmatprep.subr.bf16.mxu0 0
      %3281 = vmatpush2.bf16.msra.mxu0 0
      %3282 = vmatprep.subr.bf16.mxu0 0
      %3283 = vmatpush2.bf16.msra.mxu0 0
      %3284 = vmatprep.mubr.bf16.mxu0 0
      %3285 = vmatmul.mubr.bf16.gmra.mxu0 %v3190
      %v3286 = vpop.f32.mrf.mxu0
      %v3287 = vadd.f32 0.0, %v3286
      %v3288 = vpop.f32.mrf.mxu0
      %v3289 = vpop.f32.mrf.mxu0
      %v3290 = vadd.f32 0.0, %v3289
      %v3291 = vpop.f32.mrf.mxu0
      %3292 = vmatprep.mubr.bf16.mxu0 0
      %3293 = vmatmul.mubr.bf16.gmra.mxu0 %v3193
      %v3294 = vpop.f32.mrf.mxu0
      %v3295 = vadd.f32 0.0, %v3294
      %v3296 = vpop.f32.mrf.mxu0
      %v3297 = vpop.f32.mrf.mxu0
      %v3298 = vadd.f32 0.0, %v3297
      %v3299 = vpop.f32.mrf.mxu0
      %3300 = vmatprep.mubr.bf16.mxu0 0
      %3301 = vmatmul.mubr.bf16.gmra.mxu0 %v3196
      %v3302 = vpop.f32.mrf.mxu0
      %v3303 = vadd.f32 0.0, %v3302
      %v3304 = vpop.f32.mrf.mxu0
      %v3305 = vpop.f32.mrf.mxu0
      %v3306 = vadd.f32 0.0, %v3305
      %v3307 = vpop.f32.mrf.mxu0
      %3308 = vmatprep.mubr.bf16.mxu0 0
      %3309 = vmatmul.mubr.bf16.gmra.mxu0 %v3199
      %v3310 = vpop.f32.mrf.mxu0
      %v3311 = vadd.f32 0.0, %v3310
      %v3312 = vpop.f32.mrf.mxu0
      %v3313 = vpop.f32.mrf.mxu0
      %v3314 = vadd.f32 0.0, %v3313
      %v3315 = vpop.f32.mrf.mxu0
      %3316 = vmatprep.mubr.bf16.mxu0 0
      %3317 = vmatmul.mubr.bf16.gmra.mxu0 %v3202
      %v3318 = vpop.f32.mrf.mxu0
      %v3319 = vadd.f32 0.0, %v3318
      %v3320 = vpop.f32.mrf.mxu0
      %v3321 = vpop.f32.mrf.mxu0
      %v3322 = vadd.f32 0.0, %v3321
      %v3323 = vpop.f32.mrf.mxu0
      %3324 = vmatprep.mubr.bf16.mxu0 0
      %3325 = vmatmul.mubr.bf16.gmra.mxu0 %v3205
      %v3326 = vpop.f32.mrf.mxu0
      %v3327 = vadd.f32 0.0, %v3326
      %v3328 = vpop.f32.mrf.mxu0
      %v3329 = vpop.f32.mrf.mxu0
      %v3330 = vadd.f32 0.0, %v3329
      %v3331 = vpop.f32.mrf.mxu0
      %3332 = vmatprep.mubr.bf16.mxu0 0
      %3333 = vmatmul.mubr.bf16.gmra.mxu0 %v3208
      %v3334 = vpop.f32.mrf.mxu0
      %v3335 = vadd.f32 0.0, %v3334
      %v3336 = vpop.f32.mrf.mxu0
      %v3337 = vpop.f32.mrf.mxu0
      %v3338 = vadd.f32 0.0, %v3337
      %v3339 = vpop.f32.mrf.mxu0
      %3340 = vmatprep.mubr.bf16.mxu0 0
      %3341 = vmatmul.mubr.bf16.gmra.mxu0 %v3211
      %v3342 = vpop.f32.mrf.mxu0
      %v3343 = vadd.f32 0.0, %v3342
      %v3344 = vpop.f32.mrf.mxu0
      %v3345 = vpop.f32.mrf.mxu0
      %v3346 = vadd.f32 0.0, %v3345
      %v3347 = vpop.f32.mrf.mxu0
      %3348 = vmatprep.mubr.bf16.mxu0 0
      %3349 = vmatmul.mubr.bf16.gmra.mxu0 %v3214
      %v3350 = vpop.f32.mrf.mxu0
      %v3351 = vadd.f32 0.0, %v3350
      %v3352 = vpop.f32.mrf.mxu0
      %v3353 = vpop.f32.mrf.mxu0
      %v3354 = vadd.f32 0.0, %v3353
      %v3355 = vpop.f32.mrf.mxu0
      %3356 = vmatprep.mubr.bf16.mxu0 0
      %3357 = vmatmul.mubr.bf16.gmra.mxu0 %v3217
      %v3358 = vpop.f32.mrf.mxu0
      %v3359 = vadd.f32 0.0, %v3358
      %v3360 = vpop.f32.mrf.mxu0
      %v3361 = vpop.f32.mrf.mxu0
      %v3362 = vadd.f32 0.0, %v3361
      %v3363 = vpop.f32.mrf.mxu0
      %3364 = vmatprep.mubr.bf16.mxu0 0
      %3365 = vmatmul.mubr.bf16.gmra.mxu0 %v3220
      %v3366 = vpop.f32.mrf.mxu0
      %v3367 = vadd.f32 0.0, %v3366
      %v3368 = vpop.f32.mrf.mxu0
      %v3369 = vpop.f32.mrf.mxu0
      %v3370 = vadd.f32 0.0, %v3369
      %v3371 = vpop.f32.mrf.mxu0
      %3372 = vmatprep.mubr.bf16.mxu0 0
      %3373 = vmatmul.mubr.bf16.gmra.mxu0 %v3223
      %v3374 = vpop.f32.mrf.mxu0
      %v3375 = vadd.f32 0.0, %v3374
      %v3376 = vpop.f32.mrf.mxu0
      %v3377 = vpop.f32.mrf.mxu0
      %v3378 = vadd.f32 0.0, %v3377
      %v3379 = vpop.f32.mrf.mxu0
      %3380 = vmatprep.mubr.bf16.mxu0 0
      %3381 = vmatmul.mubr.bf16.gmra.mxu0 %v3226
      %v3382 = vpop.f32.mrf.mxu0
      %v3383 = vadd.f32 0.0, %v3382
      %v3384 = vpop.f32.mrf.mxu0
      %v3385 = vpop.f32.mrf.mxu0
      %v3386 = vadd.f32 0.0, %v3385
      %v3387 = vpop.f32.mrf.mxu0
      %3388 = vmatprep.mubr.bf16.mxu0 0
      %3389 = vmatmul.mubr.bf16.gmra.mxu0 %v3229
      %v3390 = vpop.f32.mrf.mxu0
      %v3391 = vadd.f32 0.0, %v3390
      %v3392 = vpop.f32.mrf.mxu0
      %v3393 = vpop.f32.mrf.mxu0
      %v3394 = vadd.f32 0.0, %v3393
      %v3395 = vpop.f32.mrf.mxu0
      %3396 = vmatprep.mubr.bf16.mxu0 0
      %3397 = vmatmul.mubr.bf16.gmra.mxu0 %v3232
      %v3398 = vpop.f32.mrf.mxu0
      %v3399 = vadd.f32 0.0, %v3398
      %v3400 = vpop.f32.mrf.mxu0
      %v3401 = vpop.f32.mrf.mxu0
      %v3402 = vadd.f32 0.0, %v3401
      %v3403 = vpop.f32.mrf.mxu0
      %3404 = vmatprep.mubr.bf16.mxu0 0
      %3405 = vmatmul.mubr.bf16.gmra.mxu0 %v3235
      %v3406 = vpop.f32.mrf.mxu0
      %v3407 = vadd.f32 0.0, %v3406
      %v3408 = vpop.f32.mrf.mxu0
      %v3409 = vpop.f32.mrf.mxu0
      %v3410 = vadd.f32 0.0, %v3409
      %v3411 = vpop.f32.mrf.mxu0
      %3412 = vmatprep.mubr.bf16.mxu0 0
      %3413 = vmatmul.mubr.bf16.gmra.mxu0 %v3238
      %v3414 = vpop.f32.mrf.mxu0
      %v3415 = vadd.f32 0.0, %v3414
      %v3416 = vpop.f32.mrf.mxu0
      %v3417 = vpop.f32.mrf.mxu0
      %v3418 = vadd.f32 0.0, %v3417
      %v3419 = vpop.f32.mrf.mxu0
      %3420 = vmatprep.mubr.bf16.mxu0 0
      %3421 = vmatmul.mubr.bf16.gmra.mxu0 %v3241
      %v3422 = vpop.f32.mrf.mxu0
      %v3423 = vadd.f32 0.0, %v3422
      %v3424 = vpop.f32.mrf.mxu0
      %v3425 = vpop.f32.mrf.mxu0
      %v3426 = vadd.f32 0.0, %v3425
      %v3427 = vpop.f32.mrf.mxu0
      %3428 = vmatprep.mubr.bf16.mxu0 0
      %3429 = vmatmul.mubr.bf16.gmra.mxu0 %v3244
      %v3430 = vpop.f32.mrf.mxu0
      %v3431 = vadd.f32 0.0, %v3430
      %v3432 = vpop.f32.mrf.mxu0
      %v3433 = vpop.f32.mrf.mxu0
      %v3434 = vadd.f32 0.0, %v3433
      %v3435 = vpop.f32.mrf.mxu0
      %3436 = vmatprep.mubr.bf16.mxu0 0
      %3437 = vmatmul.mubr.bf16.gmra.mxu0 %v3247
      %v3438 = vpop.f32.mrf.mxu0
      %v3439 = vadd.f32 0.0, %v3438
      %v3440 = vpop.f32.mrf.mxu0
      %v3441 = vpop.f32.mrf.mxu0
      %v3442 = vadd.f32 0.0, %v3441
      %v3443 = vpop.f32.mrf.mxu0
      %3444 = vmatprep.mubr.bf16.mxu0 0
      %3445 = vmatmul.mubr.bf16.gmra.mxu0 %v3250
      %v3446 = vpop.f32.mrf.mxu0
      %v3447 = vadd.f32 0.0, %v3446
      %v3448 = vpop.f32.mrf.mxu0
      %v3449 = vpop.f32.mrf.mxu0
      %v3450 = vpop.f32.mrf.mxu0
      %3451 = vdwg.mxu0
      %v3452 = vadd.f32 %v3089, %v3287
      %v3453 = vadd.f32 %v3090, %v3290
      %v3454 = vadd.f32 %v3091, %v3295
      %v3455 = vadd.f32 %v3092, %v3298
      %v3456 = vadd.f32 %v3093, %v3303
      %v3457 = vadd.f32 %v3094, %v3306
      %v3458 = vadd.f32 %v3095, %v3311
      %v3459 = vadd.f32 %v3096, %v3314
      %v3460 = vadd.f32 %v3097, %v3319
      %v3461 = vadd.f32 %v3098, %v3322
      %v3462 = vadd.f32 %v3099, %v3327
      %v3463 = vadd.f32 %v3100, %v3330
      %v3464 = vadd.f32 %v3101, %v3335
      %v3465 = vadd.f32 %v3102, %v3338
      %v3466 = vadd.f32 %v3103, %v3343
      %v3467 = vadd.f32 %v3104, %v3346
      %v3468 = vadd.f32 %v3105, %v3351
      %v3469 = vadd.f32 %v3106, %v3354
      %v3470 = vadd.f32 %v3107, %v3359
      %v3471 = vadd.f32 %v3108, %v3362
      %v3472 = vadd.f32 %v3109, %v3367
      %v3473 = vadd.f32 %v3110, %v3370
      %v3474 = vadd.f32 %v3111, %v3375
      %v3475 = vadd.f32 %v3112, %v3378
      %v3476 = vadd.f32 %v3113, %v3383
      %v3477 = vadd.f32 %v3114, %v3386
      %v3478 = vadd.f32 %v3115, %v3391
      %v3479 = vadd.f32 %v3116, %v3394
      %v3480 = vadd.f32 %v3117, %v3399
      %v3481 = vadd.f32 %v3118, %v3402
      %v3482 = vadd.f32 %v3119, %v3407
      %v3483 = vadd.f32 %v3120, %v3410
      %v3484 = vadd.f32 %v3121, %v3415
      %v3485 = vadd.f32 %v3122, %v3418
      %v3486 = vadd.f32 %v3123, %v3423
      %v3487 = vadd.f32 %v3124, %v3426
      %v3488 = vadd.f32 %v3125, %v3431
      %v3489 = vadd.f32 %v3126, %v3434
      %v3490 = vadd.f32 %v3127, %v3439
      %v3491 = vadd.f32 %v3128, %v3442
      %v3492 = vadd.f32 %v3129, %v3447
      %v3493 = vld [vmem:[%s2] sm:$0x1]
      %v3495 = vlaneseq
      %v3496 = vshrl.u32 %v3495, 7
      %v3497 = vsub.s32 0, %v3496
      %v3498 = vrot.slane %v3493, %v3497
      %v3500 = vadd.f32 %v3452, %v3498
      %v3501 = vadd.f32 %v3453, %v3498
      %v3502 = vadd.f32 %v3454, %v3498
      %v3503 = vadd.f32 %v3455, %v3498
      %v3504 = vadd.f32 %v3456, %v3498
      %v3505 = vadd.f32 %v3457, %v3498
      %v3506 = vadd.f32 %v3458, %v3498
      %v3507 = vadd.f32 %v3459, %v3498
      %v3508 = vadd.f32 %v3460, %v3498
      %v3509 = vadd.f32 %v3461, %v3498
      %v3510 = vadd.f32 %v3462, %v3498
      %v3511 = vadd.f32 %v3463, %v3498
      %v3512 = vadd.f32 %v3464, %v3498
      %v3513 = vadd.f32 %v3465, %v3498
      %v3514 = vadd.f32 %v3466, %v3498
      %v3515 = vadd.f32 %v3467, %v3498
      %v3516 = vadd.f32 %v3468, %v3498
      %v3517 = vadd.f32 %v3469, %v3498
      %v3518 = vadd.f32 %v3470, %v3498
      %v3519 = vadd.f32 %v3471, %v3498
      %v3520 = vadd.f32 %v3472, %v3498
      %v3521 = vadd.f32 %v3473, %v3498
      %v3522 = vadd.f32 %v3474, %v3498
      %v3523 = vadd.f32 %v3475, %v3498
      %v3524 = vadd.f32 %v3476, %v3498
      %v3525 = vadd.f32 %v3477, %v3498
      %v3526 = vadd.f32 %v3478, %v3498
      %v3527 = vadd.f32 %v3479, %v3498
      %v3528 = vadd.f32 %v3480, %v3498
      %v3529 = vadd.f32 %v3481, %v3498
      %v3530 = vadd.f32 %v3482, %v3498
      %v3531 = vadd.f32 %v3483, %v3498
      %v3532 = vadd.f32 %v3484, %v3498
      %v3533 = vadd.f32 %v3485, %v3498
      %v3534 = vadd.f32 %v3486, %v3498
      %v3535 = vadd.f32 %v3487, %v3498
      %v3536 = vadd.f32 %v3488, %v3498
      %v3537 = vadd.f32 %v3489, %v3498
      %v3538 = vadd.f32 %v3490, %v3498
      %v3539 = vadd.f32 %v3491, %v3498
      %v3540 = vadd.f32 %v3492, %v3498
      %vm3541 = vcmp.ge.f32.partialorder %v3500, 0.0
      %vm3542 = vcmp.ge.f32.partialorder %v3501, 0.0
      %vm3543 = vcmp.ge.f32.partialorder %v3502, 0.0
      %vm3544 = vcmp.ge.f32.partialorder %v3503, 0.0
      %vm3545 = vcmp.ge.f32.partialorder %v3504, 0.0
      %vm3546 = vcmp.ge.f32.partialorder %v3505, 0.0
      %vm3547 = vcmp.ge.f32.partialorder %v3506, 0.0
      %vm3548 = vcmp.ge.f32.partialorder %v3507, 0.0
      %vm3549 = vcmp.ge.f32.partialorder %v3508, 0.0
      %vm3550 = vcmp.ge.f32.partialorder %v3509, 0.0
      %vm3551 = vcmp.ge.f32.partialorder %v3510, 0.0
      %vm3552 = vcmp.ge.f32.partialorder %v3511, 0.0
      %vm3553 = vcmp.ge.f32.partialorder %v3512, 0.0
      %vm3554 = vcmp.ge.f32.partialorder %v3513, 0.0
      %vm3555 = vcmp.ge.f32.partialorder %v3514, 0.0
      %vm3556 = vcmp.ge.f32.partialorder %v3515, 0.0
      %vm3557 = vcmp.ge.f32.partialorder %v3516, 0.0
      %vm3558 = vcmp.ge.f32.partialorder %v3517, 0.0
      %vm3559 = vcmp.ge.f32.partialorder %v3518, 0.0
      %vm3560 = vcmp.ge.f32.partialorder %v3519, 0.0
      %vm3561 = vcmp.ge.f32.partialorder %v3520, 0.0
      %vm3562 = vcmp.ge.f32.partialorder %v3521, 0.0
      %vm3563 = vcmp.ge.f32.partialorder %v3522, 0.0
      %vm3564 = vcmp.ge.f32.partialorder %v3523, 0.0
      %vm3565 = vcmp.ge.f32.partialorder %v3524, 0.0
      %vm3566 = vcmp.ge.f32.partialorder %v3525, 0.0
      %vm3567 = vcmp.ge.f32.partialorder %v3526, 0.0
      %vm3568 = vcmp.ge.f32.partialorder %v3527, 0.0
      %vm3569 = vcmp.ge.f32.partialorder %v3528, 0.0
      %vm3570 = vcmp.ge.f32.partialorder %v3529, 0.0
      %vm3571 = vcmp.ge.f32.partialorder %v3530, 0.0
      %vm3572 = vcmp.ge.f32.partialorder %v3531, 0.0
      %vm3573 = vcmp.ge.f32.partialorder %v3532, 0.0
      %vm3574 = vcmp.ge.f32.partialorder %v3533, 0.0
      %vm3575 = vcmp.ge.f32.partialorder %v3534, 0.0
      %vm3576 = vcmp.ge.f32.partialorder %v3535, 0.0
      %vm3577 = vcmp.ge.f32.partialorder %v3536, 0.0
      %vm3578 = vcmp.ge.f32.partialorder %v3537, 0.0
      %vm3579 = vcmp.ge.f32.partialorder %v3538, 0.0
      %vm3580 = vcmp.ge.f32.partialorder %v3539, 0.0
      %vm3581 = vcmp.ge.f32.partialorder %v3540, 0.0
      %v3582 = vmul.f32 %v3500, 0.1
      %v3583 = vmul.f32 %v3501, 0.1
      %v3584 = vmul.f32 %v3502, 0.1
      %v3585 = vmul.f32 %v3503, 0.1
      %v3586 = vmul.f32 %v3504, 0.1
      %v3587 = vmul.f32 %v3505, 0.1
      %v3588 = vmul.f32 %v3506, 0.1
      %v3589 = vmul.f32 %v3507, 0.1
      %v3590 = vmul.f32 %v3508, 0.1
      %v3591 = vmul.f32 %v3509, 0.1
      %v3592 = vmul.f32 %v3510, 0.1
      %v3593 = vmul.f32 %v3511, 0.1
      %v3594 = vmul.f32 %v3512, 0.1
      %v3595 = vmul.f32 %v3513, 0.1
      %v3596 = vmul.f32 %v3514, 0.1
      %v3597 = vmul.f32 %v3515, 0.1
      %v3598 = vmul.f32 %v3516, 0.1
      %v3599 = vmul.f32 %v3517, 0.1
      %v3600 = vmul.f32 %v3518, 0.1
      %v3601 = vmul.f32 %v3519, 0.1
      %v3602 = vmul.f32 %v3520, 0.1
      %v3603 = vmul.f32 %v3521, 0.1
      %v3604 = vmul.f32 %v3522, 0.1
      %v3605 = vmul.f32 %v3523, 0.1
      %v3606 = vmul.f32 %v3524, 0.1
      %v3607 = vmul.f32 %v3525, 0.1
      %v3608 = vmul.f32 %v3526, 0.1
      %v3609 = vmul.f32 %v3527, 0.1
      %v3610 = vmul.f32 %v3528, 0.1
      %v3611 = vmul.f32 %v3529, 0.1
      %v3612 = vmul.f32 %v3530, 0.1
      %v3613 = vmul.f32 %v3531, 0.1
      %v3614 = vmul.f32 %v3532, 0.1
      %v3615 = vmul.f32 %v3533, 0.1
      %v3616 = vmul.f32 %v3534, 0.1
      %v3617 = vmul.f32 %v3535, 0.1
      %v3618 = vmul.f32 %v3536, 0.1
      %v3619 = vmul.f32 %v3537, 0.1
      %v3620 = vmul.f32 %v3538, 0.1
      %v3621 = vmul.f32 %v3539, 0.1
      %v3622 = vmul.f32 %v3540, 0.1
      %v3623 = vsel %vm3541, %v3500, %v3582
      %v3624 = vsel %vm3542, %v3501, %v3583
      %v3625 = vsel %vm3543, %v3502, %v3584
      %v3626 = vsel %vm3544, %v3503, %v3585
      %v3627 = vsel %vm3545, %v3504, %v3586
      %v3628 = vsel %vm3546, %v3505, %v3587
      %v3629 = vsel %vm3547, %v3506, %v3588
      %v3630 = vsel %vm3548, %v3507, %v3589
      %v3631 = vsel %vm3549, %v3508, %v3590
      %v3632 = vsel %vm3550, %v3509, %v3591
      %v3633 = vsel %vm3551, %v3510, %v3592
      %v3634 = vsel %vm3552, %v3511, %v3593
      %v3635 = vsel %vm3553, %v3512, %v3594
      %v3636 = vsel %vm3554, %v3513, %v3595
      %v3637 = vsel %vm3555, %v3514, %v3596
      %v3638 = vsel %vm3556, %v3515, %v3597
      %v3639 = vsel %vm3557, %v3516, %v3598
      %v3640 = vsel %vm3558, %v3517, %v3599
      %v3641 = vsel %vm3559, %v3518, %v3600
      %v3642 = vsel %vm3560, %v3519, %v3601
      %v3643 = vsel %vm3561, %v3520, %v3602
      %v3644 = vsel %vm3562, %v3521, %v3603
      %v3645 = vsel %vm3563, %v3522, %v3604
      %v3646 = vsel %vm3564, %v3523, %v3605
      %v3647 = vsel %vm3565, %v3524, %v3606
      %v3648 = vsel %vm3566, %v3525, %v3607
      %v3649 = vsel %vm3567, %v3526, %v3608
      %v3650 = vsel %vm3568, %v3527, %v3609
      %v3651 = vsel %vm3569, %v3528, %v3610
      %v3652 = vsel %vm3570, %v3529, %v3611
      %v3653 = vsel %vm3571, %v3530, %v3612
      %v3654 = vsel %vm3572, %v3531, %v3613
      %v3655 = vsel %vm3573, %v3532, %v3614
      %v3656 = vsel %vm3574, %v3533, %v3615
      %v3657 = vsel %vm3575, %v3534, %v3616
      %v3658 = vsel %vm3576, %v3535, %v3617
      %v3659 = vsel %vm3577, %v3536, %v3618
      %v3660 = vsel %vm3578, %v3537, %v3619
      %v3661 = vsel %vm3579, %v3538, %v3620
      %v3662 = vsel %vm3580, %v3539, %v3621
      %v3663 = vsel %vm3581, %v3540, %v3622
      %v3664 = vld [vmem:[%s5] sm:$0xff]
      %v3665 = vld [vmem:[%s5 + $0x8] sm:$0xff]
      %v3666 = vld [vmem:[%s5 + $0x10] sm:$0xff]
      %v3667 = vld [vmem:[%s5 + $0x18] sm:$0xff]
      %v3668 = vld [vmem:[%s5 + $0x20] sm:$0xff]
      %v3669 = vld [vmem:[%s5 + $0x28] sm:$0xff]
      %v3670 = vld [vmem:[%s5 + $0x30] sm:$0xff]
      %v3671 = vld [vmem:[%s5 + $0x38] sm:$0xff]
      %v3672 = vld [vmem:[%s5 + $0x40] sm:$0xff]
      %v3673 = vld [vmem:[%s5 + $0x48] sm:$0xff]
      %v3674 = vld [vmem:[%s5 + $0x50] sm:$0xff]
      %v3675 = vld [vmem:[%s5 + $0x58] sm:$0xff]
      %v3676 = vld [vmem:[%s5 + $0x60] sm:$0xff]
      %v3677 = vld [vmem:[%s5 + $0x68] sm:$0xff]
      %v3678 = vld [vmem:[%s5 + $0x70] sm:$0xff]
      %v3679 = vld [vmem:[%s5 + $0x78] sm:$0xff]
      %v3680 = vld [vmem:[%s5 + $0x80] sm:$0xff]
      %v3681 = vld [vmem:[%s5 + $0x88] sm:$0xff]
      %v3682 = vld [vmem:[%s5 + $0x90] sm:$0xff]
      %v3683 = vld [vmem:[%s5 + $0x98] sm:$0xff]
      %v3684 = vld [vmem:[%s5 + $0xa0] sm:$0xff]
      %v3685 = vld [vmem:[%s5 + $0xa8] sm:$0xff]
      %v3686 = vld [vmem:[%s5 + $0xb0] sm:$0xff]
      %v3687 = vld [vmem:[%s5 + $0xb8] sm:$0xff]
      %v3688 = vld [vmem:[%s5 + $0xc0] sm:$0xff]
      %v3689 = vld [vmem:[%s5 + $0xc8] sm:$0xff]
      %v3690 = vld [vmem:[%s5 + $0xd0] sm:$0xff]
      %v3691 = vld [vmem:[%s5 + $0xd8] sm:$0xff]
      %v3692 = vld [vmem:[%s5 + $0xe0] sm:$0xff]
      %v3693 = vld [vmem:[%s5 + $0xe8] sm:$0xff]
      %v3694 = vld [vmem:[%s5 + $0xf0] sm:$0xff]
      %v3695 = vld [vmem:[%s5 + $0xf8] sm:$0xff]
      %v3696 = vld [vmem:[%s5 + $0x100] sm:$0xff]
      %v3697 = vld [vmem:[%s5 + $0x108] sm:$0xff]
      %v3698 = vld [vmem:[%s5 + $0x110] sm:$0xff]
      %v3699 = vld [vmem:[%s5 + $0x118] sm:$0xff]
      %v3700 = vld [vmem:[%s5 + $0x120] sm:$0xff]
      %v3701 = vld [vmem:[%s5 + $0x128] sm:$0xff]
      %v3702 = vld [vmem:[%s5 + $0x130] sm:$0xff]
      %v3703 = vld [vmem:[%s5 + $0x138] sm:$0xff]
      %v3704 = vld [vmem:[%s5 + $0x140] sm:$0xf]
      %3706 = vset.pattern.permute.xlu0 0
      %3707 = vperm.xlu0 %3706, %v3664
      %v3708 = vpop.permute.xlu0 %3707
      %3711 = vset.pattern.permute.xlu0 0
      %3712 = vperm.xlu0 %3711, %v3665
      %v3713 = vpop.permute.xlu0 %3712
      %3716 = vset.pattern.permute.xlu0 0
      %3717 = vperm.xlu0 %3716, %v3666
      %v3718 = vpop.permute.xlu0 %3717
      %3721 = vset.pattern.permute.xlu0 0
      %3722 = vperm.xlu0 %3721, %v3667
      %v3723 = vpop.permute.xlu0 %3722
      %3726 = vset.pattern.permute.xlu0 0
      %3727 = vperm.xlu0 %3726, %v3668
      %v3728 = vpop.permute.xlu0 %3727
      %3731 = vset.pattern.permute.xlu0 0
      %3732 = vperm.xlu0 %3731, %v3669
      %v3733 = vpop.permute.xlu0 %3732
      %3736 = vset.pattern.permute.xlu0 0
      %3737 = vperm.xlu0 %3736, %v3670
      %v3738 = vpop.permute.xlu0 %3737
      %3741 = vset.pattern.permute.xlu0 0
      %3742 = vperm.xlu0 %3741, %v3671
      %v3743 = vpop.permute.xlu0 %3742
      %3746 = vset.pattern.permute.xlu0 0
      %3747 = vperm.xlu0 %3746, %v3672
      %v3748 = vpop.permute.xlu0 %3747
      %3751 = vset.pattern.permute.xlu0 0
      %3752 = vperm.xlu0 %3751, %v3673
      %v3753 = vpop.permute.xlu0 %3752
      %3756 = vset.pattern.permute.xlu0 0
      %3757 = vperm.xlu0 %3756, %v3674
      %v3758 = vpop.permute.xlu0 %3757
      %3761 = vset.pattern.permute.xlu0 0
      %3762 = vperm.xlu0 %3761, %v3675
      %v3763 = vpop.permute.xlu0 %3762
      %3766 = vset.pattern.permute.xlu0 0
      %3767 = vperm.xlu0 %3766, %v3676
      %v3768 = vpop.permute.xlu0 %3767
      %3771 = vset.pattern.permute.xlu0 0
      %3772 = vperm.xlu0 %3771, %v3677
      %v3773 = vpop.permute.xlu0 %3772
      %3776 = vset.pattern.permute.xlu0 0
      %3777 = vperm.xlu0 %3776, %v3678
      %v3778 = vpop.permute.xlu0 %3777
      %3781 = vset.pattern.permute.xlu0 0
      %3782 = vperm.xlu0 %3781, %v3679
      %v3783 = vpop.permute.xlu0 %3782
      %3786 = vset.pattern.permute.xlu0 0
      %3787 = vperm.xlu0 %3786, %v3680
      %v3788 = vpop.permute.xlu0 %3787
      %3791 = vset.pattern.permute.xlu0 0
      %3792 = vperm.xlu0 %3791, %v3681
      %v3793 = vpop.permute.xlu0 %3792
      %3796 = vset.pattern.permute.xlu0 0
      %3797 = vperm.xlu0 %3796, %v3682
      %v3798 = vpop.permute.xlu0 %3797
      %3801 = vset.pattern.permute.xlu0 0
      %3802 = vperm.xlu0 %3801, %v3683
      %v3803 = vpop.permute.xlu0 %3802
      %3806 = vset.pattern.permute.xlu0 0
      %3807 = vperm.xlu0 %3806, %v3684
      %v3808 = vpop.permute.xlu0 %3807
      %3811 = vset.pattern.permute.xlu0 0
      %3812 = vperm.xlu0 %3811, %v3685
      %v3813 = vpop.permute.xlu0 %3812
      %3816 = vset.pattern.permute.xlu0 0
      %3817 = vperm.xlu0 %3816, %v3686
      %v3818 = vpop.permute.xlu0 %3817
      %3821 = vset.pattern.permute.xlu0 0
      %3822 = vperm.xlu0 %3821, %v3687
      %v3823 = vpop.permute.xlu0 %3822
      %3826 = vset.pattern.permute.xlu0 0
      %3827 = vperm.xlu0 %3826, %v3688
      %v3828 = vpop.permute.xlu0 %3827
      %3831 = vset.pattern.permute.xlu0 0
      %3832 = vperm.xlu0 %3831, %v3689
      %v3833 = vpop.permute.xlu0 %3832
      %3836 = vset.pattern.permute.xlu0 0
      %3837 = vperm.xlu0 %3836, %v3690
      %v3838 = vpop.permute.xlu0 %3837
      %3841 = vset.pattern.permute.xlu0 0
      %3842 = vperm.xlu0 %3841, %v3691
      %v3843 = vpop.permute.xlu0 %3842
      %3846 = vset.pattern.permute.xlu0 0
      %3847 = vperm.xlu0 %3846, %v3692
      %v3848 = vpop.permute.xlu0 %3847
      %3851 = vset.pattern.permute.xlu0 0
      %3852 = vperm.xlu0 %3851, %v3693
      %v3853 = vpop.permute.xlu0 %3852
      %3856 = vset.pattern.permute.xlu0 0
      %3857 = vperm.xlu0 %3856, %v3694
      %v3858 = vpop.permute.xlu0 %3857
      %3861 = vset.pattern.permute.xlu0 0
      %3862 = vperm.xlu0 %3861, %v3695
      %v3863 = vpop.permute.xlu0 %3862
      %3866 = vset.pattern.permute.xlu0 0
      %3867 = vperm.xlu0 %3866, %v3696
      %v3868 = vpop.permute.xlu0 %3867
      %3871 = vset.pattern.permute.xlu0 0
      %3872 = vperm.xlu0 %3871, %v3697
      %v3873 = vpop.permute.xlu0 %3872
      %3876 = vset.pattern.permute.xlu0 0
      %3877 = vperm.xlu0 %3876, %v3698
      %v3878 = vpop.permute.xlu0 %3877
      %3881 = vset.pattern.permute.xlu0 0
      %3882 = vperm.xlu0 %3881, %v3699
      %v3883 = vpop.permute.xlu0 %3882
      %3886 = vset.pattern.permute.xlu0 0
      %3887 = vperm.xlu0 %3886, %v3700
      %v3888 = vpop.permute.xlu0 %3887
      %3891 = vset.pattern.permute.xlu0 0
      %3892 = vperm.xlu0 %3891, %v3701
      %v3893 = vpop.permute.xlu0 %3892
      %3896 = vset.pattern.permute.xlu0 0
      %3897 = vperm.xlu0 %3896, %v3702
      %v3898 = vpop.permute.xlu0 %3897
      %3901 = vset.pattern.permute.xlu0 0
      %3902 = vperm.xlu0 %3901, %v3703
      %v3903 = vpop.permute.xlu0 %3902
      %3906 = vset.pattern.permute.xlu0 0
      %3907 = vperm.xlu0 %3906, %v3704
      %v3908 = vpop.permute.xlu0 %3907
      %v3910 = vmul.f32 %v3623, %v3708
      %v3911 = vmul.f32 %v3624, %v3713
      %v3912 = vmul.f32 %v3625, %v3718
      %v3913 = vmul.f32 %v3626, %v3723
      %v3914 = vmul.f32 %v3627, %v3728
      %v3915 = vmul.f32 %v3628, %v3733
      %v3916 = vmul.f32 %v3629, %v3738
      %v3917 = vmul.f32 %v3630, %v3743
      %v3918 = vmul.f32 %v3631, %v3748
      %v3919 = vmul.f32 %v3632, %v3753
      %v3920 = vmul.f32 %v3633, %v3758
      %v3921 = vmul.f32 %v3634, %v3763
      %v3922 = vmul.f32 %v3635, %v3768
      %v3923 = vmul.f32 %v3636, %v3773
      %v3924 = vmul.f32 %v3637, %v3778
      %v3925 = vmul.f32 %v3638, %v3783
      %v3926 = vmul.f32 %v3639, %v3788
      %v3927 = vmul.f32 %v3640, %v3793
      %v3928 = vmul.f32 %v3641, %v3798
      %v3929 = vmul.f32 %v3642, %v3803
      %v3930 = vmul.f32 %v3643, %v3808
      %v3931 = vmul.f32 %v3644, %v3813
      %v3932 = vmul.f32 %v3645, %v3818
      %v3933 = vmul.f32 %v3646, %v3823
      %v3934 = vmul.f32 %v3647, %v3828
      %v3935 = vmul.f32 %v3648, %v3833
      %v3936 = vmul.f32 %v3649, %v3838
      %v3937 = vmul.f32 %v3650, %v3843
      %v3938 = vmul.f32 %v3651, %v3848
      %v3939 = vmul.f32 %v3652, %v3853
      %v3940 = vmul.f32 %v3653, %v3858
      %v3941 = vmul.f32 %v3654, %v3863
      %v3942 = vmul.f32 %v3655, %v3868
      %v3943 = vmul.f32 %v3656, %v3873
      %v3944 = vmul.f32 %v3657, %v3878
      %v3945 = vmul.f32 %v3658, %v3883
      %v3946 = vmul.f32 %v3659, %v3888
      %v3947 = vmul.f32 %v3660, %v3893
      %v3948 = vmul.f32 %v3661, %v3898
      %v3949 = vmul.f32 %v3662, %v3903
      %v3950 = vmul.f32 %v3663, %v3908
      %vm3951 = vcmask 257024
      %3952 = vst.msk [vmem:[#allocation2] sm:$0xf] %vm3951, 0
      %3953 = vst.msk [vmem:[#allocation2 + $0x4] sm:$0xf] %vm3951, 0
      %vm3954 = vcmask 254976
      %vm3955 = vsmask.f32 1280
      %vm3956 = vmand %vm3954, %vm3955
      %v3957 = vld [vmem:[#allocation2 + $0x8] sm:$0x3]
      %v3958 = vsel %vm3956, 0, %v3957
      %3959 = vst [vmem:[#allocation2 + $0x8] sm:$0x3] %v3958
      %vm3960 = vcmask 257027
      %vm3961 = vsmask.f32 7950
      %vm3962 = vmand %vm3960, %vm3961
      %v3963 = vld [vmem:[#allocation2 + $0xa8] sm:$0x8]
      %v3964 = vsel %vm3962, 0, %v3963
      %3965 = vst [vmem:[#allocation2 + $0xa8] sm:$0x8] %v3964
      %3966 = vst.msk [vmem:[#allocation2 + $0xac] sm:$0xf] %vm3951, 0
      %3967 = vst.msk [vmem:[#allocation2 + $0xb0] sm:$0xf] %vm3951, 0
      %vm3968 = vcmask 253952
      %3969 = vst.msk [vmem:[#allocation2 + $0xb4] sm:$0x1] %vm3968, 0
      %v3970 = vpack.c.bf16 %v3911, %v3910
      %v3971 = vpack.c.bf16 %v3913, %v3912
      %v3972 = vpack.c.bf16 %v3915, %v3914
      %v3973 = vpack.c.bf16 %v3917, %v3916
      %v3974 = vpack.c.bf16 %v3919, %v3918
      %v3975 = vpack.c.bf16 %v3921, %v3920
      %v3976 = vpack.c.bf16 %v3923, %v3922
      %v3977 = vpack.c.bf16 %v3925, %v3924
      %v3978 = vpack.c.bf16 %v3927, %v3926
      %v3979 = vpack.c.bf16 %v3929, %v3928
      %v3980 = vpack.c.bf16 %v3931, %v3930
      %v3981 = vpack.c.bf16 %v3933, %v3932
      %v3982 = vpack.c.bf16 %v3935, %v3934
      %v3983 = vpack.c.bf16 %v3937, %v3936
      %v3984 = vpack.c.bf16 %v3939, %v3938
      %v3985 = vpack.c.bf16 %v3941, %v3940
      %v3986 = vpack.c.bf16 %v3943, %v3942
      %v3987 = vpack.c.bf16 %v3945, %v3944
      %v3988 = vpack.c.bf16 %v3947, %v3946
      %v3989 = vpack.c.bf16 %v3949, %v3948
      %v3990 = vpack.c.bf16 %v3950, %v3950
      %v4012 = vunpack.c.l.b16 %v3970
      %v4013 = vunpack.c.h.b16 %v3970
      %v4014 = vunpack.c.l.b16 %v3971
      %v4015 = vunpack.c.h.b16 %v3971
      %v4016 = vunpack.c.l.b16 %v3972
      %v4017 = vunpack.c.h.b16 %v3972
      %v4018 = vunpack.c.l.b16 %v3973
      %v4019 = vunpack.c.h.b16 %v3973
      %v4020 = vunpack.c.l.b16 %v3974
      %v4021 = vunpack.c.h.b16 %v3974
      %v4022 = vunpack.c.l.b16 %v3975
      %v4023 = vunpack.c.h.b16 %v3975
      %v4024 = vunpack.c.l.b16 %v3976
      %v4025 = vunpack.c.h.b16 %v3976
      %v4026 = vunpack.c.l.b16 %v3977
      %v4027 = vunpack.c.h.b16 %v3977
      %v4028 = vunpack.c.l.b16 %v3978
      %v4029 = vunpack.c.h.b16 %v3978
      %v4030 = vunpack.c.l.b16 %v3979
      %v4031 = vunpack.c.h.b16 %v3979
      %v4032 = vunpack.c.l.b16 %v3980
      %v4033 = vunpack.c.h.b16 %v3980
      %v4034 = vunpack.c.l.b16 %v3981
      %v4035 = vunpack.c.h.b16 %v3981
      %v4036 = vunpack.c.l.b16 %v3982
      %v4037 = vunpack.c.h.b16 %v3982
      %v4038 = vunpack.c.l.b16 %v3983
      %v4039 = vunpack.c.h.b16 %v3983
      %v4040 = vunpack.c.l.b16 %v3984
      %v4041 = vunpack.c.h.b16 %v3984
      %v4042 = vunpack.c.l.b16 %v3985
      %v4043 = vunpack.c.h.b16 %v3985
      %v4044 = vunpack.c.l.b16 %v3986
      %v4045 = vunpack.c.h.b16 %v3986
      %v4046 = vunpack.c.l.b16 %v3987
      %v4047 = vunpack.c.h.b16 %v3987
      %v4048 = vunpack.c.l.b16 %v3988
      %v4049 = vunpack.c.h.b16 %v3988
      %v4050 = vunpack.c.l.b16 %v3989
      %v4051 = vunpack.c.h.b16 %v3989
      %v4052 = vunpack.c.l.b16 %v3990
      %v4053 = vpack.c.b16 %v4012, %v4012
      %v4054 = vpack.c.b16 %v4013, %v4013
      %v4055 = vpack.c.b16 %v4014, %v4014
      %v4056 = vpack.c.b16 %v4015, %v4015
      %v4057 = vpack.c.b16 %v4016, %v4016
      %v4058 = vpack.c.b16 %v4017, %v4017
      %v4059 = vpack.c.b16 %v4018, %v4018
      %v4060 = vpack.c.b16 %v4019, %v4019
      %v4061 = vpack.c.b16 %v4020, %v4020
      %v4062 = vpack.c.b16 %v4021, %v4021
      %v4063 = vpack.c.b16 %v4022, %v4022
      %v4064 = vpack.c.b16 %v4023, %v4023
      %v4065 = vpack.c.b16 %v4024, %v4024
      %v4066 = vpack.c.b16 %v4025, %v4025
      %v4067 = vpack.c.b16 %v4026, %v4026
      %v4068 = vpack.c.b16 %v4027, %v4027
      %v4069 = vpack.c.b16 %v4028, %v4028
      %v4070 = vpack.c.b16 %v4029, %v4029
      %v4071 = vpack.c.b16 %v4030, %v4030
      %v4072 = vpack.c.b16 %v4031, %v4031
      %v4073 = vpack.c.b16 %v4032, %v4032
      %v4074 = vpack.c.b16 %v4033, %v4033
      %v4075 = vpack.c.b16 %v4034, %v4034
      %v4076 = vpack.c.b16 %v4035, %v4035
      %v4077 = vpack.c.b16 %v4036, %v4036
      %v4078 = vpack.c.b16 %v4037, %v4037
      %v4079 = vpack.c.b16 %v4038, %v4038
      %v4080 = vpack.c.b16 %v4039, %v4039
      %v4081 = vpack.c.b16 %v4040, %v4040
      %v4082 = vpack.c.b16 %v4041, %v4041
      %v4083 = vpack.c.b16 %v4042, %v4042
      %v4084 = vpack.c.b16 %v4043, %v4043
      %v4085 = vpack.c.b16 %v4044, %v4044
      %v4086 = vpack.c.b16 %v4045, %v4045
      %v4087 = vpack.c.b16 %v4046, %v4046
      %v4088 = vpack.c.b16 %v4047, %v4047
      %v4089 = vpack.c.b16 %v4048, %v4048
      %v4090 = vpack.c.b16 %v4049, %v4049
      %v4091 = vpack.c.b16 %v4050, %v4050
      %v4092 = vpack.c.b16 %v4051, %v4051
      %v4093 = vpack.c.b16 %v4052, %v4052
      %vm4094 = vsmask.f32 5392
      %vm4095 = vmor %vm3955, %vm4094
      %v4097 = vshrl.u32 %v4053, 16
      %v4099 = vrot.slane %v4097, 6
      %v4100 = vshll.u32 %v4053, 16
      %v4102 = vrot.slane %v4100, 7
      %v4103 = vor.u32 %v4099, %v4102
      %v4104 = vrot.slane %v4103, 4
      %v4106 = vshrl.u32 %v4054, 16
      %v4108 = vrot.slane %v4106, 6
      %v4109 = vshll.u32 %v4054, 16
      %v4111 = vrot.slane %v4109, 7
      %v4112 = vor.u32 %v4108, %v4111
      %v4113 = vsel %vm4095, %v4104, %v4112
      %v4114 = vrot.slane %v4112, 4
      %v4116 = vshrl.u32 %v4055, 16
      %v4118 = vrot.slane %v4116, 6
      %v4119 = vshll.u32 %v4055, 16
      %v4121 = vrot.slane %v4119, 7
      %v4122 = vor.u32 %v4118, %v4121
      %v4123 = vsel %vm4095, %v4114, %v4122
      %v4124 = vrot.slane %v4122, 4
      %v4126 = vshrl.u32 %v4056, 16
      %v4128 = vrot.slane %v4126, 6
      %v4129 = vshll.u32 %v4056, 16
      %v4131 = vrot.slane %v4129, 7
      %v4132 = vor.u32 %v4128, %v4131
      %v4133 = vsel %vm4095, %v4124, %v4132
      %v4134 = vrot.slane %v4132, 4
      %v4136 = vshrl.u32 %v4057, 16
      %v4138 = vrot.slane %v4136, 6
      %v4139 = vshll.u32 %v4057, 16
      %v4141 = vrot.slane %v4139, 7
      %v4142 = vor.u32 %v4138, %v4141
      %v4143 = vsel %vm4095, %v4134, %v4142
      %v4144 = vrot.slane %v4142, 4
      %v4146 = vshrl.u32 %v4058, 16
      %v4148 = vrot.slane %v4146, 6
      %v4149 = vshll.u32 %v4058, 16
      %v4151 = vrot.slane %v4149, 7
      %v4152 = vor.u32 %v4148, %v4151
      %v4153 = vsel %vm4095, %v4144, %v4152
      %v4154 = vrot.slane %v4152, 4
      %v4156 = vshrl.u32 %v4059, 16
      %v4158 = vrot.slane %v4156, 6
      %v4159 = vshll.u32 %v4059, 16
      %v4161 = vrot.slane %v4159, 7
      %v4162 = vor.u32 %v4158, %v4161
      %v4163 = vsel %vm4095, %v4154, %v4162
      %v4164 = vrot.slane %v4162, 4
      %v4166 = vshrl.u32 %v4060, 16
      %v4168 = vrot.slane %v4166, 6
      %v4169 = vshll.u32 %v4060, 16
      %v4171 = vrot.slane %v4169, 7
      %v4172 = vor.u32 %v4168, %v4171
      %v4173 = vsel %vm4095, %v4164, %v4172
      %v4174 = vrot.slane %v4172, 4
      %v4176 = vshrl.u32 %v4061, 16
      %v4178 = vrot.slane %v4176, 6
      %v4179 = vshll.u32 %v4061, 16
      %v4181 = vrot.slane %v4179, 7
      %v4182 = vor.u32 %v4178, %v4181
      %v4183 = vsel %vm4095, %v4174, %v4182
      %v4184 = vrot.slane %v4182, 4
      %v4186 = vshrl.u32 %v4062, 16
      %v4188 = vrot.slane %v4186, 6
      %v4189 = vshll.u32 %v4062, 16
      %v4191 = vrot.slane %v4189, 7
      %v4192 = vor.u32 %v4188, %v4191
      %v4193 = vsel %vm4095, %v4184, %v4192
      %v4194 = vrot.slane %v4192, 4
      %v4196 = vshrl.u32 %v4063, 16
      %v4198 = vrot.slane %v4196, 6
      %v4199 = vshll.u32 %v4063, 16
      %v4201 = vrot.slane %v4199, 7
      %v4202 = vor.u32 %v4198, %v4201
      %v4203 = vsel %vm4095, %v4194, %v4202
      %v4204 = vrot.slane %v4202, 4
      %v4206 = vshrl.u32 %v4064, 16
      %v4208 = vrot.slane %v4206, 6
      %v4209 = vshll.u32 %v4064, 16
      %v4211 = vrot.slane %v4209, 7
      %v4212 = vor.u32 %v4208, %v4211
      %v4213 = vsel %vm4095, %v4204, %v4212
      %v4214 = vrot.slane %v4212, 4
      %v4216 = vshrl.u32 %v4065, 16
      %v4218 = vrot.slane %v4216, 6
      %v4219 = vshll.u32 %v4065, 16
      %v4221 = vrot.slane %v4219, 7
      %v4222 = vor.u32 %v4218, %v4221
      %v4223 = vsel %vm4095, %v4214, %v4222
      %v4224 = vrot.slane %v4222, 4
      %v4226 = vshrl.u32 %v4066, 16
      %v4228 = vrot.slane %v4226, 6
      %v4229 = vshll.u32 %v4066, 16
      %v4231 = vrot.slane %v4229, 7
      %v4232 = vor.u32 %v4228, %v4231
      %v4233 = vsel %vm4095, %v4224, %v4232
      %v4234 = vrot.slane %v4232, 4
      %v4236 = vshrl.u32 %v4067, 16
      %v4238 = vrot.slane %v4236, 6
      %v4239 = vshll.u32 %v4067, 16
      %v4241 = vrot.slane %v4239, 7
      %v4242 = vor.u32 %v4238, %v4241
      %v4243 = vsel %vm4095, %v4234, %v4242
      %v4244 = vrot.slane %v4242, 4
      %v4246 = vshrl.u32 %v4068, 16
      %v4248 = vrot.slane %v4246, 6
      %v4249 = vshll.u32 %v4068, 16
      %v4251 = vrot.slane %v4249, 7
      %v4252 = vor.u32 %v4248, %v4251
      %v4253 = vsel %vm4095, %v4244, %v4252
      %v4254 = vrot.slane %v4252, 4
      %v4256 = vshrl.u32 %v4069, 16
      %v4258 = vrot.slane %v4256, 6
      %v4259 = vshll.u32 %v4069, 16
      %v4261 = vrot.slane %v4259, 7
      %v4262 = vor.u32 %v4258, %v4261
      %v4263 = vsel %vm4095, %v4254, %v4262
      %v4264 = vrot.slane %v4262, 4
      %v4266 = vshrl.u32 %v4070, 16
      %v4268 = vrot.slane %v4266, 6
      %v4269 = vshll.u32 %v4070, 16
      %v4271 = vrot.slane %v4269, 7
      %v4272 = vor.u32 %v4268, %v4271
      %v4273 = vsel %vm4095, %v4264, %v4272
      %v4274 = vrot.slane %v4272, 4
      %v4276 = vshrl.u32 %v4071, 16
      %v4278 = vrot.slane %v4276, 6
      %v4279 = vshll.u32 %v4071, 16
      %v4281 = vrot.slane %v4279, 7
      %v4282 = vor.u32 %v4278, %v4281
      %v4283 = vsel %vm4095, %v4274, %v4282
      %v4284 = vrot.slane %v4282, 4
      %v4286 = vshrl.u32 %v4072, 16
      %v4288 = vrot.slane %v4286, 6
      %v4289 = vshll.u32 %v4072, 16
      %v4291 = vrot.slane %v4289, 7
      %v4292 = vor.u32 %v4288, %v4291
      %v4293 = vsel %vm4095, %v4284, %v4292
      %v4294 = vrot.slane %v4292, 4
      %v4296 = vshrl.u32 %v4073, 16
      %v4298 = vrot.slane %v4296, 6
      %v4299 = vshll.u32 %v4073, 16
      %v4301 = vrot.slane %v4299, 7
      %v4302 = vor.u32 %v4298, %v4301
      %v4303 = vsel %vm4095, %v4294, %v4302
      %v4304 = vrot.slane %v4302, 4
      %v4306 = vshrl.u32 %v4074, 16
      %v4308 = vrot.slane %v4306, 6
      %v4309 = vshll.u32 %v4074, 16
      %v4311 = vrot.slane %v4309, 7
      %v4312 = vor.u32 %v4308, %v4311
      %v4313 = vsel %vm4095, %v4304, %v4312
      %v4314 = vrot.slane %v4312, 4
      %v4316 = vshrl.u32 %v4075, 16
      %v4318 = vrot.slane %v4316, 6
      %v4319 = vshll.u32 %v4075, 16
      %v4321 = vrot.slane %v4319, 7
      %v4322 = vor.u32 %v4318, %v4321
      %v4323 = vsel %vm4095, %v4314, %v4322
      %v4324 = vrot.slane %v4322, 4
      %v4326 = vshrl.u32 %v4076, 16
      %v4328 = vrot.slane %v4326, 6
      %v4329 = vshll.u32 %v4076, 16
      %v4331 = vrot.slane %v4329, 7
      %v4332 = vor.u32 %v4328, %v4331
      %v4333 = vsel %vm4095, %v4324, %v4332
      %v4334 = vrot.slane %v4332, 4
      %v4336 = vshrl.u32 %v4077, 16
      %v4338 = vrot.slane %v4336, 6
      %v4339 = vshll.u32 %v4077, 16
      %v4341 = vrot.slane %v4339, 7
      %v4342 = vor.u32 %v4338, %v4341
      %v4343 = vsel %vm4095, %v4334, %v4342
      %v4344 = vrot.slane %v4342, 4
      %v4346 = vshrl.u32 %v4078, 16
      %v4348 = vrot.slane %v4346, 6
      %v4349 = vshll.u32 %v4078, 16
      %v4351 = vrot.slane %v4349, 7
      %v4352 = vor.u32 %v4348, %v4351
      %v4353 = vsel %vm4095, %v4344, %v4352
      %v4354 = vrot.slane %v4352, 4
      %v4356 = vshrl.u32 %v4079, 16
      %v4358 = vrot.slane %v4356, 6
      %v4359 = vshll.u32 %v4079, 16
      %v4361 = vrot.slane %v4359, 7
      %v4362 = vor.u32 %v4358, %v4361
      %v4363 = vsel %vm4095, %v4354, %v4362
      %v4364 = vrot.slane %v4362, 4
      %v4366 = vshrl.u32 %v4080, 16
      %v4368 = vrot.slane %v4366, 6
      %v4369 = vshll.u32 %v4080, 16
      %v4371 = vrot.slane %v4369, 7
      %v4372 = vor.u32 %v4368, %v4371
      %v4373 = vsel %vm4095, %v4364, %v4372
      %v4374 = vrot.slane %v4372, 4
      %v4376 = vshrl.u32 %v4081, 16
      %v4378 = vrot.slane %v4376, 6
      %v4379 = vshll.u32 %v4081, 16
      %v4381 = vrot.slane %v4379, 7
      %v4382 = vor.u32 %v4378, %v4381
      %v4383 = vsel %vm4095, %v4374, %v4382
      %v4384 = vrot.slane %v4382, 4
      %v4386 = vshrl.u32 %v4082, 16
      %v4388 = vrot.slane %v4386, 6
      %v4389 = vshll.u32 %v4082, 16
      %v4391 = vrot.slane %v4389, 7
      %v4392 = vor.u32 %v4388, %v4391
      %v4393 = vsel %vm4095, %v4384, %v4392
      %v4394 = vrot.slane %v4392, 4
      %v4396 = vshrl.u32 %v4083, 16
      %v4398 = vrot.slane %v4396, 6
      %v4399 = vshll.u32 %v4083, 16
      %v4401 = vrot.slane %v4399, 7
      %v4402 = vor.u32 %v4398, %v4401
      %v4403 = vsel %vm4095, %v4394, %v4402
      %v4404 = vrot.slane %v4402, 4
      %v4406 = vshrl.u32 %v4084, 16
      %v4408 = vrot.slane %v4406, 6
      %v4409 = vshll.u32 %v4084, 16
      %v4411 = vrot.slane %v4409, 7
      %v4412 = vor.u32 %v4408, %v4411
      %v4413 = vsel %vm4095, %v4404, %v4412
      %v4414 = vrot.slane %v4412, 4
      %v4416 = vshrl.u32 %v4085, 16
      %v4418 = vrot.slane %v4416, 6
      %v4419 = vshll.u32 %v4085, 16
      %v4421 = vrot.slane %v4419, 7
      %v4422 = vor.u32 %v4418, %v4421
      %v4423 = vsel %vm4095, %v4414, %v4422
      %v4424 = vrot.slane %v4422, 4
      %v4426 = vshrl.u32 %v4086, 16
      %v4428 = vrot.slane %v4426, 6
      %v4429 = vshll.u32 %v4086, 16
      %v4431 = vrot.slane %v4429, 7
      %v4432 = vor.u32 %v4428, %v4431
      %v4433 = vsel %vm4095, %v4424, %v4432
      %v4434 = vrot.slane %v4432, 4
      %v4436 = vshrl.u32 %v4087, 16
      %v4438 = vrot.slane %v4436, 6
      %v4439 = vshll.u32 %v4087, 16
      %v4441 = vrot.slane %v4439, 7
      %v4442 = vor.u32 %v4438, %v4441
      %v4443 = vsel %vm4095, %v4434, %v4442
      %v4444 = vrot.slane %v4442, 4
      %v4446 = vshrl.u32 %v4088, 16
      %v4448 = vrot.slane %v4446, 6
      %v4449 = vshll.u32 %v4088, 16
      %v4451 = vrot.slane %v4449, 7
      %v4452 = vor.u32 %v4448, %v4451
      %v4453 = vsel %vm4095, %v4444, %v4452
      %v4454 = vrot.slane %v4452, 4
      %v4456 = vshrl.u32 %v4089, 16
      %v4458 = vrot.slane %v4456, 6
      %v4459 = vshll.u32 %v4089, 16
      %v4461 = vrot.slane %v4459, 7
      %v4462 = vor.u32 %v4458, %v4461
      %v4463 = vsel %vm4095, %v4454, %v4462
      %v4464 = vrot.slane %v4462, 4
      %v4466 = vshrl.u32 %v4090, 16
      %v4468 = vrot.slane %v4466, 6
      %v4469 = vshll.u32 %v4090, 16
      %v4471 = vrot.slane %v4469, 7
      %v4472 = vor.u32 %v4468, %v4471
      %v4473 = vsel %vm4095, %v4464, %v4472
      %v4474 = vrot.slane %v4472, 4
      %v4476 = vshrl.u32 %v4091, 16
      %v4478 = vrot.slane %v4476, 6
      %v4479 = vshll.u32 %v4091, 16
      %v4481 = vrot.slane %v4479, 7
      %v4482 = vor.u32 %v4478, %v4481
      %v4483 = vsel %vm4095, %v4474, %v4482
      %v4484 = vrot.slane %v4482, 4
      %v4486 = vshrl.u32 %v4092, 16
      %v4488 = vrot.slane %v4486, 6
      %v4489 = vshll.u32 %v4092, 16
      %v4491 = vrot.slane %v4489, 7
      %v4492 = vor.u32 %v4488, %v4491
      %v4493 = vsel %vm4095, %v4484, %v4492
      %v4494 = vrot.slane %v4492, 4
      %v4496 = vshrl.u32 %v4093, 16
      %v4498 = vrot.slane %v4496, 6
      %v4499 = vshll.u32 %v4093, 16
      %v4501 = vrot.slane %v4499, 7
      %v4502 = vor.u32 %v4498, %v4501
      %v4503 = vsel %vm4095, %v4494, %v4502
      %vm4545 = vcmask 257025
      %vm4546 = vsmask.f32 7942
      %vm4547 = vmand %vm4545, %vm4546
      %v4548 = vld [vmem:[#allocation2 + $0x8] sm:$0xe]
      %v4549 = vsel %vm4547, %v4103, %v4548
      %4550 = vst [vmem:[#allocation2 + $0x8] sm:$0xe] %v4549
      %4551 = vst.msk [vmem:[#allocation2 + $0xc] sm:$0xf] %vm3951, %v4113
      %4552 = vst.msk [vmem:[#allocation2 + $0x10] sm:$0xf] %vm3951, %v4123
      %4553 = vst.msk [vmem:[#allocation2 + $0x14] sm:$0xf] %vm3951, %v4133
      %4554 = vst.msk [vmem:[#allocation2 + $0x18] sm:$0xf] %vm3951, %v4143
      %4555 = vst.msk [vmem:[#allocation2 + $0x1c] sm:$0xf] %vm3951, %v4153
      %4556 = vst.msk [vmem:[#allocation2 + $0x20] sm:$0xf] %vm3951, %v4163
      %4557 = vst.msk [vmem:[#allocation2 + $0x24] sm:$0xf] %vm3951, %v4173
      %4558 = vst.msk [vmem:[#allocation2 + $0x28] sm:$0xf] %vm3951, %v4183
      %4559 = vst.msk [vmem:[#allocation2 + $0x2c] sm:$0xf] %vm3951, %v4193
      %4560 = vst.msk [vmem:[#allocation2 + $0x30] sm:$0xf] %vm3951, %v4203
      %4561 = vst.msk [vmem:[#allocation2 + $0x34] sm:$0xf] %vm3951, %v4213
      %4562 = vst.msk [vmem:[#allocation2 + $0x38] sm:$0xf] %vm3951, %v4223
      %4563 = vst.msk [vmem:[#allocation2 + $0x3c] sm:$0xf] %vm3951, %v4233
      %4564 = vst.msk [vmem:[#allocation2 + $0x40] sm:$0xf] %vm3951, %v4243
      %4565 = vst.msk [vmem:[#allocation2 + $0x44] sm:$0xf] %vm3951, %v4253
      %4566 = vst.msk [vmem:[#allocation2 + $0x48] sm:$0xf] %vm3951, %v4263
      %4567 = vst.msk [vmem:[#allocation2 + $0x4c] sm:$0xf] %vm3951, %v4273
      %4568 = vst.msk [vmem:[#allocation2 + $0x50] sm:$0xf] %vm3951, %v4283
      %4569 = vst.msk [vmem:[#allocation2 + $0x54] sm:$0xf] %vm3951, %v4293
      %4570 = vst.msk [vmem:[#allocation2 + $0x58] sm:$0xf] %vm3951, %v4303
      %4571 = vst.msk [vmem:[#allocation2 + $0x5c] sm:$0xf] %vm3951, %v4313
      %4572 = vst.msk [vmem:[#allocation2 + $0x60] sm:$0xf] %vm3951, %v4323
      %4573 = vst.msk [vmem:[#allocation2 + $0x64] sm:$0xf] %vm3951, %v4333
      %4574 = vst.msk [vmem:[#allocation2 + $0x68] sm:$0xf] %vm3951, %v4343
      %4575 = vst.msk [vmem:[#allocation2 + $0x6c] sm:$0xf] %vm3951, %v4353
      %4576 = vst.msk [vmem:[#allocation2 + $0x70] sm:$0xf] %vm3951, %v4363
      %4577 = vst.msk [vmem:[#allocation2 + $0x74] sm:$0xf] %vm3951, %v4373
      %4578 = vst.msk [vmem:[#allocation2 + $0x78] sm:$0xf] %vm3951, %v4383
      %4579 = vst.msk [vmem:[#allocation2 + $0x7c] sm:$0xf] %vm3951, %v4393
      %4580 = vst.msk [vmem:[#allocation2 + $0x80] sm:$0xf] %vm3951, %v4403
      %4581 = vst.msk [vmem:[#allocation2 + $0x84] sm:$0xf] %vm3951, %v4413
      %4582 = vst.msk [vmem:[#allocation2 + $0x88] sm:$0xf] %vm3951, %v4423
      %4583 = vst.msk [vmem:[#allocation2 + $0x8c] sm:$0xf] %vm3951, %v4433
      %4584 = vst.msk [vmem:[#allocation2 + $0x90] sm:$0xf] %vm3951, %v4443
      %4585 = vst.msk [vmem:[#allocation2 + $0x94] sm:$0xf] %vm3951, %v4453
      %4586 = vst.msk [vmem:[#allocation2 + $0x98] sm:$0xf] %vm3951, %v4463
      %4587 = vst.msk [vmem:[#allocation2 + $0x9c] sm:$0xf] %vm3951, %v4473
      %4588 = vst.msk [vmem:[#allocation2 + $0xa0] sm:$0xf] %vm3951, %v4483
      %4589 = vst.msk [vmem:[#allocation2 + $0xa4] sm:$0xf] %vm3951, %v4493
      %vm4590 = vcmask 257024
      %vm4591 = vsmask.f32 3328
      %vm4592 = vmand %vm4590, %vm4591
      %v4593 = vld [vmem:[#allocation2 + $0xa8] sm:$0xf]
      %v4594 = vsel %vm4592, %v4503, %v4593
      %4595 = vst [vmem:[#allocation2 + $0xa8] sm:$0xf] %v4594
      %v4596 = vld [vmem:[#allocation2] sm:$0xf]
      %v4597 = vld [vmem:[#allocation2 + $0x4] sm:$0xf]
      %v4598 = vld [vmem:[#allocation2 + $0x8] sm:$0xf]
      %v4599 = vld [vmem:[#allocation2 + $0xc] sm:$0xf]
      %v4600 = vld [vmem:[#allocation2 + $0x10] sm:$0xf]
      %v4601 = vld [vmem:[#allocation2 + $0x14] sm:$0xf]
      %v4602 = vld [vmem:[#allocation2 + $0x18] sm:$0xf]
      %v4603 = vld [vmem:[#allocation2 + $0x1c] sm:$0xf]
      %v4604 = vld [vmem:[#allocation2 + $0x20] sm:$0xf]
      %v4605 = vld [vmem:[#allocation2 + $0x24] sm:$0xf]
      %v4606 = vld [vmem:[#allocation2 + $0x28] sm:$0xf]
      %v4607 = vld [vmem:[#allocation2 + $0x2c] sm:$0xf]
      %v4608 = vld [vmem:[#allocation2 + $0x30] sm:$0xf]
      %v4609 = vld [vmem:[#allocation2 + $0x34] sm:$0xf]
      %v4610 = vld [vmem:[#allocation2 + $0x38] sm:$0xf]
      %v4611 = vld [vmem:[#allocation2 + $0x3c] sm:$0xf]
      %v4612 = vld [vmem:[#allocation2 + $0x40] sm:$0xf]
      %v4613 = vld [vmem:[#allocation2 + $0x44] sm:$0xf]
      %v4614 = vld [vmem:[#allocation2 + $0x48] sm:$0xf]
      %v4615 = vld [vmem:[#allocation2 + $0x4c] sm:$0xf]
      %v4616 = vld [vmem:[#allocation2 + $0x50] sm:$0xf]
      %v4617 = vld [vmem:[#allocation2 + $0x54] sm:$0xf]
      %v4618 = vld [vmem:[#allocation2 + $0x58] sm:$0xf]
      %v4619 = vld [vmem:[#allocation2 + $0x5c] sm:$0xf]
      %v4620 = vld [vmem:[#allocation2 + $0x60] sm:$0xf]
      %v4621 = vld [vmem:[#allocation2 + $0x64] sm:$0xf]
      %v4622 = vld [vmem:[#allocation2 + $0x68] sm:$0xf]
      %v4623 = vld [vmem:[#allocation2 + $0x6c] sm:$0xf]
      %v4624 = vld [vmem:[#allocation2 + $0x70] sm:$0xf]
      %v4625 = vld [vmem:[#allocation2 + $0x74] sm:$0xf]
      %v4626 = vld [vmem:[#allocation2 + $0x78] sm:$0xf]
      %v4627 = vld [vmem:[#allocation2 + $0x7c] sm:$0xf]
      %v4628 = vld [vmem:[#allocation2 + $0x80] sm:$0xf]
      %v4629 = vld [vmem:[#allocation2 + $0x84] sm:$0xf]
      %v4630 = vld [vmem:[#allocation2 + $0x88] sm:$0xf]
      %v4631 = vld [vmem:[#allocation2 + $0x8c] sm:$0xf]
      %v4632 = vld [vmem:[#allocation2 + $0x90] sm:$0xf]
      %v4633 = vld [vmem:[#allocation2 + $0x94] sm:$0xf]
      %v4634 = vld [vmem:[#allocation2 + $0x98] sm:$0xf]
      %v4635 = vld [vmem:[#allocation2 + $0x9c] sm:$0xf]
      %v4636 = vld [vmem:[#allocation2 + $0xa0] sm:$0xf]
      %v4637 = vld [vmem:[#allocation2 + $0xa4] sm:$0xf]
      %v4638 = vld [vmem:[#allocation2 + $0xa8] sm:$0xf]
      %v4639 = vld [vmem:[#allocation2 + $0xac] sm:$0xf]
      %v4640 = vld [vmem:[#allocation2 + $0xb0] sm:$0xf]
      %v4641 = vld [vmem:[#allocation2 + $0xb4] sm:$0x1]
      %v4642 = vld [vmem:[%s3] sm:$0xf]
      %v4643 = vld [vmem:[%s3 + $0x4] sm:$0xf]
      %v4644 = vld [vmem:[%s3 + $0x8] sm:$0xf]
      %v4645 = vld [vmem:[%s3 + $0xc] sm:$0xf]
      %s4646 = scalar_lea.vmem %s3, 16
      %v4647 = vld [vmem:[%s4646] sm:$0xf]
      %v4648 = vld [vmem:[%s4646 + $0x4] sm:$0xf]
      %v4649 = vld [vmem:[%s4646 + $0x8] sm:$0xf]
      %v4650 = vld [vmem:[%s4646 + $0xc] sm:$0xf]
      %v4692 = vunpack.c.l.b16 %v4596
      %v4693 = vunpack.c.l.b16 %v4597
      %v4694 = vunpack.c.l.b16 %v4598
      %v4695 = vunpack.c.l.b16 %v4599
      %v4696 = vunpack.c.l.b16 %v4600
      %v4697 = vunpack.c.l.b16 %v4601
      %v4698 = vunpack.c.l.b16 %v4602
      %v4699 = vunpack.c.l.b16 %v4603
      %v4700 = vunpack.c.l.b16 %v4604
      %v4701 = vunpack.c.l.b16 %v4605
      %v4702 = vunpack.c.l.b16 %v4606
      %v4703 = vunpack.c.l.b16 %v4607
      %v4704 = vunpack.c.l.b16 %v4608
      %v4705 = vunpack.c.l.b16 %v4609
      %v4706 = vunpack.c.l.b16 %v4610
      %v4707 = vunpack.c.l.b16 %v4611
      %v4708 = vunpack.c.l.b16 %v4612
      %v4709 = vunpack.c.l.b16 %v4613
      %v4710 = vunpack.c.l.b16 %v4614
      %v4711 = vunpack.c.l.b16 %v4615
      %v4712 = vunpack.c.l.b16 %v4616
      %v4713 = vunpack.c.l.b16 %v4617
      %v4714 = vunpack.c.l.b16 %v4618
      %v4715 = vunpack.c.l.b16 %v4619
      %v4716 = vunpack.c.l.b16 %v4620
      %v4717 = vunpack.c.l.b16 %v4621
      %v4718 = vunpack.c.l.b16 %v4622
      %v4719 = vunpack.c.l.b16 %v4623
      %v4720 = vunpack.c.l.b16 %v4624
      %v4721 = vunpack.c.l.b16 %v4625
      %v4722 = vunpack.c.l.b16 %v4626
      %v4723 = vunpack.c.l.b16 %v4627
      %v4724 = vunpack.c.l.b16 %v4628
      %v4725 = vunpack.c.l.b16 %v4629
      %v4726 = vunpack.c.l.b16 %v4630
      %v4727 = vunpack.c.l.b16 %v4631
      %v4728 = vunpack.c.l.b16 %v4632
      %v4729 = vunpack.c.l.b16 %v4633
      %v4730 = vunpack.c.l.b16 %v4634
      %v4731 = vunpack.c.l.b16 %v4635
      %v4732 = vunpack.c.l.b16 %v4636
      %v4733 = vpack.c.b16 %v4693, %v4692
      %v4734 = vpack.c.b16 %v4695, %v4694
      %v4735 = vpack.c.b16 %v4697, %v4696
      %v4736 = vpack.c.b16 %v4699, %v4698
      %v4737 = vpack.c.b16 %v4701, %v4700
      %v4738 = vpack.c.b16 %v4703, %v4702
      %v4739 = vpack.c.b16 %v4705, %v4704
      %v4740 = vpack.c.b16 %v4707, %v4706
      %v4741 = vpack.c.b16 %v4709, %v4708
      %v4742 = vpack.c.b16 %v4711, %v4710
      %v4743 = vpack.c.b16 %v4713, %v4712
      %v4744 = vpack.c.b16 %v4715, %v4714
      %v4745 = vpack.c.b16 %v4717, %v4716
      %v4746 = vpack.c.b16 %v4719, %v4718
      %v4747 = vpack.c.b16 %v4721, %v4720
      %v4748 = vpack.c.b16 %v4723, %v4722
      %v4749 = vpack.c.b16 %v4725, %v4724
      %v4750 = vpack.c.b16 %v4727, %v4726
      %v4751 = vpack.c.b16 %v4729, %v4728
      %v4752 = vpack.c.b16 %v4731, %v4730
      %v4753 = vpack.c.b16 %v4732, %v4732
      %v4755 = vshrl.u32 %v4733, 16
      %v4757 = vshll.u32 %v4733, 16
      %v4759 = vrot.slane %v4757, 1
      %v4760 = vor.u32 %v4755, %v4759
      %v4762 = vshll.u32 %v4734, 16
      %v4764 = vrot.slane %v4762, 1
      %v4765 = vsel %vm331, %v4760, %v4764
      %v4766 = vshrl.u32 %v4734, 16
      %v4768 = vor.u32 %v4766, %v4764
      %v4770 = vshll.u32 %v4735, 16
      %v4772 = vrot.slane %v4770, 1
      %v4773 = vsel %vm331, %v4768, %v4772
      %v4774 = vshrl.u32 %v4735, 16
      %v4776 = vor.u32 %v4774, %v4772
      %v4778 = vshll.u32 %v4736, 16
      %v4780 = vrot.slane %v4778, 1
      %v4781 = vsel %vm331, %v4776, %v4780
      %v4782 = vshrl.u32 %v4736, 16
      %v4784 = vor.u32 %v4782, %v4780
      %v4786 = vshll.u32 %v4737, 16
      %v4788 = vrot.slane %v4786, 1
      %v4789 = vsel %vm331, %v4784, %v4788
      %v4790 = vshrl.u32 %v4737, 16
      %v4792 = vor.u32 %v4790, %v4788
      %v4794 = vshll.u32 %v4738, 16
      %v4796 = vrot.slane %v4794, 1
      %v4797 = vsel %vm331, %v4792, %v4796
      %v4798 = vshrl.u32 %v4738, 16
      %v4800 = vor.u32 %v4798, %v4796
      %v4802 = vshll.u32 %v4739, 16
      %v4804 = vrot.slane %v4802, 1
      %v4805 = vsel %vm331, %v4800, %v4804
      %v4806 = vshrl.u32 %v4739, 16
      %v4808 = vor.u32 %v4806, %v4804
      %v4810 = vshll.u32 %v4740, 16
      %v4812 = vrot.slane %v4810, 1
      %v4813 = vsel %vm331, %v4808, %v4812
      %v4814 = vshrl.u32 %v4740, 16
      %v4816 = vor.u32 %v4814, %v4812
      %v4818 = vshll.u32 %v4741, 16
      %v4820 = vrot.slane %v4818, 1
      %v4821 = vsel %vm331, %v4816, %v4820
      %v4822 = vshrl.u32 %v4741, 16
      %v4824 = vor.u32 %v4822, %v4820
      %v4826 = vshll.u32 %v4742, 16
      %v4828 = vrot.slane %v4826, 1
      %v4829 = vsel %vm331, %v4824, %v4828
      %v4830 = vshrl.u32 %v4742, 16
      %v4832 = vor.u32 %v4830, %v4828
      %v4834 = vshll.u32 %v4743, 16
      %v4836 = vrot.slane %v4834, 1
      %v4837 = vsel %vm331, %v4832, %v4836
      %v4838 = vshrl.u32 %v4743, 16
      %v4840 = vor.u32 %v4838, %v4836
      %v4842 = vshll.u32 %v4744, 16
      %v4844 = vrot.slane %v4842, 1
      %v4845 = vsel %vm331, %v4840, %v4844
      %v4846 = vshrl.u32 %v4744, 16
      %v4848 = vor.u32 %v4846, %v4844
      %v4850 = vshll.u32 %v4745, 16
      %v4852 = vrot.slane %v4850, 1
      %v4853 = vsel %vm331, %v4848, %v4852
      %v4854 = vshrl.u32 %v4745, 16
      %v4856 = vor.u32 %v4854, %v4852
      %v4858 = vshll.u32 %v4746, 16
      %v4860 = vrot.slane %v4858, 1
      %v4861 = vsel %vm331, %v4856, %v4860
      %v4862 = vshrl.u32 %v4746, 16
      %v4864 = vor.u32 %v4862, %v4860
      %v4866 = vshll.u32 %v4747, 16
      %v4868 = vrot.slane %v4866, 1
      %v4869 = vsel %vm331, %v4864, %v4868
      %v4870 = vshrl.u32 %v4747, 16
      %v4872 = vor.u32 %v4870, %v4868
      %v4874 = vshll.u32 %v4748, 16
      %v4876 = vrot.slane %v4874, 1
      %v4877 = vsel %vm331, %v4872, %v4876
      %v4878 = vshrl.u32 %v4748, 16
      %v4880 = vor.u32 %v4878, %v4876
      %v4882 = vshll.u32 %v4749, 16
      %v4884 = vrot.slane %v4882, 1
      %v4885 = vsel %vm331, %v4880, %v4884
      %v4886 = vshrl.u32 %v4749, 16
      %v4888 = vor.u32 %v4886, %v4884
      %v4890 = vshll.u32 %v4750, 16
      %v4892 = vrot.slane %v4890, 1
      %v4893 = vsel %vm331, %v4888, %v4892
      %v4894 = vshrl.u32 %v4750, 16
      %v4896 = vor.u32 %v4894, %v4892
      %v4898 = vshll.u32 %v4751, 16
      %v4900 = vrot.slane %v4898, 1
      %v4901 = vsel %vm331, %v4896, %v4900
      %v4902 = vshrl.u32 %v4751, 16
      %v4904 = vor.u32 %v4902, %v4900
      %v4906 = vshll.u32 %v4752, 16
      %v4908 = vrot.slane %v4906, 1
      %v4909 = vsel %vm331, %v4904, %v4908
      %v4910 = vshrl.u32 %v4752, 16
      %v4912 = vor.u32 %v4910, %v4908
      %v4914 = vshll.u32 %v4753, 16
      %v4916 = vrot.slane %v4914, 1
      %v4917 = vsel %vm331, %v4912, %v4916
      %v4918 = vshrl.u32 %v4753, 16
      %v4920 = vor.u32 %v4918, %v4916
      %v4925 = vunpack.c.l.b16 %v4647
      %v4926 = vunpack.c.l.b16 %v4648
      %v4927 = vunpack.c.l.b16 %v4649
      %v4928 = vunpack.c.l.b16 %v4650
      %v4929 = vpack.c.b16 %v4926, %v4925
      %v4930 = vpack.c.b16 %v4928, %v4927
      %v4934 = vsel %vm511, %v4765, 0
      %v4937 = vsel %vm511, %v4773, 0
      %v4940 = vsel %vm511, %v4781, 0
      %v4943 = vsel %vm511, %v4789, 0
      %v4946 = vsel %vm511, %v4797, 0
      %v4949 = vsel %vm511, %v4805, 0
      %v4952 = vsel %vm511, %v4813, 0
      %v4955 = vsel %vm511, %v4821, 0
      %v4958 = vsel %vm511, %v4829, 0
      %v4961 = vsel %vm511, %v4837, 0
      %v4964 = vsel %vm511, %v4845, 0
      %v4967 = vsel %vm511, %v4853, 0
      %v4970 = vsel %vm511, %v4861, 0
      %v4973 = vsel %vm511, %v4869, 0
      %v4976 = vsel %vm511, %v4877, 0
      %v4979 = vsel %vm511, %v4885, 0
      %v4982 = vsel %vm511, %v4893, 0
      %v4985 = vsel %vm511, %v4901, 0
      %v4988 = vsel %vm511, %v4909, 0
      %v4991 = vsel %vm511, %v4917, 0
      %v4994 = vsel %vm511, %v4920, 0
      %4996 = vmatprep.subr.bf16.mxu0 0
      %4997 = vmatpush1.bf16.msra.mxu0 0
      %4998 = vmatprep.subr.bf16.mxu0 0
      %4999 = vmatpush1.bf16.msra.mxu0 0
      %5000 = vmatprep.subr.bf16.mxu0 0
      %5001 = vmatpush1.bf16.msra.mxu0 0
      %5002 = vmatprep.subr.bf16.mxu0 0
      %5003 = vmatpush1.bf16.msra.mxu0 0
      %5004 = vmatprep.subr.bf16.mxu0 0
      %5005 = vmatpush1.bf16.msra.mxu0 0
      %5006 = vmatprep.subr.bf16.mxu0 0
      %5007 = vmatpush1.bf16.msra.mxu0 0
      %5008 = vmatprep.subr.bf16.mxu0 0
      %5009 = vmatpush1.bf16.msra.mxu0 %v4930
      %5010 = vmatprep.subr.bf16.mxu0 0
      %5011 = vmatpush1.bf16.msra.mxu0 %v4929
      %5012 = vmatprep.subr.bf16.mxu0 0
      %5013 = vmatpush2.bf16.msra.mxu0 0
      %5014 = vmatprep.subr.bf16.mxu0 0
      %5015 = vmatpush2.bf16.msra.mxu0 0
      %5016 = vmatprep.subr.bf16.mxu0 0
      %5017 = vmatpush2.bf16.msra.mxu0 0
      %5018 = vmatprep.subr.bf16.mxu0 0
      %5019 = vmatpush2.bf16.msra.mxu0 0
      %5020 = vmatprep.subr.bf16.mxu0 0
      %5021 = vmatpush2.bf16.msra.mxu0 0
      %5022 = vmatprep.subr.bf16.mxu0 0
      %5023 = vmatpush2.bf16.msra.mxu0 0
      %5024 = vmatprep.subr.bf16.mxu0 0
      %5025 = vmatpush2.bf16.msra.mxu0 0
      %5026 = vmatprep.subr.bf16.mxu0 0
      %5027 = vmatpush2.bf16.msra.mxu0 0
      %5028 = vmatprep.mubr.bf16.mxu0 0
      %5029 = vmatmul.mubr.bf16.gmra.mxu0 %v4934
      %v5030 = vpop.f32.mrf.mxu0
      %v5031 = vadd.f32 0.0, %v5030
      %v5032 = vpop.f32.mrf.mxu0
      %v5033 = vpop.f32.mrf.mxu0
      %v5034 = vadd.f32 0.0, %v5033
      %v5035 = vpop.f32.mrf.mxu0
      %5036 = vmatprep.mubr.bf16.mxu0 0
      %5037 = vmatmul.mubr.bf16.gmra.mxu0 %v4937
      %v5038 = vpop.f32.mrf.mxu0
      %v5039 = vadd.f32 0.0, %v5038
      %v5040 = vpop.f32.mrf.mxu0
      %v5041 = vpop.f32.mrf.mxu0
      %v5042 = vadd.f32 0.0, %v5041
      %v5043 = vpop.f32.mrf.mxu0
      %5044 = vmatprep.mubr.bf16.mxu0 0
      %5045 = vmatmul.mubr.bf16.gmra.mxu0 %v4940
      %v5046 = vpop.f32.mrf.mxu0
      %v5047 = vadd.f32 0.0, %v5046
      %v5048 = vpop.f32.mrf.mxu0
      %v5049 = vpop.f32.mrf.mxu0
      %v5050 = vadd.f32 0.0, %v5049
      %v5051 = vpop.f32.mrf.mxu0
      %5052 = vmatprep.mubr.bf16.mxu0 0
      %5053 = vmatmul.mubr.bf16.gmra.mxu0 %v4943
      %v5054 = vpop.f32.mrf.mxu0
      %v5055 = vadd.f32 0.0, %v5054
      %v5056 = vpop.f32.mrf.mxu0
      %v5057 = vpop.f32.mrf.mxu0
      %v5058 = vadd.f32 0.0, %v5057
      %v5059 = vpop.f32.mrf.mxu0
      %5060 = vmatprep.mubr.bf16.mxu0 0
      %5061 = vmatmul.mubr.bf16.gmra.mxu0 %v4946
      %v5062 = vpop.f32.mrf.mxu0
      %v5063 = vadd.f32 0.0, %v5062
      %v5064 = vpop.f32.mrf.mxu0
      %v5065 = vpop.f32.mrf.mxu0
      %v5066 = vadd.f32 0.0, %v5065
      %v5067 = vpop.f32.mrf.mxu0
      %5068 = vmatprep.mubr.bf16.mxu0 0
      %5069 = vmatmul.mubr.bf16.gmra.mxu0 %v4949
      %v5070 = vpop.f32.mrf.mxu0
      %v5071 = vadd.f32 0.0, %v5070
      %v5072 = vpop.f32.mrf.mxu0
      %v5073 = vpop.f32.mrf.mxu0
      %v5074 = vadd.f32 0.0, %v5073
      %v5075 = vpop.f32.mrf.mxu0
      %5076 = vmatprep.mubr.bf16.mxu0 0
      %5077 = vmatmul.mubr.bf16.gmra.mxu0 %v4952
      %v5078 = vpop.f32.mrf.mxu0
      %v5079 = vadd.f32 0.0, %v5078
      %v5080 = vpop.f32.mrf.mxu0
      %v5081 = vpop.f32.mrf.mxu0
      %v5082 = vadd.f32 0.0, %v5081
      %v5083 = vpop.f32.mrf.mxu0
      %5084 = vmatprep.mubr.bf16.mxu0 0
      %5085 = vmatmul.mubr.bf16.gmra.mxu0 %v4955
      %v5086 = vpop.f32.mrf.mxu0
      %v5087 = vadd.f32 0.0, %v5086
      %v5088 = vpop.f32.mrf.mxu0
      %v5089 = vpop.f32.mrf.mxu0
      %v5090 = vadd.f32 0.0, %v5089
      %v5091 = vpop.f32.mrf.mxu0
      %5092 = vmatprep.mubr.bf16.mxu0 0
      %5093 = vmatmul.mubr.bf16.gmra.mxu0 %v4958
      %v5094 = vpop.f32.mrf.mxu0
      %v5095 = vadd.f32 0.0, %v5094
      %v5096 = vpop.f32.mrf.mxu0
      %v5097 = vpop.f32.mrf.mxu0
      %v5098 = vadd.f32 0.0, %v5097
      %v5099 = vpop.f32.mrf.mxu0
      %5100 = vmatprep.mubr.bf16.mxu0 0
      %5101 = vmatmul.mubr.bf16.gmra.mxu0 %v4961
      %v5102 = vpop.f32.mrf.mxu0
      %v5103 = vadd.f32 0.0, %v5102
      %v5104 = vpop.f32.mrf.mxu0
      %v5105 = vpop.f32.mrf.mxu0
      %v5106 = vadd.f32 0.0, %v5105
      %v5107 = vpop.f32.mrf.mxu0
      %5108 = vmatprep.mubr.bf16.mxu0 0
      %5109 = vmatmul.mubr.bf16.gmra.mxu0 %v4964
      %v5110 = vpop.f32.mrf.mxu0
      %v5111 = vadd.f32 0.0, %v5110
      %v5112 = vpop.f32.mrf.mxu0
      %v5113 = vpop.f32.mrf.mxu0
      %v5114 = vadd.f32 0.0, %v5113
      %v5115 = vpop.f32.mrf.mxu0
      %5116 = vmatprep.mubr.bf16.mxu0 0
      %5117 = vmatmul.mubr.bf16.gmra.mxu0 %v4967
      %v5118 = vpop.f32.mrf.mxu0
      %v5119 = vadd.f32 0.0, %v5118
      %v5120 = vpop.f32.mrf.mxu0
      %v5121 = vpop.f32.mrf.mxu0
      %v5122 = vadd.f32 0.0, %v5121
      %v5123 = vpop.f32.mrf.mxu0
      %5124 = vmatprep.mubr.bf16.mxu0 0
      %5125 = vmatmul.mubr.bf16.gmra.mxu0 %v4970
      %v5126 = vpop.f32.mrf.mxu0
      %v5127 = vadd.f32 0.0, %v5126
      %v5128 = vpop.f32.mrf.mxu0
      %v5129 = vpop.f32.mrf.mxu0
      %v5130 = vadd.f32 0.0, %v5129
      %v5131 = vpop.f32.mrf.mxu0
      %5132 = vmatprep.mubr.bf16.mxu0 0
      %5133 = vmatmul.mubr.bf16.gmra.mxu0 %v4973
      %v5134 = vpop.f32.mrf.mxu0
      %v5135 = vadd.f32 0.0, %v5134
      %v5136 = vpop.f32.mrf.mxu0
      %v5137 = vpop.f32.mrf.mxu0
      %v5138 = vadd.f32 0.0, %v5137
      %v5139 = vpop.f32.mrf.mxu0
      %5140 = vmatprep.mubr.bf16.mxu0 0
      %5141 = vmatmul.mubr.bf16.gmra.mxu0 %v4976
      %v5142 = vpop.f32.mrf.mxu0
      %v5143 = vadd.f32 0.0, %v5142
      %v5144 = vpop.f32.mrf.mxu0
      %v5145 = vpop.f32.mrf.mxu0
      %v5146 = vadd.f32 0.0, %v5145
      %v5147 = vpop.f32.mrf.mxu0
      %5148 = vmatprep.mubr.bf16.mxu0 0
      %5149 = vmatmul.mubr.bf16.gmra.mxu0 %v4979
      %v5150 = vpop.f32.mrf.mxu0
      %v5151 = vadd.f32 0.0, %v5150
      %v5152 = vpop.f32.mrf.mxu0
      %v5153 = vpop.f32.mrf.mxu0
      %v5154 = vadd.f32 0.0, %v5153
      %v5155 = vpop.f32.mrf.mxu0
      %5156 = vmatprep.mubr.bf16.mxu0 0
      %5157 = vmatmul.mubr.bf16.gmra.mxu0 %v4982
      %v5158 = vpop.f32.mrf.mxu0
      %v5159 = vadd.f32 0.0, %v5158
      %v5160 = vpop.f32.mrf.mxu0
      %v5161 = vpop.f32.mrf.mxu0
      %v5162 = vadd.f32 0.0, %v5161
      %v5163 = vpop.f32.mrf.mxu0
      %5164 = vmatprep.mubr.bf16.mxu0 0
      %5165 = vmatmul.mubr.bf16.gmra.mxu0 %v4985
      %v5166 = vpop.f32.mrf.mxu0
      %v5167 = vadd.f32 0.0, %v5166
      %v5168 = vpop.f32.mrf.mxu0
      %v5169 = vpop.f32.mrf.mxu0
      %v5170 = vadd.f32 0.0, %v5169
      %v5171 = vpop.f32.mrf.mxu0
      %5172 = vmatprep.mubr.bf16.mxu0 0
      %5173 = vmatmul.mubr.bf16.gmra.mxu0 %v4988
      %v5174 = vpop.f32.mrf.mxu0
      %v5175 = vadd.f32 0.0, %v5174
      %v5176 = vpop.f32.mrf.mxu0
      %v5177 = vpop.f32.mrf.mxu0
      %v5178 = vadd.f32 0.0, %v5177
      %v5179 = vpop.f32.mrf.mxu0
      %5180 = vmatprep.mubr.bf16.mxu0 0
      %5181 = vmatmul.mubr.bf16.gmra.mxu0 %v4991
      %v5182 = vpop.f32.mrf.mxu0
      %v5183 = vadd.f32 0.0, %v5182
      %v5184 = vpop.f32.mrf.mxu0
      %v5185 = vpop.f32.mrf.mxu0
      %v5186 = vadd.f32 0.0, %v5185
      %v5187 = vpop.f32.mrf.mxu0
      %5188 = vmatprep.mubr.bf16.mxu0 0
      %5189 = vmatmul.mubr.bf16.gmra.mxu0 %v4994
      %v5190 = vpop.f32.mrf.mxu0
      %v5191 = vadd.f32 0.0, %v5190
      %v5192 = vpop.f32.mrf.mxu0
      %v5193 = vpop.f32.mrf.mxu0
      %v5194 = vpop.f32.mrf.mxu0
      %5195 = vdwg.mxu0
      %v5200 = vunpack.c.l.b16 %v4642
      %v5201 = vunpack.c.l.b16 %v4643
      %v5202 = vunpack.c.l.b16 %v4644
      %v5203 = vunpack.c.l.b16 %v4645
      %v5204 = vpack.c.b16 %v5201, %v5200
      %v5205 = vpack.c.b16 %v5203, %v5202
      %v5208 = vsel %vm511, %v4733, 0
      %v5210 = vsel %vm511, %v4734, 0
      %v5212 = vsel %vm511, %v4735, 0
      %v5214 = vsel %vm511, %v4736, 0
      %v5216 = vsel %vm511, %v4737, 0
      %v5218 = vsel %vm511, %v4738, 0
      %v5220 = vsel %vm511, %v4739, 0
      %v5222 = vsel %vm511, %v4740, 0
      %v5224 = vsel %vm511, %v4741, 0
      %v5226 = vsel %vm511, %v4742, 0
      %v5228 = vsel %vm511, %v4743, 0
      %v5230 = vsel %vm511, %v4744, 0
      %v5232 = vsel %vm511, %v4745, 0
      %v5234 = vsel %vm511, %v4746, 0
      %v5236 = vsel %vm511, %v4747, 0
      %v5238 = vsel %vm511, %v4748, 0
      %v5240 = vsel %vm511, %v4749, 0
      %v5242 = vsel %vm511, %v4750, 0
      %v5244 = vsel %vm511, %v4751, 0
      %v5246 = vsel %vm511, %v4752, 0
      %v5248 = vsel %vm511, %v4753, 0
      %5250 = vmatprep.subr.bf16.mxu0 0
      %5251 = vmatpush1.bf16.msra.mxu0 0
      %5252 = vmatprep.subr.bf16.mxu0 0
      %5253 = vmatpush1.bf16.msra.mxu0 0
      %5254 = vmatprep.subr.bf16.mxu0 0
      %5255 = vmatpush1.bf16.msra.mxu0 0
      %5256 = vmatprep.subr.bf16.mxu0 0
      %5257 = vmatpush1.bf16.msra.mxu0 0
      %5258 = vmatprep.subr.bf16.mxu0 0
      %5259 = vmatpush1.bf16.msra.mxu0 0
      %5260 = vmatprep.subr.bf16.mxu0 0
      %5261 = vmatpush1.bf16.msra.mxu0 0
      %5262 = vmatprep.subr.bf16.mxu0 0
      %5263 = vmatpush1.bf16.msra.mxu0 %v5205
      %5264 = vmatprep.subr.bf16.mxu0 0
      %5265 = vmatpush1.bf16.msra.mxu0 %v5204
      %5266 = vmatprep.subr.bf16.mxu0 0
      %5267 = vmatpush2.bf16.msra.mxu0 0
      %5268 = vmatprep.subr.bf16.mxu0 0
      %5269 = vmatpush2.bf16.msra.mxu0 0
      %5270 = vmatprep.subr.bf16.mxu0 0
      %5271 = vmatpush2.bf16.msra.mxu0 0
      %5272 = vmatprep.subr.bf16.mxu0 0
      %5273 = vmatpush2.bf16.msra.mxu0 0
      %5274 = vmatprep.subr.bf16.mxu0 0
      %5275 = vmatpush2.bf16.msra.mxu0 0
      %5276 = vmatprep.subr.bf16.mxu0 0
      %5277 = vmatpush2.bf16.msra.mxu0 0
      %5278 = vmatprep.subr.bf16.mxu0 0
      %5279 = vmatpush2.bf16.msra.mxu0 0
      %5280 = vmatprep.subr.bf16.mxu0 0
      %5281 = vmatpush2.bf16.msra.mxu0 0
      %5282 = vmatprep.mubr.bf16.mxu0 0
      %5283 = vmatmul.mubr.bf16.gmra.mxu0 %v5208
      %v5284 = vpop.f32.mrf.mxu0
      %v5285 = vadd.f32 %v5031, %v5284
      %v5286 = vpop.f32.mrf.mxu0
      %v5287 = vpop.f32.mrf.mxu0
      %v5288 = vadd.f32 %v5034, %v5287
      %v5289 = vpop.f32.mrf.mxu0
      %5290 = vmatprep.mubr.bf16.mxu0 0
      %5291 = vmatmul.mubr.bf16.gmra.mxu0 %v5210
      %v5292 = vpop.f32.mrf.mxu0
      %v5293 = vadd.f32 %v5039, %v5292
      %v5294 = vpop.f32.mrf.mxu0
      %v5295 = vpop.f32.mrf.mxu0
      %v5296 = vadd.f32 %v5042, %v5295
      %v5297 = vpop.f32.mrf.mxu0
      %5298 = vmatprep.mubr.bf16.mxu0 0
      %5299 = vmatmul.mubr.bf16.gmra.mxu0 %v5212
      %v5300 = vpop.f32.mrf.mxu0
      %v5301 = vadd.f32 %v5047, %v5300
      %v5302 = vpop.f32.mrf.mxu0
      %v5303 = vpop.f32.mrf.mxu0
      %v5304 = vadd.f32 %v5050, %v5303
      %v5305 = vpop.f32.mrf.mxu0
      %5306 = vmatprep.mubr.bf16.mxu0 0
      %5307 = vmatmul.mubr.bf16.gmra.mxu0 %v5214
      %v5308 = vpop.f32.mrf.mxu0
      %v5309 = vadd.f32 %v5055, %v5308
      %v5310 = vpop.f32.mrf.mxu0
      %v5311 = vpop.f32.mrf.mxu0
      %v5312 = vadd.f32 %v5058, %v5311
      %v5313 = vpop.f32.mrf.mxu0
      %5314 = vmatprep.mubr.bf16.mxu0 0
      %5315 = vmatmul.mubr.bf16.gmra.mxu0 %v5216
      %v5316 = vpop.f32.mrf.mxu0
      %v5317 = vadd.f32 %v5063, %v5316
      %v5318 = vpop.f32.mrf.mxu0
      %v5319 = vpop.f32.mrf.mxu0
      %v5320 = vadd.f32 %v5066, %v5319
      %v5321 = vpop.f32.mrf.mxu0
      %5322 = vmatprep.mubr.bf16.mxu0 0
      %5323 = vmatmul.mubr.bf16.gmra.mxu0 %v5218
      %v5324 = vpop.f32.mrf.mxu0
      %v5325 = vadd.f32 %v5071, %v5324
      %v5326 = vpop.f32.mrf.mxu0
      %v5327 = vpop.f32.mrf.mxu0
      %v5328 = vadd.f32 %v5074, %v5327
      %v5329 = vpop.f32.mrf.mxu0
      %5330 = vmatprep.mubr.bf16.mxu0 0
      %5331 = vmatmul.mubr.bf16.gmra.mxu0 %v5220
      %v5332 = vpop.f32.mrf.mxu0
      %v5333 = vadd.f32 %v5079, %v5332
      %v5334 = vpop.f32.mrf.mxu0
      %v5335 = vpop.f32.mrf.mxu0
      %v5336 = vadd.f32 %v5082, %v5335
      %v5337 = vpop.f32.mrf.mxu0
      %5338 = vmatprep.mubr.bf16.mxu0 0
      %5339 = vmatmul.mubr.bf16.gmra.mxu0 %v5222
      %v5340 = vpop.f32.mrf.mxu0
      %v5341 = vadd.f32 %v5087, %v5340
      %v5342 = vpop.f32.mrf.mxu0
      %v5343 = vpop.f32.mrf.mxu0
      %v5344 = vadd.f32 %v5090, %v5343
      %v5345 = vpop.f32.mrf.mxu0
      %5346 = vmatprep.mubr.bf16.mxu0 0
      %5347 = vmatmul.mubr.bf16.gmra.mxu0 %v5224
      %v5348 = vpop.f32.mrf.mxu0
      %v5349 = vadd.f32 %v5095, %v5348
      %v5350 = vpop.f32.mrf.mxu0
      %v5351 = vpop.f32.mrf.mxu0
      %v5352 = vadd.f32 %v5098, %v5351
      %v5353 = vpop.f32.mrf.mxu0
      %5354 = vmatprep.mubr.bf16.mxu0 0
      %5355 = vmatmul.mubr.bf16.gmra.mxu0 %v5226
      %v5356 = vpop.f32.mrf.mxu0
      %v5357 = vadd.f32 %v5103, %v5356
      %v5358 = vpop.f32.mrf.mxu0
      %v5359 = vpop.f32.mrf.mxu0
      %v5360 = vadd.f32 %v5106, %v5359
      %v5361 = vpop.f32.mrf.mxu0
      %5362 = vmatprep.mubr.bf16.mxu0 0
      %5363 = vmatmul.mubr.bf16.gmra.mxu0 %v5228
      %v5364 = vpop.f32.mrf.mxu0
      %v5365 = vadd.f32 %v5111, %v5364
      %v5366 = vpop.f32.mrf.mxu0
      %v5367 = vpop.f32.mrf.mxu0
      %v5368 = vadd.f32 %v5114, %v5367
      %v5369 = vpop.f32.mrf.mxu0
      %5370 = vmatprep.mubr.bf16.mxu0 0
      %5371 = vmatmul.mubr.bf16.gmra.mxu0 %v5230
      %v5372 = vpop.f32.mrf.mxu0
      %v5373 = vadd.f32 %v5119, %v5372
      %v5374 = vpop.f32.mrf.mxu0
      %v5375 = vpop.f32.mrf.mxu0
      %v5376 = vadd.f32 %v5122, %v5375
      %v5377 = vpop.f32.mrf.mxu0
      %5378 = vmatprep.mubr.bf16.mxu0 0
      %5379 = vmatmul.mubr.bf16.gmra.mxu0 %v5232
      %v5380 = vpop.f32.mrf.mxu0
      %v5381 = vadd.f32 %v5127, %v5380
      %v5382 = vpop.f32.mrf.mxu0
      %v5383 = vpop.f32.mrf.mxu0
      %v5384 = vadd.f32 %v5130, %v5383
      %v5385 = vpop.f32.mrf.mxu0
      %5386 = vmatprep.mubr.bf16.mxu0 0
      %5387 = vmatmul.mubr.bf16.gmra.mxu0 %v5234
      %v5388 = vpop.f32.mrf.mxu0
      %v5389 = vadd.f32 %v5135, %v5388
      %v5390 = vpop.f32.mrf.mxu0
      %v5391 = vpop.f32.mrf.mxu0
      %v5392 = vadd.f32 %v5138, %v5391
      %v5393 = vpop.f32.mrf.mxu0
      %5394 = vmatprep.mubr.bf16.mxu0 0
      %5395 = vmatmul.mubr.bf16.gmra.mxu0 %v5236
      %v5396 = vpop.f32.mrf.mxu0
      %v5397 = vadd.f32 %v5143, %v5396
      %v5398 = vpop.f32.mrf.mxu0
      %v5399 = vpop.f32.mrf.mxu0
      %v5400 = vadd.f32 %v5146, %v5399
      %v5401 = vpop.f32.mrf.mxu0
      %5402 = vmatprep.mubr.bf16.mxu0 0
      %5403 = vmatmul.mubr.bf16.gmra.mxu0 %v5238
      %v5404 = vpop.f32.mrf.mxu0
      %v5405 = vadd.f32 %v5151, %v5404
      %v5406 = vpop.f32.mrf.mxu0
      %v5407 = vpop.f32.mrf.mxu0
      %v5408 = vadd.f32 %v5154, %v5407
      %v5409 = vpop.f32.mrf.mxu0
      %5410 = vmatprep.mubr.bf16.mxu0 0
      %5411 = vmatmul.mubr.bf16.gmra.mxu0 %v5240
      %v5412 = vpop.f32.mrf.mxu0
      %v5413 = vadd.f32 %v5159, %v5412
      %v5414 = vpop.f32.mrf.mxu0
      %v5415 = vpop.f32.mrf.mxu0
      %v5416 = vadd.f32 %v5162, %v5415
      %v5417 = vpop.f32.mrf.mxu0
      %5418 = vmatprep.mubr.bf16.mxu0 0
      %5419 = vmatmul.mubr.bf16.gmra.mxu0 %v5242
      %v5420 = vpop.f32.mrf.mxu0
      %v5421 = vadd.f32 %v5167, %v5420
      %v5422 = vpop.f32.mrf.mxu0
      %v5423 = vpop.f32.mrf.mxu0
      %v5424 = vadd.f32 %v5170, %v5423
      %v5425 = vpop.f32.mrf.mxu0
      %5426 = vmatprep.mubr.bf16.mxu0 0
      %5427 = vmatmul.mubr.bf16.gmra.mxu0 %v5244
      %v5428 = vpop.f32.mrf.mxu0
      %v5429 = vadd.f32 %v5175, %v5428
      %v5430 = vpop.f32.mrf.mxu0
      %v5431 = vpop.f32.mrf.mxu0
      %v5432 = vadd.f32 %v5178, %v5431
      %v5433 = vpop.f32.mrf.mxu0
      %5434 = vmatprep.mubr.bf16.mxu0 0
      %5435 = vmatmul.mubr.bf16.gmra.mxu0 %v5246
      %v5436 = vpop.f32.mrf.mxu0
      %v5437 = vadd.f32 %v5183, %v5436
      %v5438 = vpop.f32.mrf.mxu0
      %v5439 = vpop.f32.mrf.mxu0
      %v5440 = vadd.f32 %v5186, %v5439
      %v5441 = vpop.f32.mrf.mxu0
      %5442 = vmatprep.mubr.bf16.mxu0 0
      %5443 = vmatmul.mubr.bf16.gmra.mxu0 %v5248
      %v5444 = vpop.f32.mrf.mxu0
      %v5445 = vadd.f32 %v5191, %v5444
      %v5446 = vpop.f32.mrf.mxu0
      %v5447 = vpop.f32.mrf.mxu0
      %v5448 = vpop.f32.mrf.mxu0
      %5449 = vdwg.mxu0
      %s5450 = scalar_lea.vmem %s3, 32
      %v5451 = vld [vmem:[%s5450] sm:$0xf]
      %v5452 = vld [vmem:[%s5450 + $0x4] sm:$0xf]
      %v5453 = vld [vmem:[%s5450 + $0x8] sm:$0xf]
      %v5454 = vld [vmem:[%s5450 + $0xc] sm:$0xf]
      %v5455 = vrot.slane %v4733, 1
      %v5456 = vrot.slane %v4734, 1
      %v5457 = vsel %vm1055, %v5455, %v5456
      %v5458 = vrot.slane %v4735, 1
      %v5459 = vsel %vm1055, %v5456, %v5458
      %v5460 = vrot.slane %v4736, 1
      %v5461 = vsel %vm1055, %v5458, %v5460
      %v5462 = vrot.slane %v4737, 1
      %v5463 = vsel %vm1055, %v5460, %v5462
      %v5464 = vrot.slane %v4738, 1
      %v5465 = vsel %vm1055, %v5462, %v5464
      %v5466 = vrot.slane %v4739, 1
      %v5467 = vsel %vm1055, %v5464, %v5466
      %v5468 = vrot.slane %v4740, 1
      %v5469 = vsel %vm1055, %v5466, %v5468
      %v5470 = vrot.slane %v4741, 1
      %v5471 = vsel %vm1055, %v5468, %v5470
      %v5472 = vrot.slane %v4742, 1
      %v5473 = vsel %vm1055, %v5470, %v5472
      %v5474 = vrot.slane %v4743, 1
      %v5475 = vsel %vm1055, %v5472, %v5474
      %v5476 = vrot.slane %v4744, 1
      %v5477 = vsel %vm1055, %v5474, %v5476
      %v5478 = vrot.slane %v4745, 1
      %v5479 = vsel %vm1055, %v5476, %v5478
      %v5480 = vrot.slane %v4746, 1
      %v5481 = vsel %vm1055, %v5478, %v5480
      %v5482 = vrot.slane %v4747, 1
      %v5483 = vsel %vm1055, %v5480, %v5482
      %v5484 = vrot.slane %v4748, 1
      %v5485 = vsel %vm1055, %v5482, %v5484
      %v5486 = vrot.slane %v4749, 1
      %v5487 = vsel %vm1055, %v5484, %v5486
      %v5488 = vrot.slane %v4750, 1
      %v5489 = vsel %vm1055, %v5486, %v5488
      %v5490 = vrot.slane %v4751, 1
      %v5491 = vsel %vm1055, %v5488, %v5490
      %v5492 = vrot.slane %v4752, 1
      %v5493 = vsel %vm1055, %v5490, %v5492
      %v5494 = vrot.slane %v4753, 1
      %v5495 = vsel %vm1055, %v5492, %v5494
      %v5500 = vunpack.c.l.b16 %v5451
      %v5501 = vunpack.c.l.b16 %v5452
      %v5502 = vunpack.c.l.b16 %v5453
      %v5503 = vunpack.c.l.b16 %v5454
      %v5504 = vpack.c.b16 %v5501, %v5500
      %v5505 = vpack.c.b16 %v5503, %v5502
      %v5509 = vsel %vm511, %v5457, 0
      %v5512 = vsel %vm511, %v5459, 0
      %v5515 = vsel %vm511, %v5461, 0
      %v5518 = vsel %vm511, %v5463, 0
      %v5521 = vsel %vm511, %v5465, 0
      %v5524 = vsel %vm511, %v5467, 0
      %v5527 = vsel %vm511, %v5469, 0
      %v5530 = vsel %vm511, %v5471, 0
      %v5533 = vsel %vm511, %v5473, 0
      %v5536 = vsel %vm511, %v5475, 0
      %v5539 = vsel %vm511, %v5477, 0
      %v5542 = vsel %vm511, %v5479, 0
      %v5545 = vsel %vm511, %v5481, 0
      %v5548 = vsel %vm511, %v5483, 0
      %v5551 = vsel %vm511, %v5485, 0
      %v5554 = vsel %vm511, %v5487, 0
      %v5557 = vsel %vm511, %v5489, 0
      %v5560 = vsel %vm511, %v5491, 0
      %v5563 = vsel %vm511, %v5493, 0
      %v5566 = vsel %vm511, %v5495, 0
      %v5569 = vsel %vm511, %v5494, 0
      %5571 = vmatprep.subr.bf16.mxu0 0
      %5572 = vmatpush1.bf16.msra.mxu0 0
      %5573 = vmatprep.subr.bf16.mxu0 0
      %5574 = vmatpush1.bf16.msra.mxu0 0
      %5575 = vmatprep.subr.bf16.mxu0 0
      %5576 = vmatpush1.bf16.msra.mxu0 0
      %5577 = vmatprep.subr.bf16.mxu0 0
      %5578 = vmatpush1.bf16.msra.mxu0 0
      %5579 = vmatprep.subr.bf16.mxu0 0
      %5580 = vmatpush1.bf16.msra.mxu0 0
      %5581 = vmatprep.subr.bf16.mxu0 0
      %5582 = vmatpush1.bf16.msra.mxu0 0
      %5583 = vmatprep.subr.bf16.mxu0 0
      %5584 = vmatpush1.bf16.msra.mxu0 %v5505
      %5585 = vmatprep.subr.bf16.mxu0 0
      %5586 = vmatpush1.bf16.msra.mxu0 %v5504
      %5587 = vmatprep.subr.bf16.mxu0 0
      %5588 = vmatpush2.bf16.msra.mxu0 0
      %5589 = vmatprep.subr.bf16.mxu0 0
      %5590 = vmatpush2.bf16.msra.mxu0 0
      %5591 = vmatprep.subr.bf16.mxu0 0
      %5592 = vmatpush2.bf16.msra.mxu0 0
      %5593 = vmatprep.subr.bf16.mxu0 0
      %5594 = vmatpush2.bf16.msra.mxu0 0
      %5595 = vmatprep.subr.bf16.mxu0 0
      %5596 = vmatpush2.bf16.msra.mxu0 0
      %5597 = vmatprep.subr.bf16.mxu0 0
      %5598 = vmatpush2.bf16.msra.mxu0 0
      %5599 = vmatprep.subr.bf16.mxu0 0
      %5600 = vmatpush2.bf16.msra.mxu0 0
      %5601 = vmatprep.subr.bf16.mxu0 0
      %5602 = vmatpush2.bf16.msra.mxu0 0
      %5603 = vmatprep.mubr.bf16.mxu0 0
      %5604 = vmatmul.mubr.bf16.gmra.mxu0 %v5509
      %v5605 = vpop.f32.mrf.mxu0
      %v5606 = vadd.f32 0.0, %v5605
      %v5607 = vpop.f32.mrf.mxu0
      %v5608 = vpop.f32.mrf.mxu0
      %v5609 = vadd.f32 0.0, %v5608
      %v5610 = vpop.f32.mrf.mxu0
      %5611 = vmatprep.mubr.bf16.mxu0 0
      %5612 = vmatmul.mubr.bf16.gmra.mxu0 %v5512
      %v5613 = vpop.f32.mrf.mxu0
      %v5614 = vadd.f32 0.0, %v5613
      %v5615 = vpop.f32.mrf.mxu0
      %v5616 = vpop.f32.mrf.mxu0
      %v5617 = vadd.f32 0.0, %v5616
      %v5618 = vpop.f32.mrf.mxu0
      %5619 = vmatprep.mubr.bf16.mxu0 0
      %5620 = vmatmul.mubr.bf16.gmra.mxu0 %v5515
      %v5621 = vpop.f32.mrf.mxu0
      %v5622 = vadd.f32 0.0, %v5621
      %v5623 = vpop.f32.mrf.mxu0
      %v5624 = vpop.f32.mrf.mxu0
      %v5625 = vadd.f32 0.0, %v5624
      %v5626 = vpop.f32.mrf.mxu0
      %5627 = vmatprep.mubr.bf16.mxu0 0
      %5628 = vmatmul.mubr.bf16.gmra.mxu0 %v5518
      %v5629 = vpop.f32.mrf.mxu0
      %v5630 = vadd.f32 0.0, %v5629
      %v5631 = vpop.f32.mrf.mxu0
      %v5632 = vpop.f32.mrf.mxu0
      %v5633 = vadd.f32 0.0, %v5632
      %v5634 = vpop.f32.mrf.mxu0
      %5635 = vmatprep.mubr.bf16.mxu0 0
      %5636 = vmatmul.mubr.bf16.gmra.mxu0 %v5521
      %v5637 = vpop.f32.mrf.mxu0
      %v5638 = vadd.f32 0.0, %v5637
      %v5639 = vpop.f32.mrf.mxu0
      %v5640 = vpop.f32.mrf.mxu0
      %v5641 = vadd.f32 0.0, %v5640
      %v5642 = vpop.f32.mrf.mxu0
      %5643 = vmatprep.mubr.bf16.mxu0 0
      %5644 = vmatmul.mubr.bf16.gmra.mxu0 %v5524
      %v5645 = vpop.f32.mrf.mxu0
      %v5646 = vadd.f32 0.0, %v5645
      %v5647 = vpop.f32.mrf.mxu0
      %v5648 = vpop.f32.mrf.mxu0
      %v5649 = vadd.f32 0.0, %v5648
      %v5650 = vpop.f32.mrf.mxu0
      %5651 = vmatprep.mubr.bf16.mxu0 0
      %5652 = vmatmul.mubr.bf16.gmra.mxu0 %v5527
      %v5653 = vpop.f32.mrf.mxu0
      %v5654 = vadd.f32 0.0, %v5653
      %v5655 = vpop.f32.mrf.mxu0
      %v5656 = vpop.f32.mrf.mxu0
      %v5657 = vadd.f32 0.0, %v5656
      %v5658 = vpop.f32.mrf.mxu0
      %5659 = vmatprep.mubr.bf16.mxu0 0
      %5660 = vmatmul.mubr.bf16.gmra.mxu0 %v5530
      %v5661 = vpop.f32.mrf.mxu0
      %v5662 = vadd.f32 0.0, %v5661
      %v5663 = vpop.f32.mrf.mxu0
      %v5664 = vpop.f32.mrf.mxu0
      %v5665 = vadd.f32 0.0, %v5664
      %v5666 = vpop.f32.mrf.mxu0
      %5667 = vmatprep.mubr.bf16.mxu0 0
      %5668 = vmatmul.mubr.bf16.gmra.mxu0 %v5533
      %v5669 = vpop.f32.mrf.mxu0
      %v5670 = vadd.f32 0.0, %v5669
      %v5671 = vpop.f32.mrf.mxu0
      %v5672 = vpop.f32.mrf.mxu0
      %v5673 = vadd.f32 0.0, %v5672
      %v5674 = vpop.f32.mrf.mxu0
      %5675 = vmatprep.mubr.bf16.mxu0 0
      %5676 = vmatmul.mubr.bf16.gmra.mxu0 %v5536
      %v5677 = vpop.f32.mrf.mxu0
      %v5678 = vadd.f32 0.0, %v5677
      %v5679 = vpop.f32.mrf.mxu0
      %v5680 = vpop.f32.mrf.mxu0
      %v5681 = vadd.f32 0.0, %v5680
      %v5682 = vpop.f32.mrf.mxu0
      %5683 = vmatprep.mubr.bf16.mxu0 0
      %5684 = vmatmul.mubr.bf16.gmra.mxu0 %v5539
      %v5685 = vpop.f32.mrf.mxu0
      %v5686 = vadd.f32 0.0, %v5685
      %v5687 = vpop.f32.mrf.mxu0
      %v5688 = vpop.f32.mrf.mxu0
      %v5689 = vadd.f32 0.0, %v5688
      %v5690 = vpop.f32.mrf.mxu0
      %5691 = vmatprep.mubr.bf16.mxu0 0
      %5692 = vmatmul.mubr.bf16.gmra.mxu0 %v5542
      %v5693 = vpop.f32.mrf.mxu0
      %v5694 = vadd.f32 0.0, %v5693
      %v5695 = vpop.f32.mrf.mxu0
      %v5696 = vpop.f32.mrf.mxu0
      %v5697 = vadd.f32 0.0, %v5696
      %v5698 = vpop.f32.mrf.mxu0
      %5699 = vmatprep.mubr.bf16.mxu0 0
      %5700 = vmatmul.mubr.bf16.gmra.mxu0 %v5545
      %v5701 = vpop.f32.mrf.mxu0
      %v5702 = vadd.f32 0.0, %v5701
      %v5703 = vpop.f32.mrf.mxu0
      %v5704 = vpop.f32.mrf.mxu0
      %v5705 = vadd.f32 0.0, %v5704
      %v5706 = vpop.f32.mrf.mxu0
      %5707 = vmatprep.mubr.bf16.mxu0 0
      %5708 = vmatmul.mubr.bf16.gmra.mxu0 %v5548
      %v5709 = vpop.f32.mrf.mxu0
      %v5710 = vadd.f32 0.0, %v5709
      %v5711 = vpop.f32.mrf.mxu0
      %v5712 = vpop.f32.mrf.mxu0
      %v5713 = vadd.f32 0.0, %v5712
      %v5714 = vpop.f32.mrf.mxu0
      %5715 = vmatprep.mubr.bf16.mxu0 0
      %5716 = vmatmul.mubr.bf16.gmra.mxu0 %v5551
      %v5717 = vpop.f32.mrf.mxu0
      %v5718 = vadd.f32 0.0, %v5717
      %v5719 = vpop.f32.mrf.mxu0
      %v5720 = vpop.f32.mrf.mxu0
      %v5721 = vadd.f32 0.0, %v5720
      %v5722 = vpop.f32.mrf.mxu0
      %5723 = vmatprep.mubr.bf16.mxu0 0
      %5724 = vmatmul.mubr.bf16.gmra.mxu0 %v5554
      %v5725 = vpop.f32.mrf.mxu0
      %v5726 = vadd.f32 0.0, %v5725
      %v5727 = vpop.f32.mrf.mxu0
      %v5728 = vpop.f32.mrf.mxu0
      %v5729 = vadd.f32 0.0, %v5728
      %v5730 = vpop.f32.mrf.mxu0
      %5731 = vmatprep.mubr.bf16.mxu0 0
      %5732 = vmatmul.mubr.bf16.gmra.mxu0 %v5557
      %v5733 = vpop.f32.mrf.mxu0
      %v5734 = vadd.f32 0.0, %v5733
      %v5735 = vpop.f32.mrf.mxu0
      %v5736 = vpop.f32.mrf.mxu0
      %v5737 = vadd.f32 0.0, %v5736
      %v5738 = vpop.f32.mrf.mxu0
      %5739 = vmatprep.mubr.bf16.mxu0 0
      %5740 = vmatmul.mubr.bf16.gmra.mxu0 %v5560
      %v5741 = vpop.f32.mrf.mxu0
      %v5742 = vadd.f32 0.0, %v5741
      %v5743 = vpop.f32.mrf.mxu0
      %v5744 = vpop.f32.mrf.mxu0
      %v5745 = vadd.f32 0.0, %v5744
      %v5746 = vpop.f32.mrf.mxu0
      %5747 = vmatprep.mubr.bf16.mxu0 0
      %5748 = vmatmul.mubr.bf16.gmra.mxu0 %v5563
      %v5749 = vpop.f32.mrf.mxu0
      %v5750 = vadd.f32 0.0, %v5749
      %v5751 = vpop.f32.mrf.mxu0
      %v5752 = vpop.f32.mrf.mxu0
      %v5753 = vadd.f32 0.0, %v5752
      %v5754 = vpop.f32.mrf.mxu0
      %5755 = vmatprep.mubr.bf16.mxu0 0
      %5756 = vmatmul.mubr.bf16.gmra.mxu0 %v5566
      %v5757 = vpop.f32.mrf.mxu0
      %v5758 = vadd.f32 0.0, %v5757
      %v5759 = vpop.f32.mrf.mxu0
      %v5760 = vpop.f32.mrf.mxu0
      %v5761 = vadd.f32 0.0, %v5760
      %v5762 = vpop.f32.mrf.mxu0
      %5763 = vmatprep.mubr.bf16.mxu0 0
      %5764 = vmatmul.mubr.bf16.gmra.mxu0 %v5569
      %v5765 = vpop.f32.mrf.mxu0
      %v5766 = vadd.f32 0.0, %v5765
      %v5767 = vpop.f32.mrf.mxu0
      %v5768 = vpop.f32.mrf.mxu0
      %v5769 = vpop.f32.mrf.mxu0
      %5770 = vdwg.mxu0
      %v5771 = vadd.f32 %v5285, %v5606
      %v5772 = vadd.f32 %v5288, %v5609
      %v5773 = vadd.f32 %v5293, %v5614
      %v5774 = vadd.f32 %v5296, %v5617
      %v5775 = vadd.f32 %v5301, %v5622
      %v5776 = vadd.f32 %v5304, %v5625
      %v5777 = vadd.f32 %v5309, %v5630
      %v5778 = vadd.f32 %v5312, %v5633
      %v5779 = vadd.f32 %v5317, %v5638
      %v5780 = vadd.f32 %v5320, %v5641
      %v5781 = vadd.f32 %v5325, %v5646
      %v5782 = vadd.f32 %v5328, %v5649
      %v5783 = vadd.f32 %v5333, %v5654
      %v5784 = vadd.f32 %v5336, %v5657
      %v5785 = vadd.f32 %v5341, %v5662
      %v5786 = vadd.f32 %v5344, %v5665
      %v5787 = vadd.f32 %v5349, %v5670
      %v5788 = vadd.f32 %v5352, %v5673
      %v5789 = vadd.f32 %v5357, %v5678
      %v5790 = vadd.f32 %v5360, %v5681
      %v5791 = vadd.f32 %v5365, %v5686
      %v5792 = vadd.f32 %v5368, %v5689
      %v5793 = vadd.f32 %v5373, %v5694
      %v5794 = vadd.f32 %v5376, %v5697
      %v5795 = vadd.f32 %v5381, %v5702
      %v5796 = vadd.f32 %v5384, %v5705
      %v5797 = vadd.f32 %v5389, %v5710
      %v5798 = vadd.f32 %v5392, %v5713
      %v5799 = vadd.f32 %v5397, %v5718
      %v5800 = vadd.f32 %v5400, %v5721
      %v5801 = vadd.f32 %v5405, %v5726
      %v5802 = vadd.f32 %v5408, %v5729
      %v5803 = vadd.f32 %v5413, %v5734
      %v5804 = vadd.f32 %v5416, %v5737
      %v5805 = vadd.f32 %v5421, %v5742
      %v5806 = vadd.f32 %v5424, %v5745
      %v5807 = vadd.f32 %v5429, %v5750
      %v5808 = vadd.f32 %v5432, %v5753
      %v5809 = vadd.f32 %v5437, %v5758
      %v5810 = vadd.f32 %v5440, %v5761
      %v5811 = vadd.f32 %v5445, %v5766
      %s5812 = scalar_lea.vmem %s3, 48
      %v5813 = vld [vmem:[%s5812] sm:$0xf]
      %v5814 = vld [vmem:[%s5812 + $0x4] sm:$0xf]
      %v5815 = vld [vmem:[%s5812 + $0x8] sm:$0xf]
      %v5816 = vld [vmem:[%s5812 + $0xc] sm:$0xf]
      %v5819 = vunpack.c.l.b16 %v4637
      %v5820 = vunpack.c.l.b16 %v4638
      %v5821 = vpack.c.b16 %v5819, %v4732
      %v5822 = vpack.c.b16 %v5820, %v5820
      %v5823 = vrot.slane %v5821, 1
      %v5824 = vsel %vm1055, %v5492, %v5823
      %v5825 = vrot.slane %v5822, 1
      %v5826 = vsel %vm1055, %v5823, %v5825
      %v5831 = vunpack.c.l.b16 %v5813
      %v5832 = vunpack.c.l.b16 %v5814
      %v5833 = vunpack.c.l.b16 %v5815
      %v5834 = vunpack.c.l.b16 %v5816
      %v5835 = vpack.c.b16 %v5832, %v5831
      %v5836 = vpack.c.b16 %v5834, %v5833
      %v5840 = vsel %vm511, %v5824, 0
      %v5843 = vsel %vm511, %v5826, 0
      %v5846 = vsel %vm511, %v5825, 0
      %5848 = vmatprep.subr.bf16.mxu0 0
      %5849 = vmatpush1.bf16.msra.mxu0 0
      %5850 = vmatprep.subr.bf16.mxu0 0
      %5851 = vmatpush1.bf16.msra.mxu0 0
      %5852 = vmatprep.subr.bf16.mxu0 0
      %5853 = vmatpush1.bf16.msra.mxu0 0
      %5854 = vmatprep.subr.bf16.mxu0 0
      %5855 = vmatpush1.bf16.msra.mxu0 0
      %5856 = vmatprep.subr.bf16.mxu0 0
      %5857 = vmatpush1.bf16.msra.mxu0 0
      %5858 = vmatprep.subr.bf16.mxu0 0
      %5859 = vmatpush1.bf16.msra.mxu0 0
      %5860 = vmatprep.subr.bf16.mxu0 0
      %5861 = vmatpush1.bf16.msra.mxu0 %v5836
      %5862 = vmatprep.subr.bf16.mxu0 0
      %5863 = vmatpush1.bf16.msra.mxu0 %v5835
      %5864 = vmatprep.subr.bf16.mxu0 0
      %5865 = vmatpush2.bf16.msra.mxu0 0
      %5866 = vmatprep.subr.bf16.mxu0 0
      %5867 = vmatpush2.bf16.msra.mxu0 0
      %5868 = vmatprep.subr.bf16.mxu0 0
      %5869 = vmatpush2.bf16.msra.mxu0 0
      %5870 = vmatprep.subr.bf16.mxu0 0
      %5871 = vmatpush2.bf16.msra.mxu0 0
      %5872 = vmatprep.subr.bf16.mxu0 0
      %5873 = vmatpush2.bf16.msra.mxu0 0
      %5874 = vmatprep.subr.bf16.mxu0 0
      %5875 = vmatpush2.bf16.msra.mxu0 0
      %5876 = vmatprep.subr.bf16.mxu0 0
      %5877 = vmatpush2.bf16.msra.mxu0 0
      %5878 = vmatprep.subr.bf16.mxu0 0
      %5879 = vmatpush2.bf16.msra.mxu0 0
      %5880 = vmatprep.mubr.bf16.mxu0 0
      %5881 = vmatmul.mubr.bf16.gmra.mxu0 %v5512
      %v5882 = vpop.f32.mrf.mxu0
      %v5883 = vadd.f32 0.0, %v5882
      %v5884 = vpop.f32.mrf.mxu0
      %v5885 = vpop.f32.mrf.mxu0
      %v5886 = vadd.f32 0.0, %v5885
      %v5887 = vpop.f32.mrf.mxu0
      %5888 = vmatprep.mubr.bf16.mxu0 0
      %5889 = vmatmul.mubr.bf16.gmra.mxu0 %v5515
      %v5890 = vpop.f32.mrf.mxu0
      %v5891 = vadd.f32 0.0, %v5890
      %v5892 = vpop.f32.mrf.mxu0
      %v5893 = vpop.f32.mrf.mxu0
      %v5894 = vadd.f32 0.0, %v5893
      %v5895 = vpop.f32.mrf.mxu0
      %5896 = vmatprep.mubr.bf16.mxu0 0
      %5897 = vmatmul.mubr.bf16.gmra.mxu0 %v5518
      %v5898 = vpop.f32.mrf.mxu0
      %v5899 = vadd.f32 0.0, %v5898
      %v5900 = vpop.f32.mrf.mxu0
      %v5901 = vpop.f32.mrf.mxu0
      %v5902 = vadd.f32 0.0, %v5901
      %v5903 = vpop.f32.mrf.mxu0
      %5904 = vmatprep.mubr.bf16.mxu0 0
      %5905 = vmatmul.mubr.bf16.gmra.mxu0 %v5521
      %v5906 = vpop.f32.mrf.mxu0
      %v5907 = vadd.f32 0.0, %v5906
      %v5908 = vpop.f32.mrf.mxu0
      %v5909 = vpop.f32.mrf.mxu0
      %v5910 = vadd.f32 0.0, %v5909
      %v5911 = vpop.f32.mrf.mxu0
      %5912 = vmatprep.mubr.bf16.mxu0 0
      %5913 = vmatmul.mubr.bf16.gmra.mxu0 %v5524
      %v5914 = vpop.f32.mrf.mxu0
      %v5915 = vadd.f32 0.0, %v5914
      %v5916 = vpop.f32.mrf.mxu0
      %v5917 = vpop.f32.mrf.mxu0
      %v5918 = vadd.f32 0.0, %v5917
      %v5919 = vpop.f32.mrf.mxu0
      %5920 = vmatprep.mubr.bf16.mxu0 0
      %5921 = vmatmul.mubr.bf16.gmra.mxu0 %v5527
      %v5922 = vpop.f32.mrf.mxu0
      %v5923 = vadd.f32 0.0, %v5922
      %v5924 = vpop.f32.mrf.mxu0
      %v5925 = vpop.f32.mrf.mxu0
      %v5926 = vadd.f32 0.0, %v5925
      %v5927 = vpop.f32.mrf.mxu0
      %5928 = vmatprep.mubr.bf16.mxu0 0
      %5929 = vmatmul.mubr.bf16.gmra.mxu0 %v5530
      %v5930 = vpop.f32.mrf.mxu0
      %v5931 = vadd.f32 0.0, %v5930
      %v5932 = vpop.f32.mrf.mxu0
      %v5933 = vpop.f32.mrf.mxu0
      %v5934 = vadd.f32 0.0, %v5933
      %v5935 = vpop.f32.mrf.mxu0
      %5936 = vmatprep.mubr.bf16.mxu0 0
      %5937 = vmatmul.mubr.bf16.gmra.mxu0 %v5533
      %v5938 = vpop.f32.mrf.mxu0
      %v5939 = vadd.f32 0.0, %v5938
      %v5940 = vpop.f32.mrf.mxu0
      %v5941 = vpop.f32.mrf.mxu0
      %v5942 = vadd.f32 0.0, %v5941
      %v5943 = vpop.f32.mrf.mxu0
      %5944 = vmatprep.mubr.bf16.mxu0 0
      %5945 = vmatmul.mubr.bf16.gmra.mxu0 %v5536
      %v5946 = vpop.f32.mrf.mxu0
      %v5947 = vadd.f32 0.0, %v5946
      %v5948 = vpop.f32.mrf.mxu0
      %v5949 = vpop.f32.mrf.mxu0
      %v5950 = vadd.f32 0.0, %v5949
      %v5951 = vpop.f32.mrf.mxu0
      %5952 = vmatprep.mubr.bf16.mxu0 0
      %5953 = vmatmul.mubr.bf16.gmra.mxu0 %v5539
      %v5954 = vpop.f32.mrf.mxu0
      %v5955 = vadd.f32 0.0, %v5954
      %v5956 = vpop.f32.mrf.mxu0
      %v5957 = vpop.f32.mrf.mxu0
      %v5958 = vadd.f32 0.0, %v5957
      %v5959 = vpop.f32.mrf.mxu0
      %5960 = vmatprep.mubr.bf16.mxu0 0
      %5961 = vmatmul.mubr.bf16.gmra.mxu0 %v5542
      %v5962 = vpop.f32.mrf.mxu0
      %v5963 = vadd.f32 0.0, %v5962
      %v5964 = vpop.f32.mrf.mxu0
      %v5965 = vpop.f32.mrf.mxu0
      %v5966 = vadd.f32 0.0, %v5965
      %v5967 = vpop.f32.mrf.mxu0
      %5968 = vmatprep.mubr.bf16.mxu0 0
      %5969 = vmatmul.mubr.bf16.gmra.mxu0 %v5545
      %v5970 = vpop.f32.mrf.mxu0
      %v5971 = vadd.f32 0.0, %v5970
      %v5972 = vpop.f32.mrf.mxu0
      %v5973 = vpop.f32.mrf.mxu0
      %v5974 = vadd.f32 0.0, %v5973
      %v5975 = vpop.f32.mrf.mxu0
      %5976 = vmatprep.mubr.bf16.mxu0 0
      %5977 = vmatmul.mubr.bf16.gmra.mxu0 %v5548
      %v5978 = vpop.f32.mrf.mxu0
      %v5979 = vadd.f32 0.0, %v5978
      %v5980 = vpop.f32.mrf.mxu0
      %v5981 = vpop.f32.mrf.mxu0
      %v5982 = vadd.f32 0.0, %v5981
      %v5983 = vpop.f32.mrf.mxu0
      %5984 = vmatprep.mubr.bf16.mxu0 0
      %5985 = vmatmul.mubr.bf16.gmra.mxu0 %v5551
      %v5986 = vpop.f32.mrf.mxu0
      %v5987 = vadd.f32 0.0, %v5986
      %v5988 = vpop.f32.mrf.mxu0
      %v5989 = vpop.f32.mrf.mxu0
      %v5990 = vadd.f32 0.0, %v5989
      %v5991 = vpop.f32.mrf.mxu0
      %5992 = vmatprep.mubr.bf16.mxu0 0
      %5993 = vmatmul.mubr.bf16.gmra.mxu0 %v5554
      %v5994 = vpop.f32.mrf.mxu0
      %v5995 = vadd.f32 0.0, %v5994
      %v5996 = vpop.f32.mrf.mxu0
      %v5997 = vpop.f32.mrf.mxu0
      %v5998 = vadd.f32 0.0, %v5997
      %v5999 = vpop.f32.mrf.mxu0
      %6000 = vmatprep.mubr.bf16.mxu0 0
      %6001 = vmatmul.mubr.bf16.gmra.mxu0 %v5557
      %v6002 = vpop.f32.mrf.mxu0
      %v6003 = vadd.f32 0.0, %v6002
      %v6004 = vpop.f32.mrf.mxu0
      %v6005 = vpop.f32.mrf.mxu0
      %v6006 = vadd.f32 0.0, %v6005
      %v6007 = vpop.f32.mrf.mxu0
      %6008 = vmatprep.mubr.bf16.mxu0 0
      %6009 = vmatmul.mubr.bf16.gmra.mxu0 %v5560
      %v6010 = vpop.f32.mrf.mxu0
      %v6011 = vadd.f32 0.0, %v6010
      %v6012 = vpop.f32.mrf.mxu0
      %v6013 = vpop.f32.mrf.mxu0
      %v6014 = vadd.f32 0.0, %v6013
      %v6015 = vpop.f32.mrf.mxu0
      %6016 = vmatprep.mubr.bf16.mxu0 0
      %6017 = vmatmul.mubr.bf16.gmra.mxu0 %v5563
      %v6018 = vpop.f32.mrf.mxu0
      %v6019 = vadd.f32 0.0, %v6018
      %v6020 = vpop.f32.mrf.mxu0
      %v6021 = vpop.f32.mrf.mxu0
      %v6022 = vadd.f32 0.0, %v6021
      %v6023 = vpop.f32.mrf.mxu0
      %6024 = vmatprep.mubr.bf16.mxu0 0
      %6025 = vmatmul.mubr.bf16.gmra.mxu0 %v5840
      %v6026 = vpop.f32.mrf.mxu0
      %v6027 = vadd.f32 0.0, %v6026
      %v6028 = vpop.f32.mrf.mxu0
      %v6029 = vpop.f32.mrf.mxu0
      %v6030 = vadd.f32 0.0, %v6029
      %v6031 = vpop.f32.mrf.mxu0
      %6032 = vmatprep.mubr.bf16.mxu0 0
      %6033 = vmatmul.mubr.bf16.gmra.mxu0 %v5843
      %v6034 = vpop.f32.mrf.mxu0
      %v6035 = vadd.f32 0.0, %v6034
      %v6036 = vpop.f32.mrf.mxu0
      %v6037 = vpop.f32.mrf.mxu0
      %v6038 = vadd.f32 0.0, %v6037
      %v6039 = vpop.f32.mrf.mxu0
      %6040 = vmatprep.mubr.bf16.mxu0 0
      %6041 = vmatmul.mubr.bf16.gmra.mxu0 %v5846
      %v6042 = vpop.f32.mrf.mxu0
      %v6043 = vadd.f32 0.0, %v6042
      %v6044 = vpop.f32.mrf.mxu0
      %v6045 = vpop.f32.mrf.mxu0
      %v6046 = vpop.f32.mrf.mxu0
      %6047 = vdwg.mxu0
      %v6048 = vadd.f32 %v5771, %v5883
      %v6049 = vadd.f32 %v5772, %v5886
      %v6050 = vadd.f32 %v5773, %v5891
      %v6051 = vadd.f32 %v5774, %v5894
      %v6052 = vadd.f32 %v5775, %v5899
      %v6053 = vadd.f32 %v5776, %v5902
      %v6054 = vadd.f32 %v5777, %v5907
      %v6055 = vadd.f32 %v5778, %v5910
      %v6056 = vadd.f32 %v5779, %v5915
      %v6057 = vadd.f32 %v5780, %v5918
      %v6058 = vadd.f32 %v5781, %v5923
      %v6059 = vadd.f32 %v5782, %v5926
      %v6060 = vadd.f32 %v5783, %v5931
      %v6061 = vadd.f32 %v5784, %v5934
      %v6062 = vadd.f32 %v5785, %v5939
      %v6063 = vadd.f32 %v5786, %v5942
      %v6064 = vadd.f32 %v5787, %v5947
      %v6065 = vadd.f32 %v5788, %v5950
      %v6066 = vadd.f32 %v5789, %v5955
      %v6067 = vadd.f32 %v5790, %v5958
      %v6068 = vadd.f32 %v5791, %v5963
      %v6069 = vadd.f32 %v5792, %v5966
      %v6070 = vadd.f32 %v5793, %v5971
      %v6071 = vadd.f32 %v5794, %v5974
      %v6072 = vadd.f32 %v5795, %v5979
      %v6073 = vadd.f32 %v5796, %v5982
      %v6074 = vadd.f32 %v5797, %v5987
      %v6075 = vadd.f32 %v5798, %v5990
      %v6076 = vadd.f32 %v5799, %v5995
      %v6077 = vadd.f32 %v5800, %v5998
      %v6078 = vadd.f32 %v5801, %v6003
      %v6079 = vadd.f32 %v5802, %v6006
      %v6080 = vadd.f32 %v5803, %v6011
      %v6081 = vadd.f32 %v5804, %v6014
      %v6082 = vadd.f32 %v5805, %v6019
      %v6083 = vadd.f32 %v5806, %v6022
      %v6084 = vadd.f32 %v5807, %v6027
      %v6085 = vadd.f32 %v5808, %v6030
      %v6086 = vadd.f32 %v5809, %v6035
      %v6087 = vadd.f32 %v5810, %v6038
      %v6088 = vadd.f32 %v5811, %v6043
      %s6089 = scalar_lea.vmem %s3, 64
      %v6090 = vld [vmem:[%s6089] sm:$0xf]
      %v6091 = vld [vmem:[%s6089 + $0x4] sm:$0xf]
      %v6092 = vld [vmem:[%s6089 + $0x8] sm:$0xf]
      %v6093 = vld [vmem:[%s6089 + $0xc] sm:$0xf]
      %v6094 = vrot.slane %v4766, 1
      %v6095 = vrot.slane %v4762, 2
      %v6096 = vor.u32 %v6094, %v6095
      %v6097 = vrot.slane %v4774, 1
      %v6098 = vrot.slane %v4770, 2
      %v6099 = vor.u32 %v6097, %v6098
      %v6100 = vsel %vm1685, %v6096, %v6099
      %v6101 = vrot.slane %v4782, 1
      %v6102 = vrot.slane %v4778, 2
      %v6103 = vor.u32 %v6101, %v6102
      %v6104 = vsel %vm1685, %v6099, %v6103
      %v6105 = vrot.slane %v4790, 1
      %v6106 = vrot.slane %v4786, 2
      %v6107 = vor.u32 %v6105, %v6106
      %v6108 = vsel %vm1685, %v6103, %v6107
      %v6109 = vrot.slane %v4798, 1
      %v6110 = vrot.slane %v4794, 2
      %v6111 = vor.u32 %v6109, %v6110
      %v6112 = vsel %vm1685, %v6107, %v6111
      %v6113 = vrot.slane %v4806, 1
      %v6114 = vrot.slane %v4802, 2
      %v6115 = vor.u32 %v6113, %v6114
      %v6116 = vsel %vm1685, %v6111, %v6115
      %v6117 = vrot.slane %v4814, 1
      %v6118 = vrot.slane %v4810, 2
      %v6119 = vor.u32 %v6117, %v6118
      %v6120 = vsel %vm1685, %v6115, %v6119
      %v6121 = vrot.slane %v4822, 1
      %v6122 = vrot.slane %v4818, 2
      %v6123 = vor.u32 %v6121, %v6122
      %v6124 = vsel %vm1685, %v6119, %v6123
      %v6125 = vrot.slane %v4830, 1
      %v6126 = vrot.slane %v4826, 2
      %v6127 = vor.u32 %v6125, %v6126
      %v6128 = vsel %vm1685, %v6123, %v6127
      %v6129 = vrot.slane %v4838, 1
      %v6130 = vrot.slane %v4834, 2
      %v6131 = vor.u32 %v6129, %v6130
      %v6132 = vsel %vm1685, %v6127, %v6131
      %v6133 = vrot.slane %v4846, 1
      %v6134 = vrot.slane %v4842, 2
      %v6135 = vor.u32 %v6133, %v6134
      %v6136 = vsel %vm1685, %v6131, %v6135
      %v6137 = vrot.slane %v4854, 1
      %v6138 = vrot.slane %v4850, 2
      %v6139 = vor.u32 %v6137, %v6138
      %v6140 = vsel %vm1685, %v6135, %v6139
      %v6141 = vrot.slane %v4862, 1
      %v6142 = vrot.slane %v4858, 2
      %v6143 = vor.u32 %v6141, %v6142
      %v6144 = vsel %vm1685, %v6139, %v6143
      %v6145 = vrot.slane %v4870, 1
      %v6146 = vrot.slane %v4866, 2
      %v6147 = vor.u32 %v6145, %v6146
      %v6148 = vsel %vm1685, %v6143, %v6147
      %v6149 = vrot.slane %v4878, 1
      %v6150 = vrot.slane %v4874, 2
      %v6151 = vor.u32 %v6149, %v6150
      %v6152 = vsel %vm1685, %v6147, %v6151
      %v6153 = vrot.slane %v4886, 1
      %v6154 = vrot.slane %v4882, 2
      %v6155 = vor.u32 %v6153, %v6154
      %v6156 = vsel %vm1685, %v6151, %v6155
      %v6157 = vrot.slane %v4894, 1
      %v6158 = vrot.slane %v4890, 2
      %v6159 = vor.u32 %v6157, %v6158
      %v6160 = vsel %vm1685, %v6155, %v6159
      %v6161 = vrot.slane %v4902, 1
      %v6162 = vrot.slane %v4898, 2
      %v6163 = vor.u32 %v6161, %v6162
      %v6164 = vsel %vm1685, %v6159, %v6163
      %v6165 = vrot.slane %v4910, 1
      %v6166 = vrot.slane %v4906, 2
      %v6167 = vor.u32 %v6165, %v6166
      %v6168 = vsel %vm1685, %v6163, %v6167
      %v6170 = vshrl.u32 %v5821, 16
      %v6172 = vrot.slane %v6170, 1
      %v6173 = vshll.u32 %v5821, 16
      %v6175 = vrot.slane %v6173, 2
      %v6176 = vor.u32 %v6172, %v6175
      %v6177 = vsel %vm1685, %v6167, %v6176
      %v6179 = vshrl.u32 %v5822, 16
      %v6181 = vrot.slane %v6179, 1
      %v6182 = vshll.u32 %v5822, 16
      %v6184 = vrot.slane %v6182, 2
      %v6185 = vor.u32 %v6181, %v6184
      %v6186 = vsel %vm1685, %v6176, %v6185
      %v6191 = vunpack.c.l.b16 %v6090
      %v6192 = vunpack.c.l.b16 %v6091
      %v6193 = vunpack.c.l.b16 %v6092
      %v6194 = vunpack.c.l.b16 %v6093
      %v6195 = vpack.c.b16 %v6192, %v6191
      %v6196 = vpack.c.b16 %v6194, %v6193
      %v6200 = vsel %vm511, %v6100, 0
      %v6203 = vsel %vm511, %v6104, 0
      %v6206 = vsel %vm511, %v6108, 0
      %v6209 = vsel %vm511, %v6112, 0
      %v6212 = vsel %vm511, %v6116, 0
      %v6215 = vsel %vm511, %v6120, 0
      %v6218 = vsel %vm511, %v6124, 0
      %v6221 = vsel %vm511, %v6128, 0
      %v6224 = vsel %vm511, %v6132, 0
      %v6227 = vsel %vm511, %v6136, 0
      %v6230 = vsel %vm511, %v6140, 0
      %v6233 = vsel %vm511, %v6144, 0
      %v6236 = vsel %vm511, %v6148, 0
      %v6239 = vsel %vm511, %v6152, 0
      %v6242 = vsel %vm511, %v6156, 0
      %v6245 = vsel %vm511, %v6160, 0
      %v6248 = vsel %vm511, %v6164, 0
      %v6251 = vsel %vm511, %v6168, 0
      %v6254 = vsel %vm511, %v6177, 0
      %v6257 = vsel %vm511, %v6186, 0
      %v6260 = vsel %vm511, %v6185, 0
      %6262 = vmatprep.subr.bf16.mxu0 0
      %6263 = vmatpush1.bf16.msra.mxu0 0
      %6264 = vmatprep.subr.bf16.mxu0 0
      %6265 = vmatpush1.bf16.msra.mxu0 0
      %6266 = vmatprep.subr.bf16.mxu0 0
      %6267 = vmatpush1.bf16.msra.mxu0 0
      %6268 = vmatprep.subr.bf16.mxu0 0
      %6269 = vmatpush1.bf16.msra.mxu0 0
      %6270 = vmatprep.subr.bf16.mxu0 0
      %6271 = vmatpush1.bf16.msra.mxu0 0
      %6272 = vmatprep.subr.bf16.mxu0 0
      %6273 = vmatpush1.bf16.msra.mxu0 0
      %6274 = vmatprep.subr.bf16.mxu0 0
      %6275 = vmatpush1.bf16.msra.mxu0 %v6196
      %6276 = vmatprep.subr.bf16.mxu0 0
      %6277 = vmatpush1.bf16.msra.mxu0 %v6195
      %6278 = vmatprep.subr.bf16.mxu0 0
      %6279 = vmatpush2.bf16.msra.mxu0 0
      %6280 = vmatprep.subr.bf16.mxu0 0
      %6281 = vmatpush2.bf16.msra.mxu0 0
      %6282 = vmatprep.subr.bf16.mxu0 0
      %6283 = vmatpush2.bf16.msra.mxu0 0
      %6284 = vmatprep.subr.bf16.mxu0 0
      %6285 = vmatpush2.bf16.msra.mxu0 0
      %6286 = vmatprep.subr.bf16.mxu0 0
      %6287 = vmatpush2.bf16.msra.mxu0 0
      %6288 = vmatprep.subr.bf16.mxu0 0
      %6289 = vmatpush2.bf16.msra.mxu0 0
      %6290 = vmatprep.subr.bf16.mxu0 0
      %6291 = vmatpush2.bf16.msra.mxu0 0
      %6292 = vmatprep.subr.bf16.mxu0 0
      %6293 = vmatpush2.bf16.msra.mxu0 0
      %6294 = vmatprep.mubr.bf16.mxu0 0
      %6295 = vmatmul.mubr.bf16.gmra.mxu0 %v6200
      %v6296 = vpop.f32.mrf.mxu0
      %v6297 = vadd.f32 0.0, %v6296
      %v6298 = vpop.f32.mrf.mxu0
      %v6299 = vpop.f32.mrf.mxu0
      %v6300 = vadd.f32 0.0, %v6299
      %v6301 = vpop.f32.mrf.mxu0
      %6302 = vmatprep.mubr.bf16.mxu0 0
      %6303 = vmatmul.mubr.bf16.gmra.mxu0 %v6203
      %v6304 = vpop.f32.mrf.mxu0
      %v6305 = vadd.f32 0.0, %v6304
      %v6306 = vpop.f32.mrf.mxu0
      %v6307 = vpop.f32.mrf.mxu0
      %v6308 = vadd.f32 0.0, %v6307
      %v6309 = vpop.f32.mrf.mxu0
      %6310 = vmatprep.mubr.bf16.mxu0 0
      %6311 = vmatmul.mubr.bf16.gmra.mxu0 %v6206
      %v6312 = vpop.f32.mrf.mxu0
      %v6313 = vadd.f32 0.0, %v6312
      %v6314 = vpop.f32.mrf.mxu0
      %v6315 = vpop.f32.mrf.mxu0
      %v6316 = vadd.f32 0.0, %v6315
      %v6317 = vpop.f32.mrf.mxu0
      %6318 = vmatprep.mubr.bf16.mxu0 0
      %6319 = vmatmul.mubr.bf16.gmra.mxu0 %v6209
      %v6320 = vpop.f32.mrf.mxu0
      %v6321 = vadd.f32 0.0, %v6320
      %v6322 = vpop.f32.mrf.mxu0
      %v6323 = vpop.f32.mrf.mxu0
      %v6324 = vadd.f32 0.0, %v6323
      %v6325 = vpop.f32.mrf.mxu0
      %6326 = vmatprep.mubr.bf16.mxu0 0
      %6327 = vmatmul.mubr.bf16.gmra.mxu0 %v6212
      %v6328 = vpop.f32.mrf.mxu0
      %v6329 = vadd.f32 0.0, %v6328
      %v6330 = vpop.f32.mrf.mxu0
      %v6331 = vpop.f32.mrf.mxu0
      %v6332 = vadd.f32 0.0, %v6331
      %v6333 = vpop.f32.mrf.mxu0
      %6334 = vmatprep.mubr.bf16.mxu0 0
      %6335 = vmatmul.mubr.bf16.gmra.mxu0 %v6215
      %v6336 = vpop.f32.mrf.mxu0
      %v6337 = vadd.f32 0.0, %v6336
      %v6338 = vpop.f32.mrf.mxu0
      %v6339 = vpop.f32.mrf.mxu0
      %v6340 = vadd.f32 0.0, %v6339
      %v6341 = vpop.f32.mrf.mxu0
      %6342 = vmatprep.mubr.bf16.mxu0 0
      %6343 = vmatmul.mubr.bf16.gmra.mxu0 %v6218
      %v6344 = vpop.f32.mrf.mxu0
      %v6345 = vadd.f32 0.0, %v6344
      %v6346 = vpop.f32.mrf.mxu0
      %v6347 = vpop.f32.mrf.mxu0
      %v6348 = vadd.f32 0.0, %v6347
      %v6349 = vpop.f32.mrf.mxu0
      %6350 = vmatprep.mubr.bf16.mxu0 0
      %6351 = vmatmul.mubr.bf16.gmra.mxu0 %v6221
      %v6352 = vpop.f32.mrf.mxu0
      %v6353 = vadd.f32 0.0, %v6352
      %v6354 = vpop.f32.mrf.mxu0
      %v6355 = vpop.f32.mrf.mxu0
      %v6356 = vadd.f32 0.0, %v6355
      %v6357 = vpop.f32.mrf.mxu0
      %6358 = vmatprep.mubr.bf16.mxu0 0
      %6359 = vmatmul.mubr.bf16.gmra.mxu0 %v6224
      %v6360 = vpop.f32.mrf.mxu0
      %v6361 = vadd.f32 0.0, %v6360
      %v6362 = vpop.f32.mrf.mxu0
      %v6363 = vpop.f32.mrf.mxu0
      %v6364 = vadd.f32 0.0, %v6363
      %v6365 = vpop.f32.mrf.mxu0
      %6366 = vmatprep.mubr.bf16.mxu0 0
      %6367 = vmatmul.mubr.bf16.gmra.mxu0 %v6227
      %v6368 = vpop.f32.mrf.mxu0
      %v6369 = vadd.f32 0.0, %v6368
      %v6370 = vpop.f32.mrf.mxu0
      %v6371 = vpop.f32.mrf.mxu0
      %v6372 = vadd.f32 0.0, %v6371
      %v6373 = vpop.f32.mrf.mxu0
      %6374 = vmatprep.mubr.bf16.mxu0 0
      %6375 = vmatmul.mubr.bf16.gmra.mxu0 %v6230
      %v6376 = vpop.f32.mrf.mxu0
      %v6377 = vadd.f32 0.0, %v6376
      %v6378 = vpop.f32.mrf.mxu0
      %v6379 = vpop.f32.mrf.mxu0
      %v6380 = vadd.f32 0.0, %v6379
      %v6381 = vpop.f32.mrf.mxu0
      %6382 = vmatprep.mubr.bf16.mxu0 0
      %6383 = vmatmul.mubr.bf16.gmra.mxu0 %v6233
      %v6384 = vpop.f32.mrf.mxu0
      %v6385 = vadd.f32 0.0, %v6384
      %v6386 = vpop.f32.mrf.mxu0
      %v6387 = vpop.f32.mrf.mxu0
      %v6388 = vadd.f32 0.0, %v6387
      %v6389 = vpop.f32.mrf.mxu0
      %6390 = vmatprep.mubr.bf16.mxu0 0
      %6391 = vmatmul.mubr.bf16.gmra.mxu0 %v6236
      %v6392 = vpop.f32.mrf.mxu0
      %v6393 = vadd.f32 0.0, %v6392
      %v6394 = vpop.f32.mrf.mxu0
      %v6395 = vpop.f32.mrf.mxu0
      %v6396 = vadd.f32 0.0, %v6395
      %v6397 = vpop.f32.mrf.mxu0
      %6398 = vmatprep.mubr.bf16.mxu0 0
      %6399 = vmatmul.mubr.bf16.gmra.mxu0 %v6239
      %v6400 = vpop.f32.mrf.mxu0
      %v6401 = vadd.f32 0.0, %v6400
      %v6402 = vpop.f32.mrf.mxu0
      %v6403 = vpop.f32.mrf.mxu0
      %v6404 = vadd.f32 0.0, %v6403
      %v6405 = vpop.f32.mrf.mxu0
      %6406 = vmatprep.mubr.bf16.mxu0 0
      %6407 = vmatmul.mubr.bf16.gmra.mxu0 %v6242
      %v6408 = vpop.f32.mrf.mxu0
      %v6409 = vadd.f32 0.0, %v6408
      %v6410 = vpop.f32.mrf.mxu0
      %v6411 = vpop.f32.mrf.mxu0
      %v6412 = vadd.f32 0.0, %v6411
      %v6413 = vpop.f32.mrf.mxu0
      %6414 = vmatprep.mubr.bf16.mxu0 0
      %6415 = vmatmul.mubr.bf16.gmra.mxu0 %v6245
      %v6416 = vpop.f32.mrf.mxu0
      %v6417 = vadd.f32 0.0, %v6416
      %v6418 = vpop.f32.mrf.mxu0
      %v6419 = vpop.f32.mrf.mxu0
      %v6420 = vadd.f32 0.0, %v6419
      %v6421 = vpop.f32.mrf.mxu0
      %6422 = vmatprep.mubr.bf16.mxu0 0
      %6423 = vmatmul.mubr.bf16.gmra.mxu0 %v6248
      %v6424 = vpop.f32.mrf.mxu0
      %v6425 = vadd.f32 0.0, %v6424
      %v6426 = vpop.f32.mrf.mxu0
      %v6427 = vpop.f32.mrf.mxu0
      %v6428 = vadd.f32 0.0, %v6427
      %v6429 = vpop.f32.mrf.mxu0
      %6430 = vmatprep.mubr.bf16.mxu0 0
      %6431 = vmatmul.mubr.bf16.gmra.mxu0 %v6251
      %v6432 = vpop.f32.mrf.mxu0
      %v6433 = vadd.f32 0.0, %v6432
      %v6434 = vpop.f32.mrf.mxu0
      %v6435 = vpop.f32.mrf.mxu0
      %v6436 = vadd.f32 0.0, %v6435
      %v6437 = vpop.f32.mrf.mxu0
      %6438 = vmatprep.mubr.bf16.mxu0 0
      %6439 = vmatmul.mubr.bf16.gmra.mxu0 %v6254
      %v6440 = vpop.f32.mrf.mxu0
      %v6441 = vadd.f32 0.0, %v6440
      %v6442 = vpop.f32.mrf.mxu0
      %v6443 = vpop.f32.mrf.mxu0
      %v6444 = vadd.f32 0.0, %v6443
      %v6445 = vpop.f32.mrf.mxu0
      %6446 = vmatprep.mubr.bf16.mxu0 0
      %6447 = vmatmul.mubr.bf16.gmra.mxu0 %v6257
      %v6448 = vpop.f32.mrf.mxu0
      %v6449 = vadd.f32 0.0, %v6448
      %v6450 = vpop.f32.mrf.mxu0
      %v6451 = vpop.f32.mrf.mxu0
      %v6452 = vadd.f32 0.0, %v6451
      %v6453 = vpop.f32.mrf.mxu0
      %6454 = vmatprep.mubr.bf16.mxu0 0
      %6455 = vmatmul.mubr.bf16.gmra.mxu0 %v6260
      %v6456 = vpop.f32.mrf.mxu0
      %v6457 = vadd.f32 0.0, %v6456
      %v6458 = vpop.f32.mrf.mxu0
      %v6459 = vpop.f32.mrf.mxu0
      %v6460 = vpop.f32.mrf.mxu0
      %6461 = vdwg.mxu0
      %v6462 = vadd.f32 %v6048, %v6297
      %v6463 = vadd.f32 %v6049, %v6300
      %v6464 = vadd.f32 %v6050, %v6305
      %v6465 = vadd.f32 %v6051, %v6308
      %v6466 = vadd.f32 %v6052, %v6313
      %v6467 = vadd.f32 %v6053, %v6316
      %v6468 = vadd.f32 %v6054, %v6321
      %v6469 = vadd.f32 %v6055, %v6324
      %v6470 = vadd.f32 %v6056, %v6329
      %v6471 = vadd.f32 %v6057, %v6332
      %v6472 = vadd.f32 %v6058, %v6337
      %v6473 = vadd.f32 %v6059, %v6340
      %v6474 = vadd.f32 %v6060, %v6345
      %v6475 = vadd.f32 %v6061, %v6348
      %v6476 = vadd.f32 %v6062, %v6353
      %v6477 = vadd.f32 %v6063, %v6356
      %v6478 = vadd.f32 %v6064, %v6361
      %v6479 = vadd.f32 %v6065, %v6364
      %v6480 = vadd.f32 %v6066, %v6369
      %v6481 = vadd.f32 %v6067, %v6372
      %v6482 = vadd.f32 %v6068, %v6377
      %v6483 = vadd.f32 %v6069, %v6380
      %v6484 = vadd.f32 %v6070, %v6385
      %v6485 = vadd.f32 %v6071, %v6388
      %v6486 = vadd.f32 %v6072, %v6393
      %v6487 = vadd.f32 %v6073, %v6396
      %v6488 = vadd.f32 %v6074, %v6401
      %v6489 = vadd.f32 %v6075, %v6404
      %v6490 = vadd.f32 %v6076, %v6409
      %v6491 = vadd.f32 %v6077, %v6412
      %v6492 = vadd.f32 %v6078, %v6417
      %v6493 = vadd.f32 %v6079, %v6420
      %v6494 = vadd.f32 %v6080, %v6425
      %v6495 = vadd.f32 %v6081, %v6428
      %v6496 = vadd.f32 %v6082, %v6433
      %v6497 = vadd.f32 %v6083, %v6436
      %v6498 = vadd.f32 %v6084, %v6441
      %v6499 = vadd.f32 %v6085, %v6444
      %v6500 = vadd.f32 %v6086, %v6449
      %v6501 = vadd.f32 %v6087, %v6452
      %v6502 = vadd.f32 %v6088, %v6457
      %s6503 = scalar_lea.vmem %s3, 80
      %v6504 = vld [vmem:[%s6503] sm:$0xf]
      %v6505 = vld [vmem:[%s6503 + $0x4] sm:$0xf]
      %v6506 = vld [vmem:[%s6503 + $0x8] sm:$0xf]
      %v6507 = vld [vmem:[%s6503 + $0xc] sm:$0xf]
      %v6508 = vrot.slane %v4734, 2
      %v6509 = vrot.slane %v4735, 2
      %v6510 = vsel %vm2095, %v6508, %v6509
      %v6511 = vrot.slane %v4736, 2
      %v6512 = vsel %vm2095, %v6509, %v6511
      %v6513 = vrot.slane %v4737, 2
      %v6514 = vsel %vm2095, %v6511, %v6513
      %v6515 = vrot.slane %v4738, 2
      %v6516 = vsel %vm2095, %v6513, %v6515
      %v6517 = vrot.slane %v4739, 2
      %v6518 = vsel %vm2095, %v6515, %v6517
      %v6519 = vrot.slane %v4740, 2
      %v6520 = vsel %vm2095, %v6517, %v6519
      %v6521 = vrot.slane %v4741, 2
      %v6522 = vsel %vm2095, %v6519, %v6521
      %v6523 = vrot.slane %v4742, 2
      %v6524 = vsel %vm2095, %v6521, %v6523
      %v6525 = vrot.slane %v4743, 2
      %v6526 = vsel %vm2095, %v6523, %v6525
      %v6527 = vrot.slane %v4744, 2
      %v6528 = vsel %vm2095, %v6525, %v6527
      %v6529 = vrot.slane %v4745, 2
      %v6530 = vsel %vm2095, %v6527, %v6529
      %v6531 = vrot.slane %v4746, 2
      %v6532 = vsel %vm2095, %v6529, %v6531
      %v6533 = vrot.slane %v4747, 2
      %v6534 = vsel %vm2095, %v6531, %v6533
      %v6535 = vrot.slane %v4748, 2
      %v6536 = vsel %vm2095, %v6533, %v6535
      %v6537 = vrot.slane %v4749, 2
      %v6538 = vsel %vm2095, %v6535, %v6537
      %v6539 = vrot.slane %v4750, 2
      %v6540 = vsel %vm2095, %v6537, %v6539
      %v6541 = vrot.slane %v4751, 2
      %v6542 = vsel %vm2095, %v6539, %v6541
      %v6543 = vrot.slane %v4752, 2
      %v6544 = vsel %vm2095, %v6541, %v6543
      %v6545 = vrot.slane %v5821, 2
      %v6546 = vsel %vm2095, %v6543, %v6545
      %v6547 = vrot.slane %v5822, 2
      %v6548 = vsel %vm2095, %v6545, %v6547
      %v6553 = vunpack.c.l.b16 %v6504
      %v6554 = vunpack.c.l.b16 %v6505
      %v6555 = vunpack.c.l.b16 %v6506
      %v6556 = vunpack.c.l.b16 %v6507
      %v6557 = vpack.c.b16 %v6554, %v6553
      %v6558 = vpack.c.b16 %v6556, %v6555
      %v6562 = vsel %vm511, %v6510, 0
      %v6565 = vsel %vm511, %v6512, 0
      %v6568 = vsel %vm511, %v6514, 0
      %v6571 = vsel %vm511, %v6516, 0
      %v6574 = vsel %vm511, %v6518, 0
      %v6577 = vsel %vm511, %v6520, 0
      %v6580 = vsel %vm511, %v6522, 0
      %v6583 = vsel %vm511, %v6524, 0
      %v6586 = vsel %vm511, %v6526, 0
      %v6589 = vsel %vm511, %v6528, 0
      %v6592 = vsel %vm511, %v6530, 0
      %v6595 = vsel %vm511, %v6532, 0
      %v6598 = vsel %vm511, %v6534, 0
      %v6601 = vsel %vm511, %v6536, 0
      %v6604 = vsel %vm511, %v6538, 0
      %v6607 = vsel %vm511, %v6540, 0
      %v6610 = vsel %vm511, %v6542, 0
      %v6613 = vsel %vm511, %v6544, 0
      %v6616 = vsel %vm511, %v6546, 0
      %v6619 = vsel %vm511, %v6548, 0
      %v6622 = vsel %vm511, %v6547, 0
      %6624 = vmatprep.subr.bf16.mxu0 0
      %6625 = vmatpush1.bf16.msra.mxu0 0
      %6626 = vmatprep.subr.bf16.mxu0 0
      %6627 = vmatpush1.bf16.msra.mxu0 0
      %6628 = vmatprep.subr.bf16.mxu0 0
      %6629 = vmatpush1.bf16.msra.mxu0 0
      %6630 = vmatprep.subr.bf16.mxu0 0
      %6631 = vmatpush1.bf16.msra.mxu0 0
      %6632 = vmatprep.subr.bf16.mxu0 0
      %6633 = vmatpush1.bf16.msra.mxu0 0
      %6634 = vmatprep.subr.bf16.mxu0 0
      %6635 = vmatpush1.bf16.msra.mxu0 0
      %6636 = vmatprep.subr.bf16.mxu0 0
      %6637 = vmatpush1.bf16.msra.mxu0 %v6558
      %6638 = vmatprep.subr.bf16.mxu0 0
      %6639 = vmatpush1.bf16.msra.mxu0 %v6557
      %6640 = vmatprep.subr.bf16.mxu0 0
      %6641 = vmatpush2.bf16.msra.mxu0 0
      %6642 = vmatprep.subr.bf16.mxu0 0
      %6643 = vmatpush2.bf16.msra.mxu0 0
      %6644 = vmatprep.subr.bf16.mxu0 0
      %6645 = vmatpush2.bf16.msra.mxu0 0
      %6646 = vmatprep.subr.bf16.mxu0 0
      %6647 = vmatpush2.bf16.msra.mxu0 0
      %6648 = vmatprep.subr.bf16.mxu0 0
      %6649 = vmatpush2.bf16.msra.mxu0 0
      %6650 = vmatprep.subr.bf16.mxu0 0
      %6651 = vmatpush2.bf16.msra.mxu0 0
      %6652 = vmatprep.subr.bf16.mxu0 0
      %6653 = vmatpush2.bf16.msra.mxu0 0
      %6654 = vmatprep.subr.bf16.mxu0 0
      %6655 = vmatpush2.bf16.msra.mxu0 0
      %6656 = vmatprep.mubr.bf16.mxu0 0
      %6657 = vmatmul.mubr.bf16.gmra.mxu0 %v6562
      %v6658 = vpop.f32.mrf.mxu0
      %v6659 = vadd.f32 0.0, %v6658
      %v6660 = vpop.f32.mrf.mxu0
      %v6661 = vpop.f32.mrf.mxu0
      %v6662 = vadd.f32 0.0, %v6661
      %v6663 = vpop.f32.mrf.mxu0
      %6664 = vmatprep.mubr.bf16.mxu0 0
      %6665 = vmatmul.mubr.bf16.gmra.mxu0 %v6565
      %v6666 = vpop.f32.mrf.mxu0
      %v6667 = vadd.f32 0.0, %v6666
      %v6668 = vpop.f32.mrf.mxu0
      %v6669 = vpop.f32.mrf.mxu0
      %v6670 = vadd.f32 0.0, %v6669
      %v6671 = vpop.f32.mrf.mxu0
      %6672 = vmatprep.mubr.bf16.mxu0 0
      %6673 = vmatmul.mubr.bf16.gmra.mxu0 %v6568
      %v6674 = vpop.f32.mrf.mxu0
      %v6675 = vadd.f32 0.0, %v6674
      %v6676 = vpop.f32.mrf.mxu0
      %v6677 = vpop.f32.mrf.mxu0
      %v6678 = vadd.f32 0.0, %v6677
      %v6679 = vpop.f32.mrf.mxu0
      %6680 = vmatprep.mubr.bf16.mxu0 0
      %6681 = vmatmul.mubr.bf16.gmra.mxu0 %v6571
      %v6682 = vpop.f32.mrf.mxu0
      %v6683 = vadd.f32 0.0, %v6682
      %v6684 = vpop.f32.mrf.mxu0
      %v6685 = vpop.f32.mrf.mxu0
      %v6686 = vadd.f32 0.0, %v6685
      %v6687 = vpop.f32.mrf.mxu0
      %6688 = vmatprep.mubr.bf16.mxu0 0
      %6689 = vmatmul.mubr.bf16.gmra.mxu0 %v6574
      %v6690 = vpop.f32.mrf.mxu0
      %v6691 = vadd.f32 0.0, %v6690
      %v6692 = vpop.f32.mrf.mxu0
      %v6693 = vpop.f32.mrf.mxu0
      %v6694 = vadd.f32 0.0, %v6693
      %v6695 = vpop.f32.mrf.mxu0
      %6696 = vmatprep.mubr.bf16.mxu0 0
      %6697 = vmatmul.mubr.bf16.gmra.mxu0 %v6577
      %v6698 = vpop.f32.mrf.mxu0
      %v6699 = vadd.f32 0.0, %v6698
      %v6700 = vpop.f32.mrf.mxu0
      %v6701 = vpop.f32.mrf.mxu0
      %v6702 = vadd.f32 0.0, %v6701
      %v6703 = vpop.f32.mrf.mxu0
      %6704 = vmatprep.mubr.bf16.mxu0 0
      %6705 = vmatmul.mubr.bf16.gmra.mxu0 %v6580
      %v6706 = vpop.f32.mrf.mxu0
      %v6707 = vadd.f32 0.0, %v6706
      %v6708 = vpop.f32.mrf.mxu0
      %v6709 = vpop.f32.mrf.mxu0
      %v6710 = vadd.f32 0.0, %v6709
      %v6711 = vpop.f32.mrf.mxu0
      %6712 = vmatprep.mubr.bf16.mxu0 0
      %6713 = vmatmul.mubr.bf16.gmra.mxu0 %v6583
      %v6714 = vpop.f32.mrf.mxu0
      %v6715 = vadd.f32 0.0, %v6714
      %v6716 = vpop.f32.mrf.mxu0
      %v6717 = vpop.f32.mrf.mxu0
      %v6718 = vadd.f32 0.0, %v6717
      %v6719 = vpop.f32.mrf.mxu0
      %6720 = vmatprep.mubr.bf16.mxu0 0
      %6721 = vmatmul.mubr.bf16.gmra.mxu0 %v6586
      %v6722 = vpop.f32.mrf.mxu0
      %v6723 = vadd.f32 0.0, %v6722
      %v6724 = vpop.f32.mrf.mxu0
      %v6725 = vpop.f32.mrf.mxu0
      %v6726 = vadd.f32 0.0, %v6725
      %v6727 = vpop.f32.mrf.mxu0
      %6728 = vmatprep.mubr.bf16.mxu0 0
      %6729 = vmatmul.mubr.bf16.gmra.mxu0 %v6589
      %v6730 = vpop.f32.mrf.mxu0
      %v6731 = vadd.f32 0.0, %v6730
      %v6732 = vpop.f32.mrf.mxu0
      %v6733 = vpop.f32.mrf.mxu0
      %v6734 = vadd.f32 0.0, %v6733
      %v6735 = vpop.f32.mrf.mxu0
      %6736 = vmatprep.mubr.bf16.mxu0 0
      %6737 = vmatmul.mubr.bf16.gmra.mxu0 %v6592
      %v6738 = vpop.f32.mrf.mxu0
      %v6739 = vadd.f32 0.0, %v6738
      %v6740 = vpop.f32.mrf.mxu0
      %v6741 = vpop.f32.mrf.mxu0
      %v6742 = vadd.f32 0.0, %v6741
      %v6743 = vpop.f32.mrf.mxu0
      %6744 = vmatprep.mubr.bf16.mxu0 0
      %6745 = vmatmul.mubr.bf16.gmra.mxu0 %v6595
      %v6746 = vpop.f32.mrf.mxu0
      %v6747 = vadd.f32 0.0, %v6746
      %v6748 = vpop.f32.mrf.mxu0
      %v6749 = vpop.f32.mrf.mxu0
      %v6750 = vadd.f32 0.0, %v6749
      %v6751 = vpop.f32.mrf.mxu0
      %6752 = vmatprep.mubr.bf16.mxu0 0
      %6753 = vmatmul.mubr.bf16.gmra.mxu0 %v6598
      %v6754 = vpop.f32.mrf.mxu0
      %v6755 = vadd.f32 0.0, %v6754
      %v6756 = vpop.f32.mrf.mxu0
      %v6757 = vpop.f32.mrf.mxu0
      %v6758 = vadd.f32 0.0, %v6757
      %v6759 = vpop.f32.mrf.mxu0
      %6760 = vmatprep.mubr.bf16.mxu0 0
      %6761 = vmatmul.mubr.bf16.gmra.mxu0 %v6601
      %v6762 = vpop.f32.mrf.mxu0
      %v6763 = vadd.f32 0.0, %v6762
      %v6764 = vpop.f32.mrf.mxu0
      %v6765 = vpop.f32.mrf.mxu0
      %v6766 = vadd.f32 0.0, %v6765
      %v6767 = vpop.f32.mrf.mxu0
      %6768 = vmatprep.mubr.bf16.mxu0 0
      %6769 = vmatmul.mubr.bf16.gmra.mxu0 %v6604
      %v6770 = vpop.f32.mrf.mxu0
      %v6771 = vadd.f32 0.0, %v6770
      %v6772 = vpop.f32.mrf.mxu0
      %v6773 = vpop.f32.mrf.mxu0
      %v6774 = vadd.f32 0.0, %v6773
      %v6775 = vpop.f32.mrf.mxu0
      %6776 = vmatprep.mubr.bf16.mxu0 0
      %6777 = vmatmul.mubr.bf16.gmra.mxu0 %v6607
      %v6778 = vpop.f32.mrf.mxu0
      %v6779 = vadd.f32 0.0, %v6778
      %v6780 = vpop.f32.mrf.mxu0
      %v6781 = vpop.f32.mrf.mxu0
      %v6782 = vadd.f32 0.0, %v6781
      %v6783 = vpop.f32.mrf.mxu0
      %6784 = vmatprep.mubr.bf16.mxu0 0
      %6785 = vmatmul.mubr.bf16.gmra.mxu0 %v6610
      %v6786 = vpop.f32.mrf.mxu0
      %v6787 = vadd.f32 0.0, %v6786
      %v6788 = vpop.f32.mrf.mxu0
      %v6789 = vpop.f32.mrf.mxu0
      %v6790 = vadd.f32 0.0, %v6789
      %v6791 = vpop.f32.mrf.mxu0
      %6792 = vmatprep.mubr.bf16.mxu0 0
      %6793 = vmatmul.mubr.bf16.gmra.mxu0 %v6613
      %v6794 = vpop.f32.mrf.mxu0
      %v6795 = vadd.f32 0.0, %v6794
      %v6796 = vpop.f32.mrf.mxu0
      %v6797 = vpop.f32.mrf.mxu0
      %v6798 = vadd.f32 0.0, %v6797
      %v6799 = vpop.f32.mrf.mxu0
      %6800 = vmatprep.mubr.bf16.mxu0 0
      %6801 = vmatmul.mubr.bf16.gmra.mxu0 %v6616
      %v6802 = vpop.f32.mrf.mxu0
      %v6803 = vadd.f32 0.0, %v6802
      %v6804 = vpop.f32.mrf.mxu0
      %v6805 = vpop.f32.mrf.mxu0
      %v6806 = vadd.f32 0.0, %v6805
      %v6807 = vpop.f32.mrf.mxu0
      %6808 = vmatprep.mubr.bf16.mxu0 0
      %6809 = vmatmul.mubr.bf16.gmra.mxu0 %v6619
      %v6810 = vpop.f32.mrf.mxu0
      %v6811 = vadd.f32 0.0, %v6810
      %v6812 = vpop.f32.mrf.mxu0
      %v6813 = vpop.f32.mrf.mxu0
      %v6814 = vadd.f32 0.0, %v6813
      %v6815 = vpop.f32.mrf.mxu0
      %6816 = vmatprep.mubr.bf16.mxu0 0
      %6817 = vmatmul.mubr.bf16.gmra.mxu0 %v6622
      %v6818 = vpop.f32.mrf.mxu0
      %v6819 = vadd.f32 0.0, %v6818
      %v6820 = vpop.f32.mrf.mxu0
      %v6821 = vpop.f32.mrf.mxu0
      %v6822 = vpop.f32.mrf.mxu0
      %6823 = vdwg.mxu0
      %v6824 = vadd.f32 %v6462, %v6659
      %v6825 = vadd.f32 %v6463, %v6662
      %v6826 = vadd.f32 %v6464, %v6667
      %v6827 = vadd.f32 %v6465, %v6670
      %v6828 = vadd.f32 %v6466, %v6675
      %v6829 = vadd.f32 %v6467, %v6678
      %v6830 = vadd.f32 %v6468, %v6683
      %v6831 = vadd.f32 %v6469, %v6686
      %v6832 = vadd.f32 %v6470, %v6691
      %v6833 = vadd.f32 %v6471, %v6694
      %v6834 = vadd.f32 %v6472, %v6699
      %v6835 = vadd.f32 %v6473, %v6702
      %v6836 = vadd.f32 %v6474, %v6707
      %v6837 = vadd.f32 %v6475, %v6710
      %v6838 = vadd.f32 %v6476, %v6715
      %v6839 = vadd.f32 %v6477, %v6718
      %v6840 = vadd.f32 %v6478, %v6723
      %v6841 = vadd.f32 %v6479, %v6726
      %v6842 = vadd.f32 %v6480, %v6731
      %v6843 = vadd.f32 %v6481, %v6734
      %v6844 = vadd.f32 %v6482, %v6739
      %v6845 = vadd.f32 %v6483, %v6742
      %v6846 = vadd.f32 %v6484, %v6747
      %v6847 = vadd.f32 %v6485, %v6750
      %v6848 = vadd.f32 %v6486, %v6755
      %v6849 = vadd.f32 %v6487, %v6758
      %v6850 = vadd.f32 %v6488, %v6763
      %v6851 = vadd.f32 %v6489, %v6766
      %v6852 = vadd.f32 %v6490, %v6771
      %v6853 = vadd.f32 %v6491, %v6774
      %v6854 = vadd.f32 %v6492, %v6779
      %v6855 = vadd.f32 %v6493, %v6782
      %v6856 = vadd.f32 %v6494, %v6787
      %v6857 = vadd.f32 %v6495, %v6790
      %v6858 = vadd.f32 %v6496, %v6795
      %v6859 = vadd.f32 %v6497, %v6798
      %v6860 = vadd.f32 %v6498, %v6803
      %v6861 = vadd.f32 %v6499, %v6806
      %v6862 = vadd.f32 %v6500, %v6811
      %v6863 = vadd.f32 %v6501, %v6814
      %v6864 = vadd.f32 %v6502, %v6819
      %s6865 = scalar_lea.vmem %s3, 96
      %v6866 = vld [vmem:[%s6865] sm:$0xf]
      %v6867 = vld [vmem:[%s6865 + $0x4] sm:$0xf]
      %v6868 = vld [vmem:[%s6865 + $0x8] sm:$0xf]
      %v6869 = vld [vmem:[%s6865 + $0xc] sm:$0xf]
      %v6872 = vunpack.c.l.b16 %v4639
      %v6873 = vunpack.c.l.b16 %v4640
      %v6874 = vpack.c.b16 %v6872, %v5820
      %v6875 = vpack.c.b16 %v6873, %v6873
      %v6876 = vrot.slane %v6874, 2
      %v6877 = vsel %vm2095, %v6545, %v6876
      %v6878 = vrot.slane %v6875, 2
      %v6879 = vsel %vm2095, %v6876, %v6878
      %v6884 = vunpack.c.l.b16 %v6866
      %v6885 = vunpack.c.l.b16 %v6867
      %v6886 = vunpack.c.l.b16 %v6868
      %v6887 = vunpack.c.l.b16 %v6869
      %v6888 = vpack.c.b16 %v6885, %v6884
      %v6889 = vpack.c.b16 %v6887, %v6886
      %v6893 = vsel %vm511, %v6877, 0
      %v6896 = vsel %vm511, %v6879, 0
      %v6899 = vsel %vm511, %v6878, 0
      %6901 = vmatprep.subr.bf16.mxu0 0
      %6902 = vmatpush1.bf16.msra.mxu0 0
      %6903 = vmatprep.subr.bf16.mxu0 0
      %6904 = vmatpush1.bf16.msra.mxu0 0
      %6905 = vmatprep.subr.bf16.mxu0 0
      %6906 = vmatpush1.bf16.msra.mxu0 0
      %6907 = vmatprep.subr.bf16.mxu0 0
      %6908 = vmatpush1.bf16.msra.mxu0 0
      %6909 = vmatprep.subr.bf16.mxu0 0
      %6910 = vmatpush1.bf16.msra.mxu0 0
      %6911 = vmatprep.subr.bf16.mxu0 0
      %6912 = vmatpush1.bf16.msra.mxu0 0
      %6913 = vmatprep.subr.bf16.mxu0 0
      %6914 = vmatpush1.bf16.msra.mxu0 %v6889
      %6915 = vmatprep.subr.bf16.mxu0 0
      %6916 = vmatpush1.bf16.msra.mxu0 %v6888
      %6917 = vmatprep.subr.bf16.mxu0 0
      %6918 = vmatpush2.bf16.msra.mxu0 0
      %6919 = vmatprep.subr.bf16.mxu0 0
      %6920 = vmatpush2.bf16.msra.mxu0 0
      %6921 = vmatprep.subr.bf16.mxu0 0
      %6922 = vmatpush2.bf16.msra.mxu0 0
      %6923 = vmatprep.subr.bf16.mxu0 0
      %6924 = vmatpush2.bf16.msra.mxu0 0
      %6925 = vmatprep.subr.bf16.mxu0 0
      %6926 = vmatpush2.bf16.msra.mxu0 0
      %6927 = vmatprep.subr.bf16.mxu0 0
      %6928 = vmatpush2.bf16.msra.mxu0 0
      %6929 = vmatprep.subr.bf16.mxu0 0
      %6930 = vmatpush2.bf16.msra.mxu0 0
      %6931 = vmatprep.subr.bf16.mxu0 0
      %6932 = vmatpush2.bf16.msra.mxu0 0
      %6933 = vmatprep.mubr.bf16.mxu0 0
      %6934 = vmatmul.mubr.bf16.gmra.mxu0 %v6565
      %v6935 = vpop.f32.mrf.mxu0
      %v6936 = vadd.f32 0.0, %v6935
      %v6937 = vpop.f32.mrf.mxu0
      %v6938 = vpop.f32.mrf.mxu0
      %v6939 = vadd.f32 0.0, %v6938
      %v6940 = vpop.f32.mrf.mxu0
      %6941 = vmatprep.mubr.bf16.mxu0 0
      %6942 = vmatmul.mubr.bf16.gmra.mxu0 %v6568
      %v6943 = vpop.f32.mrf.mxu0
      %v6944 = vadd.f32 0.0, %v6943
      %v6945 = vpop.f32.mrf.mxu0
      %v6946 = vpop.f32.mrf.mxu0
      %v6947 = vadd.f32 0.0, %v6946
      %v6948 = vpop.f32.mrf.mxu0
      %6949 = vmatprep.mubr.bf16.mxu0 0
      %6950 = vmatmul.mubr.bf16.gmra.mxu0 %v6571
      %v6951 = vpop.f32.mrf.mxu0
      %v6952 = vadd.f32 0.0, %v6951
      %v6953 = vpop.f32.mrf.mxu0
      %v6954 = vpop.f32.mrf.mxu0
      %v6955 = vadd.f32 0.0, %v6954
      %v6956 = vpop.f32.mrf.mxu0
      %6957 = vmatprep.mubr.bf16.mxu0 0
      %6958 = vmatmul.mubr.bf16.gmra.mxu0 %v6574
      %v6959 = vpop.f32.mrf.mxu0
      %v6960 = vadd.f32 0.0, %v6959
      %v6961 = vpop.f32.mrf.mxu0
      %v6962 = vpop.f32.mrf.mxu0
      %v6963 = vadd.f32 0.0, %v6962
      %v6964 = vpop.f32.mrf.mxu0
      %6965 = vmatprep.mubr.bf16.mxu0 0
      %6966 = vmatmul.mubr.bf16.gmra.mxu0 %v6577
      %v6967 = vpop.f32.mrf.mxu0
      %v6968 = vadd.f32 0.0, %v6967
      %v6969 = vpop.f32.mrf.mxu0
      %v6970 = vpop.f32.mrf.mxu0
      %v6971 = vadd.f32 0.0, %v6970
      %v6972 = vpop.f32.mrf.mxu0
      %6973 = vmatprep.mubr.bf16.mxu0 0
      %6974 = vmatmul.mubr.bf16.gmra.mxu0 %v6580
      %v6975 = vpop.f32.mrf.mxu0
      %v6976 = vadd.f32 0.0, %v6975
      %v6977 = vpop.f32.mrf.mxu0
      %v6978 = vpop.f32.mrf.mxu0
      %v6979 = vadd.f32 0.0, %v6978
      %v6980 = vpop.f32.mrf.mxu0
      %6981 = vmatprep.mubr.bf16.mxu0 0
      %6982 = vmatmul.mubr.bf16.gmra.mxu0 %v6583
      %v6983 = vpop.f32.mrf.mxu0
      %v6984 = vadd.f32 0.0, %v6983
      %v6985 = vpop.f32.mrf.mxu0
      %v6986 = vpop.f32.mrf.mxu0
      %v6987 = vadd.f32 0.0, %v6986
      %v6988 = vpop.f32.mrf.mxu0
      %6989 = vmatprep.mubr.bf16.mxu0 0
      %6990 = vmatmul.mubr.bf16.gmra.mxu0 %v6586
      %v6991 = vpop.f32.mrf.mxu0
      %v6992 = vadd.f32 0.0, %v6991
      %v6993 = vpop.f32.mrf.mxu0
      %v6994 = vpop.f32.mrf.mxu0
      %v6995 = vadd.f32 0.0, %v6994
      %v6996 = vpop.f32.mrf.mxu0
      %6997 = vmatprep.mubr.bf16.mxu0 0
      %6998 = vmatmul.mubr.bf16.gmra.mxu0 %v6589
      %v6999 = vpop.f32.mrf.mxu0
      %v7000 = vadd.f32 0.0, %v6999
      %v7001 = vpop.f32.mrf.mxu0
      %v7002 = vpop.f32.mrf.mxu0
      %v7003 = vadd.f32 0.0, %v7002
      %v7004 = vpop.f32.mrf.mxu0
      %7005 = vmatprep.mubr.bf16.mxu0 0
      %7006 = vmatmul.mubr.bf16.gmra.mxu0 %v6592
      %v7007 = vpop.f32.mrf.mxu0
      %v7008 = vadd.f32 0.0, %v7007
      %v7009 = vpop.f32.mrf.mxu0
      %v7010 = vpop.f32.mrf.mxu0
      %v7011 = vadd.f32 0.0, %v7010
      %v7012 = vpop.f32.mrf.mxu0
      %7013 = vmatprep.mubr.bf16.mxu0 0
      %7014 = vmatmul.mubr.bf16.gmra.mxu0 %v6595
      %v7015 = vpop.f32.mrf.mxu0
      %v7016 = vadd.f32 0.0, %v7015
      %v7017 = vpop.f32.mrf.mxu0
      %v7018 = vpop.f32.mrf.mxu0
      %v7019 = vadd.f32 0.0, %v7018
      %v7020 = vpop.f32.mrf.mxu0
      %7021 = vmatprep.mubr.bf16.mxu0 0
      %7022 = vmatmul.mubr.bf16.gmra.mxu0 %v6598
      %v7023 = vpop.f32.mrf.mxu0
      %v7024 = vadd.f32 0.0, %v7023
      %v7025 = vpop.f32.mrf.mxu0
      %v7026 = vpop.f32.mrf.mxu0
      %v7027 = vadd.f32 0.0, %v7026
      %v7028 = vpop.f32.mrf.mxu0
      %7029 = vmatprep.mubr.bf16.mxu0 0
      %7030 = vmatmul.mubr.bf16.gmra.mxu0 %v6601
      %v7031 = vpop.f32.mrf.mxu0
      %v7032 = vadd.f32 0.0, %v7031
      %v7033 = vpop.f32.mrf.mxu0
      %v7034 = vpop.f32.mrf.mxu0
      %v7035 = vadd.f32 0.0, %v7034
      %v7036 = vpop.f32.mrf.mxu0
      %7037 = vmatprep.mubr.bf16.mxu0 0
      %7038 = vmatmul.mubr.bf16.gmra.mxu0 %v6604
      %v7039 = vpop.f32.mrf.mxu0
      %v7040 = vadd.f32 0.0, %v7039
      %v7041 = vpop.f32.mrf.mxu0
      %v7042 = vpop.f32.mrf.mxu0
      %v7043 = vadd.f32 0.0, %v7042
      %v7044 = vpop.f32.mrf.mxu0
      %7045 = vmatprep.mubr.bf16.mxu0 0
      %7046 = vmatmul.mubr.bf16.gmra.mxu0 %v6607
      %v7047 = vpop.f32.mrf.mxu0
      %v7048 = vadd.f32 0.0, %v7047
      %v7049 = vpop.f32.mrf.mxu0
      %v7050 = vpop.f32.mrf.mxu0
      %v7051 = vadd.f32 0.0, %v7050
      %v7052 = vpop.f32.mrf.mxu0
      %7053 = vmatprep.mubr.bf16.mxu0 0
      %7054 = vmatmul.mubr.bf16.gmra.mxu0 %v6610
      %v7055 = vpop.f32.mrf.mxu0
      %v7056 = vadd.f32 0.0, %v7055
      %v7057 = vpop.f32.mrf.mxu0
      %v7058 = vpop.f32.mrf.mxu0
      %v7059 = vadd.f32 0.0, %v7058
      %v7060 = vpop.f32.mrf.mxu0
      %7061 = vmatprep.mubr.bf16.mxu0 0
      %7062 = vmatmul.mubr.bf16.gmra.mxu0 %v6613
      %v7063 = vpop.f32.mrf.mxu0
      %v7064 = vadd.f32 0.0, %v7063
      %v7065 = vpop.f32.mrf.mxu0
      %v7066 = vpop.f32.mrf.mxu0
      %v7067 = vadd.f32 0.0, %v7066
      %v7068 = vpop.f32.mrf.mxu0
      %7069 = vmatprep.mubr.bf16.mxu0 0
      %7070 = vmatmul.mubr.bf16.gmra.mxu0 %v6616
      %v7071 = vpop.f32.mrf.mxu0
      %v7072 = vadd.f32 0.0, %v7071
      %v7073 = vpop.f32.mrf.mxu0
      %v7074 = vpop.f32.mrf.mxu0
      %v7075 = vadd.f32 0.0, %v7074
      %v7076 = vpop.f32.mrf.mxu0
      %7077 = vmatprep.mubr.bf16.mxu0 0
      %7078 = vmatmul.mubr.bf16.gmra.mxu0 %v6893
      %v7079 = vpop.f32.mrf.mxu0
      %v7080 = vadd.f32 0.0, %v7079
      %v7081 = vpop.f32.mrf.mxu0
      %v7082 = vpop.f32.mrf.mxu0
      %v7083 = vadd.f32 0.0, %v7082
      %v7084 = vpop.f32.mrf.mxu0
      %7085 = vmatprep.mubr.bf16.mxu0 0
      %7086 = vmatmul.mubr.bf16.gmra.mxu0 %v6896
      %v7087 = vpop.f32.mrf.mxu0
      %v7088 = vadd.f32 0.0, %v7087
      %v7089 = vpop.f32.mrf.mxu0
      %v7090 = vpop.f32.mrf.mxu0
      %v7091 = vadd.f32 0.0, %v7090
      %v7092 = vpop.f32.mrf.mxu0
      %7093 = vmatprep.mubr.bf16.mxu0 0
      %7094 = vmatmul.mubr.bf16.gmra.mxu0 %v6899
      %v7095 = vpop.f32.mrf.mxu0
      %v7096 = vadd.f32 0.0, %v7095
      %v7097 = vpop.f32.mrf.mxu0
      %v7098 = vpop.f32.mrf.mxu0
      %v7099 = vpop.f32.mrf.mxu0
      %7100 = vdwg.mxu0
      %v7101 = vadd.f32 %v6824, %v6936
      %v7102 = vadd.f32 %v6825, %v6939
      %v7103 = vadd.f32 %v6826, %v6944
      %v7104 = vadd.f32 %v6827, %v6947
      %v7105 = vadd.f32 %v6828, %v6952
      %v7106 = vadd.f32 %v6829, %v6955
      %v7107 = vadd.f32 %v6830, %v6960
      %v7108 = vadd.f32 %v6831, %v6963
      %v7109 = vadd.f32 %v6832, %v6968
      %v7110 = vadd.f32 %v6833, %v6971
      %v7111 = vadd.f32 %v6834, %v6976
      %v7112 = vadd.f32 %v6835, %v6979
      %v7113 = vadd.f32 %v6836, %v6984
      %v7114 = vadd.f32 %v6837, %v6987
      %v7115 = vadd.f32 %v6838, %v6992
      %v7116 = vadd.f32 %v6839, %v6995
      %v7117 = vadd.f32 %v6840, %v7000
      %v7118 = vadd.f32 %v6841, %v7003
      %v7119 = vadd.f32 %v6842, %v7008
      %v7120 = vadd.f32 %v6843, %v7011
      %v7121 = vadd.f32 %v6844, %v7016
      %v7122 = vadd.f32 %v6845, %v7019
      %v7123 = vadd.f32 %v6846, %v7024
      %v7124 = vadd.f32 %v6847, %v7027
      %v7125 = vadd.f32 %v6848, %v7032
      %v7126 = vadd.f32 %v6849, %v7035
      %v7127 = vadd.f32 %v6850, %v7040
      %v7128 = vadd.f32 %v6851, %v7043
      %v7129 = vadd.f32 %v6852, %v7048
      %v7130 = vadd.f32 %v6853, %v7051
      %v7131 = vadd.f32 %v6854, %v7056
      %v7132 = vadd.f32 %v6855, %v7059
      %v7133 = vadd.f32 %v6856, %v7064
      %v7134 = vadd.f32 %v6857, %v7067
      %v7135 = vadd.f32 %v6858, %v7072
      %v7136 = vadd.f32 %v6859, %v7075
      %v7137 = vadd.f32 %v6860, %v7080
      %v7138 = vadd.f32 %v6861, %v7083
      %v7139 = vadd.f32 %v6862, %v7088
      %v7140 = vadd.f32 %v6863, %v7091
      %v7141 = vadd.f32 %v6864, %v7096
      %s7142 = scalar_lea.vmem %s3, 112
      %v7143 = vld [vmem:[%s7142] sm:$0xf]
      %v7144 = vld [vmem:[%s7142 + $0x4] sm:$0xf]
      %v7145 = vld [vmem:[%s7142 + $0x8] sm:$0xf]
      %v7146 = vld [vmem:[%s7142 + $0xc] sm:$0xf]
      %v7148 = vunpack.c.l.b16 %v4641
      %v7149 = vpack.c.b16 %v7148, %v6873
      %v7150 = vrot.slane %v4774, 2
      %v7151 = vrot.slane %v4770, 3
      %v7152 = vor.u32 %v7150, %v7151
      %v7153 = vrot.slane %v4782, 2
      %v7154 = vrot.slane %v4778, 3
      %v7155 = vor.u32 %v7153, %v7154
      %v7156 = vsel %vm2725, %v7152, %v7155
      %v7157 = vrot.slane %v4790, 2
      %v7158 = vrot.slane %v4786, 3
      %v7159 = vor.u32 %v7157, %v7158
      %v7160 = vsel %vm2725, %v7155, %v7159
      %v7161 = vrot.slane %v4798, 2
      %v7162 = vrot.slane %v4794, 3
      %v7163 = vor.u32 %v7161, %v7162
      %v7164 = vsel %vm2725, %v7159, %v7163
      %v7165 = vrot.slane %v4806, 2
      %v7166 = vrot.slane %v4802, 3
      %v7167 = vor.u32 %v7165, %v7166
      %v7168 = vsel %vm2725, %v7163, %v7167
      %v7169 = vrot.slane %v4814, 2
      %v7170 = vrot.slane %v4810, 3
      %v7171 = vor.u32 %v7169, %v7170
      %v7172 = vsel %vm2725, %v7167, %v7171
      %v7173 = vrot.slane %v4822, 2
      %v7174 = vrot.slane %v4818, 3
      %v7175 = vor.u32 %v7173, %v7174
      %v7176 = vsel %vm2725, %v7171, %v7175
      %v7177 = vrot.slane %v4830, 2
      %v7178 = vrot.slane %v4826, 3
      %v7179 = vor.u32 %v7177, %v7178
      %v7180 = vsel %vm2725, %v7175, %v7179
      %v7181 = vrot.slane %v4838, 2
      %v7182 = vrot.slane %v4834, 3
      %v7183 = vor.u32 %v7181, %v7182
      %v7184 = vsel %vm2725, %v7179, %v7183
      %v7185 = vrot.slane %v4846, 2
      %v7186 = vrot.slane %v4842, 3
      %v7187 = vor.u32 %v7185, %v7186
      %v7188 = vsel %vm2725, %v7183, %v7187
      %v7189 = vrot.slane %v4854, 2
      %v7190 = vrot.slane %v4850, 3
      %v7191 = vor.u32 %v7189, %v7190
      %v7192 = vsel %vm2725, %v7187, %v7191
      %v7193 = vrot.slane %v4862, 2
      %v7194 = vrot.slane %v4858, 3
      %v7195 = vor.u32 %v7193, %v7194
      %v7196 = vsel %vm2725, %v7191, %v7195
      %v7197 = vrot.slane %v4870, 2
      %v7198 = vrot.slane %v4866, 3
      %v7199 = vor.u32 %v7197, %v7198
      %v7200 = vsel %vm2725, %v7195, %v7199
      %v7201 = vrot.slane %v4878, 2
      %v7202 = vrot.slane %v4874, 3
      %v7203 = vor.u32 %v7201, %v7202
      %v7204 = vsel %vm2725, %v7199, %v7203
      %v7205 = vrot.slane %v4886, 2
      %v7206 = vrot.slane %v4882, 3
      %v7207 = vor.u32 %v7205, %v7206
      %v7208 = vsel %vm2725, %v7203, %v7207
      %v7209 = vrot.slane %v4894, 2
      %v7210 = vrot.slane %v4890, 3
      %v7211 = vor.u32 %v7209, %v7210
      %v7212 = vsel %vm2725, %v7207, %v7211
      %v7213 = vrot.slane %v4902, 2
      %v7214 = vrot.slane %v4898, 3
      %v7215 = vor.u32 %v7213, %v7214
      %v7216 = vsel %vm2725, %v7211, %v7215
      %v7217 = vrot.slane %v4910, 2
      %v7218 = vrot.slane %v4906, 3
      %v7219 = vor.u32 %v7217, %v7218
      %v7220 = vsel %vm2725, %v7215, %v7219
      %v7221 = vrot.slane %v6170, 2
      %v7222 = vrot.slane %v6173, 3
      %v7223 = vor.u32 %v7221, %v7222
      %v7224 = vsel %vm2725, %v7219, %v7223
      %v7226 = vshrl.u32 %v6874, 16
      %v7228 = vrot.slane %v7226, 2
      %v7229 = vshll.u32 %v6874, 16
      %v7231 = vrot.slane %v7229, 3
      %v7232 = vor.u32 %v7228, %v7231
      %v7233 = vsel %vm2725, %v7223, %v7232
      %v7235 = vshrl.u32 %v7149, 16
      %v7237 = vrot.slane %v7235, 2
      %v7238 = vshll.u32 %v7149, 16
      %v7240 = vrot.slane %v7238, 3
      %v7241 = vor.u32 %v7237, %v7240
      %v7242 = vsel %vm2725, %v7232, %v7241
      %v7247 = vunpack.c.l.b16 %v7143
      %v7248 = vunpack.c.l.b16 %v7144
      %v7249 = vunpack.c.l.b16 %v7145
      %v7250 = vunpack.c.l.b16 %v7146
      %v7251 = vpack.c.b16 %v7248, %v7247
      %v7252 = vpack.c.b16 %v7250, %v7249
      %v7256 = vsel %vm511, %v7156, 0
      %v7259 = vsel %vm511, %v7160, 0
      %v7262 = vsel %vm511, %v7164, 0
      %v7265 = vsel %vm511, %v7168, 0
      %v7268 = vsel %vm511, %v7172, 0
      %v7271 = vsel %vm511, %v7176, 0
      %v7274 = vsel %vm511, %v7180, 0
      %v7277 = vsel %vm511, %v7184, 0
      %v7280 = vsel %vm511, %v7188, 0
      %v7283 = vsel %vm511, %v7192, 0
      %v7286 = vsel %vm511, %v7196, 0
      %v7289 = vsel %vm511, %v7200, 0
      %v7292 = vsel %vm511, %v7204, 0
      %v7295 = vsel %vm511, %v7208, 0
      %v7298 = vsel %vm511, %v7212, 0
      %v7301 = vsel %vm511, %v7216, 0
      %v7304 = vsel %vm511, %v7220, 0
      %v7307 = vsel %vm511, %v7224, 0
      %v7310 = vsel %vm511, %v7233, 0
      %v7313 = vsel %vm511, %v7242, 0
      %v7316 = vsel %vm511, %v7241, 0
      %7318 = vmatprep.subr.bf16.mxu0 0
      %7319 = vmatpush1.bf16.msra.mxu0 0
      %7320 = vmatprep.subr.bf16.mxu0 0
      %7321 = vmatpush1.bf16.msra.mxu0 0
      %7322 = vmatprep.subr.bf16.mxu0 0
      %7323 = vmatpush1.bf16.msra.mxu0 0
      %7324 = vmatprep.subr.bf16.mxu0 0
      %7325 = vmatpush1.bf16.msra.mxu0 0
      %7326 = vmatprep.subr.bf16.mxu0 0
      %7327 = vmatpush1.bf16.msra.mxu0 0
      %7328 = vmatprep.subr.bf16.mxu0 0
      %7329 = vmatpush1.bf16.msra.mxu0 0
      %7330 = vmatprep.subr.bf16.mxu0 0
      %7331 = vmatpush1.bf16.msra.mxu0 %v7252
      %7332 = vmatprep.subr.bf16.mxu0 0
      %7333 = vmatpush1.bf16.msra.mxu0 %v7251
      %7334 = vmatprep.subr.bf16.mxu0 0
      %7335 = vmatpush2.bf16.msra.mxu0 0
      %7336 = vmatprep.subr.bf16.mxu0 0
      %7337 = vmatpush2.bf16.msra.mxu0 0
      %7338 = vmatprep.subr.bf16.mxu0 0
      %7339 = vmatpush2.bf16.msra.mxu0 0
      %7340 = vmatprep.subr.bf16.mxu0 0
      %7341 = vmatpush2.bf16.msra.mxu0 0
      %7342 = vmatprep.subr.bf16.mxu0 0
      %7343 = vmatpush2.bf16.msra.mxu0 0
      %7344 = vmatprep.subr.bf16.mxu0 0
      %7345 = vmatpush2.bf16.msra.mxu0 0
      %7346 = vmatprep.subr.bf16.mxu0 0
      %7347 = vmatpush2.bf16.msra.mxu0 0
      %7348 = vmatprep.subr.bf16.mxu0 0
      %7349 = vmatpush2.bf16.msra.mxu0 0
      %7350 = vmatprep.mubr.bf16.mxu0 0
      %7351 = vmatmul.mubr.bf16.gmra.mxu0 %v7256
      %v7352 = vpop.f32.mrf.mxu0
      %v7353 = vadd.f32 0.0, %v7352
      %v7354 = vpop.f32.mrf.mxu0
      %v7355 = vpop.f32.mrf.mxu0
      %v7356 = vadd.f32 0.0, %v7355
      %v7357 = vpop.f32.mrf.mxu0
      %7358 = vmatprep.mubr.bf16.mxu0 0
      %7359 = vmatmul.mubr.bf16.gmra.mxu0 %v7259
      %v7360 = vpop.f32.mrf.mxu0
      %v7361 = vadd.f32 0.0, %v7360
      %v7362 = vpop.f32.mrf.mxu0
      %v7363 = vpop.f32.mrf.mxu0
      %v7364 = vadd.f32 0.0, %v7363
      %v7365 = vpop.f32.mrf.mxu0
      %7366 = vmatprep.mubr.bf16.mxu0 0
      %7367 = vmatmul.mubr.bf16.gmra.mxu0 %v7262
      %v7368 = vpop.f32.mrf.mxu0
      %v7369 = vadd.f32 0.0, %v7368
      %v7370 = vpop.f32.mrf.mxu0
      %v7371 = vpop.f32.mrf.mxu0
      %v7372 = vadd.f32 0.0, %v7371
      %v7373 = vpop.f32.mrf.mxu0
      %7374 = vmatprep.mubr.bf16.mxu0 0
      %7375 = vmatmul.mubr.bf16.gmra.mxu0 %v7265
      %v7376 = vpop.f32.mrf.mxu0
      %v7377 = vadd.f32 0.0, %v7376
      %v7378 = vpop.f32.mrf.mxu0
      %v7379 = vpop.f32.mrf.mxu0
      %v7380 = vadd.f32 0.0, %v7379
      %v7381 = vpop.f32.mrf.mxu0
      %7382 = vmatprep.mubr.bf16.mxu0 0
      %7383 = vmatmul.mubr.bf16.gmra.mxu0 %v7268
      %v7384 = vpop.f32.mrf.mxu0
      %v7385 = vadd.f32 0.0, %v7384
      %v7386 = vpop.f32.mrf.mxu0
      %v7387 = vpop.f32.mrf.mxu0
      %v7388 = vadd.f32 0.0, %v7387
      %v7389 = vpop.f32.mrf.mxu0
      %7390 = vmatprep.mubr.bf16.mxu0 0
      %7391 = vmatmul.mubr.bf16.gmra.mxu0 %v7271
      %v7392 = vpop.f32.mrf.mxu0
      %v7393 = vadd.f32 0.0, %v7392
      %v7394 = vpop.f32.mrf.mxu0
      %v7395 = vpop.f32.mrf.mxu0
      %v7396 = vadd.f32 0.0, %v7395
      %v7397 = vpop.f32.mrf.mxu0
      %7398 = vmatprep.mubr.bf16.mxu0 0
      %7399 = vmatmul.mubr.bf16.gmra.mxu0 %v7274
      %v7400 = vpop.f32.mrf.mxu0
      %v7401 = vadd.f32 0.0, %v7400
      %v7402 = vpop.f32.mrf.mxu0
      %v7403 = vpop.f32.mrf.mxu0
      %v7404 = vadd.f32 0.0, %v7403
      %v7405 = vpop.f32.mrf.mxu0
      %7406 = vmatprep.mubr.bf16.mxu0 0
      %7407 = vmatmul.mubr.bf16.gmra.mxu0 %v7277
      %v7408 = vpop.f32.mrf.mxu0
      %v7409 = vadd.f32 0.0, %v7408
      %v7410 = vpop.f32.mrf.mxu0
      %v7411 = vpop.f32.mrf.mxu0
      %v7412 = vadd.f32 0.0, %v7411
      %v7413 = vpop.f32.mrf.mxu0
      %7414 = vmatprep.mubr.bf16.mxu0 0
      %7415 = vmatmul.mubr.bf16.gmra.mxu0 %v7280
      %v7416 = vpop.f32.mrf.mxu0
      %v7417 = vadd.f32 0.0, %v7416
      %v7418 = vpop.f32.mrf.mxu0
      %v7419 = vpop.f32.mrf.mxu0
      %v7420 = vadd.f32 0.0, %v7419
      %v7421 = vpop.f32.mrf.mxu0
      %7422 = vmatprep.mubr.bf16.mxu0 0
      %7423 = vmatmul.mubr.bf16.gmra.mxu0 %v7283
      %v7424 = vpop.f32.mrf.mxu0
      %v7425 = vadd.f32 0.0, %v7424
      %v7426 = vpop.f32.mrf.mxu0
      %v7427 = vpop.f32.mrf.mxu0
      %v7428 = vadd.f32 0.0, %v7427
      %v7429 = vpop.f32.mrf.mxu0
      %7430 = vmatprep.mubr.bf16.mxu0 0
      %7431 = vmatmul.mubr.bf16.gmra.mxu0 %v7286
      %v7432 = vpop.f32.mrf.mxu0
      %v7433 = vadd.f32 0.0, %v7432
      %v7434 = vpop.f32.mrf.mxu0
      %v7435 = vpop.f32.mrf.mxu0
      %v7436 = vadd.f32 0.0, %v7435
      %v7437 = vpop.f32.mrf.mxu0
      %7438 = vmatprep.mubr.bf16.mxu0 0
      %7439 = vmatmul.mubr.bf16.gmra.mxu0 %v7289
      %v7440 = vpop.f32.mrf.mxu0
      %v7441 = vadd.f32 0.0, %v7440
      %v7442 = vpop.f32.mrf.mxu0
      %v7443 = vpop.f32.mrf.mxu0
      %v7444 = vadd.f32 0.0, %v7443
      %v7445 = vpop.f32.mrf.mxu0
      %7446 = vmatprep.mubr.bf16.mxu0 0
      %7447 = vmatmul.mubr.bf16.gmra.mxu0 %v7292
      %v7448 = vpop.f32.mrf.mxu0
      %v7449 = vadd.f32 0.0, %v7448
      %v7450 = vpop.f32.mrf.mxu0
      %v7451 = vpop.f32.mrf.mxu0
      %v7452 = vadd.f32 0.0, %v7451
      %v7453 = vpop.f32.mrf.mxu0
      %7454 = vmatprep.mubr.bf16.mxu0 0
      %7455 = vmatmul.mubr.bf16.gmra.mxu0 %v7295
      %v7456 = vpop.f32.mrf.mxu0
      %v7457 = vadd.f32 0.0, %v7456
      %v7458 = vpop.f32.mrf.mxu0
      %v7459 = vpop.f32.mrf.mxu0
      %v7460 = vadd.f32 0.0, %v7459
      %v7461 = vpop.f32.mrf.mxu0
      %7462 = vmatprep.mubr.bf16.mxu0 0
      %7463 = vmatmul.mubr.bf16.gmra.mxu0 %v7298
      %v7464 = vpop.f32.mrf.mxu0
      %v7465 = vadd.f32 0.0, %v7464
      %v7466 = vpop.f32.mrf.mxu0
      %v7467 = vpop.f32.mrf.mxu0
      %v7468 = vadd.f32 0.0, %v7467
      %v7469 = vpop.f32.mrf.mxu0
      %7470 = vmatprep.mubr.bf16.mxu0 0
      %7471 = vmatmul.mubr.bf16.gmra.mxu0 %v7301
      %v7472 = vpop.f32.mrf.mxu0
      %v7473 = vadd.f32 0.0, %v7472
      %v7474 = vpop.f32.mrf.mxu0
      %v7475 = vpop.f32.mrf.mxu0
      %v7476 = vadd.f32 0.0, %v7475
      %v7477 = vpop.f32.mrf.mxu0
      %7478 = vmatprep.mubr.bf16.mxu0 0
      %7479 = vmatmul.mubr.bf16.gmra.mxu0 %v7304
      %v7480 = vpop.f32.mrf.mxu0
      %v7481 = vadd.f32 0.0, %v7480
      %v7482 = vpop.f32.mrf.mxu0
      %v7483 = vpop.f32.mrf.mxu0
      %v7484 = vadd.f32 0.0, %v7483
      %v7485 = vpop.f32.mrf.mxu0
      %7486 = vmatprep.mubr.bf16.mxu0 0
      %7487 = vmatmul.mubr.bf16.gmra.mxu0 %v7307
      %v7488 = vpop.f32.mrf.mxu0
      %v7489 = vadd.f32 0.0, %v7488
      %v7490 = vpop.f32.mrf.mxu0
      %v7491 = vpop.f32.mrf.mxu0
      %v7492 = vadd.f32 0.0, %v7491
      %v7493 = vpop.f32.mrf.mxu0
      %7494 = vmatprep.mubr.bf16.mxu0 0
      %7495 = vmatmul.mubr.bf16.gmra.mxu0 %v7310
      %v7496 = vpop.f32.mrf.mxu0
      %v7497 = vadd.f32 0.0, %v7496
      %v7498 = vpop.f32.mrf.mxu0
      %v7499 = vpop.f32.mrf.mxu0
      %v7500 = vadd.f32 0.0, %v7499
      %v7501 = vpop.f32.mrf.mxu0
      %7502 = vmatprep.mubr.bf16.mxu0 0
      %7503 = vmatmul.mubr.bf16.gmra.mxu0 %v7313
      %v7504 = vpop.f32.mrf.mxu0
      %v7505 = vadd.f32 0.0, %v7504
      %v7506 = vpop.f32.mrf.mxu0
      %v7507 = vpop.f32.mrf.mxu0
      %v7508 = vadd.f32 0.0, %v7507
      %v7509 = vpop.f32.mrf.mxu0
      %7510 = vmatprep.mubr.bf16.mxu0 0
      %7511 = vmatmul.mubr.bf16.gmra.mxu0 %v7316
      %v7512 = vpop.f32.mrf.mxu0
      %v7513 = vadd.f32 0.0, %v7512
      %v7514 = vpop.f32.mrf.mxu0
      %v7515 = vpop.f32.mrf.mxu0
      %v7516 = vpop.f32.mrf.mxu0
      %7517 = vdwg.mxu0
      %v7518 = vadd.f32 %v7101, %v7353
      %v7519 = vadd.f32 %v7102, %v7356
      %v7520 = vadd.f32 %v7103, %v7361
      %v7521 = vadd.f32 %v7104, %v7364
      %v7522 = vadd.f32 %v7105, %v7369
      %v7523 = vadd.f32 %v7106, %v7372
      %v7524 = vadd.f32 %v7107, %v7377
      %v7525 = vadd.f32 %v7108, %v7380
      %v7526 = vadd.f32 %v7109, %v7385
      %v7527 = vadd.f32 %v7110, %v7388
      %v7528 = vadd.f32 %v7111, %v7393
      %v7529 = vadd.f32 %v7112, %v7396
      %v7530 = vadd.f32 %v7113, %v7401
      %v7531 = vadd.f32 %v7114, %v7404
      %v7532 = vadd.f32 %v7115, %v7409
      %v7533 = vadd.f32 %v7116, %v7412
      %v7534 = vadd.f32 %v7117, %v7417
      %v7535 = vadd.f32 %v7118, %v7420
      %v7536 = vadd.f32 %v7119, %v7425
      %v7537 = vadd.f32 %v7120, %v7428
      %v7538 = vadd.f32 %v7121, %v7433
      %v7539 = vadd.f32 %v7122, %v7436
      %v7540 = vadd.f32 %v7123, %v7441
      %v7541 = vadd.f32 %v7124, %v7444
      %v7542 = vadd.f32 %v7125, %v7449
      %v7543 = vadd.f32 %v7126, %v7452
      %v7544 = vadd.f32 %v7127, %v7457
      %v7545 = vadd.f32 %v7128, %v7460
      %v7546 = vadd.f32 %v7129, %v7465
      %v7547 = vadd.f32 %v7130, %v7468
      %v7548 = vadd.f32 %v7131, %v7473
      %v7549 = vadd.f32 %v7132, %v7476
      %v7550 = vadd.f32 %v7133, %v7481
      %v7551 = vadd.f32 %v7134, %v7484
      %v7552 = vadd.f32 %v7135, %v7489
      %v7553 = vadd.f32 %v7136, %v7492
      %v7554 = vadd.f32 %v7137, %v7497
      %v7555 = vadd.f32 %v7138, %v7500
      %v7556 = vadd.f32 %v7139, %v7505
      %v7557 = vadd.f32 %v7140, %v7508
      %v7558 = vadd.f32 %v7141, %v7513
      %s7559 = scalar_lea.vmem %s3, 128
      %v7560 = vld [vmem:[%s7559] sm:$0xf]
      %v7561 = vld [vmem:[%s7559 + $0x4] sm:$0xf]
      %v7562 = vld [vmem:[%s7559 + $0x8] sm:$0xf]
      %v7563 = vld [vmem:[%s7559 + $0xc] sm:$0xf]
      %v7564 = vrot.slane %v4735, 3
      %v7565 = vrot.slane %v4736, 3
      %v7566 = vsel %vm3135, %v7564, %v7565
      %v7567 = vrot.slane %v4737, 3
      %v7568 = vsel %vm3135, %v7565, %v7567
      %v7569 = vrot.slane %v4738, 3
      %v7570 = vsel %vm3135, %v7567, %v7569
      %v7571 = vrot.slane %v4739, 3
      %v7572 = vsel %vm3135, %v7569, %v7571
      %v7573 = vrot.slane %v4740, 3
      %v7574 = vsel %vm3135, %v7571, %v7573
      %v7575 = vrot.slane %v4741, 3
      %v7576 = vsel %vm3135, %v7573, %v7575
      %v7577 = vrot.slane %v4742, 3
      %v7578 = vsel %vm3135, %v7575, %v7577
      %v7579 = vrot.slane %v4743, 3
      %v7580 = vsel %vm3135, %v7577, %v7579
      %v7581 = vrot.slane %v4744, 3
      %v7582 = vsel %vm3135, %v7579, %v7581
      %v7583 = vrot.slane %v4745, 3
      %v7584 = vsel %vm3135, %v7581, %v7583
      %v7585 = vrot.slane %v4746, 3
      %v7586 = vsel %vm3135, %v7583, %v7585
      %v7587 = vrot.slane %v4747, 3
      %v7588 = vsel %vm3135, %v7585, %v7587
      %v7589 = vrot.slane %v4748, 3
      %v7590 = vsel %vm3135, %v7587, %v7589
      %v7591 = vrot.slane %v4749, 3
      %v7592 = vsel %vm3135, %v7589, %v7591
      %v7593 = vrot.slane %v4750, 3
      %v7594 = vsel %vm3135, %v7591, %v7593
      %v7595 = vrot.slane %v4751, 3
      %v7596 = vsel %vm3135, %v7593, %v7595
      %v7597 = vrot.slane %v4752, 3
      %v7598 = vsel %vm3135, %v7595, %v7597
      %v7599 = vrot.slane %v5821, 3
      %v7600 = vsel %vm3135, %v7597, %v7599
      %v7601 = vrot.slane %v6874, 3
      %v7602 = vsel %vm3135, %v7599, %v7601
      %v7603 = vrot.slane %v7149, 3
      %v7604 = vsel %vm3135, %v7601, %v7603
      %v7609 = vunpack.c.l.b16 %v7560
      %v7610 = vunpack.c.l.b16 %v7561
      %v7611 = vunpack.c.l.b16 %v7562
      %v7612 = vunpack.c.l.b16 %v7563
      %v7613 = vpack.c.b16 %v7610, %v7609
      %v7614 = vpack.c.b16 %v7612, %v7611
      %v7618 = vsel %vm511, %v7566, 0
      %v7621 = vsel %vm511, %v7568, 0
      %v7624 = vsel %vm511, %v7570, 0
      %v7627 = vsel %vm511, %v7572, 0
      %v7630 = vsel %vm511, %v7574, 0
      %v7633 = vsel %vm511, %v7576, 0
      %v7636 = vsel %vm511, %v7578, 0
      %v7639 = vsel %vm511, %v7580, 0
      %v7642 = vsel %vm511, %v7582, 0
      %v7645 = vsel %vm511, %v7584, 0
      %v7648 = vsel %vm511, %v7586, 0
      %v7651 = vsel %vm511, %v7588, 0
      %v7654 = vsel %vm511, %v7590, 0
      %v7657 = vsel %vm511, %v7592, 0
      %v7660 = vsel %vm511, %v7594, 0
      %v7663 = vsel %vm511, %v7596, 0
      %v7666 = vsel %vm511, %v7598, 0
      %v7669 = vsel %vm511, %v7600, 0
      %v7672 = vsel %vm511, %v7602, 0
      %v7675 = vsel %vm511, %v7604, 0
      %v7678 = vsel %vm511, %v7603, 0
      %7680 = vmatprep.subr.bf16.mxu0 0
      %7681 = vmatpush1.bf16.msra.mxu0 0
      %7682 = vmatprep.subr.bf16.mxu0 0
      %7683 = vmatpush1.bf16.msra.mxu0 0
      %7684 = vmatprep.subr.bf16.mxu0 0
      %7685 = vmatpush1.bf16.msra.mxu0 0
      %7686 = vmatprep.subr.bf16.mxu0 0
      %7687 = vmatpush1.bf16.msra.mxu0 0
      %7688 = vmatprep.subr.bf16.mxu0 0
      %7689 = vmatpush1.bf16.msra.mxu0 0
      %7690 = vmatprep.subr.bf16.mxu0 0
      %7691 = vmatpush1.bf16.msra.mxu0 0
      %7692 = vmatprep.subr.bf16.mxu0 0
      %7693 = vmatpush1.bf16.msra.mxu0 %v7614
      %7694 = vmatprep.subr.bf16.mxu0 0
      %7695 = vmatpush1.bf16.msra.mxu0 %v7613
      %7696 = vmatprep.subr.bf16.mxu0 0
      %7697 = vmatpush2.bf16.msra.mxu0 0
      %7698 = vmatprep.subr.bf16.mxu0 0
      %7699 = vmatpush2.bf16.msra.mxu0 0
      %7700 = vmatprep.subr.bf16.mxu0 0
      %7701 = vmatpush2.bf16.msra.mxu0 0
      %7702 = vmatprep.subr.bf16.mxu0 0
      %7703 = vmatpush2.bf16.msra.mxu0 0
      %7704 = vmatprep.subr.bf16.mxu0 0
      %7705 = vmatpush2.bf16.msra.mxu0 0
      %7706 = vmatprep.subr.bf16.mxu0 0
      %7707 = vmatpush2.bf16.msra.mxu0 0
      %7708 = vmatprep.subr.bf16.mxu0 0
      %7709 = vmatpush2.bf16.msra.mxu0 0
      %7710 = vmatprep.subr.bf16.mxu0 0
      %7711 = vmatpush2.bf16.msra.mxu0 0
      %7712 = vmatprep.mubr.bf16.mxu0 0
      %7713 = vmatmul.mubr.bf16.gmra.mxu0 %v7618
      %v7714 = vpop.f32.mrf.mxu0
      %v7715 = vadd.f32 0.0, %v7714
      %v7716 = vpop.f32.mrf.mxu0
      %v7717 = vpop.f32.mrf.mxu0
      %v7718 = vadd.f32 0.0, %v7717
      %v7719 = vpop.f32.mrf.mxu0
      %7720 = vmatprep.mubr.bf16.mxu0 0
      %7721 = vmatmul.mubr.bf16.gmra.mxu0 %v7621
      %v7722 = vpop.f32.mrf.mxu0
      %v7723 = vadd.f32 0.0, %v7722
      %v7724 = vpop.f32.mrf.mxu0
      %v7725 = vpop.f32.mrf.mxu0
      %v7726 = vadd.f32 0.0, %v7725
      %v7727 = vpop.f32.mrf.mxu0
      %7728 = vmatprep.mubr.bf16.mxu0 0
      %7729 = vmatmul.mubr.bf16.gmra.mxu0 %v7624
      %v7730 = vpop.f32.mrf.mxu0
      %v7731 = vadd.f32 0.0, %v7730
      %v7732 = vpop.f32.mrf.mxu0
      %v7733 = vpop.f32.mrf.mxu0
      %v7734 = vadd.f32 0.0, %v7733
      %v7735 = vpop.f32.mrf.mxu0
      %7736 = vmatprep.mubr.bf16.mxu0 0
      %7737 = vmatmul.mubr.bf16.gmra.mxu0 %v7627
      %v7738 = vpop.f32.mrf.mxu0
      %v7739 = vadd.f32 0.0, %v7738
      %v7740 = vpop.f32.mrf.mxu0
      %v7741 = vpop.f32.mrf.mxu0
      %v7742 = vadd.f32 0.0, %v7741
      %v7743 = vpop.f32.mrf.mxu0
      %7744 = vmatprep.mubr.bf16.mxu0 0
      %7745 = vmatmul.mubr.bf16.gmra.mxu0 %v7630
      %v7746 = vpop.f32.mrf.mxu0
      %v7747 = vadd.f32 0.0, %v7746
      %v7748 = vpop.f32.mrf.mxu0
      %v7749 = vpop.f32.mrf.mxu0
      %v7750 = vadd.f32 0.0, %v7749
      %v7751 = vpop.f32.mrf.mxu0
      %7752 = vmatprep.mubr.bf16.mxu0 0
      %7753 = vmatmul.mubr.bf16.gmra.mxu0 %v7633
      %v7754 = vpop.f32.mrf.mxu0
      %v7755 = vadd.f32 0.0, %v7754
      %v7756 = vpop.f32.mrf.mxu0
      %v7757 = vpop.f32.mrf.mxu0
      %v7758 = vadd.f32 0.0, %v7757
      %v7759 = vpop.f32.mrf.mxu0
      %7760 = vmatprep.mubr.bf16.mxu0 0
      %7761 = vmatmul.mubr.bf16.gmra.mxu0 %v7636
      %v7762 = vpop.f32.mrf.mxu0
      %v7763 = vadd.f32 0.0, %v7762
      %v7764 = vpop.f32.mrf.mxu0
      %v7765 = vpop.f32.mrf.mxu0
      %v7766 = vadd.f32 0.0, %v7765
      %v7767 = vpop.f32.mrf.mxu0
      %7768 = vmatprep.mubr.bf16.mxu0 0
      %7769 = vmatmul.mubr.bf16.gmra.mxu0 %v7639
      %v7770 = vpop.f32.mrf.mxu0
      %v7771 = vadd.f32 0.0, %v7770
      %v7772 = vpop.f32.mrf.mxu0
      %v7773 = vpop.f32.mrf.mxu0
      %v7774 = vadd.f32 0.0, %v7773
      %v7775 = vpop.f32.mrf.mxu0
      %7776 = vmatprep.mubr.bf16.mxu0 0
      %7777 = vmatmul.mubr.bf16.gmra.mxu0 %v7642
      %v7778 = vpop.f32.mrf.mxu0
      %v7779 = vadd.f32 0.0, %v7778
      %v7780 = vpop.f32.mrf.mxu0
      %v7781 = vpop.f32.mrf.mxu0
      %v7782 = vadd.f32 0.0, %v7781
      %v7783 = vpop.f32.mrf.mxu0
      %7784 = vmatprep.mubr.bf16.mxu0 0
      %7785 = vmatmul.mubr.bf16.gmra.mxu0 %v7645
      %v7786 = vpop.f32.mrf.mxu0
      %v7787 = vadd.f32 0.0, %v7786
      %v7788 = vpop.f32.mrf.mxu0
      %v7789 = vpop.f32.mrf.mxu0
      %v7790 = vadd.f32 0.0, %v7789
      %v7791 = vpop.f32.mrf.mxu0
      %7792 = vmatprep.mubr.bf16.mxu0 0
      %7793 = vmatmul.mubr.bf16.gmra.mxu0 %v7648
      %v7794 = vpop.f32.mrf.mxu0
      %v7795 = vadd.f32 0.0, %v7794
      %v7796 = vpop.f32.mrf.mxu0
      %v7797 = vpop.f32.mrf.mxu0
      %v7798 = vadd.f32 0.0, %v7797
      %v7799 = vpop.f32.mrf.mxu0
      %7800 = vmatprep.mubr.bf16.mxu0 0
      %7801 = vmatmul.mubr.bf16.gmra.mxu0 %v7651
      %v7802 = vpop.f32.mrf.mxu0
      %v7803 = vadd.f32 0.0, %v7802
      %v7804 = vpop.f32.mrf.mxu0
      %v7805 = vpop.f32.mrf.mxu0
      %v7806 = vadd.f32 0.0, %v7805
      %v7807 = vpop.f32.mrf.mxu0
      %7808 = vmatprep.mubr.bf16.mxu0 0
      %7809 = vmatmul.mubr.bf16.gmra.mxu0 %v7654
      %v7810 = vpop.f32.mrf.mxu0
      %v7811 = vadd.f32 0.0, %v7810
      %v7812 = vpop.f32.mrf.mxu0
      %v7813 = vpop.f32.mrf.mxu0
      %v7814 = vadd.f32 0.0, %v7813
      %v7815 = vpop.f32.mrf.mxu0
      %7816 = vmatprep.mubr.bf16.mxu0 0
      %7817 = vmatmul.mubr.bf16.gmra.mxu0 %v7657
      %v7818 = vpop.f32.mrf.mxu0
      %v7819 = vadd.f32 0.0, %v7818
      %v7820 = vpop.f32.mrf.mxu0
      %v7821 = vpop.f32.mrf.mxu0
      %v7822 = vadd.f32 0.0, %v7821
      %v7823 = vpop.f32.mrf.mxu0
      %7824 = vmatprep.mubr.bf16.mxu0 0
      %7825 = vmatmul.mubr.bf16.gmra.mxu0 %v7660
      %v7826 = vpop.f32.mrf.mxu0
      %v7827 = vadd.f32 0.0, %v7826
      %v7828 = vpop.f32.mrf.mxu0
      %v7829 = vpop.f32.mrf.mxu0
      %v7830 = vadd.f32 0.0, %v7829
      %v7831 = vpop.f32.mrf.mxu0
      %7832 = vmatprep.mubr.bf16.mxu0 0
      %7833 = vmatmul.mubr.bf16.gmra.mxu0 %v7663
      %v7834 = vpop.f32.mrf.mxu0
      %v7835 = vadd.f32 0.0, %v7834
      %v7836 = vpop.f32.mrf.mxu0
      %v7837 = vpop.f32.mrf.mxu0
      %v7838 = vadd.f32 0.0, %v7837
      %v7839 = vpop.f32.mrf.mxu0
      %7840 = vmatprep.mubr.bf16.mxu0 0
      %7841 = vmatmul.mubr.bf16.gmra.mxu0 %v7666
      %v7842 = vpop.f32.mrf.mxu0
      %v7843 = vadd.f32 0.0, %v7842
      %v7844 = vpop.f32.mrf.mxu0
      %v7845 = vpop.f32.mrf.mxu0
      %v7846 = vadd.f32 0.0, %v7845
      %v7847 = vpop.f32.mrf.mxu0
      %7848 = vmatprep.mubr.bf16.mxu0 0
      %7849 = vmatmul.mubr.bf16.gmra.mxu0 %v7669
      %v7850 = vpop.f32.mrf.mxu0
      %v7851 = vadd.f32 0.0, %v7850
      %v7852 = vpop.f32.mrf.mxu0
      %v7853 = vpop.f32.mrf.mxu0
      %v7854 = vadd.f32 0.0, %v7853
      %v7855 = vpop.f32.mrf.mxu0
      %7856 = vmatprep.mubr.bf16.mxu0 0
      %7857 = vmatmul.mubr.bf16.gmra.mxu0 %v7672
      %v7858 = vpop.f32.mrf.mxu0
      %v7859 = vadd.f32 0.0, %v7858
      %v7860 = vpop.f32.mrf.mxu0
      %v7861 = vpop.f32.mrf.mxu0
      %v7862 = vadd.f32 0.0, %v7861
      %v7863 = vpop.f32.mrf.mxu0
      %7864 = vmatprep.mubr.bf16.mxu0 0
      %7865 = vmatmul.mubr.bf16.gmra.mxu0 %v7675
      %v7866 = vpop.f32.mrf.mxu0
      %v7867 = vadd.f32 0.0, %v7866
      %v7868 = vpop.f32.mrf.mxu0
      %v7869 = vpop.f32.mrf.mxu0
      %v7870 = vadd.f32 0.0, %v7869
      %v7871 = vpop.f32.mrf.mxu0
      %7872 = vmatprep.mubr.bf16.mxu0 0
      %7873 = vmatmul.mubr.bf16.gmra.mxu0 %v7678
      %v7874 = vpop.f32.mrf.mxu0
      %v7875 = vadd.f32 0.0, %v7874
      %v7876 = vpop.f32.mrf.mxu0
      %v7877 = vpop.f32.mrf.mxu0
      %v7878 = vpop.f32.mrf.mxu0
      %7879 = vdwg.mxu0
      %v7880 = vadd.f32 %v7518, %v7715
      %v7881 = vadd.f32 %v7519, %v7718
      %v7882 = vadd.f32 %v7520, %v7723
      %v7883 = vadd.f32 %v7521, %v7726
      %v7884 = vadd.f32 %v7522, %v7731
      %v7885 = vadd.f32 %v7523, %v7734
      %v7886 = vadd.f32 %v7524, %v7739
      %v7887 = vadd.f32 %v7525, %v7742
      %v7888 = vadd.f32 %v7526, %v7747
      %v7889 = vadd.f32 %v7527, %v7750
      %v7890 = vadd.f32 %v7528, %v7755
      %v7891 = vadd.f32 %v7529, %v7758
      %v7892 = vadd.f32 %v7530, %v7763
      %v7893 = vadd.f32 %v7531, %v7766
      %v7894 = vadd.f32 %v7532, %v7771
      %v7895 = vadd.f32 %v7533, %v7774
      %v7896 = vadd.f32 %v7534, %v7779
      %v7897 = vadd.f32 %v7535, %v7782
      %v7898 = vadd.f32 %v7536, %v7787
      %v7899 = vadd.f32 %v7537, %v7790
      %v7900 = vadd.f32 %v7538, %v7795
      %v7901 = vadd.f32 %v7539, %v7798
      %v7902 = vadd.f32 %v7540, %v7803
      %v7903 = vadd.f32 %v7541, %v7806
      %v7904 = vadd.f32 %v7542, %v7811
      %v7905 = vadd.f32 %v7543, %v7814
      %v7906 = vadd.f32 %v7544, %v7819
      %v7907 = vadd.f32 %v7545, %v7822
      %v7908 = vadd.f32 %v7546, %v7827
      %v7909 = vadd.f32 %v7547, %v7830
      %v7910 = vadd.f32 %v7548, %v7835
      %v7911 = vadd.f32 %v7549, %v7838
      %v7912 = vadd.f32 %v7550, %v7843
      %v7913 = vadd.f32 %v7551, %v7846
      %v7914 = vadd.f32 %v7552, %v7851
      %v7915 = vadd.f32 %v7553, %v7854
      %v7916 = vadd.f32 %v7554, %v7859
      %v7917 = vadd.f32 %v7555, %v7862
      %v7918 = vadd.f32 %v7556, %v7867
      %v7919 = vadd.f32 %v7557, %v7870
      %v7920 = vadd.f32 %v7558, %v7875
      %v7921 = vld [vmem:[%s4] sm:$0x1]
      %v7923 = vlaneseq
      %v7924 = vshrl.u32 %v7923, 7
      %v7925 = vsub.s32 0, %v7924
      %v7926 = vrot.slane %v7921, %v7925
      %v7928 = vadd.f32 %v7880, %v7926
      %v7929 = vadd.f32 %v7881, %v7926
      %v7930 = vadd.f32 %v7882, %v7926
      %v7931 = vadd.f32 %v7883, %v7926
      %v7932 = vadd.f32 %v7884, %v7926
      %v7933 = vadd.f32 %v7885, %v7926
      %v7934 = vadd.f32 %v7886, %v7926
      %v7935 = vadd.f32 %v7887, %v7926
      %v7936 = vadd.f32 %v7888, %v7926
      %v7937 = vadd.f32 %v7889, %v7926
      %v7938 = vadd.f32 %v7890, %v7926
      %v7939 = vadd.f32 %v7891, %v7926
      %v7940 = vadd.f32 %v7892, %v7926
      %v7941 = vadd.f32 %v7893, %v7926
      %v7942 = vadd.f32 %v7894, %v7926
      %v7943 = vadd.f32 %v7895, %v7926
      %v7944 = vadd.f32 %v7896, %v7926
      %v7945 = vadd.f32 %v7897, %v7926
      %v7946 = vadd.f32 %v7898, %v7926
      %v7947 = vadd.f32 %v7899, %v7926
      %v7948 = vadd.f32 %v7900, %v7926
      %v7949 = vadd.f32 %v7901, %v7926
      %v7950 = vadd.f32 %v7902, %v7926
      %v7951 = vadd.f32 %v7903, %v7926
      %v7952 = vadd.f32 %v7904, %v7926
      %v7953 = vadd.f32 %v7905, %v7926
      %v7954 = vadd.f32 %v7906, %v7926
      %v7955 = vadd.f32 %v7907, %v7926
      %v7956 = vadd.f32 %v7908, %v7926
      %v7957 = vadd.f32 %v7909, %v7926
      %v7958 = vadd.f32 %v7910, %v7926
      %v7959 = vadd.f32 %v7911, %v7926
      %v7960 = vadd.f32 %v7912, %v7926
      %v7961 = vadd.f32 %v7913, %v7926
      %v7962 = vadd.f32 %v7914, %v7926
      %v7963 = vadd.f32 %v7915, %v7926
      %v7964 = vadd.f32 %v7916, %v7926
      %v7965 = vadd.f32 %v7917, %v7926
      %v7966 = vadd.f32 %v7918, %v7926
      %v7967 = vadd.f32 %v7919, %v7926
      %v7968 = vadd.f32 %v7920, %v7926
      %v7969 = vld [vmem:[%s246 + $0x13] sm:$0xff]
      %v7970 = vld [vmem:[%s246 + $0x1b] sm:$0xff]
      %v7971 = vld [vmem:[%s246 + $0x23] sm:$0xff]
      %v7972 = vld [vmem:[%s246 + $0x2b] sm:$0xff]
      %v7973 = vld [vmem:[%s246 + $0x33] sm:$0xff]
      %v7974 = vld [vmem:[%s246 + $0x3b] sm:$0xff]
      %v7975 = vld [vmem:[%s246 + $0x43] sm:$0xff]
      %v7976 = vld [vmem:[%s246 + $0x4b] sm:$0xff]
      %v7977 = vld [vmem:[%s246 + $0x53] sm:$0xff]
      %v7978 = vld [vmem:[%s246 + $0x5b] sm:$0xff]
      %v7979 = vld [vmem:[%s246 + $0x63] sm:$0xff]
      %v7980 = vld [vmem:[%s246 + $0x6b] sm:$0xff]
      %v7981 = vld [vmem:[%s246 + $0x73] sm:$0xff]
      %v7982 = vld [vmem:[%s246 + $0x7b] sm:$0xff]
      %v7983 = vld [vmem:[%s246 + $0x83] sm:$0xff]
      %v7984 = vld [vmem:[%s246 + $0x8b] sm:$0xff]
      %v7985 = vld [vmem:[%s246 + $0x93] sm:$0xff]
      %v7986 = vld [vmem:[%s246 + $0x9b] sm:$0xff]
      %v7987 = vld [vmem:[%s246 + $0xa3] sm:$0xff]
      %v7988 = vld [vmem:[%s246 + $0xab] sm:$0xff]
      %v7989 = vld [vmem:[%s246 + $0xb3] sm:$0xff]
      %v7990 = vld [vmem:[%s246 + $0xbb] sm:$0xff]
      %v7991 = vld [vmem:[%s246 + $0xc3] sm:$0xff]
      %v7992 = vld [vmem:[%s246 + $0xcb] sm:$0xff]
      %v7993 = vld [vmem:[%s246 + $0xd3] sm:$0xff]
      %v7994 = vld [vmem:[%s246 + $0xdb] sm:$0xff]
      %v7995 = vld [vmem:[%s246 + $0xe3] sm:$0xff]
      %v7996 = vld [vmem:[%s246 + $0xeb] sm:$0xff]
      %v7997 = vld [vmem:[%s246 + $0xf3] sm:$0xff]
      %v7998 = vld [vmem:[%s246 + $0xfb] sm:$0xff]
      %v7999 = vld [vmem:[%s246 + $0x103] sm:$0xff]
      %v8000 = vld [vmem:[%s246 + $0x10b] sm:$0xff]
      %v8001 = vld [vmem:[%s246 + $0x113] sm:$0xff]
      %v8002 = vld [vmem:[%s246 + $0x11b] sm:$0xff]
      %v8003 = vld [vmem:[%s246 + $0x123] sm:$0xff]
      %v8004 = vld [vmem:[%s246 + $0x12b] sm:$0xff]
      %v8005 = vld [vmem:[%s246 + $0x133] sm:$0xff]
      %v8006 = vld [vmem:[%s246 + $0x13b] sm:$0xff]
      %v8007 = vld [vmem:[%s246 + $0x143] sm:$0xff]
      %v8008 = vld [vmem:[%s246 + $0x14b] sm:$0xff]
      %v8009 = vld [vmem:[%s246 + $0x153] sm:$0xf]
      %v8010 = vadd.f32 %v7928, %v7969
      %v8011 = vadd.f32 %v7929, %v7970
      %v8012 = vadd.f32 %v7930, %v7971
      %v8013 = vadd.f32 %v7931, %v7972
      %v8014 = vadd.f32 %v7932, %v7973
      %v8015 = vadd.f32 %v7933, %v7974
      %v8016 = vadd.f32 %v7934, %v7975
      %v8017 = vadd.f32 %v7935, %v7976
      %v8018 = vadd.f32 %v7936, %v7977
      %v8019 = vadd.f32 %v7937, %v7978
      %v8020 = vadd.f32 %v7938, %v7979
      %v8021 = vadd.f32 %v7939, %v7980
      %v8022 = vadd.f32 %v7940, %v7981
      %v8023 = vadd.f32 %v7941, %v7982
      %v8024 = vadd.f32 %v7942, %v7983
      %v8025 = vadd.f32 %v7943, %v7984
      %v8026 = vadd.f32 %v7944, %v7985
      %v8027 = vadd.f32 %v7945, %v7986
      %v8028 = vadd.f32 %v7946, %v7987
      %v8029 = vadd.f32 %v7947, %v7988
      %v8030 = vadd.f32 %v7948, %v7989
      %v8031 = vadd.f32 %v7949, %v7990
      %v8032 = vadd.f32 %v7950, %v7991
      %v8033 = vadd.f32 %v7951, %v7992
      %v8034 = vadd.f32 %v7952, %v7993
      %v8035 = vadd.f32 %v7953, %v7994
      %v8036 = vadd.f32 %v7954, %v7995
      %v8037 = vadd.f32 %v7955, %v7996
      %v8038 = vadd.f32 %v7956, %v7997
      %v8039 = vadd.f32 %v7957, %v7998
      %v8040 = vadd.f32 %v7958, %v7999
      %v8041 = vadd.f32 %v7959, %v8000
      %v8042 = vadd.f32 %v7960, %v8001
      %v8043 = vadd.f32 %v7961, %v8002
      %v8044 = vadd.f32 %v7962, %v8003
      %v8045 = vadd.f32 %v7963, %v8004
      %v8046 = vadd.f32 %v7964, %v8005
      %v8047 = vadd.f32 %v7965, %v8006
      %v8048 = vadd.f32 %v7966, %v8007
      %v8049 = vadd.f32 %v7967, %v8008
      %v8050 = vadd.f32 %v7968, %v8009
      %vm8051 = vcmp.ge.f32.partialorder %v8010, 0.0
      %vm8052 = vcmp.ge.f32.partialorder %v8011, 0.0
      %vm8053 = vcmp.ge.f32.partialorder %v8012, 0.0
      %vm8054 = vcmp.ge.f32.partialorder %v8013, 0.0
      %vm8055 = vcmp.ge.f32.partialorder %v8014, 0.0
      %vm8056 = vcmp.ge.f32.partialorder %v8015, 0.0
      %vm8057 = vcmp.ge.f32.partialorder %v8016, 0.0
      %vm8058 = vcmp.ge.f32.partialorder %v8017, 0.0
      %vm8059 = vcmp.ge.f32.partialorder %v8018, 0.0
      %vm8060 = vcmp.ge.f32.partialorder %v8019, 0.0
      %vm8061 = vcmp.ge.f32.partialorder %v8020, 0.0
      %vm8062 = vcmp.ge.f32.partialorder %v8021, 0.0
      %vm8063 = vcmp.ge.f32.partialorder %v8022, 0.0
      %vm8064 = vcmp.ge.f32.partialorder %v8023, 0.0
      %vm8065 = vcmp.ge.f32.partialorder %v8024, 0.0
      %vm8066 = vcmp.ge.f32.partialorder %v8025, 0.0
      %vm8067 = vcmp.ge.f32.partialorder %v8026, 0.0
      %vm8068 = vcmp.ge.f32.partialorder %v8027, 0.0
      %vm8069 = vcmp.ge.f32.partialorder %v8028, 0.0
      %vm8070 = vcmp.ge.f32.partialorder %v8029, 0.0
      %vm8071 = vcmp.ge.f32.partialorder %v8030, 0.0
      %vm8072 = vcmp.ge.f32.partialorder %v8031, 0.0
      %vm8073 = vcmp.ge.f32.partialorder %v8032, 0.0
      %vm8074 = vcmp.ge.f32.partialorder %v8033, 0.0
      %vm8075 = vcmp.ge.f32.partialorder %v8034, 0.0
      %vm8076 = vcmp.ge.f32.partialorder %v8035, 0.0
      %vm8077 = vcmp.ge.f32.partialorder %v8036, 0.0
      %vm8078 = vcmp.ge.f32.partialorder %v8037, 0.0
      %vm8079 = vcmp.ge.f32.partialorder %v8038, 0.0
      %vm8080 = vcmp.ge.f32.partialorder %v8039, 0.0
      %vm8081 = vcmp.ge.f32.partialorder %v8040, 0.0
      %vm8082 = vcmp.ge.f32.partialorder %v8041, 0.0
      %vm8083 = vcmp.ge.f32.partialorder %v8042, 0.0
      %vm8084 = vcmp.ge.f32.partialorder %v8043, 0.0
      %vm8085 = vcmp.ge.f32.partialorder %v8044, 0.0
      %vm8086 = vcmp.ge.f32.partialorder %v8045, 0.0
      %vm8087 = vcmp.ge.f32.partialorder %v8046, 0.0
      %vm8088 = vcmp.ge.f32.partialorder %v8047, 0.0
      %vm8089 = vcmp.ge.f32.partialorder %v8048, 0.0
      %vm8090 = vcmp.ge.f32.partialorder %v8049, 0.0
      %vm8091 = vcmp.ge.f32.partialorder %v8050, 0.0
      %v8092 = vmul.f32 %v8010, 0.1
      %v8093 = vmul.f32 %v8011, 0.1
      %v8094 = vmul.f32 %v8012, 0.1
      %v8095 = vmul.f32 %v8013, 0.1
      %v8096 = vmul.f32 %v8014, 0.1
      %v8097 = vmul.f32 %v8015, 0.1
      %v8098 = vmul.f32 %v8016, 0.1
      %v8099 = vmul.f32 %v8017, 0.1
      %v8100 = vmul.f32 %v8018, 0.1
      %v8101 = vmul.f32 %v8019, 0.1
      %v8102 = vmul.f32 %v8020, 0.1
      %v8103 = vmul.f32 %v8021, 0.1
      %v8104 = vmul.f32 %v8022, 0.1
      %v8105 = vmul.f32 %v8023, 0.1
      %v8106 = vmul.f32 %v8024, 0.1
      %v8107 = vmul.f32 %v8025, 0.1
      %v8108 = vmul.f32 %v8026, 0.1
      %v8109 = vmul.f32 %v8027, 0.1
      %v8110 = vmul.f32 %v8028, 0.1
      %v8111 = vmul.f32 %v8029, 0.1
      %v8112 = vmul.f32 %v8030, 0.1
      %v8113 = vmul.f32 %v8031, 0.1
      %v8114 = vmul.f32 %v8032, 0.1
      %v8115 = vmul.f32 %v8033, 0.1
      %v8116 = vmul.f32 %v8034, 0.1
      %v8117 = vmul.f32 %v8035, 0.1
      %v8118 = vmul.f32 %v8036, 0.1
      %v8119 = vmul.f32 %v8037, 0.1
      %v8120 = vmul.f32 %v8038, 0.1
      %v8121 = vmul.f32 %v8039, 0.1
      %v8122 = vmul.f32 %v8040, 0.1
      %v8123 = vmul.f32 %v8041, 0.1
      %v8124 = vmul.f32 %v8042, 0.1
      %v8125 = vmul.f32 %v8043, 0.1
      %v8126 = vmul.f32 %v8044, 0.1
      %v8127 = vmul.f32 %v8045, 0.1
      %v8128 = vmul.f32 %v8046, 0.1
      %v8129 = vmul.f32 %v8047, 0.1
      %v8130 = vmul.f32 %v8048, 0.1
      %v8131 = vmul.f32 %v8049, 0.1
      %v8132 = vmul.f32 %v8050, 0.1
      %v8133 = vsel %vm8051, %v8010, %v8092
      %v8134 = vsel %vm8052, %v8011, %v8093
      %v8135 = vsel %vm8053, %v8012, %v8094
      %v8136 = vsel %vm8054, %v8013, %v8095
      %v8137 = vsel %vm8055, %v8014, %v8096
      %v8138 = vsel %vm8056, %v8015, %v8097
      %v8139 = vsel %vm8057, %v8016, %v8098
      %v8140 = vsel %vm8058, %v8017, %v8099
      %v8141 = vsel %vm8059, %v8018, %v8100
      %v8142 = vsel %vm8060, %v8019, %v8101
      %v8143 = vsel %vm8061, %v8020, %v8102
      %v8144 = vsel %vm8062, %v8021, %v8103
      %v8145 = vsel %vm8063, %v8022, %v8104
      %v8146 = vsel %vm8064, %v8023, %v8105
      %v8147 = vsel %vm8065, %v8024, %v8106
      %v8148 = vsel %vm8066, %v8025, %v8107
      %v8149 = vsel %vm8067, %v8026, %v8108
      %v8150 = vsel %vm8068, %v8027, %v8109
      %v8151 = vsel %vm8069, %v8028, %v8110
      %v8152 = vsel %vm8070, %v8029, %v8111
      %v8153 = vsel %vm8071, %v8030, %v8112
      %v8154 = vsel %vm8072, %v8031, %v8113
      %v8155 = vsel %vm8073, %v8032, %v8114
      %v8156 = vsel %vm8074, %v8033, %v8115
      %v8157 = vsel %vm8075, %v8034, %v8116
      %v8158 = vsel %vm8076, %v8035, %v8117
      %v8159 = vsel %vm8077, %v8036, %v8118
      %v8160 = vsel %vm8078, %v8037, %v8119
      %v8161 = vsel %vm8079, %v8038, %v8120
      %v8162 = vsel %vm8080, %v8039, %v8121
      %v8163 = vsel %vm8081, %v8040, %v8122
      %v8164 = vsel %vm8082, %v8041, %v8123
      %v8165 = vsel %vm8083, %v8042, %v8124
      %v8166 = vsel %vm8084, %v8043, %v8125
      %v8167 = vsel %vm8085, %v8044, %v8126
      %v8168 = vsel %vm8086, %v8045, %v8127
      %v8169 = vsel %vm8087, %v8046, %v8128
      %v8170 = vsel %vm8088, %v8047, %v8129
      %v8171 = vsel %vm8089, %v8048, %v8130
      %v8172 = vsel %vm8090, %v8049, %v8131
      %v8173 = vsel %vm8091, %v8050, %v8132
      %8174 = vst.msk [vmem:[%s251] sm:$0xff] %vm511, %v8133
      %8175 = vst.msk [vmem:[%s251 + $0x8] sm:$0xff] %vm511, %v8134
      %8176 = vst.msk [vmem:[%s251 + $0x10] sm:$0xff] %vm511, %v8135
      %8177 = vst.msk [vmem:[%s251 + $0x18] sm:$0xff] %vm511, %v8136
      %8178 = vst.msk [vmem:[%s251 + $0x20] sm:$0xff] %vm511, %v8137
      %8179 = vst.msk [vmem:[%s251 + $0x28] sm:$0xff] %vm511, %v8138
      %8180 = vst.msk [vmem:[%s251 + $0x30] sm:$0xff] %vm511, %v8139
      %8181 = vst.msk [vmem:[%s251 + $0x38] sm:$0xff] %vm511, %v8140
      %8182 = vst.msk [vmem:[%s251 + $0x40] sm:$0xff] %vm511, %v8141
      %8183 = vst.msk [vmem:[%s251 + $0x48] sm:$0xff] %vm511, %v8142
      %8184 = vst.msk [vmem:[%s251 + $0x50] sm:$0xff] %vm511, %v8143
      %8185 = vst.msk [vmem:[%s251 + $0x58] sm:$0xff] %vm511, %v8144
      %8186 = vst.msk [vmem:[%s251 + $0x60] sm:$0xff] %vm511, %v8145
      %8187 = vst.msk [vmem:[%s251 + $0x68] sm:$0xff] %vm511, %v8146
      %8188 = vst.msk [vmem:[%s251 + $0x70] sm:$0xff] %vm511, %v8147
      %8189 = vst.msk [vmem:[%s251 + $0x78] sm:$0xff] %vm511, %v8148
      %8190 = vst.msk [vmem:[%s251 + $0x80] sm:$0xff] %vm511, %v8149
      %8191 = vst.msk [vmem:[%s251 + $0x88] sm:$0xff] %vm511, %v8150
      %8192 = vst.msk [vmem:[%s251 + $0x90] sm:$0xff] %vm511, %v8151
      %8193 = vst.msk [vmem:[%s251 + $0x98] sm:$0xff] %vm511, %v8152
      %8194 = vst.msk [vmem:[%s251 + $0xa0] sm:$0xff] %vm511, %v8153
      %8195 = vst.msk [vmem:[%s251 + $0xa8] sm:$0xff] %vm511, %v8154
      %8196 = vst.msk [vmem:[%s251 + $0xb0] sm:$0xff] %vm511, %v8155
      %8197 = vst.msk [vmem:[%s251 + $0xb8] sm:$0xff] %vm511, %v8156
      %8198 = vst.msk [vmem:[%s251 + $0xc0] sm:$0xff] %vm511, %v8157
      %8199 = vst.msk [vmem:[%s251 + $0xc8] sm:$0xff] %vm511, %v8158
      %8200 = vst.msk [vmem:[%s251 + $0xd0] sm:$0xff] %vm511, %v8159
      %8201 = vst.msk [vmem:[%s251 + $0xd8] sm:$0xff] %vm511, %v8160
      %8202 = vst.msk [vmem:[%s251 + $0xe0] sm:$0xff] %vm511, %v8161
      %8203 = vst.msk [vmem:[%s251 + $0xe8] sm:$0xff] %vm511, %v8162
      %8204 = vst.msk [vmem:[%s251 + $0xf0] sm:$0xff] %vm511, %v8163
      %8205 = vst.msk [vmem:[%s251 + $0xf8] sm:$0xff] %vm511, %v8164
      %8206 = vst.msk [vmem:[%s251 + $0x100] sm:$0xff] %vm511, %v8165
      %8207 = vst.msk [vmem:[%s251 + $0x108] sm:$0xff] %vm511, %v8166
      %8208 = vst.msk [vmem:[%s251 + $0x110] sm:$0xff] %vm511, %v8167
      %8209 = vst.msk [vmem:[%s251 + $0x118] sm:$0xff] %vm511, %v8168
      %8210 = vst.msk [vmem:[%s251 + $0x120] sm:$0xff] %vm511, %v8169
      %8211 = vst.msk [vmem:[%s251 + $0x128] sm:$0xff] %vm511, %v8170
      %8212 = vst.msk [vmem:[%s251 + $0x130] sm:$0xff] %vm511, %v8171
      %8213 = vst.msk [vmem:[%s251 + $0x138] sm:$0xff] %vm511, %v8172
      %8214 = vst.msk [vmem:[%s251 + $0x140] sm:$0xf] %vm3951, %v8173
      %p8215 = scmp.lt.s32.totalorder %s17, 1
      %s8216 = scalar_select %p8215, %s17, 1
      %s8217 = smul.addr %s8216, 41
      %s8218 = smul.addr %s8217, 8
      %s8219 = scalar_lea.vmem %s6, %s8218
      // Predicated region
      $region45: #{resblock_forward.1} parent=43 // pred_check
        %p8220 = pneg %p166
      $region46: #{resblock_forward.1} parent=43 // pred_check_branch
        %8222 = sbr.rel (%p8220) target = $region48
      $region47: #{resblock_forward.1} parent=43 // pred_region
        _
      $region48: #{resblock_forward.1} parent=43 // pred_fallthru
        _
    $region44: #{resblock_forward.1} parent=5 // pred_fallthru
      _
    %p8223 = scmp.le.s32.totalorder 2, %s12
    // Predicated region
    $region49: #{resblock_forward.1} parent=5 // pred_check
      %p8224 = pneg %p8223
    $region50: #{resblock_forward.1} parent=5 // pred_check_branch
      %8226 = sbr.rel (%p8224) target = $region52
    $region51: #{resblock_forward.1} parent=5 // pred_region
      %s8227 = ssub.s32 %s12, 2
      // Predicated region
      $region53: #{resblock_forward.1} parent=51 // pred_check
        %p8228 = pneg %p172
      $region54: #{resblock_forward.1} parent=51 // pred_check_branch
        %8230 = sbr.rel (%p8228) target = $region56
      $region55: #{resblock_forward.1} parent=51 // pred_region
        %p8231 = scmp.lt.s32.totalorder %s18, 1
        %s8232 = scalar_select %p8231, %s18, 1
        %s8233 = smul.addr %s8232, 41
        %s8234 = smul.addr %s8233, 8
        %s8235 = scalar_lea.vmem %s6, %s8234
      $region56: #{resblock_forward.1} parent=51 // pred_fallthru
        _
    $region52: #{resblock_forward.1} parent=5 // pred_fallthru
      _
  $region6: #{resblock_forward.1} parent=0 // loop_footer
    %s16 = sadd.s32 1, %s12
  $region7: #{resblock_forward.1} parent=0 // loop_footer_branch
    %11 = sbr.rel target = $region3
  $region8: #{resblock_forward.1} parent=0 // loop_exit
    _

</llo_original>
